<compile_context>
chip_gen: v7x
topology: tpu7x:2x2x1
jax: 0.10.0
libtpu: 0.0.40
codegen_flags: <defaults>
</compile_context>

<pallas_src>
import numpy as np
import jax
import jax.numpy as jnp
from jax import lax
from jax.experimental import pallas as pl
from jax.experimental.pallas import tpu as pltpu

BN_EPS = 1e-5
N_BATCH = 2
H0 = W0 = 16

# (C_in, C_out, stride) for the 9 conv layers of Encoder(depth=3).
LAYERS = [(3, 8, 1), (8, 8, 2), (8, 16, 1), (16, 16, 2), (16, 32, 1),
          (32, 32, 2), (32, 64, 1), (64, 64, 2), (64, 128, 1)]


def layer_geometry(h0, w0):
    geo, h, w = [], h0, w0
    for (ci, co, s) in LAYERS:
        ho = (h + 2 - 3) // s + 1
        wo = (w + 2 - 3) // s + 1
        geo.append(dict(Ci=ci, Co=co, s=s, Hi=h, Wi=w, Ho=ho, Wo=wo))
        h, w = ho, wo
    return geo


def init_params(key):
    """Mirror Encoder.weights_init: conv ~ N(0,0.02), BN gamma ~ N(0.5,0.02), beta=0."""
    params = []
    for (ci, co, _s) in LAYERS:
        key, kw_, kb, kg = jax.random.split(key, 4)
        w = 0.02 * jax.random.normal(kw_, (co, ci, 3, 3), jnp.float32)
        bound = 1.0 / np.sqrt(ci * 9)
        b = jax.random.uniform(kb, (co,), jnp.float32, -bound, bound)  # cancelled by BN
        gamma = 0.5 + 0.02 * jax.random.normal(kg, (co,), jnp.float32)
        beta = jnp.zeros((co,), jnp.float32)
        params.append((w, b, gamma, beta))
    return params


def build_kernel_operands(params, n, h0, w0):
    """Precompute (once) the per-layer R / B / A / gamma / beta matmul operands."""
    geo = layer_geometry(h0, w0)
    ops = []
    for (w, _b, gamma, beta), g in zip(params, geo):
        Ci, Co, s = g["Ci"], g["Co"], g["s"]
        Hi, Wi, Ho, Wo = g["Hi"], g["Wi"], g["Ho"], g["Wo"]
        w_np = np.asarray(w)  # (Co, Ci, 3, 3)

        # R[kh]: 0/1 row gather (vertical tap kh, stride s, zero-padding rows).
        R = np.zeros((3, n * Ho, n * Hi), np.float32)
        for kh in range(3):
            for b_ in range(n):
                for ho in range(Ho):
                    hi = s * ho + kh - 1
                    if 0 <= hi < Hi:
                        R[kh, b_ * Ho + ho, b_ * Hi + hi] = 1.0

        # B[kh]: block-Toeplitz conv weights for tap row kh
        #        (horizontal taps, stride s, zero-padding columns).
        B = np.zeros((3, Wi * Ci, Wo * Co), np.float32)
        for kh in range(3):
            for wo in range(Wo):
                for kw in range(3):
                    wi = s * wo + kw - 1
                    if 0 <= wi < Wi:
                        B[kh, wi * Ci:(wi + 1) * Ci, wo * Co:(wo + 1) * Co] = \
                            w_np[:, :, kh, kw].T
        # A: lane-space per-channel averaging matrix: (colsum @ A)[wo*Co+co]
        #    equals the per-channel batch mean broadcast over all wo positions.
        T = np.zeros((Wo * Co, Co), np.float32)
        for wo in range(Wo):
            for co in range(Co):
                T[wo * Co + co, co] = 1.0
        A = (T @ T.T) / float(n * Ho * Wo)

        gamma_l = np.tile(np.asarray(gamma), Wo).reshape(1, Wo * Co)
        beta_l = np.tile(np.asarray(beta), Wo).reshape(1, Wo * Co)

        ops.extend([jnp.asarray(R), jnp.asarray(B), jnp.asarray(A),
                    jnp.asarray(gamma_l), jnp.asarray(beta_l)])
    return ops, geo


def encoder_kernel(*refs):
    """Single fused kernel: 9 x (conv-as-matmuls + BN(train stats) + ReLU)."""
    x_ref, o_ref, p = refs[0], refs[-1], refs[1:-1]
    x = x_ref[...]                                    # (N*H0, W0*C0)
    for l in range(len(LAYERS)):
        r_ref, b_ref, a_ref, g_ref, bt_ref = p[5 * l:5 * l + 5]
        # Conv 3x3, pad=1, stride s:  y = sum_kh (R[kh] @ x) @ B[kh]
        y = None
        for kh in range(3):
            rows = jnp.dot(r_ref[kh], x, preferred_element_type=jnp.float32)
            yk = jnp.dot(rows, b_ref[kh], preferred_element_type=jnp.float32)
            y = yk if y is None else y + yk            # (N*Ho, Wo*Co)
        # BatchNorm2d (biased batch stats) folded to one FMA, then ReLU.
        m1 = jnp.dot(jnp.sum(y, axis=0, keepdims=True), a_ref[...],
                     preferred_element_type=jnp.float32)       # E[y]  per channel
        m2 = jnp.dot(jnp.sum(y * y, axis=0, keepdims=True), a_ref[...],
                     preferred_element_type=jnp.float32)       # E[y^2] per channel
        var = jnp.maximum(m2 - m1 * m1, 0.0)
        scale = g_ref[...] * lax.rsqrt(var + BN_EPS)
        shift = bt_ref[...] - m1 * scale
        x = jnp.maximum(y * scale + shift, 0.0)
    o_ref[...] = x                                     # (N, 128): lane-dense


def encoder_forward(x_nchw, kernel_ops, geo):
    """Full Encoder forward.  Interface is NCHW like PyTorch."""
    n, c, h, w = x_nchw.shape
    x2d = jnp.transpose(x_nchw, (0, 2, 3, 1)).reshape(n * h, w * c)
    gl = geo[-1]
    out2d = pl.pallas_call(
        encoder_kernel,
        out_shape=jax.ShapeDtypeStruct((n * gl["Ho"], gl["Wo"] * gl["Co"]),
                                       jnp.float32),
        in_specs=[pl.BlockSpec(memory_space=pltpu.MemorySpace.VMEM)]
                 * (1 + len(kernel_ops)),
        out_specs=pl.BlockSpec(memory_space=pltpu.MemorySpace.VMEM),
    )(x2d, *kernel_ops)
    out = out2d.reshape(n, gl["Ho"], gl["Wo"], gl["Co"])
    return jnp.transpose(out, (0, 3, 1, 2))            # -> NCHW


def encoder_reference(x_nchw, params):
    """Pure-JAX reference (conv WITH bias + train-mode BN + ReLU)."""
    x = x_nchw
    for (w, b, gamma, beta), (_ci, co, s) in zip(params, LAYERS):
        x = lax.conv_general_dilated(x, w, window_strides=(s, s),
                                     padding=((1, 1), (1, 1)),
                                     dimension_numbers=("NCHW", "OIHW", "NCHW"))
        x = x + b.reshape(1, co, 1, 1)
        mean = jnp.mean(x, axis=(0, 2, 3), keepdims=True)
        var = jnp.mean((x - mean) ** 2, axis=(0, 2, 3), keepdims=True)
        x = (x - mean) * lax.rsqrt(var + BN_EPS)
        x = x * gamma.reshape(1, co, 1, 1) + beta.reshape(1, co, 1, 1)
        x = jnp.maximum(x, 0.0)
    return x


if __name__ == "__main__":
    key = jax.random.PRNGKey(0)
    key, kx = jax.random.split(key)
    x = jax.random.normal(kx, (N_BATCH, 3, H0, W0), jnp.float32)
    params = init_params(key)
    kernel_ops, geo = build_kernel_operands(params, N_BATCH, H0, W0)

    fwd = jax.jit(lambda xx, ops: encoder_forward(xx, ops, geo))
    y = jax.block_until_ready(fwd(x, kernel_ops))

    assert y.shape == (N_BATCH, 128, 1, 1), y.shape   # four stride-2 convs: 16 -> 1
    assert bool(jnp.all(y >= 0.0))                    # final ReLU

    y_ref = jax.block_until_ready(encoder_reference(x, params))
    max_err = float(jnp.max(jnp.abs(y - y_ref)))
    assert max_err < 1e-2, f"max abs diff vs reference = {max_err}"

    print("KERNEL_OK")
</pallas_src>

<mosaic_0001>
module attributes {stable_mosaic.version = 11 : i64} {
  func.func @encoder_kernel(%arg0: memref<32x48xf32, #tpu.memory_space<vmem>>, %arg1: memref<3x32x32xf32, #tpu.memory_space<vmem>>, %arg2: memref<3x48x128xf32, #tpu.memory_space<vmem>>, %arg3: memref<128x128xf32, #tpu.memory_space<vmem>>, %arg4: memref<1x128xf32, #tpu.memory_space<vmem>>, %arg5: memref<1x128xf32, #tpu.memory_space<vmem>>, %arg6: memref<3x16x32xf32, #tpu.memory_space<vmem>>, %arg7: memref<3x128x64xf32, #tpu.memory_space<vmem>>, %arg8: memref<64x64xf32, #tpu.memory_space<vmem>>, %arg9: memref<1x64xf32, #tpu.memory_space<vmem>>, %arg10: memref<1x64xf32, #tpu.memory_space<vmem>>, %arg11: memref<3x16x16xf32, #tpu.memory_space<vmem>>, %arg12: memref<3x64x128xf32, #tpu.memory_space<vmem>>, %arg13: memref<128x128xf32, #tpu.memory_space<vmem>>, %arg14: memref<1x128xf32, #tpu.memory_space<vmem>>, %arg15: memref<1x128xf32, #tpu.memory_space<vmem>>, %arg16: memref<3x8x16xf32, #tpu.memory_space<vmem>>, %arg17: memref<3x128x64xf32, #tpu.memory_space<vmem>>, %arg18: memref<64x64xf32, #tpu.memory_space<vmem>>, %arg19: memref<1x64xf32, #tpu.memory_space<vmem>>, %arg20: memref<1x64xf32, #tpu.memory_space<vmem>>, %arg21: memref<3x8x8xf32, #tpu.memory_space<vmem>>, %arg22: memref<3x64x128xf32, #tpu.memory_space<vmem>>, %arg23: memref<128x128xf32, #tpu.memory_space<vmem>>, %arg24: memref<1x128xf32, #tpu.memory_space<vmem>>, %arg25: memref<1x128xf32, #tpu.memory_space<vmem>>, %arg26: memref<3x4x8xf32, #tpu.memory_space<vmem>>, %arg27: memref<3x128x64xf32, #tpu.memory_space<vmem>>, %arg28: memref<64x64xf32, #tpu.memory_space<vmem>>, %arg29: memref<1x64xf32, #tpu.memory_space<vmem>>, %arg30: memref<1x64xf32, #tpu.memory_space<vmem>>, %arg31: memref<3x4x4xf32, #tpu.memory_space<vmem>>, %arg32: memref<3x64x128xf32, #tpu.memory_space<vmem>>, %arg33: memref<128x128xf32, #tpu.memory_space<vmem>>, %arg34: memref<1x128xf32, #tpu.memory_space<vmem>>, %arg35: memref<1x128xf32, #tpu.memory_space<vmem>>, %arg36: memref<3x2x4xf32, #tpu.memory_space<vmem>>, %arg37: memref<3x128x64xf32, #tpu.memory_space<vmem>>, %arg38: memref<64x64xf32, #tpu.memory_space<vmem>>, %arg39: memref<1x64xf32, #tpu.memory_space<vmem>>, %arg40: memref<1x64xf32, #tpu.memory_space<vmem>>, %arg41: memref<3x2x2xf32, #tpu.memory_space<vmem>>, %arg42: memref<3x64x128xf32, #tpu.memory_space<vmem>>, %arg43: memref<128x128xf32, #tpu.memory_space<vmem>>, %arg44: memref<1x128xf32, #tpu.memory_space<vmem>>, %arg45: memref<1x128xf32, #tpu.memory_space<vmem>>, %arg46: memref<2x128xf32, #tpu.memory_space<vmem>>) attributes {dimension_semantics = [], scalar_prefetch = 0 : i64, scratch_operands = 0 : i64, tpu.core_type = #tpu.core_type<tc>} {
    %c0 = arith.constant 0 : index
    %c0_0 = arith.constant 0 : index
    %0 = vector.load %arg0[%c0, %c0_0] : memref<32x48xf32, #tpu.memory_space<vmem>>, vector<32x48xf32>
    %c0_1 = arith.constant 0 : index
    %c0_2 = arith.constant 0 : index
    %c0_3 = arith.constant 0 : index
    %1 = vector.load %arg1[%c0_1, %c0_2, %c0_3] : memref<3x32x32xf32, #tpu.memory_space<vmem>>, vector<1x32x32xf32>
    %2 = vector.shape_cast %1 : vector<1x32x32xf32> to vector<32x32xf32>
    %cst = arith.constant dense<0.000000e+00> : vector<32x48xf32>
    %3 = tpu.matmul %2, %0, %cst {dimension_numbers = #tpu.dot_dimension_numbers<[1], [0], [0], [1], [0, 0, 1, 1], [], []>} : vector<32x32xf32>, vector<32x48xf32>, vector<32x48xf32> -> vector<32x48xf32>
    %c0_4 = arith.constant 0 : index
    %c0_5 = arith.constant 0 : index
    %c0_6 = arith.constant 0 : index
    %4 = vector.load %arg2[%c0_4, %c0_5, %c0_6] : memref<3x48x128xf32, #tpu.memory_space<vmem>>, vector<1x48x128xf32>
    %5 = vector.shape_cast %4 : vector<1x48x128xf32> to vector<48x128xf32>
    %cst_7 = arith.constant dense<0.000000e+00> : vector<32x128xf32>
    %6 = tpu.matmul %3, %5, %cst_7 {dimension_numbers = #tpu.dot_dimension_numbers<[1], [0], [0], [1], [0, 0, 1, 1], [], []>} : vector<32x48xf32>, vector<48x128xf32>, vector<32x128xf32> -> vector<32x128xf32>
    %c1 = arith.constant 1 : index
    %c0_8 = arith.constant 0 : index
    %c0_9 = arith.constant 0 : index
    %7 = vector.load %arg1[%c1, %c0_8, %c0_9] : memref<3x32x32xf32, #tpu.memory_space<vmem>>, vector<1x32x32xf32>
    %8 = vector.shape_cast %7 : vector<1x32x32xf32> to vector<32x32xf32>
    %cst_10 = arith.constant dense<0.000000e+00> : vector<32x48xf32>
    %9 = tpu.matmul %8, %0, %cst_10 {dimension_numbers = #tpu.dot_dimension_numbers<[1], [0], [0], [1], [0, 0, 1, 1], [], []>} : vector<32x32xf32>, vector<32x48xf32>, vector<32x48xf32> -> vector<32x48xf32>
    %c1_11 = arith.constant 1 : index
    %c0_12 = arith.constant 0 : index
    %c0_13 = arith.constant 0 : index
    %10 = vector.load %arg2[%c1_11, %c0_12, %c0_13] : memref<3x48x128xf32, #tpu.memory_space<vmem>>, vector<1x48x128xf32>
    %11 = vector.shape_cast %10 : vector<1x48x128xf32> to vector<48x128xf32>
    %cst_14 = arith.constant dense<0.000000e+00> : vector<32x128xf32>
    %12 = tpu.matmul %9, %11, %cst_14 {dimension_numbers = #tpu.dot_dimension_numbers<[1], [0], [0], [1], [0, 0, 1, 1], [], []>} : vector<32x48xf32>, vector<48x128xf32>, vector<32x128xf32> -> vector<32x128xf32>
    %13 = arith.addf %6, %12 : vector<32x128xf32>
    %c2 = arith.constant 2 : index
    %c0_15 = arith.constant 0 : index
    %c0_16 = arith.constant 0 : index
    %14 = vector.load %arg1[%c2, %c0_15, %c0_16] : memref<3x32x32xf32, #tpu.memory_space<vmem>>, vector<1x32x32xf32>
    %15 = vector.shape_cast %14 : vector<1x32x32xf32> to vector<32x32xf32>
    %cst_17 = arith.constant dense<0.000000e+00> : vector<32x48xf32>
    %16 = tpu.matmul %15, %0, %cst_17 {dimension_numbers = #tpu.dot_dimension_numbers<[1], [0], [0], [1], [0, 0, 1, 1], [], []>} : vector<32x32xf32>, vector<32x48xf32>, vector<32x48xf32> -> vector<32x48xf32>
    %c2_18 = arith.constant 2 : index
    %c0_19 = arith.constant 0 : index
    %c0_20 = arith.constant 0 : index
    %17 = vector.load %arg2[%c2_18, %c0_19, %c0_20] : memref<3x48x128xf32, #tpu.memory_space<vmem>>, vector<1x48x128xf32>
    %18 = vector.shape_cast %17 : vector<1x48x128xf32> to vector<48x128xf32>
    %cst_21 = arith.constant dense<0.000000e+00> : vector<32x128xf32>
    %19 = tpu.matmul %16, %18, %cst_21 {dimension_numbers = #tpu.dot_dimension_numbers<[1], [0], [0], [1], [0, 0, 1, 1], [], []>} : vector<32x48xf32>, vector<48x128xf32>, vector<32x128xf32> -> vector<32x128xf32>
    %20 = arith.addf %13, %19 : vector<32x128xf32>
    %cst_22 = arith.constant dense<0.000000e+00> : vector<128xf32>
    %21 = vector.multi_reduction <add>, %20, %cst_22 [0] : vector<32x128xf32> to vector<128xf32>
    %22 = vector.shape_cast %21 : vector<128xf32> to vector<1x128xf32>
    %c0_23 = arith.constant 0 : index
    %c0_24 = arith.constant 0 : index
    %23 = vector.load %arg3[%c0_23, %c0_24] : memref<128x128xf32, #tpu.memory_space<vmem>>, vector<128x128xf32>
    %cst_25 = arith.constant dense<0.000000e+00> : vector<1x128xf32>
    %24 = tpu.matmul %22, %23, %cst_25 {dimension_numbers = #tpu.dot_dimension_numbers<[1], [0], [0], [1], [0, 0, 1, 1], [], []>} : vector<1x128xf32>, vector<128x128xf32>, vector<1x128xf32> -> vector<1x128xf32>
    %25 = arith.mulf %20, %20 : vector<32x128xf32>
    %cst_26 = arith.constant dense<0.000000e+00> : vector<128xf32>
    %26 = vector.multi_reduction <add>, %25, %cst_26 [0] : vector<32x128xf32> to vector<128xf32>
    %27 = vector.shape_cast %26 : vector<128xf32> to vector<1x128xf32>
    %c0_27 = arith.constant 0 : index
    %c0_28 = arith.constant 0 : index
    %28 = vector.load %arg3[%c0_27, %c0_28] : memref<128x128xf32, #tpu.memory_space<vmem>>, vector<128x128xf32>
    %cst_29 = arith.constant dense<0.000000e+00> : vector<1x128xf32>
    %29 = tpu.matmul %27, %28, %cst_29 {dimension_numbers = #tpu.dot_dimension_numbers<[1], [0], [0], [1], [0, 0, 1, 1], [], []>} : vector<1x128xf32>, vector<128x128xf32>, vector<1x128xf32> -> vector<1x128xf32>
    %30 = arith.mulf %24, %24 : vector<1x128xf32>
    %31 = arith.subf %29, %30 : vector<1x128xf32>
    %cst_30 = arith.constant 0.000000e+00 : f32
    %32 = vector.broadcast %cst_30 : f32 to vector<1x128xf32>
    %33 = arith.maximumf %31, %32 : vector<1x128xf32>
    %c0_31 = arith.constant 0 : index
    %c0_32 = arith.constant 0 : index
    %34 = vector.load %arg4[%c0_31, %c0_32] : memref<1x128xf32, #tpu.memory_space<vmem>>, vector<1x128xf32>
    %cst_33 = arith.constant 9.99999974E-6 : f32
    %35 = vector.broadcast %cst_33 : f32 to vector<1x128xf32>
    %36 = arith.addf %33, %35 : vector<1x128xf32>
    %37 = math.rsqrt %36 : vector<1x128xf32>
    %38 = arith.mulf %34, %37 : vector<1x128xf32>
    %c0_34 = arith.constant 0 : index
    %c0_35 = arith.constant 0 : index
    %39 = vector.load %arg5[%c0_34, %c0_35] : memref<1x128xf32, #tpu.memory_space<vmem>>, vector<1x128xf32>
    %40 = arith.mulf %24, %38 : vector<1x128xf32>
    %41 = arith.subf %39, %40 : vector<1x128xf32>
    %42 = vector.broadcast %38 : vector<1x128xf32> to vector<32x128xf32>
    %43 = arith.mulf %20, %42 : vector<32x128xf32>
    %44 = vector.broadcast %41 : vector<1x128xf32> to vector<32x128xf32>
    %45 = arith.addf %43, %44 : vector<32x128xf32>
    %cst_36 = arith.constant 0.000000e+00 : f32
    %46 = vector.broadcast %cst_36 : f32 to vector<32x128xf32>
    %47 = arith.maximumf %45, %46 : vector<32x128xf32>
    %c0_37 = arith.constant 0 : index
    %c0_38 = arith.constant 0 : index
    %c0_39 = arith.constant 0 : index
    %48 = vector.load %arg6[%c0_37, %c0_38, %c0_39] : memref<3x16x32xf32, #tpu.memory_space<vmem>>, vector<1x16x32xf32>
    %49 = vector.shape_cast %48 : vector<1x16x32xf32> to vector<16x32xf32>
    %cst_40 = arith.constant dense<0.000000e+00> : vector<16x128xf32>
    %50 = tpu.matmul %49, %47, %cst_40 {dimension_numbers = #tpu.dot_dimension_numbers<[1], [0], [0], [1], [0, 0, 1, 1], [], []>} : vector<16x32xf32>, vector<32x128xf32>, vector<16x128xf32> -> vector<16x128xf32>
    %c0_41 = arith.constant 0 : index
    %c0_42 = arith.constant 0 : index
    %c0_43 = arith.constant 0 : index
    %51 = vector.load %arg7[%c0_41, %c0_42, %c0_43] : memref<3x128x64xf32, #tpu.memory_space<vmem>>, vector<1x128x64xf32>
    %52 = vector.shape_cast %51 : vector<1x128x64xf32> to vector<128x64xf32>
    %cst_44 = arith.constant dense<0.000000e+00> : vector<16x64xf32>
    %53 = tpu.matmul %50, %52, %cst_44 {dimension_numbers = #tpu.dot_dimension_numbers<[1], [0], [0], [1], [0, 0, 1, 1], [], []>} : vector<16x128xf32>, vector<128x64xf32>, vector<16x64xf32> -> vector<16x64xf32>
    %c1_45 = arith.constant 1 : index
    %c0_46 = arith.constant 0 : index
    %c0_47 = arith.constant 0 : index
    %54 = vector.load %arg6[%c1_45, %c0_46, %c0_47] : memref<3x16x32xf32, #tpu.memory_space<vmem>>, vector<1x16x32xf32>
    %55 = vector.shape_cast %54 : vector<1x16x32xf32> to vector<16x32xf32>
    %cst_48 = arith.constant dense<0.000000e+00> : vector<16x128xf32>
    %56 = tpu.matmul %55, %47, %cst_48 {dimension_numbers = #tpu.dot_dimension_numbers<[1], [0], [0], [1], [0, 0, 1, 1], [], []>} : vector<16x32xf32>, vector<32x128xf32>, vector<16x128xf32> -> vector<16x128xf32>
    %c1_49 = arith.constant 1 : index
    %c0_50 = arith.constant 0 : index
    %c0_51 = arith.constant 0 : index
    %57 = vector.load %arg7[%c1_49, %c0_50, %c0_51] : memref<3x128x64xf32, #tpu.memory_space<vmem>>, vector<1x128x64xf32>
    %58 = vector.shape_cast %57 : vector<1x128x64xf32> to vector<128x64xf32>
    %cst_52 = arith.constant dense<0.000000e+00> : vector<16x64xf32>
    %59 = tpu.matmul %56, %58, %cst_52 {dimension_numbers = #tpu.dot_dimension_numbers<[1], [0], [0], [1], [0, 0, 1, 1], [], []>} : vector<16x128xf32>, vector<128x64xf32>, vector<16x64xf32> -> vector<16x64xf32>
    %60 = arith.addf %53, %59 : vector<16x64xf32>
    %c2_53 = arith.constant 2 : index
    %c0_54 = arith.constant 0 : index
    %c0_55 = arith.constant 0 : index
    %61 = vector.load %arg6[%c2_53, %c0_54, %c0_55] : memref<3x16x32xf32, #tpu.memory_space<vmem>>, vector<1x16x32xf32>
    %62 = vector.shape_cast %61 : vector<1x16x32xf32> to vector<16x32xf32>
    %cst_56 = arith.constant dense<0.000000e+00> : vector<16x128xf32>
    %63 = tpu.matmul %62, %47, %cst_56 {dimension_numbers = #tpu.dot_dimension_numbers<[1], [0], [0], [1], [0, 0, 1, 1], [], []>} : vector<16x32xf32>, vector<32x128xf32>, vector<16x128xf32> -> vector<16x128xf32>
    %c2_57 = arith.constant 2 : index
    %c0_58 = arith.constant 0 : index
    %c0_59 = arith.constant 0 : index
    %64 = vector.load %arg7[%c2_57, %c0_58, %c0_59] : memref<3x128x64xf32, #tpu.memory_space<vmem>>, vector<1x128x64xf32>
    %65 = vector.shape_cast %64 : vector<1x128x64xf32> to vector<128x64xf32>
    %cst_60 = arith.constant dense<0.000000e+00> : vector<16x64xf32>
    %66 = tpu.matmul %63, %65, %cst_60 {dimension_numbers = #tpu.dot_dimension_numbers<[1], [0], [0], [1], [0, 0, 1, 1], [], []>} : vector<16x128xf32>, vector<128x64xf32>, vector<16x64xf32> -> vector<16x64xf32>
    %67 = arith.addf %60, %66 : vector<16x64xf32>
    %cst_61 = arith.constant dense<0.000000e+00> : vector<64xf32>
    %68 = vector.multi_reduction <add>, %67, %cst_61 [0] : vector<16x64xf32> to vector<64xf32>
    %69 = vector.shape_cast %68 : vector<64xf32> to vector<1x64xf32>
    %c0_62 = arith.constant 0 : index
    %c0_63 = arith.constant 0 : index
    %70 = vector.load %arg8[%c0_62, %c0_63] : memref<64x64xf32, #tpu.memory_space<vmem>>, vector<64x64xf32>
    %cst_64 = arith.constant dense<0.000000e+00> : vector<1x64xf32>
    %71 = tpu.matmul %69, %70, %cst_64 {dimension_numbers = #tpu.dot_dimension_numbers<[1], [0], [0], [1], [0, 0, 1, 1], [], []>} : vector<1x64xf32>, vector<64x64xf32>, vector<1x64xf32> -> vector<1x64xf32>
    %72 = arith.mulf %67, %67 : vector<16x64xf32>
    %cst_65 = arith.constant dense<0.000000e+00> : vector<64xf32>
    %73 = vector.multi_reduction <add>, %72, %cst_65 [0] : vector<16x64xf32> to vector<64xf32>
    %74 = vector.shape_cast %73 : vector<64xf32> to vector<1x64xf32>
    %c0_66 = arith.constant 0 : index
    %c0_67 = arith.constant 0 : index
    %75 = vector.load %arg8[%c0_66, %c0_67] : memref<64x64xf32, #tpu.memory_space<vmem>>, vector<64x64xf32>
    %cst_68 = arith.constant dense<0.000000e+00> : vector<1x64xf32>
    %76 = tpu.matmul %74, %75, %cst_68 {dimension_numbers = #tpu.dot_dimension_numbers<[1], [0], [0], [1], [0, 0, 1, 1], [], []>} : vector<1x64xf32>, vector<64x64xf32>, vector<1x64xf32> -> vector<1x64xf32>
    %77 = arith.mulf %71, %71 : vector<1x64xf32>
    %78 = arith.subf %76, %77 : vector<1x64xf32>
    %cst_69 = arith.constant 0.000000e+00 : f32
    %79 = vector.broadcast %cst_69 : f32 to vector<1x64xf32>
    %80 = arith.maximumf %78, %79 : vector<1x64xf32>
    %c0_70 = arith.constant 0 : index
    %c0_71 = arith.constant 0 : index
    %81 = vector.load %arg9[%c0_70, %c0_71] : memref<1x64xf32, #tpu.memory_space<vmem>>, vector<1x64xf32>
    %cst_72 = arith.constant 9.99999974E-6 : f32
    %82 = vector.broadcast %cst_72 : f32 to vector<1x64xf32>
    %83 = arith.addf %80, %82 : vector<1x64xf32>
    %84 = math.rsqrt %83 : vector<1x64xf32>
    %85 = arith.mulf %81, %84 : vector<1x64xf32>
    %c0_73 = arith.constant 0 : index
    %c0_74 = arith.constant 0 : index
    %86 = vector.load %arg10[%c0_73, %c0_74] : memref<1x64xf32, #tpu.memory_space<vmem>>, vector<1x64xf32>
    %87 = arith.mulf %71, %85 : vector<1x64xf32>
    %88 = arith.subf %86, %87 : vector<1x64xf32>
    %89 = vector.broadcast %85 : vector<1x64xf32> to vector<16x64xf32>
    %90 = arith.mulf %67, %89 : vector<16x64xf32>
    %91 = vector.broadcast %88 : vector<1x64xf32> to vector<16x64xf32>
    %92 = arith.addf %90, %91 : vector<16x64xf32>
    %cst_75 = arith.constant 0.000000e+00 : f32
    %93 = vector.broadcast %cst_75 : f32 to vector<16x64xf32>
    %94 = arith.maximumf %92, %93 : vector<16x64xf32>
    %c0_76 = arith.constant 0 : index
    %c0_77 = arith.constant 0 : index
    %c0_78 = arith.constant 0 : index
    %95 = vector.load %arg11[%c0_76, %c0_77, %c0_78] : memref<3x16x16xf32, #tpu.memory_space<vmem>>, vector<1x16x16xf32>
    %96 = vector.shape_cast %95 : vector<1x16x16xf32> to vector<16x16xf32>
    %cst_79 = arith.constant dense<0.000000e+00> : vector<16x64xf32>
    %97 = tpu.matmul %96, %94, %cst_79 {dimension_numbers = #tpu.dot_dimension_numbers<[1], [0], [0], [1], [0, 0, 1, 1], [], []>} : vector<16x16xf32>, vector<16x64xf32>, vector<16x64xf32> -> vector<16x64xf32>
    %c0_80 = arith.constant 0 : index
    %c0_81 = arith.constant 0 : index
    %c0_82 = arith.constant 0 : index
    %98 = vector.load %arg12[%c0_80, %c0_81, %c0_82] : memref<3x64x128xf32, #tpu.memory_space<vmem>>, vector<1x64x128xf32>
    %99 = vector.shape_cast %98 : vector<1x64x128xf32> to vector<64x128xf32>
    %cst_83 = arith.constant dense<0.000000e+00> : vector<16x128xf32>
    %100 = tpu.matmul %97, %99, %cst_83 {dimension_numbers = #tpu.dot_dimension_numbers<[1], [0], [0], [1], [0, 0, 1, 1], [], []>} : vector<16x64xf32>, vector<64x128xf32>, vector<16x128xf32> -> vector<16x128xf32>
    %c1_84 = arith.constant 1 : index
    %c0_85 = arith.constant 0 : index
    %c0_86 = arith.constant 0 : index
    %101 = vector.load %arg11[%c1_84, %c0_85, %c0_86] : memref<3x16x16xf32, #tpu.memory_space<vmem>>, vector<1x16x16xf32>
    %102 = vector.shape_cast %101 : vector<1x16x16xf32> to vector<16x16xf32>
    %cst_87 = arith.constant dense<0.000000e+00> : vector<16x64xf32>
    %103 = tpu.matmul %102, %94, %cst_87 {dimension_numbers = #tpu.dot_dimension_numbers<[1], [0], [0], [1], [0, 0, 1, 1], [], []>} : vector<16x16xf32>, vector<16x64xf32>, vector<16x64xf32> -> vector<16x64xf32>
    %c1_88 = arith.constant 1 : index
    %c0_89 = arith.constant 0 : index
    %c0_90 = arith.constant 0 : index
    %104 = vector.load %arg12[%c1_88, %c0_89, %c0_90] : memref<3x64x128xf32, #tpu.memory_space<vmem>>, vector<1x64x128xf32>
    %105 = vector.shape_cast %104 : vector<1x64x128xf32> to vector<64x128xf32>
    %cst_91 = arith.constant dense<0.000000e+00> : vector<16x128xf32>
    %106 = tpu.matmul %103, %105, %cst_91 {dimension_numbers = #tpu.dot_dimension_numbers<[1], [0], [0], [1], [0, 0, 1, 1], [], []>} : vector<16x64xf32>, vector<64x128xf32>, vector<16x128xf32> -> vector<16x128xf32>
    %107 = arith.addf %100, %106 : vector<16x128xf32>
    %c2_92 = arith.constant 2 : index
    %c0_93 = arith.constant 0 : index
    %c0_94 = arith.constant 0 : index
    %108 = vector.load %arg11[%c2_92, %c0_93, %c0_94] : memref<3x16x16xf32, #tpu.memory_space<vmem>>, vector<1x16x16xf32>
    %109 = vector.shape_cast %108 : vector<1x16x16xf32> to vector<16x16xf32>
    %cst_95 = arith.constant dense<0.000000e+00> : vector<16x64xf32>
    %110 = tpu.matmul %109, %94, %cst_95 {dimension_numbers = #tpu.dot_dimension_numbers<[1], [0], [0], [1], [0, 0, 1, 1], [], []>} : vector<16x16xf32>, vector<16x64xf32>, vector<16x64xf32> -> vector<16x64xf32>
    %c2_96 = arith.constant 2 : index
    %c0_97 = arith.constant 0 : index
    %c0_98 = arith.constant 0 : index
    %111 = vector.load %arg12[%c2_96, %c0_97, %c0_98] : memref<3x64x128xf32, #tpu.memory_space<vmem>>, vector<1x64x128xf32>
    %112 = vector.shape_cast %111 : vector<1x64x128xf32> to vector<64x128xf32>
    %cst_99 = arith.constant dense<0.000000e+00> : vector<16x128xf32>
    %113 = tpu.matmul %110, %112, %cst_99 {dimension_numbers = #tpu.dot_dimension_numbers<[1], [0], [0], [1], [0, 0, 1, 1], [], []>} : vector<16x64xf32>, vector<64x128xf32>, vector<16x128xf32> -> vector<16x128xf32>
    %114 = arith.addf %107, %113 : vector<16x128xf32>
    %cst_100 = arith.constant dense<0.000000e+00> : vector<128xf32>
    %115 = vector.multi_reduction <add>, %114, %cst_100 [0] : vector<16x128xf32> to vector<128xf32>
    %116 = vector.shape_cast %115 : vector<128xf32> to vector<1x128xf32>
    %c0_101 = arith.constant 0 : index
    %c0_102 = arith.constant 0 : index
    %117 = vector.load %arg13[%c0_101, %c0_102] : memref<128x128xf32, #tpu.memory_space<vmem>>, vector<128x128xf32>
    %cst_103 = arith.constant dense<0.000000e+00> : vector<1x128xf32>
    %118 = tpu.matmul %116, %117, %cst_103 {dimension_numbers = #tpu.dot_dimension_numbers<[1], [0], [0], [1], [0, 0, 1, 1], [], []>} : vector<1x128xf32>, vector<128x128xf32>, vector<1x128xf32> -> vector<1x128xf32>
    %119 = arith.mulf %114, %114 : vector<16x128xf32>
    %cst_104 = arith.constant dense<0.000000e+00> : vector<128xf32>
    %120 = vector.multi_reduction <add>, %119, %cst_104 [0] : vector<16x128xf32> to vector<128xf32>
    %121 = vector.shape_cast %120 : vector<128xf32> to vector<1x128xf32>
    %c0_105 = arith.constant 0 : index
    %c0_106 = arith.constant 0 : index
    %122 = vector.load %arg13[%c0_105, %c0_106] : memref<128x128xf32, #tpu.memory_space<vmem>>, vector<128x128xf32>
    %cst_107 = arith.constant dense<0.000000e+00> : vector<1x128xf32>
    %123 = tpu.matmul %121, %122, %cst_107 {dimension_numbers = #tpu.dot_dimension_numbers<[1], [0], [0], [1], [0, 0, 1, 1], [], []>} : vector<1x128xf32>, vector<128x128xf32>, vector<1x128xf32> -> vector<1x128xf32>
    %124 = arith.mulf %118, %118 : vector<1x128xf32>
    %125 = arith.subf %123, %124 : vector<1x128xf32>
    %cst_108 = arith.constant 0.000000e+00 : f32
    %126 = vector.broadcast %cst_108 : f32 to vector<1x128xf32>
    %127 = arith.maximumf %125, %126 : vector<1x128xf32>
    %c0_109 = arith.constant 0 : index
    %c0_110 = arith.constant 0 : index
    %128 = vector.load %arg14[%c0_109, %c0_110] : memref<1x128xf32, #tpu.memory_space<vmem>>, vector<1x128xf32>
    %cst_111 = arith.constant 9.99999974E-6 : f32
    %129 = vector.broadcast %cst_111 : f32 to vector<1x128xf32>
    %130 = arith.addf %127, %129 : vector<1x128xf32>
    %131 = math.rsqrt %130 : vector<1x128xf32>
    %132 = arith.mulf %128, %131 : vector<1x128xf32>
    %c0_112 = arith.constant 0 : index
    %c0_113 = arith.constant 0 : index
    %133 = vector.load %arg15[%c0_112, %c0_113] : memref<1x128xf32, #tpu.memory_space<vmem>>, vector<1x128xf32>
    %134 = arith.mulf %118, %132 : vector<1x128xf32>
    %135 = arith.subf %133, %134 : vector<1x128xf32>
    %136 = vector.broadcast %132 : vector<1x128xf32> to vector<16x128xf32>
    %137 = arith.mulf %114, %136 : vector<16x128xf32>
    %138 = vector.broadcast %135 : vector<1x128xf32> to vector<16x128xf32>
    %139 = arith.addf %137, %138 : vector<16x128xf32>
    %cst_114 = arith.constant 0.000000e+00 : f32
    %140 = vector.broadcast %cst_114 : f32 to vector<16x128xf32>
    %141 = arith.maximumf %139, %140 : vector<16x128xf32>
    %c0_115 = arith.constant 0 : index
    %c0_116 = arith.constant 0 : index
    %c0_117 = arith.constant 0 : index
    %142 = vector.load %arg16[%c0_115, %c0_116, %c0_117] : memref<3x8x16xf32, #tpu.memory_space<vmem>>, vector<1x8x16xf32>
    %143 = vector.shape_cast %142 : vector<1x8x16xf32> to vector<8x16xf32>
    %cst_118 = arith.constant dense<0.000000e+00> : vector<8x128xf32>
    %144 = tpu.matmul %143, %141, %cst_118 {dimension_numbers = #tpu.dot_dimension_numbers<[1], [0], [0], [1], [0, 0, 1, 1], [], []>} : vector<8x16xf32>, vector<16x128xf32>, vector<8x128xf32> -> vector<8x128xf32>
    %c0_119 = arith.constant 0 : index
    %c0_120 = arith.constant 0 : index
    %c0_121 = arith.constant 0 : index
    %145 = vector.load %arg17[%c0_119, %c0_120, %c0_121] : memref<3x128x64xf32, #tpu.memory_space<vmem>>, vector<1x128x64xf32>
    %146 = vector.shape_cast %145 : vector<1x128x64xf32> to vector<128x64xf32>
    %cst_122 = arith.constant dense<0.000000e+00> : vector<8x64xf32>
    %147 = tpu.matmul %144, %146, %cst_122 {dimension_numbers = #tpu.dot_dimension_numbers<[1], [0], [0], [1], [0, 0, 1, 1], [], []>} : vector<8x128xf32>, vector<128x64xf32>, vector<8x64xf32> -> vector<8x64xf32>
    %c1_123 = arith.constant 1 : index
    %c0_124 = arith.constant 0 : index
    %c0_125 = arith.constant 0 : index
    %148 = vector.load %arg16[%c1_123, %c0_124, %c0_125] : memref<3x8x16xf32, #tpu.memory_space<vmem>>, vector<1x8x16xf32>
    %149 = vector.shape_cast %148 : vector<1x8x16xf32> to vector<8x16xf32>
    %cst_126 = arith.constant dense<0.000000e+00> : vector<8x128xf32>
    %150 = tpu.matmul %149, %141, %cst_126 {dimension_numbers = #tpu.dot_dimension_numbers<[1], [0], [0], [1], [0, 0, 1, 1], [], []>} : vector<8x16xf32>, vector<16x128xf32>, vector<8x128xf32> -> vector<8x128xf32>
    %c1_127 = arith.constant 1 : index
    %c0_128 = arith.constant 0 : index
    %c0_129 = arith.constant 0 : index
    %151 = vector.load %arg17[%c1_127, %c0_128, %c0_129] : memref<3x128x64xf32, #tpu.memory_space<vmem>>, vector<1x128x64xf32>
    %152 = vector.shape_cast %151 : vector<1x128x64xf32> to vector<128x64xf32>
    %cst_130 = arith.constant dense<0.000000e+00> : vector<8x64xf32>
    %153 = tpu.matmul %150, %152, %cst_130 {dimension_numbers = #tpu.dot_dimension_numbers<[1], [0], [0], [1], [0, 0, 1, 1], [], []>} : vector<8x128xf32>, vector<128x64xf32>, vector<8x64xf32> -> vector<8x64xf32>
    %154 = arith.addf %147, %153 : vector<8x64xf32>
    %c2_131 = arith.constant 2 : index
    %c0_132 = arith.constant 0 : index
    %c0_133 = arith.constant 0 : index
    %155 = vector.load %arg16[%c2_131, %c0_132, %c0_133] : memref<3x8x16xf32, #tpu.memory_space<vmem>>, vector<1x8x16xf32>
    %156 = vector.shape_cast %155 : vector<1x8x16xf32> to vector<8x16xf32>
    %cst_134 = arith.constant dense<0.000000e+00> : vector<8x128xf32>
    %157 = tpu.matmul %156, %141, %cst_134 {dimension_numbers = #tpu.dot_dimension_numbers<[1], [0], [0], [1], [0, 0, 1, 1], [], []>} : vector<8x16xf32>, vector<16x128xf32>, vector<8x128xf32> -> vector<8x128xf32>
    %c2_135 = arith.constant 2 : index
    %c0_136 = arith.constant 0 : index
    %c0_137 = arith.constant 0 : index
    %158 = vector.load %arg17[%c2_135, %c0_136, %c0_137] : memref<3x128x64xf32, #tpu.memory_space<vmem>>, vector<1x128x64xf32>
    %159 = vector.shape_cast %158 : vector<1x128x64xf32> to vector<128x64xf32>
    %cst_138 = arith.constant dense<0.000000e+00> : vector<8x64xf32>
    %160 = tpu.matmul %157, %159, %cst_138 {dimension_numbers = #tpu.dot_dimension_numbers<[1], [0], [0], [1], [0, 0, 1, 1], [], []>} : vector<8x128xf32>, vector<128x64xf32>, vector<8x64xf32> -> vector<8x64xf32>
    %161 = arith.addf %154, %160 : vector<8x64xf32>
    %cst_139 = arith.constant dense<0.000000e+00> : vector<64xf32>
    %162 = vector.multi_reduction <add>, %161, %cst_139 [0] : vector<8x64xf32> to vector<64xf32>
    %163 = vector.shape_cast %162 : vector<64xf32> to vector<1x64xf32>
    %c0_140 = arith.constant 0 : index
    %c0_141 = arith.constant 0 : index
    %164 = vector.load %arg18[%c0_140, %c0_141] : memref<64x64xf32, #tpu.memory_space<vmem>>, vector<64x64xf32>
    %cst_142 = arith.constant dense<0.000000e+00> : vector<1x64xf32>
    %165 = tpu.matmul %163, %164, %cst_142 {dimension_numbers = #tpu.dot_dimension_numbers<[1], [0], [0], [1], [0, 0, 1, 1], [], []>} : vector<1x64xf32>, vector<64x64xf32>, vector<1x64xf32> -> vector<1x64xf32>
    %166 = arith.mulf %161, %161 : vector<8x64xf32>
    %cst_143 = arith.constant dense<0.000000e+00> : vector<64xf32>
    %167 = vector.multi_reduction <add>, %166, %cst_143 [0] : vector<8x64xf32> to vector<64xf32>
    %168 = vector.shape_cast %167 : vector<64xf32> to vector<1x64xf32>
    %c0_144 = arith.constant 0 : index
    %c0_145 = arith.constant 0 : index
    %169 = vector.load %arg18[%c0_144, %c0_145] : memref<64x64xf32, #tpu.memory_space<vmem>>, vector<64x64xf32>
    %cst_146 = arith.constant dense<0.000000e+00> : vector<1x64xf32>
    %170 = tpu.matmul %168, %169, %cst_146 {dimension_numbers = #tpu.dot_dimension_numbers<[1], [0], [0], [1], [0, 0, 1, 1], [], []>} : vector<1x64xf32>, vector<64x64xf32>, vector<1x64xf32> -> vector<1x64xf32>
    %171 = arith.mulf %165, %165 : vector<1x64xf32>
    %172 = arith.subf %170, %171 : vector<1x64xf32>
    %cst_147 = arith.constant 0.000000e+00 : f32
    %173 = vector.broadcast %cst_147 : f32 to vector<1x64xf32>
    %174 = arith.maximumf %172, %173 : vector<1x64xf32>
    %c0_148 = arith.constant 0 : index
    %c0_149 = arith.constant 0 : index
    %175 = vector.load %arg19[%c0_148, %c0_149] : memref<1x64xf32, #tpu.memory_space<vmem>>, vector<1x64xf32>
    %cst_150 = arith.constant 9.99999974E-6 : f32
    %176 = vector.broadcast %cst_150 : f32 to vector<1x64xf32>
    %177 = arith.addf %174, %176 : vector<1x64xf32>
    %178 = math.rsqrt %177 : vector<1x64xf32>
    %179 = arith.mulf %175, %178 : vector<1x64xf32>
    %c0_151 = arith.constant 0 : index
    %c0_152 = arith.constant 0 : index
    %180 = vector.load %arg20[%c0_151, %c0_152] : memref<1x64xf32, #tpu.memory_space<vmem>>, vector<1x64xf32>
    %181 = arith.mulf %165, %179 : vector<1x64xf32>
    %182 = arith.subf %180, %181 : vector<1x64xf32>
    %183 = vector.broadcast %179 : vector<1x64xf32> to vector<8x64xf32>
    %184 = arith.mulf %161, %183 : vector<8x64xf32>
    %185 = vector.broadcast %182 : vector<1x64xf32> to vector<8x64xf32>
    %186 = arith.addf %184, %185 : vector<8x64xf32>
    %cst_153 = arith.constant 0.000000e+00 : f32
    %187 = vector.broadcast %cst_153 : f32 to vector<8x64xf32>
    %188 = arith.maximumf %186, %187 : vector<8x64xf32>
    %c0_154 = arith.constant 0 : index
    %c0_155 = arith.constant 0 : index
    %c0_156 = arith.constant 0 : index
    %189 = vector.load %arg21[%c0_154, %c0_155, %c0_156] : memref<3x8x8xf32, #tpu.memory_space<vmem>>, vector<1x8x8xf32>
    %190 = vector.shape_cast %189 : vector<1x8x8xf32> to vector<8x8xf32>
    %cst_157 = arith.constant dense<0.000000e+00> : vector<8x64xf32>
    %191 = tpu.matmul %190, %188, %cst_157 {dimension_numbers = #tpu.dot_dimension_numbers<[1], [0], [0], [1], [0, 0, 1, 1], [], []>} : vector<8x8xf32>, vector<8x64xf32>, vector<8x64xf32> -> vector<8x64xf32>
    %c0_158 = arith.constant 0 : index
    %c0_159 = arith.constant 0 : index
    %c0_160 = arith.constant 0 : index
    %192 = vector.load %arg22[%c0_158, %c0_159, %c0_160] : memref<3x64x128xf32, #tpu.memory_space<vmem>>, vector<1x64x128xf32>
    %193 = vector.shape_cast %192 : vector<1x64x128xf32> to vector<64x128xf32>
    %cst_161 = arith.constant dense<0.000000e+00> : vector<8x128xf32>
    %194 = tpu.matmul %191, %193, %cst_161 {dimension_numbers = #tpu.dot_dimension_numbers<[1], [0], [0], [1], [0, 0, 1, 1], [], []>} : vector<8x64xf32>, vector<64x128xf32>, vector<8x128xf32> -> vector<8x128xf32>
    %c1_162 = arith.constant 1 : index
    %c0_163 = arith.constant 0 : index
    %c0_164 = arith.constant 0 : index
    %195 = vector.load %arg21[%c1_162, %c0_163, %c0_164] : memref<3x8x8xf32, #tpu.memory_space<vmem>>, vector<1x8x8xf32>
    %196 = vector.shape_cast %195 : vector<1x8x8xf32> to vector<8x8xf32>
    %cst_165 = arith.constant dense<0.000000e+00> : vector<8x64xf32>
    %197 = tpu.matmul %196, %188, %cst_165 {dimension_numbers = #tpu.dot_dimension_numbers<[1], [0], [0], [1], [0, 0, 1, 1], [], []>} : vector<8x8xf32>, vector<8x64xf32>, vector<8x64xf32> -> vector<8x64xf32>
    %c1_166 = arith.constant 1 : index
    %c0_167 = arith.constant 0 : index
    %c0_168 = arith.constant 0 : index
    %198 = vector.load %arg22[%c1_166, %c0_167, %c0_168] : memref<3x64x128xf32, #tpu.memory_space<vmem>>, vector<1x64x128xf32>
    %199 = vector.shape_cast %198 : vector<1x64x128xf32> to vector<64x128xf32>
    %cst_169 = arith.constant dense<0.000000e+00> : vector<8x128xf32>
    %200 = tpu.matmul %197, %199, %cst_169 {dimension_numbers = #tpu.dot_dimension_numbers<[1], [0], [0], [1], [0, 0, 1, 1], [], []>} : vector<8x64xf32>, vector<64x128xf32>, vector<8x128xf32> -> vector<8x128xf32>
    %201 = arith.addf %194, %200 : vector<8x128xf32>
    %c2_170 = arith.constant 2 : index
    %c0_171 = arith.constant 0 : index
    %c0_172 = arith.constant 0 : index
    %202 = vector.load %arg21[%c2_170, %c0_171, %c0_172] : memref<3x8x8xf32, #tpu.memory_space<vmem>>, vector<1x8x8xf32>
    %203 = vector.shape_cast %202 : vector<1x8x8xf32> to vector<8x8xf32>
    %cst_173 = arith.constant dense<0.000000e+00> : vector<8x64xf32>
    %204 = tpu.matmul %203, %188, %cst_173 {dimension_numbers = #tpu.dot_dimension_numbers<[1], [0], [0], [1], [0, 0, 1, 1], [], []>} : vector<8x8xf32>, vector<8x64xf32>, vector<8x64xf32> -> vector<8x64xf32>
    %c2_174 = arith.constant 2 : index
    %c0_175 = arith.constant 0 : index
    %c0_176 = arith.constant 0 : index
    %205 = vector.load %arg22[%c2_174, %c0_175, %c0_176] : memref<3x64x128xf32, #tpu.memory_space<vmem>>, vector<1x64x128xf32>
    %206 = vector.shape_cast %205 : vector<1x64x128xf32> to vector<64x128xf32>
    %cst_177 = arith.constant dense<0.000000e+00> : vector<8x128xf32>
    %207 = tpu.matmul %204, %206, %cst_177 {dimension_numbers = #tpu.dot_dimension_numbers<[1], [0], [0], [1], [0, 0, 1, 1], [], []>} : vector<8x64xf32>, vector<64x128xf32>, vector<8x128xf32> -> vector<8x128xf32>
    %208 = arith.addf %201, %207 : vector<8x128xf32>
    %cst_178 = arith.constant dense<0.000000e+00> : vector<128xf32>
    %209 = vector.multi_reduction <add>, %208, %cst_178 [0] : vector<8x128xf32> to vector<128xf32>
    %210 = vector.shape_cast %209 : vector<128xf32> to vector<1x128xf32>
    %c0_179 = arith.constant 0 : index
    %c0_180 = arith.constant 0 : index
    %211 = vector.load %arg23[%c0_179, %c0_180] : memref<128x128xf32, #tpu.memory_space<vmem>>, vector<128x128xf32>
    %cst_181 = arith.constant dense<0.000000e+00> : vector<1x128xf32>
    %212 = tpu.matmul %210, %211, %cst_181 {dimension_numbers = #tpu.dot_dimension_numbers<[1], [0], [0], [1], [0, 0, 1, 1], [], []>} : vector<1x128xf32>, vector<128x128xf32>, vector<1x128xf32> -> vector<1x128xf32>
    %213 = arith.mulf %208, %208 : vector<8x128xf32>
    %cst_182 = arith.constant dense<0.000000e+00> : vector<128xf32>
    %214 = vector.multi_reduction <add>, %213, %cst_182 [0] : vector<8x128xf32> to vector<128xf32>
    %215 = vector.shape_cast %214 : vector<128xf32> to vector<1x128xf32>
    %c0_183 = arith.constant 0 : index
    %c0_184 = arith.constant 0 : index
    %216 = vector.load %arg23[%c0_183, %c0_184] : memref<128x128xf32, #tpu.memory_space<vmem>>, vector<128x128xf32>
    %cst_185 = arith.constant dense<0.000000e+00> : vector<1x128xf32>
    %217 = tpu.matmul %215, %216, %cst_185 {dimension_numbers = #tpu.dot_dimension_numbers<[1], [0], [0], [1], [0, 0, 1, 1], [], []>} : vector<1x128xf32>, vector<128x128xf32>, vector<1x128xf32> -> vector<1x128xf32>
    %218 = arith.mulf %212, %212 : vector<1x128xf32>
    %219 = arith.subf %217, %218 : vector<1x128xf32>
    %cst_186 = arith.constant 0.000000e+00 : f32
    %220 = vector.broadcast %cst_186 : f32 to vector<1x128xf32>
    %221 = arith.maximumf %219, %220 : vector<1x128xf32>
    %c0_187 = arith.constant 0 : index
    %c0_188 = arith.constant 0 : index
    %222 = vector.load %arg24[%c0_187, %c0_188] : memref<1x128xf32, #tpu.memory_space<vmem>>, vector<1x128xf32>
    %cst_189 = arith.constant 9.99999974E-6 : f32
    %223 = vector.broadcast %cst_189 : f32 to vector<1x128xf32>
    %224 = arith.addf %221, %223 : vector<1x128xf32>
    %225 = math.rsqrt %224 : vector<1x128xf32>
    %226 = arith.mulf %222, %225 : vector<1x128xf32>
    %c0_190 = arith.constant 0 : index
    %c0_191 = arith.constant 0 : index
    %227 = vector.load %arg25[%c0_190, %c0_191] : memref<1x128xf32, #tpu.memory_space<vmem>>, vector<1x128xf32>
    %228 = arith.mulf %212, %226 : vector<1x128xf32>
    %229 = arith.subf %227, %228 : vector<1x128xf32>
    %230 = vector.broadcast %226 : vector<1x128xf32> to vector<8x128xf32>
    %231 = arith.mulf %208, %230 : vector<8x128xf32>
    %232 = vector.broadcast %229 : vector<1x128xf32> to vector<8x128xf32>
    %233 = arith.addf %231, %232 : vector<8x128xf32>
    %cst_192 = arith.constant 0.000000e+00 : f32
    %234 = vector.broadcast %cst_192 : f32 to vector<8x128xf32>
    %235 = arith.maximumf %233, %234 : vector<8x128xf32>
    %c0_193 = arith.constant 0 : index
    %c0_194 = arith.constant 0 : index
    %c0_195 = arith.constant 0 : index
    %236 = vector.load %arg26[%c0_193, %c0_194, %c0_195] : memref<3x4x8xf32, #tpu.memory_space<vmem>>, vector<1x4x8xf32>
    %237 = vector.shape_cast %236 : vector<1x4x8xf32> to vector<4x8xf32>
    %cst_196 = arith.constant dense<0.000000e+00> : vector<4x128xf32>
    %238 = tpu.matmul %237, %235, %cst_196 {dimension_numbers = #tpu.dot_dimension_numbers<[1], [0], [0], [1], [0, 0, 1, 1], [], []>} : vector<4x8xf32>, vector<8x128xf32>, vector<4x128xf32> -> vector<4x128xf32>
    %c0_197 = arith.constant 0 : index
    %c0_198 = arith.constant 0 : index
    %c0_199 = arith.constant 0 : index
    %239 = vector.load %arg27[%c0_197, %c0_198, %c0_199] : memref<3x128x64xf32, #tpu.memory_space<vmem>>, vector<1x128x64xf32>
    %240 = vector.shape_cast %239 : vector<1x128x64xf32> to vector<128x64xf32>
    %cst_200 = arith.constant dense<0.000000e+00> : vector<4x64xf32>
    %241 = tpu.matmul %238, %240, %cst_200 {dimension_numbers = #tpu.dot_dimension_numbers<[1], [0], [0], [1], [0, 0, 1, 1], [], []>} : vector<4x128xf32>, vector<128x64xf32>, vector<4x64xf32> -> vector<4x64xf32>
    %c1_201 = arith.constant 1 : index
    %c0_202 = arith.constant 0 : index
    %c0_203 = arith.constant 0 : index
    %242 = vector.load %arg26[%c1_201, %c0_202, %c0_203] : memref<3x4x8xf32, #tpu.memory_space<vmem>>, vector<1x4x8xf32>
    %243 = vector.shape_cast %242 : vector<1x4x8xf32> to vector<4x8xf32>
    %cst_204 = arith.constant dense<0.000000e+00> : vector<4x128xf32>
    %244 = tpu.matmul %243, %235, %cst_204 {dimension_numbers = #tpu.dot_dimension_numbers<[1], [0], [0], [1], [0, 0, 1, 1], [], []>} : vector<4x8xf32>, vector<8x128xf32>, vector<4x128xf32> -> vector<4x128xf32>
    %c1_205 = arith.constant 1 : index
    %c0_206 = arith.constant 0 : index
    %c0_207 = arith.constant 0 : index
    %245 = vector.load %arg27[%c1_205, %c0_206, %c0_207] : memref<3x128x64xf32, #tpu.memory_space<vmem>>, vector<1x128x64xf32>
    %246 = vector.shape_cast %245 : vector<1x128x64xf32> to vector<128x64xf32>
    %cst_208 = arith.constant dense<0.000000e+00> : vector<4x64xf32>
    %247 = tpu.matmul %244, %246, %cst_208 {dimension_numbers = #tpu.dot_dimension_numbers<[1], [0], [0], [1], [0, 0, 1, 1], [], []>} : vector<4x128xf32>, vector<128x64xf32>, vector<4x64xf32> -> vector<4x64xf32>
    %248 = arith.addf %241, %247 : vector<4x64xf32>
    %c2_209 = arith.constant 2 : index
    %c0_210 = arith.constant 0 : index
    %c0_211 = arith.constant 0 : index
    %249 = vector.load %arg26[%c2_209, %c0_210, %c0_211] : memref<3x4x8xf32, #tpu.memory_space<vmem>>, vector<1x4x8xf32>
    %250 = vector.shape_cast %249 : vector<1x4x8xf32> to vector<4x8xf32>
    %cst_212 = arith.constant dense<0.000000e+00> : vector<4x128xf32>
    %251 = tpu.matmul %250, %235, %cst_212 {dimension_numbers = #tpu.dot_dimension_numbers<[1], [0], [0], [1], [0, 0, 1, 1], [], []>} : vector<4x8xf32>, vector<8x128xf32>, vector<4x128xf32> -> vector<4x128xf32>
    %c2_213 = arith.constant 2 : index
    %c0_214 = arith.constant 0 : index
    %c0_215 = arith.constant 0 : index
    %252 = vector.load %arg27[%c2_213, %c0_214, %c0_215] : memref<3x128x64xf32, #tpu.memory_space<vmem>>, vector<1x128x64xf32>
    %253 = vector.shape_cast %252 : vector<1x128x64xf32> to vector<128x64xf32>
    %cst_216 = arith.constant dense<0.000000e+00> : vector<4x64xf32>
    %254 = tpu.matmul %251, %253, %cst_216 {dimension_numbers = #tpu.dot_dimension_numbers<[1], [0], [0], [1], [0, 0, 1, 1], [], []>} : vector<4x128xf32>, vector<128x64xf32>, vector<4x64xf32> -> vector<4x64xf32>
    %255 = arith.addf %248, %254 : vector<4x64xf32>
    %cst_217 = arith.constant dense<0.000000e+00> : vector<64xf32>
    %256 = vector.multi_reduction <add>, %255, %cst_217 [0] : vector<4x64xf32> to vector<64xf32>
    %257 = vector.shape_cast %256 : vector<64xf32> to vector<1x64xf32>
    %c0_218 = arith.constant 0 : index
    %c0_219 = arith.constant 0 : index
    %258 = vector.load %arg28[%c0_218, %c0_219] : memref<64x64xf32, #tpu.memory_space<vmem>>, vector<64x64xf32>
    %cst_220 = arith.constant dense<0.000000e+00> : vector<1x64xf32>
    %259 = tpu.matmul %257, %258, %cst_220 {dimension_numbers = #tpu.dot_dimension_numbers<[1], [0], [0], [1], [0, 0, 1, 1], [], []>} : vector<1x64xf32>, vector<64x64xf32>, vector<1x64xf32> -> vector<1x64xf32>
    %260 = arith.mulf %255, %255 : vector<4x64xf32>
    %cst_221 = arith.constant dense<0.000000e+00> : vector<64xf32>
    %261 = vector.multi_reduction <add>, %260, %cst_221 [0] : vector<4x64xf32> to vector<64xf32>
    %262 = vector.shape_cast %261 : vector<64xf32> to vector<1x64xf32>
    %c0_222 = arith.constant 0 : index
    %c0_223 = arith.constant 0 : index
    %263 = vector.load %arg28[%c0_222, %c0_223] : memref<64x64xf32, #tpu.memory_space<vmem>>, vector<64x64xf32>
    %cst_224 = arith.constant dense<0.000000e+00> : vector<1x64xf32>
    %264 = tpu.matmul %262, %263, %cst_224 {dimension_numbers = #tpu.dot_dimension_numbers<[1], [0], [0], [1], [0, 0, 1, 1], [], []>} : vector<1x64xf32>, vector<64x64xf32>, vector<1x64xf32> -> vector<1x64xf32>
    %265 = arith.mulf %259, %259 : vector<1x64xf32>
    %266 = arith.subf %264, %265 : vector<1x64xf32>
    %cst_225 = arith.constant 0.000000e+00 : f32
    %267 = vector.broadcast %cst_225 : f32 to vector<1x64xf32>
    %268 = arith.maximumf %266, %267 : vector<1x64xf32>
    %c0_226 = arith.constant 0 : index
    %c0_227 = arith.constant 0 : index
    %269 = vector.load %arg29[%c0_226, %c0_227] : memref<1x64xf32, #tpu.memory_space<vmem>>, vector<1x64xf32>
    %cst_228 = arith.constant 9.99999974E-6 : f32
    %270 = vector.broadcast %cst_228 : f32 to vector<1x64xf32>
    %271 = arith.addf %268, %270 : vector<1x64xf32>
    %272 = math.rsqrt %271 : vector<1x64xf32>
    %273 = arith.mulf %269, %272 : vector<1x64xf32>
    %c0_229 = arith.constant 0 : index
    %c0_230 = arith.constant 0 : index
    %274 = vector.load %arg30[%c0_229, %c0_230] : memref<1x64xf32, #tpu.memory_space<vmem>>, vector<1x64xf32>
    %275 = arith.mulf %259, %273 : vector<1x64xf32>
    %276 = arith.subf %274, %275 : vector<1x64xf32>
    %277 = vector.broadcast %273 : vector<1x64xf32> to vector<4x64xf32>
    %278 = arith.mulf %255, %277 : vector<4x64xf32>
    %279 = vector.broadcast %276 : vector<1x64xf32> to vector<4x64xf32>
    %280 = arith.addf %278, %279 : vector<4x64xf32>
    %cst_231 = arith.constant 0.000000e+00 : f32
    %281 = vector.broadcast %cst_231 : f32 to vector<4x64xf32>
    %282 = arith.maximumf %280, %281 : vector<4x64xf32>
    %c0_232 = arith.constant 0 : index
    %c0_233 = arith.constant 0 : index
    %c0_234 = arith.constant 0 : index
    %283 = vector.load %arg31[%c0_232, %c0_233, %c0_234] : memref<3x4x4xf32, #tpu.memory_space<vmem>>, vector<1x4x4xf32>
    %284 = vector.shape_cast %283 : vector<1x4x4xf32> to vector<4x4xf32>
    %cst_235 = arith.constant dense<0.000000e+00> : vector<4x64xf32>
    %285 = tpu.matmul %284, %282, %cst_235 {dimension_numbers = #tpu.dot_dimension_numbers<[1], [0], [0], [1], [0, 0, 1, 1], [], []>} : vector<4x4xf32>, vector<4x64xf32>, vector<4x64xf32> -> vector<4x64xf32>
    %c0_236 = arith.constant 0 : index
    %c0_237 = arith.constant 0 : index
    %c0_238 = arith.constant 0 : index
    %286 = vector.load %arg32[%c0_236, %c0_237, %c0_238] : memref<3x64x128xf32, #tpu.memory_space<vmem>>, vector<1x64x128xf32>
    %287 = vector.shape_cast %286 : vector<1x64x128xf32> to vector<64x128xf32>
    %cst_239 = arith.constant dense<0.000000e+00> : vector<4x128xf32>
    %288 = tpu.matmul %285, %287, %cst_239 {dimension_numbers = #tpu.dot_dimension_numbers<[1], [0], [0], [1], [0, 0, 1, 1], [], []>} : vector<4x64xf32>, vector<64x128xf32>, vector<4x128xf32> -> vector<4x128xf32>
    %c1_240 = arith.constant 1 : index
    %c0_241 = arith.constant 0 : index
    %c0_242 = arith.constant 0 : index
    %289 = vector.load %arg31[%c1_240, %c0_241, %c0_242] : memref<3x4x4xf32, #tpu.memory_space<vmem>>, vector<1x4x4xf32>
    %290 = vector.shape_cast %289 : vector<1x4x4xf32> to vector<4x4xf32>
    %cst_243 = arith.constant dense<0.000000e+00> : vector<4x64xf32>
    %291 = tpu.matmul %290, %282, %cst_243 {dimension_numbers = #tpu.dot_dimension_numbers<[1], [0], [0], [1], [0, 0, 1, 1], [], []>} : vector<4x4xf32>, vector<4x64xf32>, vector<4x64xf32> -> vector<4x64xf32>
    %c1_244 = arith.constant 1 : index
    %c0_245 = arith.constant 0 : index
    %c0_246 = arith.constant 0 : index
    %292 = vector.load %arg32[%c1_244, %c0_245, %c0_246] : memref<3x64x128xf32, #tpu.memory_space<vmem>>, vector<1x64x128xf32>
    %293 = vector.shape_cast %292 : vector<1x64x128xf32> to vector<64x128xf32>
    %cst_247 = arith.constant dense<0.000000e+00> : vector<4x128xf32>
    %294 = tpu.matmul %291, %293, %cst_247 {dimension_numbers = #tpu.dot_dimension_numbers<[1], [0], [0], [1], [0, 0, 1, 1], [], []>} : vector<4x64xf32>, vector<64x128xf32>, vector<4x128xf32> -> vector<4x128xf32>
    %295 = arith.addf %288, %294 : vector<4x128xf32>
    %c2_248 = arith.constant 2 : index
    %c0_249 = arith.constant 0 : index
    %c0_250 = arith.constant 0 : index
    %296 = vector.load %arg31[%c2_248, %c0_249, %c0_250] : memref<3x4x4xf32, #tpu.memory_space<vmem>>, vector<1x4x4xf32>
    %297 = vector.shape_cast %296 : vector<1x4x4xf32> to vector<4x4xf32>
    %cst_251 = arith.constant dense<0.000000e+00> : vector<4x64xf32>
    %298 = tpu.matmul %297, %282, %cst_251 {dimension_numbers = #tpu.dot_dimension_numbers<[1], [0], [0], [1], [0, 0, 1, 1], [], []>} : vector<4x4xf32>, vector<4x64xf32>, vector<4x64xf32> -> vector<4x64xf32>
    %c2_252 = arith.constant 2 : index
    %c0_253 = arith.constant 0 : index
    %c0_254 = arith.constant 0 : index
    %299 = vector.load %arg32[%c2_252, %c0_253, %c0_254] : memref<3x64x128xf32, #tpu.memory_space<vmem>>, vector<1x64x128xf32>
    %300 = vector.shape_cast %299 : vector<1x64x128xf32> to vector<64x128xf32>
    %cst_255 = arith.constant dense<0.000000e+00> : vector<4x128xf32>
    %301 = tpu.matmul %298, %300, %cst_255 {dimension_numbers = #tpu.dot_dimension_numbers<[1], [0], [0], [1], [0, 0, 1, 1], [], []>} : vector<4x64xf32>, vector<64x128xf32>, vector<4x128xf32> -> vector<4x128xf32>
    %302 = arith.addf %295, %301 : vector<4x128xf32>
    %cst_256 = arith.constant dense<0.000000e+00> : vector<128xf32>
    %303 = vector.multi_reduction <add>, %302, %cst_256 [0] : vector<4x128xf32> to vector<128xf32>
    %304 = vector.shape_cast %303 : vector<128xf32> to vector<1x128xf32>
    %c0_257 = arith.constant 0 : index
    %c0_258 = arith.constant 0 : index
    %305 = vector.load %arg33[%c0_257, %c0_258] : memref<128x128xf32, #tpu.memory_space<vmem>>, vector<128x128xf32>
    %cst_259 = arith.constant dense<0.000000e+00> : vector<1x128xf32>
    %306 = tpu.matmul %304, %305, %cst_259 {dimension_numbers = #tpu.dot_dimension_numbers<[1], [0], [0], [1], [0, 0, 1, 1], [], []>} : vector<1x128xf32>, vector<128x128xf32>, vector<1x128xf32> -> vector<1x128xf32>
    %307 = arith.mulf %302, %302 : vector<4x128xf32>
    %cst_260 = arith.constant dense<0.000000e+00> : vector<128xf32>
    %308 = vector.multi_reduction <add>, %307, %cst_260 [0] : vector<4x128xf32> to vector<128xf32>
    %309 = vector.shape_cast %308 : vector<128xf32> to vector<1x128xf32>
    %c0_261 = arith.constant 0 : index
    %c0_262 = arith.constant 0 : index
    %310 = vector.load %arg33[%c0_261, %c0_262] : memref<128x128xf32, #tpu.memory_space<vmem>>, vector<128x128xf32>
    %cst_263 = arith.constant dense<0.000000e+00> : vector<1x128xf32>
    %311 = tpu.matmul %309, %310, %cst_263 {dimension_numbers = #tpu.dot_dimension_numbers<[1], [0], [0], [1], [0, 0, 1, 1], [], []>} : vector<1x128xf32>, vector<128x128xf32>, vector<1x128xf32> -> vector<1x128xf32>
    %312 = arith.mulf %306, %306 : vector<1x128xf32>
    %313 = arith.subf %311, %312 : vector<1x128xf32>
    %cst_264 = arith.constant 0.000000e+00 : f32
    %314 = vector.broadcast %cst_264 : f32 to vector<1x128xf32>
    %315 = arith.maximumf %313, %314 : vector<1x128xf32>
    %c0_265 = arith.constant 0 : index
    %c0_266 = arith.constant 0 : index
    %316 = vector.load %arg34[%c0_265, %c0_266] : memref<1x128xf32, #tpu.memory_space<vmem>>, vector<1x128xf32>
    %cst_267 = arith.constant 9.99999974E-6 : f32
    %317 = vector.broadcast %cst_267 : f32 to vector<1x128xf32>
    %318 = arith.addf %315, %317 : vector<1x128xf32>
    %319 = math.rsqrt %318 : vector<1x128xf32>
    %320 = arith.mulf %316, %319 : vector<1x128xf32>
    %c0_268 = arith.constant 0 : index
    %c0_269 = arith.constant 0 : index
    %321 = vector.load %arg35[%c0_268, %c0_269] : memref<1x128xf32, #tpu.memory_space<vmem>>, vector<1x128xf32>
    %322 = arith.mulf %306, %320 : vector<1x128xf32>
    %323 = arith.subf %321, %322 : vector<1x128xf32>
    %324 = vector.broadcast %320 : vector<1x128xf32> to vector<4x128xf32>
    %325 = arith.mulf %302, %324 : vector<4x128xf32>
    %326 = vector.broadcast %323 : vector<1x128xf32> to vector<4x128xf32>
    %327 = arith.addf %325, %326 : vector<4x128xf32>
    %cst_270 = arith.constant 0.000000e+00 : f32
    %328 = vector.broadcast %cst_270 : f32 to vector<4x128xf32>
    %329 = arith.maximumf %327, %328 : vector<4x128xf32>
    %c0_271 = arith.constant 0 : index
    %c0_272 = arith.constant 0 : index
    %c0_273 = arith.constant 0 : index
    %330 = vector.load %arg36[%c0_271, %c0_272, %c0_273] : memref<3x2x4xf32, #tpu.memory_space<vmem>>, vector<1x2x4xf32>
    %331 = vector.shape_cast %330 : vector<1x2x4xf32> to vector<2x4xf32>
    %cst_274 = arith.constant dense<0.000000e+00> : vector<2x128xf32>
    %332 = tpu.matmul %331, %329, %cst_274 {dimension_numbers = #tpu.dot_dimension_numbers<[1], [0], [0], [1], [0, 0, 1, 1], [], []>} : vector<2x4xf32>, vector<4x128xf32>, vector<2x128xf32> -> vector<2x128xf32>
    %c0_275 = arith.constant 0 : index
    %c0_276 = arith.constant 0 : index
    %c0_277 = arith.constant 0 : index
    %333 = vector.load %arg37[%c0_275, %c0_276, %c0_277] : memref<3x128x64xf32, #tpu.memory_space<vmem>>, vector<1x128x64xf32>
    %334 = vector.shape_cast %333 : vector<1x128x64xf32> to vector<128x64xf32>
    %cst_278 = arith.constant dense<0.000000e+00> : vector<2x64xf32>
    %335 = tpu.matmul %332, %334, %cst_278 {dimension_numbers = #tpu.dot_dimension_numbers<[1], [0], [0], [1], [0, 0, 1, 1], [], []>} : vector<2x128xf32>, vector<128x64xf32>, vector<2x64xf32> -> vector<2x64xf32>
    %c1_279 = arith.constant 1 : index
    %c0_280 = arith.constant 0 : index
    %c0_281 = arith.constant 0 : index
    %336 = vector.load %arg36[%c1_279, %c0_280, %c0_281] : memref<3x2x4xf32, #tpu.memory_space<vmem>>, vector<1x2x4xf32>
    %337 = vector.shape_cast %336 : vector<1x2x4xf32> to vector<2x4xf32>
    %cst_282 = arith.constant dense<0.000000e+00> : vector<2x128xf32>
    %338 = tpu.matmul %337, %329, %cst_282 {dimension_numbers = #tpu.dot_dimension_numbers<[1], [0], [0], [1], [0, 0, 1, 1], [], []>} : vector<2x4xf32>, vector<4x128xf32>, vector<2x128xf32> -> vector<2x128xf32>
    %c1_283 = arith.constant 1 : index
    %c0_284 = arith.constant 0 : index
    %c0_285 = arith.constant 0 : index
    %339 = vector.load %arg37[%c1_283, %c0_284, %c0_285] : memref<3x128x64xf32, #tpu.memory_space<vmem>>, vector<1x128x64xf32>
    %340 = vector.shape_cast %339 : vector<1x128x64xf32> to vector<128x64xf32>
    %cst_286 = arith.constant dense<0.000000e+00> : vector<2x64xf32>
    %341 = tpu.matmul %338, %340, %cst_286 {dimension_numbers = #tpu.dot_dimension_numbers<[1], [0], [0], [1], [0, 0, 1, 1], [], []>} : vector<2x128xf32>, vector<128x64xf32>, vector<2x64xf32> -> vector<2x64xf32>
    %342 = arith.addf %335, %341 : vector<2x64xf32>
    %c2_287 = arith.constant 2 : index
    %c0_288 = arith.constant 0 : index
    %c0_289 = arith.constant 0 : index
    %343 = vector.load %arg36[%c2_287, %c0_288, %c0_289] : memref<3x2x4xf32, #tpu.memory_space<vmem>>, vector<1x2x4xf32>
    %344 = vector.shape_cast %343 : vector<1x2x4xf32> to vector<2x4xf32>
    %cst_290 = arith.constant dense<0.000000e+00> : vector<2x128xf32>
    %345 = tpu.matmul %344, %329, %cst_290 {dimension_numbers = #tpu.dot_dimension_numbers<[1], [0], [0], [1], [0, 0, 1, 1], [], []>} : vector<2x4xf32>, vector<4x128xf32>, vector<2x128xf32> -> vector<2x128xf32>
    %c2_291 = arith.constant 2 : index
    %c0_292 = arith.constant 0 : index
    %c0_293 = arith.constant 0 : index
    %346 = vector.load %arg37[%c2_291, %c0_292, %c0_293] : memref<3x128x64xf32, #tpu.memory_space<vmem>>, vector<1x128x64xf32>
    %347 = vector.shape_cast %346 : vector<1x128x64xf32> to vector<128x64xf32>
    %cst_294 = arith.constant dense<0.000000e+00> : vector<2x64xf32>
    %348 = tpu.matmul %345, %347, %cst_294 {dimension_numbers = #tpu.dot_dimension_numbers<[1], [0], [0], [1], [0, 0, 1, 1], [], []>} : vector<2x128xf32>, vector<128x64xf32>, vector<2x64xf32> -> vector<2x64xf32>
    %349 = arith.addf %342, %348 : vector<2x64xf32>
    %cst_295 = arith.constant dense<0.000000e+00> : vector<64xf32>
    %350 = vector.multi_reduction <add>, %349, %cst_295 [0] : vector<2x64xf32> to vector<64xf32>
    %351 = vector.shape_cast %350 : vector<64xf32> to vector<1x64xf32>
    %c0_296 = arith.constant 0 : index
    %c0_297 = arith.constant 0 : index
    %352 = vector.load %arg38[%c0_296, %c0_297] : memref<64x64xf32, #tpu.memory_space<vmem>>, vector<64x64xf32>
    %cst_298 = arith.constant dense<0.000000e+00> : vector<1x64xf32>
    %353 = tpu.matmul %351, %352, %cst_298 {dimension_numbers = #tpu.dot_dimension_numbers<[1], [0], [0], [1], [0, 0, 1, 1], [], []>} : vector<1x64xf32>, vector<64x64xf32>, vector<1x64xf32> -> vector<1x64xf32>
    %354 = arith.mulf %349, %349 : vector<2x64xf32>
    %cst_299 = arith.constant dense<0.000000e+00> : vector<64xf32>
    %355 = vector.multi_reduction <add>, %354, %cst_299 [0] : vector<2x64xf32> to vector<64xf32>
    %356 = vector.shape_cast %355 : vector<64xf32> to vector<1x64xf32>
    %c0_300 = arith.constant 0 : index
    %c0_301 = arith.constant 0 : index
    %357 = vector.load %arg38[%c0_300, %c0_301] : memref<64x64xf32, #tpu.memory_space<vmem>>, vector<64x64xf32>
    %cst_302 = arith.constant dense<0.000000e+00> : vector<1x64xf32>
    %358 = tpu.matmul %356, %357, %cst_302 {dimension_numbers = #tpu.dot_dimension_numbers<[1], [0], [0], [1], [0, 0, 1, 1], [], []>} : vector<1x64xf32>, vector<64x64xf32>, vector<1x64xf32> -> vector<1x64xf32>
    %359 = arith.mulf %353, %353 : vector<1x64xf32>
    %360 = arith.subf %358, %359 : vector<1x64xf32>
    %cst_303 = arith.constant 0.000000e+00 : f32
    %361 = vector.broadcast %cst_303 : f32 to vector<1x64xf32>
    %362 = arith.maximumf %360, %361 : vector<1x64xf32>
    %c0_304 = arith.constant 0 : index
    %c0_305 = arith.constant 0 : index
    %363 = vector.load %arg39[%c0_304, %c0_305] : memref<1x64xf32, #tpu.memory_space<vmem>>, vector<1x64xf32>
    %cst_306 = arith.constant 9.99999974E-6 : f32
    %364 = vector.broadcast %cst_306 : f32 to vector<1x64xf32>
    %365 = arith.addf %362, %364 : vector<1x64xf32>
    %366 = math.rsqrt %365 : vector<1x64xf32>
    %367 = arith.mulf %363, %366 : vector<1x64xf32>
    %c0_307 = arith.constant 0 : index
    %c0_308 = arith.constant 0 : index
    %368 = vector.load %arg40[%c0_307, %c0_308] : memref<1x64xf32, #tpu.memory_space<vmem>>, vector<1x64xf32>
    %369 = arith.mulf %353, %367 : vector<1x64xf32>
    %370 = arith.subf %368, %369 : vector<1x64xf32>
    %371 = vector.broadcast %367 : vector<1x64xf32> to vector<2x64xf32>
    %372 = arith.mulf %349, %371 : vector<2x64xf32>
    %373 = vector.broadcast %370 : vector<1x64xf32> to vector<2x64xf32>
    %374 = arith.addf %372, %373 : vector<2x64xf32>
    %cst_309 = arith.constant 0.000000e+00 : f32
    %375 = vector.broadcast %cst_309 : f32 to vector<2x64xf32>
    %376 = arith.maximumf %374, %375 : vector<2x64xf32>
    %c0_310 = arith.constant 0 : index
    %c0_311 = arith.constant 0 : index
    %c0_312 = arith.constant 0 : index
    %377 = vector.load %arg41[%c0_310, %c0_311, %c0_312] : memref<3x2x2xf32, #tpu.memory_space<vmem>>, vector<1x2x2xf32>
    %378 = vector.shape_cast %377 : vector<1x2x2xf32> to vector<2x2xf32>
    %cst_313 = arith.constant dense<0.000000e+00> : vector<2x64xf32>
    %379 = tpu.matmul %378, %376, %cst_313 {dimension_numbers = #tpu.dot_dimension_numbers<[1], [0], [0], [1], [0, 0, 1, 1], [], []>} : vector<2x2xf32>, vector<2x64xf32>, vector<2x64xf32> -> vector<2x64xf32>
    %c0_314 = arith.constant 0 : index
    %c0_315 = arith.constant 0 : index
    %c0_316 = arith.constant 0 : index
    %380 = vector.load %arg42[%c0_314, %c0_315, %c0_316] : memref<3x64x128xf32, #tpu.memory_space<vmem>>, vector<1x64x128xf32>
    %381 = vector.shape_cast %380 : vector<1x64x128xf32> to vector<64x128xf32>
    %cst_317 = arith.constant dense<0.000000e+00> : vector<2x128xf32>
    %382 = tpu.matmul %379, %381, %cst_317 {dimension_numbers = #tpu.dot_dimension_numbers<[1], [0], [0], [1], [0, 0, 1, 1], [], []>} : vector<2x64xf32>, vector<64x128xf32>, vector<2x128xf32> -> vector<2x128xf32>
    %c1_318 = arith.constant 1 : index
    %c0_319 = arith.constant 0 : index
    %c0_320 = arith.constant 0 : index
    %383 = vector.load %arg41[%c1_318, %c0_319, %c0_320] : memref<3x2x2xf32, #tpu.memory_space<vmem>>, vector<1x2x2xf32>
    %384 = vector.shape_cast %383 : vector<1x2x2xf32> to vector<2x2xf32>
    %cst_321 = arith.constant dense<0.000000e+00> : vector<2x64xf32>
    %385 = tpu.matmul %384, %376, %cst_321 {dimension_numbers = #tpu.dot_dimension_numbers<[1], [0], [0], [1], [0, 0, 1, 1], [], []>} : vector<2x2xf32>, vector<2x64xf32>, vector<2x64xf32> -> vector<2x64xf32>
    %c1_322 = arith.constant 1 : index
    %c0_323 = arith.constant 0 : index
    %c0_324 = arith.constant 0 : index
    %386 = vector.load %arg42[%c1_322, %c0_323, %c0_324] : memref<3x64x128xf32, #tpu.memory_space<vmem>>, vector<1x64x128xf32>
    %387 = vector.shape_cast %386 : vector<1x64x128xf32> to vector<64x128xf32>
    %cst_325 = arith.constant dense<0.000000e+00> : vector<2x128xf32>
    %388 = tpu.matmul %385, %387, %cst_325 {dimension_numbers = #tpu.dot_dimension_numbers<[1], [0], [0], [1], [0, 0, 1, 1], [], []>} : vector<2x64xf32>, vector<64x128xf32>, vector<2x128xf32> -> vector<2x128xf32>
    %389 = arith.addf %382, %388 : vector<2x128xf32>
    %c2_326 = arith.constant 2 : index
    %c0_327 = arith.constant 0 : index
    %c0_328 = arith.constant 0 : index
    %390 = vector.load %arg41[%c2_326, %c0_327, %c0_328] : memref<3x2x2xf32, #tpu.memory_space<vmem>>, vector<1x2x2xf32>
    %391 = vector.shape_cast %390 : vector<1x2x2xf32> to vector<2x2xf32>
    %cst_329 = arith.constant dense<0.000000e+00> : vector<2x64xf32>
    %392 = tpu.matmul %391, %376, %cst_329 {dimension_numbers = #tpu.dot_dimension_numbers<[1], [0], [0], [1], [0, 0, 1, 1], [], []>} : vector<2x2xf32>, vector<2x64xf32>, vector<2x64xf32> -> vector<2x64xf32>
    %c2_330 = arith.constant 2 : index
    %c0_331 = arith.constant 0 : index
    %c0_332 = arith.constant 0 : index
    %393 = vector.load %arg42[%c2_330, %c0_331, %c0_332] : memref<3x64x128xf32, #tpu.memory_space<vmem>>, vector<1x64x128xf32>
    %394 = vector.shape_cast %393 : vector<1x64x128xf32> to vector<64x128xf32>
    %cst_333 = arith.constant dense<0.000000e+00> : vector<2x128xf32>
    %395 = tpu.matmul %392, %394, %cst_333 {dimension_numbers = #tpu.dot_dimension_numbers<[1], [0], [0], [1], [0, 0, 1, 1], [], []>} : vector<2x64xf32>, vector<64x128xf32>, vector<2x128xf32> -> vector<2x128xf32>
    %396 = arith.addf %389, %395 : vector<2x128xf32>
    %cst_334 = arith.constant dense<0.000000e+00> : vector<128xf32>
    %397 = vector.multi_reduction <add>, %396, %cst_334 [0] : vector<2x128xf32> to vector<128xf32>
    %398 = vector.shape_cast %397 : vector<128xf32> to vector<1x128xf32>
    %c0_335 = arith.constant 0 : index
    %c0_336 = arith.constant 0 : index
    %399 = vector.load %arg43[%c0_335, %c0_336] : memref<128x128xf32, #tpu.memory_space<vmem>>, vector<128x128xf32>
    %cst_337 = arith.constant dense<0.000000e+00> : vector<1x128xf32>
    %400 = tpu.matmul %398, %399, %cst_337 {dimension_numbers = #tpu.dot_dimension_numbers<[1], [0], [0], [1], [0, 0, 1, 1], [], []>} : vector<1x128xf32>, vector<128x128xf32>, vector<1x128xf32> -> vector<1x128xf32>
    %401 = arith.mulf %396, %396 : vector<2x128xf32>
    %cst_338 = arith.constant dense<0.000000e+00> : vector<128xf32>
    %402 = vector.multi_reduction <add>, %401, %cst_338 [0] : vector<2x128xf32> to vector<128xf32>
    %403 = vector.shape_cast %402 : vector<128xf32> to vector<1x128xf32>
    %c0_339 = arith.constant 0 : index
    %c0_340 = arith.constant 0 : index
    %404 = vector.load %arg43[%c0_339, %c0_340] : memref<128x128xf32, #tpu.memory_space<vmem>>, vector<128x128xf32>
    %cst_341 = arith.constant dense<0.000000e+00> : vector<1x128xf32>
    %405 = tpu.matmul %403, %404, %cst_341 {dimension_numbers = #tpu.dot_dimension_numbers<[1], [0], [0], [1], [0, 0, 1, 1], [], []>} : vector<1x128xf32>, vector<128x128xf32>, vector<1x128xf32> -> vector<1x128xf32>
    %406 = arith.mulf %400, %400 : vector<1x128xf32>
    %407 = arith.subf %405, %406 : vector<1x128xf32>
    %cst_342 = arith.constant 0.000000e+00 : f32
    %408 = vector.broadcast %cst_342 : f32 to vector<1x128xf32>
    %409 = arith.maximumf %407, %408 : vector<1x128xf32>
    %c0_343 = arith.constant 0 : index
    %c0_344 = arith.constant 0 : index
    %410 = vector.load %arg44[%c0_343, %c0_344] : memref<1x128xf32, #tpu.memory_space<vmem>>, vector<1x128xf32>
    %cst_345 = arith.constant 9.99999974E-6 : f32
    %411 = vector.broadcast %cst_345 : f32 to vector<1x128xf32>
    %412 = arith.addf %409, %411 : vector<1x128xf32>
    %413 = math.rsqrt %412 : vector<1x128xf32>
    %414 = arith.mulf %410, %413 : vector<1x128xf32>
    %c0_346 = arith.constant 0 : index
    %c0_347 = arith.constant 0 : index
    %415 = vector.load %arg45[%c0_346, %c0_347] : memref<1x128xf32, #tpu.memory_space<vmem>>, vector<1x128xf32>
    %416 = arith.mulf %400, %414 : vector<1x128xf32>
    %417 = arith.subf %415, %416 : vector<1x128xf32>
    %418 = vector.broadcast %414 : vector<1x128xf32> to vector<2x128xf32>
    %419 = arith.mulf %396, %418 : vector<2x128xf32>
    %420 = vector.broadcast %417 : vector<1x128xf32> to vector<2x128xf32>
    %421 = arith.addf %419, %420 : vector<2x128xf32>
    %cst_348 = arith.constant 0.000000e+00 : f32
    %422 = vector.broadcast %cst_348 : f32 to vector<2x128xf32>
    %423 = arith.maximumf %421, %422 : vector<2x128xf32>
    %c0_349 = arith.constant 0 : index
    %c0_350 = arith.constant 0 : index
    %424 = vector.load %arg46[%c0_349, %c0_350] : memref<2x128xf32, #tpu.memory_space<vmem>>, vector<2x128xf32>
    tpu.vector_store %arg46[%c0_349, %c0_350], %423 {strides = array<i32>} : memref<2x128xf32, #tpu.memory_space<vmem>>, vector<2x128xf32>,
    return
  }
}

</mosaic_0001>

<llo_original>
// kernel: _lambda_.1
$region0: #{_lambda_.1}
  #allocation0 [shape = 'u32[]', space=smem, size = 0x4, offset = 0x4, fixed_abs, tag = 'smem constant byte address 0x4 - core index']
  #allocation1 [shape = 'u32[144,128]{1,0:T(1,128)}', space=vmem, size = 0x12000, scoped, tag = 'internal scratch']
  %s0 = inlined_call_operand.smem [shape: u32[47], index: -1, kind: input, shape index: {}]
  %s1 = sld [smem:[%s0]]
  %s2 = scalar_lea.smem %s0, 1
  %s3 = sld [smem:[%s2]]
  %s4 = scalar_lea.smem %s0, 2
  %s5 = sld [smem:[%s4]]
  %s6 = scalar_lea.smem %s0, 3
  %s7 = sld [smem:[%s6]]
  %s8 = scalar_lea.smem %s0, 4
  %s9 = sld [smem:[%s8]]
  %s10 = scalar_lea.smem %s0, 5
  %s11 = sld [smem:[%s10]]
  %s12 = scalar_lea.smem %s0, 6
  %s13 = sld [smem:[%s12]]
  %s14 = scalar_lea.smem %s0, 7
  %s15 = sld [smem:[%s14]]
  %s16 = scalar_lea.smem %s0, 8
  %s17 = sld [smem:[%s16]]
  %s18 = scalar_lea.smem %s0, 9
  %s19 = sld [smem:[%s18]]
  %s20 = scalar_lea.smem %s0, 10
  %s21 = sld [smem:[%s20]]
  %s22 = scalar_lea.smem %s0, 11
  %s23 = sld [smem:[%s22]]
  %s24 = scalar_lea.smem %s0, 12
  %s25 = sld [smem:[%s24]]
  %s26 = scalar_lea.smem %s0, 13
  %s27 = sld [smem:[%s26]]
  %s28 = scalar_lea.smem %s0, 14
  %s29 = sld [smem:[%s28]]
  %s30 = scalar_lea.smem %s0, 15
  %s31 = sld [smem:[%s30]]
  %s32 = scalar_lea.smem %s0, 16
  %s33 = sld [smem:[%s32]]
  %s34 = scalar_lea.smem %s0, 17
  %s35 = sld [smem:[%s34]]
  %s36 = scalar_lea.smem %s0, 18
  %s37 = sld [smem:[%s36]]
  %s38 = scalar_lea.smem %s0, 19
  %s39 = sld [smem:[%s38]]
  %s40 = scalar_lea.smem %s0, 20
  %s41 = sld [smem:[%s40]]
  %s42 = scalar_lea.smem %s0, 21
  %s43 = sld [smem:[%s42]]
  %s44 = scalar_lea.smem %s0, 22
  %s45 = sld [smem:[%s44]]
  %s46 = scalar_lea.smem %s0, 23
  %s47 = sld [smem:[%s46]]
  %s48 = scalar_lea.smem %s0, 24
  %s49 = sld [smem:[%s48]]
  %s50 = scalar_lea.smem %s0, 25
  %s51 = sld [smem:[%s50]]
  %s52 = scalar_lea.smem %s0, 26
  %s53 = sld [smem:[%s52]]
  %s54 = scalar_lea.smem %s0, 27
  %s55 = sld [smem:[%s54]]
  %s56 = scalar_lea.smem %s0, 28
  %s57 = sld [smem:[%s56]]
  %s58 = scalar_lea.smem %s0, 29
  %s59 = sld [smem:[%s58]]
  %s60 = scalar_lea.smem %s0, 30
  %s61 = sld [smem:[%s60]]
  %s62 = scalar_lea.smem %s0, 31
  %s63 = sld [smem:[%s62]]
  %s64 = scalar_lea.smem %s0, 32
  %s65 = sld [smem:[%s64]]
  %s66 = scalar_lea.smem %s0, 33
  %s67 = sld [smem:[%s66]]
  %s68 = scalar_lea.smem %s0, 34
  %s69 = sld [smem:[%s68]]
  %s70 = scalar_lea.smem %s0, 35
  %s71 = sld [smem:[%s70]]
  %s72 = scalar_lea.smem %s0, 36
  %s73 = sld [smem:[%s72]]
  %s74 = scalar_lea.smem %s0, 37
  %s75 = sld [smem:[%s74]]
  %s76 = scalar_lea.smem %s0, 38
  %s77 = sld [smem:[%s76]]
  %s78 = scalar_lea.smem %s0, 39
  %s79 = sld [smem:[%s78]]
  %s80 = scalar_lea.smem %s0, 40
  %s81 = sld [smem:[%s80]]
  %s82 = scalar_lea.smem %s0, 41
  %s83 = sld [smem:[%s82]]
  %s84 = scalar_lea.smem %s0, 42
  %s85 = sld [smem:[%s84]]
  %s86 = scalar_lea.smem %s0, 43
  %s87 = sld [smem:[%s86]]
  %s88 = scalar_lea.smem %s0, 44
  %s89 = sld [smem:[%s88]]
  %s90 = scalar_lea.smem %s0, 45
  %s91 = sld [smem:[%s90]]
  %s92 = scalar_lea.smem %s0, 46
  %s93 = sld [smem:[%s92]]
  %s94 = sld [smem:[#allocation0]]
  $region222: #{_lambda_.1} parent=0
    _
  %s96 = ssub.s32 1, %s94
  %s97 = scalar_select 0, %s96, %s94
  $region1: #{_lambda_.1} parent=0
    #allocation2 [shape = 'u8[512]{0}', space=vmem, size = 0x400, scoped, tag = 'input window, operand 5, single buffered']
    #allocation3 [shape = 's32[1]{0}', space=sflag, size = 0x4, scoped, tag = 'scoped memory for _lambda_.1']
    #allocation4 [shape = 's32[1]{0}', space=sflag, size = 0x4, scoped, tag = 'scoped memory for _lambda_.1']
    #allocation5 [shape = 'u8[512]{0}', space=vmem, size = 0x400, scoped, tag = 'input window, operand 9, single buffered']
    #allocation6 [shape = 's32[1]{0}', space=sflag, size = 0x4, scoped, tag = 'scoped memory for _lambda_.1']
    #allocation7 [shape = 'u8[512]{0}', space=vmem, size = 0x400, scoped, tag = 'input window, operand 10, single buffered']
    #allocation8 [shape = 'u8[24576]{0}', space=vmem, size = 0x6000, scoped, tag = 'input window, operand 11, single buffered']
    #allocation9 [shape = 's32[1]{0}', space=sflag, size = 0x4, scoped, tag = 'scoped memory for _lambda_.1']
    #allocation10 [shape = 'u8[512]{0}', space=vmem, size = 0x400, scoped, tag = 'input window, operand 14, single buffered']
    #allocation11 [shape = 'u8[512]{0}', space=vmem, size = 0x400, scoped, tag = 'input window, operand 15, single buffered']
    #allocation12 [shape = 's32[1]{0}', space=sflag, size = 0x4, scoped, tag = 'scoped memory for _lambda_.1']
    #allocation13 [shape = 'u8[512]{0}', space=vmem, size = 0x400, scoped, tag = 'input window, operand 19, single buffered']
    #allocation14 [shape = 'u8[1024]{0}', space=vmem, size = 0x400, scoped, tag = 'output window, operand 0, single buffered']
    %98 = vsyncpa [#allocation3], 0
    %99 = vsyncpa [#allocation6], 0
    %100 = vsyncpa [#allocation9], 0
    %101 = vsyncpa [#allocation12], 0
    %102 = vsyncpa [#allocation4], 0
    // Predicated region
    $region2: #{_lambda_.1} parent=1 // pred_check
      _
    $region3: #{_lambda_.1} parent=1 // pred_check_branch
      %104 = sbr.rel (0) target = $region5
    $region4: #{_lambda_.1} parent=1 // pred_region
      _
    $region5: #{_lambda_.1} parent=1 // pred_fallthru
      _
    // Predicated region
    $region6: #{_lambda_.1} parent=1 // pred_check
      _
    $region7: #{_lambda_.1} parent=1 // pred_check_branch
      %106 = sbr.rel (0) target = $region9
    $region8: #{_lambda_.1} parent=1 // pred_region
      _
    $region9: #{_lambda_.1} parent=1 // pred_fallthru
      _
    // Predicated region
    $region10: #{_lambda_.1} parent=1 // pred_check
      _
    $region11: #{_lambda_.1} parent=1 // pred_check_branch
      %108 = sbr.rel (0) target = $region13
    $region12: #{_lambda_.1} parent=1 // pred_region
      _
    $region13: #{_lambda_.1} parent=1 // pred_fallthru
      _
    // Predicated region
    $region14: #{_lambda_.1} parent=1 // pred_check
      _
    $region15: #{_lambda_.1} parent=1 // pred_check_branch
      %110 = sbr.rel (0) target = $region17
    $region16: #{_lambda_.1} parent=1 // pred_region
      _
    $region17: #{_lambda_.1} parent=1 // pred_fallthru
      _
    // Predicated region
    $region18: #{_lambda_.1} parent=1 // pred_check
      _
    $region19: #{_lambda_.1} parent=1 // pred_check_branch
      %112 = sbr.rel (0) target = $region21
    $region20: #{_lambda_.1} parent=1 // pred_region
      _
    $region21: #{_lambda_.1} parent=1 // pred_fallthru
      _
    // Predicated region
    $region22: #{_lambda_.1} parent=1 // pred_check
      _
    $region23: #{_lambda_.1} parent=1 // pred_check_branch
      %114 = sbr.rel (0) target = $region25
    $region24: #{_lambda_.1} parent=1 // pred_region
      %s116 = ssub.s32 16, 16
      %117 = vsyncadd [#allocation3], %s116
      %s119 = sshll.u32 [#allocation2], 4
      %s120 = int_to_ptr.vmem [resolvable:$true] %s119
      %122 = dma.hbm_to_vmem [thread:$0]  %s11, 16, %s120, [#allocation3]
    $region25: #{_lambda_.1} parent=1 // pred_fallthru
      _
    // Predicated region
    $region26: #{_lambda_.1} parent=1 // pred_check
      _
    $region27: #{_lambda_.1} parent=1 // pred_check_branch
      %124 = sbr.rel (0) target = $region29
    $region28: #{_lambda_.1} parent=1 // pred_region
      _
    $region29: #{_lambda_.1} parent=1 // pred_fallthru
      _
    // Predicated region
    $region30: #{_lambda_.1} parent=1 // pred_check
      _
    $region31: #{_lambda_.1} parent=1 // pred_check_branch
      %126 = sbr.rel (0) target = $region33
    $region32: #{_lambda_.1} parent=1 // pred_region
      _
    $region33: #{_lambda_.1} parent=1 // pred_fallthru
      _
    // Predicated region
    $region34: #{_lambda_.1} parent=1 // pred_check
      _
    $region35: #{_lambda_.1} parent=1 // pred_check_branch
      %128 = sbr.rel (0) target = $region37
    $region36: #{_lambda_.1} parent=1 // pred_region
      _
    $region37: #{_lambda_.1} parent=1 // pred_fallthru
      _
    // Predicated region
    $region38: #{_lambda_.1} parent=1 // pred_check
      _
    $region39: #{_lambda_.1} parent=1 // pred_check_branch
      %130 = sbr.rel (0) target = $region41
    $region40: #{_lambda_.1} parent=1 // pred_region
      %s132 = ssub.s32 16, 16
      %133 = vsyncadd [#allocation6], %s132
      %s135 = sshll.u32 [#allocation5], 4
      %s136 = int_to_ptr.vmem [resolvable:$true] %s135
      %138 = dma.hbm_to_vmem [thread:$0]  %s19, 16, %s136, [#allocation6]
    $region41: #{_lambda_.1} parent=1 // pred_fallthru
      _
    // Predicated region
    $region42: #{_lambda_.1} parent=1 // pred_check
      _
    $region43: #{_lambda_.1} parent=1 // pred_check_branch
      %140 = sbr.rel (0) target = $region45
    $region44: #{_lambda_.1} parent=1 // pred_region
      %s142 = ssub.s32 16, 16
      %143 = vsyncadd [#allocation6], %s142
      %s145 = sshll.u32 [#allocation7], 4
      %s146 = int_to_ptr.vmem [resolvable:$true] %s145
      %148 = dma.hbm_to_vmem [thread:$0]  %s21, 16, %s146, [#allocation6]
    $region45: #{_lambda_.1} parent=1 // pred_fallthru
      _
    // Predicated region
    $region46: #{_lambda_.1} parent=1 // pred_check
      _
    $region47: #{_lambda_.1} parent=1 // pred_check_branch
      %150 = sbr.rel (0) target = $region49
    $region48: #{_lambda_.1} parent=1 // pred_region
      %s152 = ssub.s32 768, 768
      %153 = vsyncadd [#allocation9], %s152
      %s154 = sshll.u32 [#allocation8], 4
      %s155 = int_to_ptr.vmem [resolvable:$true] %s154
      %160 = dma.hbm_to_vmem [thread:$0]  %s23, 768, %s155, [#allocation9], 128, 128, 8
    $region49: #{_lambda_.1} parent=1 // pred_fallthru
      _
    // Predicated region
    $region50: #{_lambda_.1} parent=1 // pred_check
      _
    $region51: #{_lambda_.1} parent=1 // pred_check_branch
      %162 = sbr.rel (0) target = $region53
    $region52: #{_lambda_.1} parent=1 // pred_region
      _
    $region53: #{_lambda_.1} parent=1 // pred_fallthru
      _
    // Predicated region
    $region54: #{_lambda_.1} parent=1 // pred_check
      _
    $region55: #{_lambda_.1} parent=1 // pred_check_branch
      %164 = sbr.rel (0) target = $region57
    $region56: #{_lambda_.1} parent=1 // pred_region
      _
    $region57: #{_lambda_.1} parent=1 // pred_fallthru
      _
    // Predicated region
    $region58: #{_lambda_.1} parent=1 // pred_check
      _
    $region59: #{_lambda_.1} parent=1 // pred_check_branch
      %166 = sbr.rel (0) target = $region61
    $region60: #{_lambda_.1} parent=1 // pred_region
      %s168 = ssub.s32 16, 16
      %169 = vsyncadd [#allocation9], %s168
      %s171 = sshll.u32 [#allocation10], 4
      %s172 = int_to_ptr.vmem [resolvable:$true] %s171
      %174 = dma.hbm_to_vmem [thread:$0]  %s29, 16, %s172, [#allocation9]
    $region61: #{_lambda_.1} parent=1 // pred_fallthru
      _
    // Predicated region
    $region62: #{_lambda_.1} parent=1 // pred_check
      _
    $region63: #{_lambda_.1} parent=1 // pred_check_branch
      %176 = sbr.rel (0) target = $region65
    $region64: #{_lambda_.1} parent=1 // pred_region
      %s178 = ssub.s32 16, 16
      %179 = vsyncadd [#allocation12], %s178
      %s181 = sshll.u32 [#allocation11], 4
      %s182 = int_to_ptr.vmem [resolvable:$true] %s181
      %184 = dma.hbm_to_vmem [thread:$0]  %s31, 16, %s182, [#allocation12]
    $region65: #{_lambda_.1} parent=1 // pred_fallthru
      _
    // Predicated region
    $region66: #{_lambda_.1} parent=1 // pred_check
      _
    $region67: #{_lambda_.1} parent=1 // pred_check_branch
      %186 = sbr.rel (0) target = $region69
    $region68: #{_lambda_.1} parent=1 // pred_region
      _
    $region69: #{_lambda_.1} parent=1 // pred_fallthru
      _
    // Predicated region
    $region70: #{_lambda_.1} parent=1 // pred_check
      _
    $region71: #{_lambda_.1} parent=1 // pred_check_branch
      %188 = sbr.rel (0) target = $region73
    $region72: #{_lambda_.1} parent=1 // pred_region
      _
    $region73: #{_lambda_.1} parent=1 // pred_fallthru
      _
    // Predicated region
    $region74: #{_lambda_.1} parent=1 // pred_check
      _
    $region75: #{_lambda_.1} parent=1 // pred_check_branch
      %190 = sbr.rel (0) target = $region77
    $region76: #{_lambda_.1} parent=1 // pred_region
      _
    $region77: #{_lambda_.1} parent=1 // pred_fallthru
      _
    // Predicated region
    $region78: #{_lambda_.1} parent=1 // pred_check
      _
    $region79: #{_lambda_.1} parent=1 // pred_check_branch
      %192 = sbr.rel (0) target = $region81
    $region80: #{_lambda_.1} parent=1 // pred_region
      %s194 = ssub.s32 16, 16
      %195 = vsyncadd [#allocation12], %s194
      %s197 = sshll.u32 [#allocation13], 4
      %s198 = int_to_ptr.vmem [resolvable:$true] %s197
      %200 = dma.hbm_to_vmem [thread:$0]  %s39, 16, %s198, [#allocation12]
    $region81: #{_lambda_.1} parent=1 // pred_fallthru
      _
    // Predicated region
    $region82: #{_lambda_.1} parent=1 // pred_check
      _
    $region83: #{_lambda_.1} parent=1 // pred_check_branch
      %202 = sbr.rel (0) target = $region85
    $region84: #{_lambda_.1} parent=1 // pred_region
      _
    $region85: #{_lambda_.1} parent=1 // pred_fallthru
      _
    // Predicated region
    $region86: #{_lambda_.1} parent=1 // pred_check
      _
    $region87: #{_lambda_.1} parent=1 // pred_check_branch
      %204 = sbr.rel (0) target = $region89
    $region88: #{_lambda_.1} parent=1 // pred_region
      _
    $region89: #{_lambda_.1} parent=1 // pred_fallthru
      _
    // Predicated region
    $region90: #{_lambda_.1} parent=1 // pred_check
      _
    $region91: #{_lambda_.1} parent=1 // pred_check_branch
      %206 = sbr.rel (0) target = $region93
    $region92: #{_lambda_.1} parent=1 // pred_region
      _
    $region93: #{_lambda_.1} parent=1 // pred_fallthru
      _
    // Predicated region
    $region94: #{_lambda_.1} parent=1 // pred_check
      _
    $region95: #{_lambda_.1} parent=1 // pred_check_branch
      %208 = sbr.rel (0) target = $region97
    $region96: #{_lambda_.1} parent=1 // pred_region
      _
    $region97: #{_lambda_.1} parent=1 // pred_fallthru
      _
    // Predicated region
    $region98: #{_lambda_.1} parent=1 // pred_check
      _
    $region99: #{_lambda_.1} parent=1 // pred_check_branch
      %210 = sbr.rel (0) target = $region101
    $region100: #{_lambda_.1} parent=1 // pred_region
      _
    $region101: #{_lambda_.1} parent=1 // pred_fallthru
      _
    // Predicated region
    $region102: #{_lambda_.1} parent=1 // pred_check
      _
    $region103: #{_lambda_.1} parent=1 // pred_check_branch
      %212 = sbr.rel (0) target = $region105
    $region104: #{_lambda_.1} parent=1 // pred_region
      _
    $region105: #{_lambda_.1} parent=1 // pred_fallthru
      _
    // Predicated region
    $region106: #{_lambda_.1} parent=1 // pred_check
      _
    $region107: #{_lambda_.1} parent=1 // pred_check_branch
      %214 = sbr.rel (0) target = $region109
    $region108: #{_lambda_.1} parent=1 // pred_region
      _
    $region109: #{_lambda_.1} parent=1 // pred_fallthru
      _
    // Predicated region
    $region110: #{_lambda_.1} parent=1 // pred_check
      _
    $region111: #{_lambda_.1} parent=1 // pred_check_branch
      %216 = sbr.rel (0) target = $region113
    $region112: #{_lambda_.1} parent=1 // pred_region
      _
    $region113: #{_lambda_.1} parent=1 // pred_fallthru
      _
    // Predicated region
    $region114: #{_lambda_.1} parent=1 // pred_check
      _
    $region115: #{_lambda_.1} parent=1 // pred_check_branch
      %218 = sbr.rel (0) target = $region117
    $region116: #{_lambda_.1} parent=1 // pred_region
      _
    $region117: #{_lambda_.1} parent=1 // pred_fallthru
      _
    // Predicated region
    $region118: #{_lambda_.1} parent=1 // pred_check
      _
    $region119: #{_lambda_.1} parent=1 // pred_check_branch
      %220 = sbr.rel (0) target = $region121
    $region120: #{_lambda_.1} parent=1 // pred_region
      _
    $region121: #{_lambda_.1} parent=1 // pred_fallthru
      _
    // Predicated region
    $region122: #{_lambda_.1} parent=1 // pred_check
      _
    $region123: #{_lambda_.1} parent=1 // pred_check_branch
      %222 = sbr.rel (0) target = $region125
    $region124: #{_lambda_.1} parent=1 // pred_region
      _
    $region125: #{_lambda_.1} parent=1 // pred_fallthru
      _
    // Predicated region
    $region126: #{_lambda_.1} parent=1 // pred_check
      _
    $region127: #{_lambda_.1} parent=1 // pred_check_branch
      %224 = sbr.rel (0) target = $region129
    $region128: #{_lambda_.1} parent=1 // pred_region
      _
    $region129: #{_lambda_.1} parent=1 // pred_fallthru
      _
    // Predicated region
    $region130: #{_lambda_.1} parent=1 // pred_check
      _
    $region131: #{_lambda_.1} parent=1 // pred_check_branch
      %226 = sbr.rel (0) target = $region133
    $region132: #{_lambda_.1} parent=1 // pred_region
      _
    $region133: #{_lambda_.1} parent=1 // pred_fallthru
      _
    // Predicated region
    $region134: #{_lambda_.1} parent=1 // pred_check
      _
    $region135: #{_lambda_.1} parent=1 // pred_check_branch
      %228 = sbr.rel (0) target = $region137
    $region136: #{_lambda_.1} parent=1 // pred_region
      _
    $region137: #{_lambda_.1} parent=1 // pred_fallthru
      _
    // Predicated region
    $region138: #{_lambda_.1} parent=1 // pred_check
      _
    $region139: #{_lambda_.1} parent=1 // pred_check_branch
      %230 = sbr.rel (0) target = $region141
    $region140: #{_lambda_.1} parent=1 // pred_region
      _
    $region141: #{_lambda_.1} parent=1 // pred_fallthru
      _
    // Predicated region
    $region142: #{_lambda_.1} parent=1 // pred_check
      _
    $region143: #{_lambda_.1} parent=1 // pred_check_branch
      %232 = sbr.rel (0) target = $region145
    $region144: #{_lambda_.1} parent=1 // pred_region
      _
    $region145: #{_lambda_.1} parent=1 // pred_fallthru
      _
    // Predicated region
    $region146: #{_lambda_.1} parent=1 // pred_check
      _
    $region147: #{_lambda_.1} parent=1 // pred_check_branch
      %234 = sbr.rel (0) target = $region149
    $region148: #{_lambda_.1} parent=1 // pred_region
      _
    $region149: #{_lambda_.1} parent=1 // pred_fallthru
      _
    // Predicated region
    $region150: #{_lambda_.1} parent=1 // pred_check
      _
    $region151: #{_lambda_.1} parent=1 // pred_check_branch
      %236 = sbr.rel (0) target = $region153
    $region152: #{_lambda_.1} parent=1 // pred_region
      _
    $region153: #{_lambda_.1} parent=1 // pred_fallthru
      _
    // Predicated region
    $region154: #{_lambda_.1} parent=1 // pred_check
      _
    $region155: #{_lambda_.1} parent=1 // pred_check_branch
      %238 = sbr.rel (0) target = $region157
    $region156: #{_lambda_.1} parent=1 // pred_region
      _
    $region157: #{_lambda_.1} parent=1 // pred_fallthru
      _
    // Predicated region
    $region158: #{_lambda_.1} parent=1 // pred_check
      _
    $region159: #{_lambda_.1} parent=1 // pred_check_branch
      %240 = sbr.rel (0) target = $region161
    $region160: #{_lambda_.1} parent=1 // pred_region
      _
    $region161: #{_lambda_.1} parent=1 // pred_fallthru
      _
    // Predicated region
    $region162: #{_lambda_.1} parent=1 // pred_check
      _
    $region163: #{_lambda_.1} parent=1 // pred_check_branch
      %242 = sbr.rel (0) target = $region165
    $region164: #{_lambda_.1} parent=1 // pred_region
      _
    $region165: #{_lambda_.1} parent=1 // pred_fallthru
      _
    // Predicated region
    $region166: #{_lambda_.1} parent=1 // pred_check
      _
    $region167: #{_lambda_.1} parent=1 // pred_check_branch
      %244 = sbr.rel (0) target = $region169
    $region168: #{_lambda_.1} parent=1 // pred_region
      _
    $region169: #{_lambda_.1} parent=1 // pred_fallthru
      _
    // Predicated region
    $region170: #{_lambda_.1} parent=1 // pred_check
      _
    $region171: #{_lambda_.1} parent=1 // pred_check_branch
      %246 = sbr.rel (0) target = $region173
    $region172: #{_lambda_.1} parent=1 // pred_region
      _
    $region173: #{_lambda_.1} parent=1 // pred_fallthru
      _
    // Predicated region
    $region174: #{_lambda_.1} parent=1 // pred_check
      _
    $region175: #{_lambda_.1} parent=1 // pred_check_branch
      %248 = sbr.rel (0) target = $region177
    $region176: #{_lambda_.1} parent=1 // pred_region
      _
    $region177: #{_lambda_.1} parent=1 // pred_fallthru
      _
    // Predicated region
    $region178: #{_lambda_.1} parent=1 // pred_check
      _
    $region179: #{_lambda_.1} parent=1 // pred_check_branch
      %250 = sbr.rel (0) target = $region181
    $region180: #{_lambda_.1} parent=1 // pred_region
      _
    $region181: #{_lambda_.1} parent=1 // pred_fallthru
      _
    // Predicated region
    $region182: #{_lambda_.1} parent=1 // pred_check
      _
    $region183: #{_lambda_.1} parent=1 // pred_check_branch
      %252 = sbr.rel (0) target = $region185
    $region184: #{_lambda_.1} parent=1 // pred_region
      _
    $region185: #{_lambda_.1} parent=1 // pred_fallthru
      _
    // Predicated region
    $region186: #{_lambda_.1} parent=1 // pred_check
      _
    $region187: #{_lambda_.1} parent=1 // pred_check_branch
      %254 = sbr.rel (0) target = $region189
    $region188: #{_lambda_.1} parent=1 // pred_region
      %255 = dma.done [#allocation3], 16
    $region189: #{_lambda_.1} parent=1 // pred_fallthru
      _
    // Predicated region
    $region190: #{_lambda_.1} parent=1 // pred_check
      _
    $region191: #{_lambda_.1} parent=1 // pred_check_branch
      %257 = sbr.rel (0) target = $region193
    $region192: #{_lambda_.1} parent=1 // pred_region
      %258 = dma.done [#allocation6], 16
    $region193: #{_lambda_.1} parent=1 // pred_fallthru
      _
    // Predicated region
    $region194: #{_lambda_.1} parent=1 // pred_check
      _
    $region195: #{_lambda_.1} parent=1 // pred_check_branch
      %260 = sbr.rel (0) target = $region197
    $region196: #{_lambda_.1} parent=1 // pred_region
      %261 = dma.done [#allocation6], 16
    $region197: #{_lambda_.1} parent=1 // pred_fallthru
      _
    // Predicated region
    $region198: #{_lambda_.1} parent=1 // pred_check
      _
    $region199: #{_lambda_.1} parent=1 // pred_check_branch
      %263 = sbr.rel (0) target = $region201
    $region200: #{_lambda_.1} parent=1 // pred_region
      %264 = dma.done [#allocation9], 768
    $region201: #{_lambda_.1} parent=1 // pred_fallthru
      _
    // Predicated region
    $region202: #{_lambda_.1} parent=1 // pred_check
      _
    $region203: #{_lambda_.1} parent=1 // pred_check_branch
      %266 = sbr.rel (0) target = $region205
    $region204: #{_lambda_.1} parent=1 // pred_region
      %267 = dma.done [#allocation9], 16
    $region205: #{_lambda_.1} parent=1 // pred_fallthru
      _
    // Predicated region
    $region206: #{_lambda_.1} parent=1 // pred_check
      _
    $region207: #{_lambda_.1} parent=1 // pred_check_branch
      %269 = sbr.rel (0) target = $region209
    $region208: #{_lambda_.1} parent=1 // pred_region
      %270 = dma.done [#allocation12], 16
    $region209: #{_lambda_.1} parent=1 // pred_fallthru
      _
    // Predicated region
    $region210: #{_lambda_.1} parent=1 // pred_check
      _
    $region211: #{_lambda_.1} parent=1 // pred_check_branch
      %272 = sbr.rel (0) target = $region213
    $region212: #{_lambda_.1} parent=1 // pred_region
      %273 = dma.done [#allocation12], 16
    $region213: #{_lambda_.1} parent=1 // pred_fallthru
      _
    %v274 = vld [vmem:[%s1] sm:$0xff]
    %v275 = vld [vmem:[%s1 + $0x8] sm:$0xff]
    %v276 = vld [vmem:[%s1 + $0x10] sm:$0xff]
    %v277 = vld [vmem:[%s1 + $0x18] sm:$0xff]
    %v278 = vld [vmem:[%s3] sm:$0xff]
    %v279 = vld [vmem:[%s3 + $0x8] sm:$0xff]
    %v280 = vld [vmem:[%s3 + $0x10] sm:$0xff]
    %v281 = vld [vmem:[%s3 + $0x18] sm:$0xff]
    %vm282 = vcmask 261120
    %v284 = vsel %vm282, %v278, 0
    %v287 = vsel %vm282, %v279, 0
    %v290 = vsel %vm282, %v280, 0
    %v293 = vsel %vm282, %v281, 0
    %295 = vmatprep.subr.mxu0 0.0
    %296 = vmatpush1.msra.mxu0 %v274
    %297 = vmatprep.subr.mxu0 0.0
    %298 = vmatpush1.msra.mxu0 %v275
    %299 = vmatprep.subr.mxu0 0.0
    %300 = vmatpush1.msra.mxu0 %v276
    %301 = vmatprep.subr.mxu0 0.0
    %302 = vmatpush1.msra.mxu0 %v277
    %303 = vmatprep.subr.mxu0 0.0
    %304 = vmatpush1.msra.mxu0 0.0
    %305 = vmatprep.subr.mxu0 0.0
    %306 = vmatpush1.msra.mxu0 0.0
    %307 = vmatprep.subr.mxu0 0.0
    %308 = vmatpush1.msra.mxu0 0.0
    %309 = vmatprep.subr.mxu0 0.0
    %310 = vmatpush1.msra.mxu0 0.0
    %311 = vmatprep.subr.mxu0 0.0
    %312 = vmatpush1.msra.mxu0 0.0
    %313 = vmatprep.subr.mxu0 0.0
    %314 = vmatpush1.msra.mxu0 0.0
    %315 = vmatprep.subr.mxu0 0.0
    %316 = vmatpush1.msra.mxu0 0.0
    %317 = vmatprep.subr.mxu0 0.0
    %318 = vmatpush1.msra.mxu0 0.0
    %319 = vmatprep.subr.mxu0 0.0
    %320 = vmatpush1.msra.mxu0 0.0
    %321 = vmatprep.subr.mxu0 0.0
    %322 = vmatpush1.msra.mxu0 0.0
    %323 = vmatprep.subr.mxu0 0.0
    %324 = vmatpush1.msra.mxu0 0.0
    %325 = vmatprep.subr.mxu0 0.0
    %326 = vmatpush1.msra.mxu0 0.0
    %327 = vmatprep.subr.mxu0 0.0
    %328 = vmatpush1.msra.mxu0 0.0
    %329 = vmatprep.subr.mxu0 0.0
    %330 = vmatpush1.msra.mxu0 0.0
    %331 = vmatprep.subr.mxu0 0.0
    %332 = vmatpush1.msra.mxu0 0.0
    %333 = vmatprep.subr.mxu0 0.0
    %334 = vmatpush1.msra.mxu0 0.0
    %335 = vmatprep.subr.mxu0 0.0
    %336 = vmatpush1.msra.mxu0 0.0
    %337 = vmatprep.subr.mxu0 0.0
    %338 = vmatpush1.msra.mxu0 0.0
    %339 = vmatprep.subr.mxu0 0.0
    %340 = vmatpush1.msra.mxu0 0.0
    %341 = vmatprep.subr.mxu0 0.0
    %342 = vmatpush1.msra.mxu0 0.0
    %343 = vmatprep.subr.mxu0 0.0
    %344 = vmatpush1.msra.mxu0 0.0
    %345 = vmatprep.subr.mxu0 0.0
    %346 = vmatpush1.msra.mxu0 0.0
    %347 = vmatprep.subr.mxu0 0.0
    %348 = vmatpush1.msra.mxu0 0.0
    %349 = vmatprep.subr.mxu0 0.0
    %350 = vmatpush1.msra.mxu0 0.0
    %351 = vmatprep.subr.mxu0 0.0
    %352 = vmatpush1.msra.mxu0 0.0
    %353 = vmatprep.subr.mxu0 0.0
    %354 = vmatpush1.msra.mxu0 0.0
    %355 = vmatprep.subr.mxu0 0.0
    %356 = vmatpush1.msra.mxu0 0.0
    %357 = vmatprep.subr.mxu0 0.0
    %358 = vmatpush1.msra.mxu0 0.0
    %359 = vmatprep.mubr.f32.mxu0 0.0
    %360 = vmatmul.mubr.f32.gmra.mrb[0].mxu0 %v284
    %v361 = vpop.f32.mrb[0].mxu0
    %v362 = vadd.f32 0.0, %v361
    %v363 = vpop.f32.mrb[0].mxu0
    %364 = vmatprep.mubr.f32.mxu0 0.0
    %365 = vmatmul.mubr.f32.gmra.mrb[0].mxu0 %v287
    %v366 = vpop.f32.mrb[0].mxu0
    %v367 = vadd.f32 0.0, %v366
    %v368 = vpop.f32.mrb[0].mxu0
    %369 = vmatprep.mubr.f32.mxu0 0.0
    %370 = vmatmul.mubr.f32.gmra.mrb[0].mxu0 %v290
    %v371 = vpop.f32.mrb[0].mxu0
    %v372 = vadd.f32 0.0, %v371
    %v373 = vpop.f32.mrb[0].mxu0
    %374 = vmatprep.mubr.f32.mxu0 0.0
    %375 = vmatmul.mubr.f32.gmra.mrb[0].mxu0 %v293
    %v376 = vpop.f32.mrb[0].mxu0
    %v377 = vadd.f32 0.0, %v376
    %v378 = vpop.f32.mrb[0].mxu0
    %379 = vdwg.mxu0
    %v380 = vld [vmem:[%s5] sm:$0xff]
    %v381 = vld [vmem:[%s5 + $0x8] sm:$0xff]
    %v382 = vld [vmem:[%s5 + $0x10] sm:$0xff]
    %v383 = vld [vmem:[%s5 + $0x18] sm:$0xff]
    %v384 = vld [vmem:[%s5 + $0x20] sm:$0xff]
    %v385 = vld [vmem:[%s5 + $0x28] sm:$0xff]
    %s386 = scalar_lea.vmem %s3, 32
    %v387 = vld [vmem:[%s386] sm:$0xff]
    %v388 = vld [vmem:[%s386 + $0x8] sm:$0xff]
    %v389 = vld [vmem:[%s386 + $0x10] sm:$0xff]
    %v390 = vld [vmem:[%s386 + $0x18] sm:$0xff]
    %v392 = vsel %vm282, %v387, 0
    %v395 = vsel %vm282, %v388, 0
    %v398 = vsel %vm282, %v389, 0
    %v401 = vsel %vm282, %v390, 0
    %403 = vmatprep.subr.mxu0 0.0
    %404 = vmatpush1.msra.mxu0 %v274
    %405 = vmatprep.subr.mxu0 0.0
    %406 = vmatpush1.msra.mxu0 %v275
    %407 = vmatprep.subr.mxu0 0.0
    %408 = vmatpush1.msra.mxu0 %v276
    %409 = vmatprep.subr.mxu0 0.0
    %410 = vmatpush1.msra.mxu0 %v277
    %411 = vmatprep.subr.mxu0 0.0
    %412 = vmatpush1.msra.mxu0 0.0
    %413 = vmatprep.subr.mxu0 0.0
    %414 = vmatpush1.msra.mxu0 0.0
    %415 = vmatprep.subr.mxu0 0.0
    %416 = vmatpush1.msra.mxu0 0.0
    %417 = vmatprep.subr.mxu0 0.0
    %418 = vmatpush1.msra.mxu0 0.0
    %419 = vmatprep.subr.mxu0 0.0
    %420 = vmatpush1.msra.mxu0 0.0
    %421 = vmatprep.subr.mxu0 0.0
    %422 = vmatpush1.msra.mxu0 0.0
    %423 = vmatprep.subr.mxu0 0.0
    %424 = vmatpush1.msra.mxu0 0.0
    %425 = vmatprep.subr.mxu0 0.0
    %426 = vmatpush1.msra.mxu0 0.0
    %427 = vmatprep.subr.mxu0 0.0
    %428 = vmatpush1.msra.mxu0 0.0
    %429 = vmatprep.subr.mxu0 0.0
    %430 = vmatpush1.msra.mxu0 0.0
    %431 = vmatprep.subr.mxu0 0.0
    %432 = vmatpush1.msra.mxu0 0.0
    %433 = vmatprep.subr.mxu0 0.0
    %434 = vmatpush1.msra.mxu0 0.0
    %435 = vmatprep.subr.mxu0 0.0
    %436 = vmatpush1.msra.mxu0 0.0
    %437 = vmatprep.subr.mxu0 0.0
    %438 = vmatpush1.msra.mxu0 0.0
    %439 = vmatprep.subr.mxu0 0.0
    %440 = vmatpush1.msra.mxu0 0.0
    %441 = vmatprep.subr.mxu0 0.0
    %442 = vmatpush1.msra.mxu0 0.0
    %443 = vmatprep.subr.mxu0 0.0
    %444 = vmatpush1.msra.mxu0 0.0
    %445 = vmatprep.subr.mxu0 0.0
    %446 = vmatpush1.msra.mxu0 0.0
    %447 = vmatprep.subr.mxu0 0.0
    %448 = vmatpush1.msra.mxu0 0.0
    %449 = vmatprep.subr.mxu0 0.0
    %450 = vmatpush1.msra.mxu0 0.0
    %451 = vmatprep.subr.mxu0 0.0
    %452 = vmatpush1.msra.mxu0 0.0
    %453 = vmatprep.subr.mxu0 0.0
    %454 = vmatpush1.msra.mxu0 0.0
    %455 = vmatprep.subr.mxu0 0.0
    %456 = vmatpush1.msra.mxu0 0.0
    %457 = vmatprep.subr.mxu0 0.0
    %458 = vmatpush1.msra.mxu0 0.0
    %459 = vmatprep.subr.mxu0 0.0
    %460 = vmatpush1.msra.mxu0 0.0
    %461 = vmatprep.subr.mxu0 0.0
    %462 = vmatpush1.msra.mxu0 0.0
    %463 = vmatprep.subr.mxu0 0.0
    %464 = vmatpush1.msra.mxu0 0.0
    %465 = vmatprep.subr.mxu0 0.0
    %466 = vmatpush1.msra.mxu0 0.0
    %467 = vmatprep.mubr.f32.mxu0 0.0
    %468 = vmatmul.mubr.f32.gmra.mrb[0].mxu0 %v392
    %v469 = vpop.f32.mrb[0].mxu0
    %v470 = vadd.f32 0.0, %v469
    %v471 = vpop.f32.mrb[0].mxu0
    %472 = vmatprep.mubr.f32.mxu0 0.0
    %473 = vmatmul.mubr.f32.gmra.mrb[0].mxu0 %v395
    %v474 = vpop.f32.mrb[0].mxu0
    %v475 = vadd.f32 0.0, %v474
    %v476 = vpop.f32.mrb[0].mxu0
    %477 = vmatprep.mubr.f32.mxu0 0.0
    %478 = vmatmul.mubr.f32.gmra.mrb[0].mxu0 %v398
    %v479 = vpop.f32.mrb[0].mxu0
    %v480 = vadd.f32 0.0, %v479
    %v481 = vpop.f32.mrb[0].mxu0
    %482 = vmatprep.mubr.f32.mxu0 0.0
    %483 = vmatmul.mubr.f32.gmra.mrb[0].mxu0 %v401
    %v484 = vpop.f32.mrb[0].mxu0
    %v485 = vadd.f32 0.0, %v484
    %v486 = vpop.f32.mrb[0].mxu0
    %487 = vdwg.mxu0
    %s488 = scalar_lea.vmem %s5, 48
    %v489 = vld [vmem:[%s488] sm:$0xff]
    %v490 = vld [vmem:[%s488 + $0x8] sm:$0xff]
    %v491 = vld [vmem:[%s488 + $0x10] sm:$0xff]
    %v492 = vld [vmem:[%s488 + $0x18] sm:$0xff]
    %v493 = vld [vmem:[%s488 + $0x20] sm:$0xff]
    %v494 = vld [vmem:[%s488 + $0x28] sm:$0xff]
    %vm495 = vcmask 392192
    %v497 = vsel %vm495, %v470, 0
    %v500 = vsel %vm495, %v475, 0
    %v503 = vsel %vm495, %v480, 0
    %v506 = vsel %vm495, %v485, 0
    %508 = vmatprep.subr.mxu0 0.0
    %509 = vmatpush1.msra.mxu0 %v489
    %510 = vmatprep.subr.mxu0 0.0
    %511 = vmatpush1.msra.mxu0 %v490
    %512 = vmatprep.subr.mxu0 0.0
    %513 = vmatpush1.msra.mxu0 %v491
    %514 = vmatprep.subr.mxu0 0.0
    %515 = vmatpush1.msra.mxu0 %v492
    %516 = vmatprep.subr.mxu0 0.0
    %517 = vmatpush1.msra.mxu0 %v493
    %518 = vmatprep.subr.mxu0 0.0
    %519 = vmatpush1.msra.mxu0 %v494
    %520 = vmatprep.subr.mxu0 0.0
    %521 = vmatpush1.msra.mxu0 0.0
    %522 = vmatprep.subr.mxu0 0.0
    %523 = vmatpush1.msra.mxu0 0.0
    %524 = vmatprep.subr.mxu0 0.0
    %525 = vmatpush1.msra.mxu0 0.0
    %526 = vmatprep.subr.mxu0 0.0
    %527 = vmatpush1.msra.mxu0 0.0
    %528 = vmatprep.subr.mxu0 0.0
    %529 = vmatpush1.msra.mxu0 0.0
    %530 = vmatprep.subr.mxu0 0.0
    %531 = vmatpush1.msra.mxu0 0.0
    %532 = vmatprep.subr.mxu0 0.0
    %533 = vmatpush1.msra.mxu0 0.0
    %534 = vmatprep.subr.mxu0 0.0
    %535 = vmatpush1.msra.mxu0 0.0
    %536 = vmatprep.subr.mxu0 0.0
    %537 = vmatpush1.msra.mxu0 0.0
    %538 = vmatprep.subr.mxu0 0.0
    %539 = vmatpush1.msra.mxu0 0.0
    %540 = vmatprep.subr.mxu0 0.0
    %541 = vmatpush1.msra.mxu0 0.0
    %542 = vmatprep.subr.mxu0 0.0
    %543 = vmatpush1.msra.mxu0 0.0
    %544 = vmatprep.subr.mxu0 0.0
    %545 = vmatpush1.msra.mxu0 0.0
    %546 = vmatprep.subr.mxu0 0.0
    %547 = vmatpush1.msra.mxu0 0.0
    %548 = vmatprep.subr.mxu0 0.0
    %549 = vmatpush1.msra.mxu0 0.0
    %550 = vmatprep.subr.mxu0 0.0
    %551 = vmatpush1.msra.mxu0 0.0
    %552 = vmatprep.subr.mxu0 0.0
    %553 = vmatpush1.msra.mxu0 0.0
    %554 = vmatprep.subr.mxu0 0.0
    %555 = vmatpush1.msra.mxu0 0.0
    %556 = vmatprep.subr.mxu0 0.0
    %557 = vmatpush1.msra.mxu0 0.0
    %558 = vmatprep.subr.mxu0 0.0
    %559 = vmatpush1.msra.mxu0 0.0
    %560 = vmatprep.subr.mxu0 0.0
    %561 = vmatpush1.msra.mxu0 0.0
    %562 = vmatprep.subr.mxu0 0.0
    %563 = vmatpush1.msra.mxu0 0.0
    %564 = vmatprep.subr.mxu0 0.0
    %565 = vmatpush1.msra.mxu0 0.0
    %566 = vmatprep.subr.mxu0 0.0
    %567 = vmatpush1.msra.mxu0 0.0
    %568 = vmatprep.subr.mxu0 0.0
    %569 = vmatpush1.msra.mxu0 0.0
    %570 = vmatprep.subr.mxu0 0.0
    %571 = vmatpush1.msra.mxu0 0.0
    %572 = vmatprep.mubr.f32.mxu0 0.0
    %573 = vmatmul.mubr.f32.gmra.mrb[0].mxu0 %v497
    %v574 = vpop.f32.mrb[0].mxu0
    %v575 = vadd.f32 0.0, %v574
    %v576 = vpop.f32.mrb[0].mxu0
    %577 = vmatprep.mubr.f32.mxu0 0.0
    %578 = vmatmul.mubr.f32.gmra.mrb[0].mxu0 %v500
    %v579 = vpop.f32.mrb[0].mxu0
    %v580 = vadd.f32 0.0, %v579
    %v581 = vpop.f32.mrb[0].mxu0
    %582 = vmatprep.mubr.f32.mxu0 0.0
    %583 = vmatmul.mubr.f32.gmra.mrb[0].mxu0 %v503
    %v584 = vpop.f32.mrb[0].mxu0
    %v585 = vadd.f32 0.0, %v584
    %v586 = vpop.f32.mrb[0].mxu0
    %587 = vmatprep.mubr.f32.mxu0 0.0
    %588 = vmatmul.mubr.f32.gmra.mrb[0].mxu0 %v506
    %v589 = vpop.f32.mrb[0].mxu0
    %v590 = vadd.f32 0.0, %v589
    %v591 = vpop.f32.mrb[0].mxu0
    %592 = vdwg.mxu0
    %v594 = vsel %vm495, %v362, 0
    %v597 = vsel %vm495, %v367, 0
    %v600 = vsel %vm495, %v372, 0
    %v603 = vsel %vm495, %v377, 0
    %605 = vmatprep.subr.mxu0 0.0
    %606 = vmatpush1.msra.mxu0 %v380
    %607 = vmatprep.subr.mxu0 0.0
    %608 = vmatpush1.msra.mxu0 %v381
    %609 = vmatprep.subr.mxu0 0.0
    %610 = vmatpush1.msra.mxu0 %v382
    %611 = vmatprep.subr.mxu0 0.0
    %612 = vmatpush1.msra.mxu0 %v383
    %613 = vmatprep.subr.mxu0 0.0
    %614 = vmatpush1.msra.mxu0 %v384
    %615 = vmatprep.subr.mxu0 0.0
    %616 = vmatpush1.msra.mxu0 %v385
    %617 = vmatprep.subr.mxu0 0.0
    %618 = vmatpush1.msra.mxu0 0.0
    %619 = vmatprep.subr.mxu0 0.0
    %620 = vmatpush1.msra.mxu0 0.0
    %621 = vmatprep.subr.mxu0 0.0
    %622 = vmatpush1.msra.mxu0 0.0
    %623 = vmatprep.subr.mxu0 0.0
    %624 = vmatpush1.msra.mxu0 0.0
    %625 = vmatprep.subr.mxu0 0.0
    %626 = vmatpush1.msra.mxu0 0.0
    %627 = vmatprep.subr.mxu0 0.0
    %628 = vmatpush1.msra.mxu0 0.0
    %629 = vmatprep.subr.mxu0 0.0
    %630 = vmatpush1.msra.mxu0 0.0
    %631 = vmatprep.subr.mxu0 0.0
    %632 = vmatpush1.msra.mxu0 0.0
    %633 = vmatprep.subr.mxu0 0.0
    %634 = vmatpush1.msra.mxu0 0.0
    %635 = vmatprep.subr.mxu0 0.0
    %636 = vmatpush1.msra.mxu0 0.0
    %637 = vmatprep.subr.mxu0 0.0
    %638 = vmatpush1.msra.mxu0 0.0
    %639 = vmatprep.subr.mxu0 0.0
    %640 = vmatpush1.msra.mxu0 0.0
    %641 = vmatprep.subr.mxu0 0.0
    %642 = vmatpush1.msra.mxu0 0.0
    %643 = vmatprep.subr.mxu0 0.0
    %644 = vmatpush1.msra.mxu0 0.0
    %645 = vmatprep.subr.mxu0 0.0
    %646 = vmatpush1.msra.mxu0 0.0
    %647 = vmatprep.subr.mxu0 0.0
    %648 = vmatpush1.msra.mxu0 0.0
    %649 = vmatprep.subr.mxu0 0.0
    %650 = vmatpush1.msra.mxu0 0.0
    %651 = vmatprep.subr.mxu0 0.0
    %652 = vmatpush1.msra.mxu0 0.0
    %653 = vmatprep.subr.mxu0 0.0
    %654 = vmatpush1.msra.mxu0 0.0
    %655 = vmatprep.subr.mxu0 0.0
    %656 = vmatpush1.msra.mxu0 0.0
    %657 = vmatprep.subr.mxu0 0.0
    %658 = vmatpush1.msra.mxu0 0.0
    %659 = vmatprep.subr.mxu0 0.0
    %660 = vmatpush1.msra.mxu0 0.0
    %661 = vmatprep.subr.mxu0 0.0
    %662 = vmatpush1.msra.mxu0 0.0
    %663 = vmatprep.subr.mxu0 0.0
    %664 = vmatpush1.msra.mxu0 0.0
    %665 = vmatprep.subr.mxu0 0.0
    %666 = vmatpush1.msra.mxu0 0.0
    %667 = vmatprep.subr.mxu0 0.0
    %668 = vmatpush1.msra.mxu0 0.0
    %669 = vmatprep.mubr.f32.mxu0 0.0
    %670 = vmatmul.mubr.f32.gmra.mrb[0].mxu0 %v594
    %v671 = vpop.f32.mrb[0].mxu0
    %v672 = vadd.f32 %v575, %v671
    %v673 = vpop.f32.mrb[0].mxu0
    %674 = vmatprep.mubr.f32.mxu0 0.0
    %675 = vmatmul.mubr.f32.gmra.mrb[0].mxu0 %v597
    %v676 = vpop.f32.mrb[0].mxu0
    %v677 = vadd.f32 %v580, %v676
    %v678 = vpop.f32.mrb[0].mxu0
    %679 = vmatprep.mubr.f32.mxu0 0.0
    %680 = vmatmul.mubr.f32.gmra.mrb[0].mxu0 %v600
    %v681 = vpop.f32.mrb[0].mxu0
    %v682 = vadd.f32 %v585, %v681
    %v683 = vpop.f32.mrb[0].mxu0
    %684 = vmatprep.mubr.f32.mxu0 0.0
    %685 = vmatmul.mubr.f32.gmra.mrb[0].mxu0 %v603
    %v686 = vpop.f32.mrb[0].mxu0
    %v687 = vadd.f32 %v590, %v686
    %v688 = vpop.f32.mrb[0].mxu0
    %689 = vdwg.mxu0
    %s690 = scalar_lea.vmem %s3, 64
    %v691 = vld [vmem:[%s690] sm:$0xff]
    %v692 = vld [vmem:[%s690 + $0x8] sm:$0xff]
    %v693 = vld [vmem:[%s690 + $0x10] sm:$0xff]
    %v694 = vld [vmem:[%s690 + $0x18] sm:$0xff]
    %v696 = vsel %vm282, %v691, 0
    %v699 = vsel %vm282, %v692, 0
    %v702 = vsel %vm282, %v693, 0
    %v705 = vsel %vm282, %v694, 0
    %707 = vmatprep.subr.mxu0 0.0
    %708 = vmatpush1.msra.mxu0 %v274
    %709 = vmatprep.subr.mxu0 0.0
    %710 = vmatpush1.msra.mxu0 %v275
    %711 = vmatprep.subr.mxu0 0.0
    %712 = vmatpush1.msra.mxu0 %v276
    %713 = vmatprep.subr.mxu0 0.0
    %714 = vmatpush1.msra.mxu0 %v277
    %715 = vmatprep.subr.mxu0 0.0
    %716 = vmatpush1.msra.mxu0 0.0
    %717 = vmatprep.subr.mxu0 0.0
    %718 = vmatpush1.msra.mxu0 0.0
    %719 = vmatprep.subr.mxu0 0.0
    %720 = vmatpush1.msra.mxu0 0.0
    %721 = vmatprep.subr.mxu0 0.0
    %722 = vmatpush1.msra.mxu0 0.0
    %723 = vmatprep.subr.mxu0 0.0
    %724 = vmatpush1.msra.mxu0 0.0
    %725 = vmatprep.subr.mxu0 0.0
    %726 = vmatpush1.msra.mxu0 0.0
    %727 = vmatprep.subr.mxu0 0.0
    %728 = vmatpush1.msra.mxu0 0.0
    %729 = vmatprep.subr.mxu0 0.0
    %730 = vmatpush1.msra.mxu0 0.0
    %731 = vmatprep.subr.mxu0 0.0
    %732 = vmatpush1.msra.mxu0 0.0
    %733 = vmatprep.subr.mxu0 0.0
    %734 = vmatpush1.msra.mxu0 0.0
    %735 = vmatprep.subr.mxu0 0.0
    %736 = vmatpush1.msra.mxu0 0.0
    %737 = vmatprep.subr.mxu0 0.0
    %738 = vmatpush1.msra.mxu0 0.0
    %739 = vmatprep.subr.mxu0 0.0
    %740 = vmatpush1.msra.mxu0 0.0
    %741 = vmatprep.subr.mxu0 0.0
    %742 = vmatpush1.msra.mxu0 0.0
    %743 = vmatprep.subr.mxu0 0.0
    %744 = vmatpush1.msra.mxu0 0.0
    %745 = vmatprep.subr.mxu0 0.0
    %746 = vmatpush1.msra.mxu0 0.0
    %747 = vmatprep.subr.mxu0 0.0
    %748 = vmatpush1.msra.mxu0 0.0
    %749 = vmatprep.subr.mxu0 0.0
    %750 = vmatpush1.msra.mxu0 0.0
    %751 = vmatprep.subr.mxu0 0.0
    %752 = vmatpush1.msra.mxu0 0.0
    %753 = vmatprep.subr.mxu0 0.0
    %754 = vmatpush1.msra.mxu0 0.0
    %755 = vmatprep.subr.mxu0 0.0
    %756 = vmatpush1.msra.mxu0 0.0
    %757 = vmatprep.subr.mxu0 0.0
    %758 = vmatpush1.msra.mxu0 0.0
    %759 = vmatprep.subr.mxu0 0.0
    %760 = vmatpush1.msra.mxu0 0.0
    %761 = vmatprep.subr.mxu0 0.0
    %762 = vmatpush1.msra.mxu0 0.0
    %763 = vmatprep.subr.mxu0 0.0
    %764 = vmatpush1.msra.mxu0 0.0
    %765 = vmatprep.subr.mxu0 0.0
    %766 = vmatpush1.msra.mxu0 0.0
    %767 = vmatprep.subr.mxu0 0.0
    %768 = vmatpush1.msra.mxu0 0.0
    %769 = vmatprep.subr.mxu0 0.0
    %770 = vmatpush1.msra.mxu0 0.0
    %771 = vmatprep.mubr.f32.mxu0 0.0
    %772 = vmatmul.mubr.f32.gmra.mrb[0].mxu0 %v696
    %v773 = vpop.f32.mrb[0].mxu0
    %v774 = vadd.f32 0.0, %v773
    %v775 = vpop.f32.mrb[0].mxu0
    %776 = vmatprep.mubr.f32.mxu0 0.0
    %777 = vmatmul.mubr.f32.gmra.mrb[0].mxu0 %v699
    %v778 = vpop.f32.mrb[0].mxu0
    %v779 = vadd.f32 0.0, %v778
    %v780 = vpop.f32.mrb[0].mxu0
    %781 = vmatprep.mubr.f32.mxu0 0.0
    %782 = vmatmul.mubr.f32.gmra.mrb[0].mxu0 %v702
    %v783 = vpop.f32.mrb[0].mxu0
    %v784 = vadd.f32 0.0, %v783
    %v785 = vpop.f32.mrb[0].mxu0
    %786 = vmatprep.mubr.f32.mxu0 0.0
    %787 = vmatmul.mubr.f32.gmra.mrb[0].mxu0 %v705
    %v788 = vpop.f32.mrb[0].mxu0
    %v789 = vadd.f32 0.0, %v788
    %v790 = vpop.f32.mrb[0].mxu0
    %791 = vdwg.mxu0
    %s792 = scalar_lea.vmem %s5, 96
    %v793 = vld [vmem:[%s792] sm:$0xff]
    %v794 = vld [vmem:[%s792 + $0x8] sm:$0xff]
    %v795 = vld [vmem:[%s792 + $0x10] sm:$0xff]
    %v796 = vld [vmem:[%s792 + $0x18] sm:$0xff]
    %v797 = vld [vmem:[%s792 + $0x20] sm:$0xff]
    %v798 = vld [vmem:[%s792 + $0x28] sm:$0xff]
    %v800 = vsel %vm495, %v774, 0
    %v803 = vsel %vm495, %v779, 0
    %v806 = vsel %vm495, %v784, 0
    %v809 = vsel %vm495, %v789, 0
    %811 = vmatprep.subr.mxu0 0.0
    %812 = vmatpush1.msra.mxu0 %v793
    %813 = vmatprep.subr.mxu0 0.0
    %814 = vmatpush1.msra.mxu0 %v794
    %815 = vmatprep.subr.mxu0 0.0
    %816 = vmatpush1.msra.mxu0 %v795
    %817 = vmatprep.subr.mxu0 0.0
    %818 = vmatpush1.msra.mxu0 %v796
    %819 = vmatprep.subr.mxu0 0.0
    %820 = vmatpush1.msra.mxu0 %v797
    %821 = vmatprep.subr.mxu0 0.0
    %822 = vmatpush1.msra.mxu0 %v798
    %823 = vmatprep.subr.mxu0 0.0
    %824 = vmatpush1.msra.mxu0 0.0
    %825 = vmatprep.subr.mxu0 0.0
    %826 = vmatpush1.msra.mxu0 0.0
    %827 = vmatprep.subr.mxu0 0.0
    %828 = vmatpush1.msra.mxu0 0.0
    %829 = vmatprep.subr.mxu0 0.0
    %830 = vmatpush1.msra.mxu0 0.0
    %831 = vmatprep.subr.mxu0 0.0
    %832 = vmatpush1.msra.mxu0 0.0
    %833 = vmatprep.subr.mxu0 0.0
    %834 = vmatpush1.msra.mxu0 0.0
    %835 = vmatprep.subr.mxu0 0.0
    %836 = vmatpush1.msra.mxu0 0.0
    %837 = vmatprep.subr.mxu0 0.0
    %838 = vmatpush1.msra.mxu0 0.0
    %839 = vmatprep.subr.mxu0 0.0
    %840 = vmatpush1.msra.mxu0 0.0
    %841 = vmatprep.subr.mxu0 0.0
    %842 = vmatpush1.msra.mxu0 0.0
    %843 = vmatprep.subr.mxu0 0.0
    %844 = vmatpush1.msra.mxu0 0.0
    %845 = vmatprep.subr.mxu0 0.0
    %846 = vmatpush1.msra.mxu0 0.0
    %847 = vmatprep.subr.mxu0 0.0
    %848 = vmatpush1.msra.mxu0 0.0
    %849 = vmatprep.subr.mxu0 0.0
    %850 = vmatpush1.msra.mxu0 0.0
    %851 = vmatprep.subr.mxu0 0.0
    %852 = vmatpush1.msra.mxu0 0.0
    %853 = vmatprep.subr.mxu0 0.0
    %854 = vmatpush1.msra.mxu0 0.0
    %855 = vmatprep.subr.mxu0 0.0
    %856 = vmatpush1.msra.mxu0 0.0
    %857 = vmatprep.subr.mxu0 0.0
    %858 = vmatpush1.msra.mxu0 0.0
    %859 = vmatprep.subr.mxu0 0.0
    %860 = vmatpush1.msra.mxu0 0.0
    %861 = vmatprep.subr.mxu0 0.0
    %862 = vmatpush1.msra.mxu0 0.0
    %863 = vmatprep.subr.mxu0 0.0
    %864 = vmatpush1.msra.mxu0 0.0
    %865 = vmatprep.subr.mxu0 0.0
    %866 = vmatpush1.msra.mxu0 0.0
    %867 = vmatprep.subr.mxu0 0.0
    %868 = vmatpush1.msra.mxu0 0.0
    %869 = vmatprep.subr.mxu0 0.0
    %870 = vmatpush1.msra.mxu0 0.0
    %871 = vmatprep.subr.mxu0 0.0
    %872 = vmatpush1.msra.mxu0 0.0
    %873 = vmatprep.subr.mxu0 0.0
    %874 = vmatpush1.msra.mxu0 0.0
    %875 = vmatprep.mubr.f32.mxu0 0.0
    %876 = vmatmul.mubr.f32.gmra.mrb[0].mxu0 %v800
    %v877 = vpop.f32.mrb[0].mxu0
    %v878 = vadd.f32 0.0, %v877
    %v879 = vpop.f32.mrb[0].mxu0
    %880 = vmatprep.mubr.f32.mxu0 0.0
    %881 = vmatmul.mubr.f32.gmra.mrb[0].mxu0 %v803
    %v882 = vpop.f32.mrb[0].mxu0
    %v883 = vadd.f32 0.0, %v882
    %v884 = vpop.f32.mrb[0].mxu0
    %885 = vmatprep.mubr.f32.mxu0 0.0
    %886 = vmatmul.mubr.f32.gmra.mrb[0].mxu0 %v806
    %v887 = vpop.f32.mrb[0].mxu0
    %v888 = vadd.f32 0.0, %v887
    %v889 = vpop.f32.mrb[0].mxu0
    %890 = vmatprep.mubr.f32.mxu0 0.0
    %891 = vmatmul.mubr.f32.gmra.mrb[0].mxu0 %v809
    %v892 = vpop.f32.mrb[0].mxu0
    %v893 = vadd.f32 0.0, %v892
    %v894 = vpop.f32.mrb[0].mxu0
    %895 = vdwg.mxu0
    %v896 = vadd.f32 %v672, %v878
    %v897 = vadd.f32 %v677, %v883
    %v898 = vadd.f32 %v682, %v888
    %v899 = vadd.f32 %v687, %v893
    %v900 = vadd.f32 %v896, %v897
    %v901 = vadd.f32 %v900, %v898
    %v902 = vadd.f32 %v901, %v899
    %v903 = vrot.slane %v902, 4
    %v904 = vadd.f32 %v902, %v903
    %v905 = vrot.slane %v904, 2
    %v906 = vadd.f32 %v904, %v905
    %v907 = vrot.slane %v906, 1
    %v908 = vadd.f32 %v906, %v907
    %v909 = vld [vmem:[%s7] sm:$0xff]
    %v910 = vld [vmem:[%s7 + $0x8] sm:$0xff]
    %v911 = vld [vmem:[%s7 + $0x10] sm:$0xff]
    %v912 = vld [vmem:[%s7 + $0x18] sm:$0xff]
    %v913 = vld [vmem:[%s7 + $0x20] sm:$0xff]
    %v914 = vld [vmem:[%s7 + $0x28] sm:$0xff]
    %v915 = vld [vmem:[%s7 + $0x30] sm:$0xff]
    %v916 = vld [vmem:[%s7 + $0x38] sm:$0xff]
    %v917 = vld [vmem:[%s7 + $0x40] sm:$0xff]
    %v918 = vld [vmem:[%s7 + $0x48] sm:$0xff]
    %v919 = vld [vmem:[%s7 + $0x50] sm:$0xff]
    %v920 = vld [vmem:[%s7 + $0x58] sm:$0xff]
    %v921 = vld [vmem:[%s7 + $0x60] sm:$0xff]
    %v922 = vld [vmem:[%s7 + $0x68] sm:$0xff]
    %v923 = vld [vmem:[%s7 + $0x70] sm:$0xff]
    %v924 = vld [vmem:[%s7 + $0x78] sm:$0xff]
    %925 = vmatprep.subr.mxu0 0.0
    %926 = vmatpush1.msra.mxu0 %v909
    %927 = vmatprep.subr.mxu0 0.0
    %928 = vmatpush1.msra.mxu0 %v910
    %929 = vmatprep.subr.mxu0 0.0
    %930 = vmatpush1.msra.mxu0 %v911
    %931 = vmatprep.subr.mxu0 0.0
    %932 = vmatpush1.msra.mxu0 %v912
    %933 = vmatprep.subr.mxu0 0.0
    %934 = vmatpush1.msra.mxu0 %v913
    %935 = vmatprep.subr.mxu0 0.0
    %936 = vmatpush1.msra.mxu0 %v914
    %937 = vmatprep.subr.mxu0 0.0
    %938 = vmatpush1.msra.mxu0 %v915
    %939 = vmatprep.subr.mxu0 0.0
    %940 = vmatpush1.msra.mxu0 %v916
    %941 = vmatprep.subr.mxu0 0.0
    %942 = vmatpush1.msra.mxu0 %v917
    %943 = vmatprep.subr.mxu0 0.0
    %944 = vmatpush1.msra.mxu0 %v918
    %945 = vmatprep.subr.mxu0 0.0
    %946 = vmatpush1.msra.mxu0 %v919
    %947 = vmatprep.subr.mxu0 0.0
    %948 = vmatpush1.msra.mxu0 %v920
    %949 = vmatprep.subr.mxu0 0.0
    %950 = vmatpush1.msra.mxu0 %v921
    %951 = vmatprep.subr.mxu0 0.0
    %952 = vmatpush1.msra.mxu0 %v922
    %953 = vmatprep.subr.mxu0 0.0
    %954 = vmatpush1.msra.mxu0 %v923
    %955 = vmatprep.subr.mxu0 0.0
    %956 = vmatpush1.msra.mxu0 %v924
    %957 = vmatprep.subr.mxu0 0.0
    %958 = vmatpush1.msra.mxu0 0.0
    %959 = vmatprep.subr.mxu0 0.0
    %960 = vmatpush1.msra.mxu0 0.0
    %961 = vmatprep.subr.mxu0 0.0
    %962 = vmatpush1.msra.mxu0 0.0
    %963 = vmatprep.subr.mxu0 0.0
    %964 = vmatpush1.msra.mxu0 0.0
    %965 = vmatprep.subr.mxu0 0.0
    %966 = vmatpush1.msra.mxu0 0.0
    %967 = vmatprep.subr.mxu0 0.0
    %968 = vmatpush1.msra.mxu0 0.0
    %969 = vmatprep.subr.mxu0 0.0
    %970 = vmatpush1.msra.mxu0 0.0
    %971 = vmatprep.subr.mxu0 0.0
    %972 = vmatpush1.msra.mxu0 0.0
    %973 = vmatprep.subr.mxu0 0.0
    %974 = vmatpush1.msra.mxu0 0.0
    %975 = vmatprep.subr.mxu0 0.0
    %976 = vmatpush1.msra.mxu0 0.0
    %977 = vmatprep.subr.mxu0 0.0
    %978 = vmatpush1.msra.mxu0 0.0
    %979 = vmatprep.subr.mxu0 0.0
    %980 = vmatpush1.msra.mxu0 0.0
    %981 = vmatprep.subr.mxu0 0.0
    %982 = vmatpush1.msra.mxu0 0.0
    %983 = vmatprep.subr.mxu0 0.0
    %984 = vmatpush1.msra.mxu0 0.0
    %985 = vmatprep.subr.mxu0 0.0
    %986 = vmatpush1.msra.mxu0 0.0
    %987 = vmatprep.subr.mxu0 0.0
    %988 = vmatpush1.msra.mxu0 0.0
    %989 = vmatprep.mubr.f32.mxu0 0.0
    %990 = vmatmul.mubr.f32.gmra.mrb[0].mxu0 %v908
    %v991 = vpop.f32.mrb[0].mxu0
    %v992 = vadd.f32 0.0, %v991
    %v993 = vpop.f32.mrb[0].mxu0
    %994 = vdwg.mxu0
    %v995 = vmul.f32 %v896, %v896
    %v996 = vmul.f32 %v897, %v897
    %v997 = vmul.f32 %v898, %v898
    %v998 = vmul.f32 %v899, %v899
    %v999 = vadd.f32 %v995, %v996
    %v1000 = vadd.f32 %v999, %v997
    %v1001 = vadd.f32 %v1000, %v998
    %v1002 = vrot.slane %v1001, 4
    %v1003 = vadd.f32 %v1001, %v1002
    %v1004 = vrot.slane %v1003, 2
    %v1005 = vadd.f32 %v1003, %v1004
    %v1006 = vrot.slane %v1005, 1
    %v1007 = vadd.f32 %v1005, %v1006
    %1008 = vmatprep.subr.mxu0 0.0
    %1009 = vmatpush1.msra.mxu0 %v909
    %1010 = vmatprep.subr.mxu0 0.0
    %1011 = vmatpush1.msra.mxu0 %v910
    %1012 = vmatprep.subr.mxu0 0.0
    %1013 = vmatpush1.msra.mxu0 %v911
    %1014 = vmatprep.subr.mxu0 0.0
    %1015 = vmatpush1.msra.mxu0 %v912
    %1016 = vmatprep.subr.mxu0 0.0
    %1017 = vmatpush1.msra.mxu0 %v913
    %1018 = vmatprep.subr.mxu0 0.0
    %1019 = vmatpush1.msra.mxu0 %v914
    %1020 = vmatprep.subr.mxu0 0.0
    %1021 = vmatpush1.msra.mxu0 %v915
    %1022 = vmatprep.subr.mxu0 0.0
    %1023 = vmatpush1.msra.mxu0 %v916
    %1024 = vmatprep.subr.mxu0 0.0
    %1025 = vmatpush1.msra.mxu0 %v917
    %1026 = vmatprep.subr.mxu0 0.0
    %1027 = vmatpush1.msra.mxu0 %v918
    %1028 = vmatprep.subr.mxu0 0.0
    %1029 = vmatpush1.msra.mxu0 %v919
    %1030 = vmatprep.subr.mxu0 0.0
    %1031 = vmatpush1.msra.mxu0 %v920
    %1032 = vmatprep.subr.mxu0 0.0
    %1033 = vmatpush1.msra.mxu0 %v921
    %1034 = vmatprep.subr.mxu0 0.0
    %1035 = vmatpush1.msra.mxu0 %v922
    %1036 = vmatprep.subr.mxu0 0.0
    %1037 = vmatpush1.msra.mxu0 %v923
    %1038 = vmatprep.subr.mxu0 0.0
    %1039 = vmatpush1.msra.mxu0 %v924
    %1040 = vmatprep.subr.mxu0 0.0
    %1041 = vmatpush1.msra.mxu0 0.0
    %1042 = vmatprep.subr.mxu0 0.0
    %1043 = vmatpush1.msra.mxu0 0.0
    %1044 = vmatprep.subr.mxu0 0.0
    %1045 = vmatpush1.msra.mxu0 0.0
    %1046 = vmatprep.subr.mxu0 0.0
    %1047 = vmatpush1.msra.mxu0 0.0
    %1048 = vmatprep.subr.mxu0 0.0
    %1049 = vmatpush1.msra.mxu0 0.0
    %1050 = vmatprep.subr.mxu0 0.0
    %1051 = vmatpush1.msra.mxu0 0.0
    %1052 = vmatprep.subr.mxu0 0.0
    %1053 = vmatpush1.msra.mxu0 0.0
    %1054 = vmatprep.subr.mxu0 0.0
    %1055 = vmatpush1.msra.mxu0 0.0
    %1056 = vmatprep.subr.mxu0 0.0
    %1057 = vmatpush1.msra.mxu0 0.0
    %1058 = vmatprep.subr.mxu0 0.0
    %1059 = vmatpush1.msra.mxu0 0.0
    %1060 = vmatprep.subr.mxu0 0.0
    %1061 = vmatpush1.msra.mxu0 0.0
    %1062 = vmatprep.subr.mxu0 0.0
    %1063 = vmatpush1.msra.mxu0 0.0
    %1064 = vmatprep.subr.mxu0 0.0
    %1065 = vmatpush1.msra.mxu0 0.0
    %1066 = vmatprep.subr.mxu0 0.0
    %1067 = vmatpush1.msra.mxu0 0.0
    %1068 = vmatprep.subr.mxu0 0.0
    %1069 = vmatpush1.msra.mxu0 0.0
    %1070 = vmatprep.subr.mxu0 0.0
    %1071 = vmatpush1.msra.mxu0 0.0
    %1072 = vmatprep.mubr.f32.mxu0 0.0
    %1073 = vmatmul.mubr.f32.gmra.mrb[0].mxu0 %v1007
    %v1074 = vpop.f32.mrb[0].mxu0
    %v1075 = vadd.f32 0.0, %v1074
    %v1076 = vpop.f32.mrb[0].mxu0
    %1077 = vdwg.mxu0
    %v1078 = vmul.f32 %v992, %v992
    %v1079 = vsub.f32 %v1075, %v1078
    %v1080 = vmax.f32 %v1079, 0.0
    %v1081 = vld [vmem:[%s9] sm:$0x1]
    %v1082 = vadd.f32 %v1080, 1e-05
    %v1083 = vrsqrt.pop %v1082
    %v1084 = vmul.f32 %v1081, %v1083
    %v1085 = vld [vmem:[#allocation2] sm:$0x1]
    %v1086 = vmul.f32 %v992, %v1084
    %v1087 = vsub.f32 %v1085, %v1086
    %v1089 = vlaneseq
    %v1090 = vshrl.u32 %v1089, 7
    %v1091 = vsub.s32 0, %v1090
    %v1092 = vrot.slane %v1084, %v1091
    %v1094 = vmul.f32 %v896, %v1092
    %v1095 = vmul.f32 %v897, %v1092
    %v1096 = vmul.f32 %v898, %v1092
    %v1097 = vmul.f32 %v899, %v1092
    %v1099 = vlaneseq
    %v1100 = vshrl.u32 %v1099, 7
    %v1101 = vsub.s32 0, %v1100
    %v1102 = vrot.slane %v1087, %v1101
    %v1104 = vadd.f32 %v1094, %v1102
    %v1105 = vadd.f32 %v1095, %v1102
    %v1106 = vadd.f32 %v1096, %v1102
    %v1107 = vadd.f32 %v1097, %v1102
    %v1108 = vmax.f32 %v1104, 0.0
    %v1109 = vmax.f32 %v1105, 0.0
    %v1110 = vmax.f32 %v1106, 0.0
    %v1111 = vmax.f32 %v1107, 0.0
    %v1112 = vld [vmem:[%s13] sm:$0xff]
    %v1113 = vld [vmem:[%s13 + $0x8] sm:$0xff]
    %v1115 = vsel %vm282, %v1112, 0
    %v1118 = vsel %vm282, %v1113, 0
    %1120 = vmatprep.subr.mxu0 0.0
    %1121 = vmatpush1.msra.mxu0 %v1108
    %1122 = vmatprep.subr.mxu0 0.0
    %1123 = vmatpush1.msra.mxu0 %v1109
    %1124 = vmatprep.subr.mxu0 0.0
    %1125 = vmatpush1.msra.mxu0 %v1110
    %1126 = vmatprep.subr.mxu0 0.0
    %1127 = vmatpush1.msra.mxu0 %v1111
    %1128 = vmatprep.subr.mxu0 0.0
    %1129 = vmatpush1.msra.mxu0 0.0
    %1130 = vmatprep.subr.mxu0 0.0
    %1131 = vmatpush1.msra.mxu0 0.0
    %1132 = vmatprep.subr.mxu0 0.0
    %1133 = vmatpush1.msra.mxu0 0.0
    %1134 = vmatprep.subr.mxu0 0.0
    %1135 = vmatpush1.msra.mxu0 0.0
    %1136 = vmatprep.subr.mxu0 0.0
    %1137 = vmatpush1.msra.mxu0 0.0
    %1138 = vmatprep.subr.mxu0 0.0
    %1139 = vmatpush1.msra.mxu0 0.0
    %1140 = vmatprep.subr.mxu0 0.0
    %1141 = vmatpush1.msra.mxu0 0.0
    %1142 = vmatprep.subr.mxu0 0.0
    %1143 = vmatpush1.msra.mxu0 0.0
    %1144 = vmatprep.subr.mxu0 0.0
    %1145 = vmatpush1.msra.mxu0 0.0
    %1146 = vmatprep.subr.mxu0 0.0
    %1147 = vmatpush1.msra.mxu0 0.0
    %1148 = vmatprep.subr.mxu0 0.0
    %1149 = vmatpush1.msra.mxu0 0.0
    %1150 = vmatprep.subr.mxu0 0.0
    %1151 = vmatpush1.msra.mxu0 0.0
    %1152 = vmatprep.subr.mxu0 0.0
    %1153 = vmatpush1.msra.mxu0 0.0
    %1154 = vmatprep.subr.mxu0 0.0
    %1155 = vmatpush1.msra.mxu0 0.0
    %1156 = vmatprep.subr.mxu0 0.0
    %1157 = vmatpush1.msra.mxu0 0.0
    %1158 = vmatprep.subr.mxu0 0.0
    %1159 = vmatpush1.msra.mxu0 0.0
    %1160 = vmatprep.subr.mxu0 0.0
    %1161 = vmatpush1.msra.mxu0 0.0
    %1162 = vmatprep.subr.mxu0 0.0
    %1163 = vmatpush1.msra.mxu0 0.0
    %1164 = vmatprep.subr.mxu0 0.0
    %1165 = vmatpush1.msra.mxu0 0.0
    %1166 = vmatprep.subr.mxu0 0.0
    %1167 = vmatpush1.msra.mxu0 0.0
    %1168 = vmatprep.subr.mxu0 0.0
    %1169 = vmatpush1.msra.mxu0 0.0
    %1170 = vmatprep.subr.mxu0 0.0
    %1171 = vmatpush1.msra.mxu0 0.0
    %1172 = vmatprep.subr.mxu0 0.0
    %1173 = vmatpush1.msra.mxu0 0.0
    %1174 = vmatprep.subr.mxu0 0.0
    %1175 = vmatpush1.msra.mxu0 0.0
    %1176 = vmatprep.subr.mxu0 0.0
    %1177 = vmatpush1.msra.mxu0 0.0
    %1178 = vmatprep.subr.mxu0 0.0
    %1179 = vmatpush1.msra.mxu0 0.0
    %1180 = vmatprep.subr.mxu0 0.0
    %1181 = vmatpush1.msra.mxu0 0.0
    %1182 = vmatprep.subr.mxu0 0.0
    %1183 = vmatpush1.msra.mxu0 0.0
    %1184 = vmatprep.mubr.f32.mxu0 0.0
    %1185 = vmatmul.mubr.f32.gmra.mrb[0].mxu0 %v1115
    %v1186 = vpop.f32.mrb[0].mxu0
    %v1187 = vadd.f32 0.0, %v1186
    %v1188 = vpop.f32.mrb[0].mxu0
    %1189 = vmatprep.mubr.f32.mxu0 0.0
    %1190 = vmatmul.mubr.f32.gmra.mrb[0].mxu0 %v1118
    %v1191 = vpop.f32.mrb[0].mxu0
    %v1192 = vadd.f32 0.0, %v1191
    %v1193 = vpop.f32.mrb[0].mxu0
    %1194 = vdwg.mxu0
    %v1195 = vld [vmem:[%s15] sm:$0xff]
    %v1196 = vld [vmem:[%s15 + $0x8] sm:$0xff]
    %v1197 = vld [vmem:[%s15 + $0x10] sm:$0xff]
    %v1198 = vld [vmem:[%s15 + $0x18] sm:$0xff]
    %v1199 = vld [vmem:[%s15 + $0x20] sm:$0xff]
    %v1200 = vld [vmem:[%s15 + $0x28] sm:$0xff]
    %v1201 = vld [vmem:[%s15 + $0x30] sm:$0xff]
    %v1202 = vld [vmem:[%s15 + $0x38] sm:$0xff]
    %v1203 = vld [vmem:[%s15 + $0x40] sm:$0xff]
    %v1204 = vld [vmem:[%s15 + $0x48] sm:$0xff]
    %v1205 = vld [vmem:[%s15 + $0x50] sm:$0xff]
    %v1206 = vld [vmem:[%s15 + $0x58] sm:$0xff]
    %v1207 = vld [vmem:[%s15 + $0x60] sm:$0xff]
    %v1208 = vld [vmem:[%s15 + $0x68] sm:$0xff]
    %v1209 = vld [vmem:[%s15 + $0x70] sm:$0xff]
    %v1210 = vld [vmem:[%s15 + $0x78] sm:$0xff]
    %s1211 = scalar_lea.vmem %s13, 16
    %v1212 = vld [vmem:[%s1211] sm:$0xff]
    %v1213 = vld [vmem:[%s1211 + $0x8] sm:$0xff]
    %v1215 = vsel %vm282, %v1212, 0
    %v1218 = vsel %vm282, %v1213, 0
    %1220 = vmatprep.subr.mxu0 0.0
    %1221 = vmatpush1.msra.mxu0 %v1108
    %1222 = vmatprep.subr.mxu0 0.0
    %1223 = vmatpush1.msra.mxu0 %v1109
    %1224 = vmatprep.subr.mxu0 0.0
    %1225 = vmatpush1.msra.mxu0 %v1110
    %1226 = vmatprep.subr.mxu0 0.0
    %1227 = vmatpush1.msra.mxu0 %v1111
    %1228 = vmatprep.subr.mxu0 0.0
    %1229 = vmatpush1.msra.mxu0 0.0
    %1230 = vmatprep.subr.mxu0 0.0
    %1231 = vmatpush1.msra.mxu0 0.0
    %1232 = vmatprep.subr.mxu0 0.0
    %1233 = vmatpush1.msra.mxu0 0.0
    %1234 = vmatprep.subr.mxu0 0.0
    %1235 = vmatpush1.msra.mxu0 0.0
    %1236 = vmatprep.subr.mxu0 0.0
    %1237 = vmatpush1.msra.mxu0 0.0
    %1238 = vmatprep.subr.mxu0 0.0
    %1239 = vmatpush1.msra.mxu0 0.0
    %1240 = vmatprep.subr.mxu0 0.0
    %1241 = vmatpush1.msra.mxu0 0.0
    %1242 = vmatprep.subr.mxu0 0.0
    %1243 = vmatpush1.msra.mxu0 0.0
    %1244 = vmatprep.subr.mxu0 0.0
    %1245 = vmatpush1.msra.mxu0 0.0
    %1246 = vmatprep.subr.mxu0 0.0
    %1247 = vmatpush1.msra.mxu0 0.0
    %1248 = vmatprep.subr.mxu0 0.0
    %1249 = vmatpush1.msra.mxu0 0.0
    %1250 = vmatprep.subr.mxu0 0.0
    %1251 = vmatpush1.msra.mxu0 0.0
    %1252 = vmatprep.subr.mxu0 0.0
    %1253 = vmatpush1.msra.mxu0 0.0
    %1254 = vmatprep.subr.mxu0 0.0
    %1255 = vmatpush1.msra.mxu0 0.0
    %1256 = vmatprep.subr.mxu0 0.0
    %1257 = vmatpush1.msra.mxu0 0.0
    %1258 = vmatprep.subr.mxu0 0.0
    %1259 = vmatpush1.msra.mxu0 0.0
    %1260 = vmatprep.subr.mxu0 0.0
    %1261 = vmatpush1.msra.mxu0 0.0
    %1262 = vmatprep.subr.mxu0 0.0
    %1263 = vmatpush1.msra.mxu0 0.0
    %1264 = vmatprep.subr.mxu0 0.0
    %1265 = vmatpush1.msra.mxu0 0.0
    %1266 = vmatprep.subr.mxu0 0.0
    %1267 = vmatpush1.msra.mxu0 0.0
    %1268 = vmatprep.subr.mxu0 0.0
    %1269 = vmatpush1.msra.mxu0 0.0
    %1270 = vmatprep.subr.mxu0 0.0
    %1271 = vmatpush1.msra.mxu0 0.0
    %1272 = vmatprep.subr.mxu0 0.0
    %1273 = vmatpush1.msra.mxu0 0.0
    %1274 = vmatprep.subr.mxu0 0.0
    %1275 = vmatpush1.msra.mxu0 0.0
    %1276 = vmatprep.subr.mxu0 0.0
    %1277 = vmatpush1.msra.mxu0 0.0
    %1278 = vmatprep.subr.mxu0 0.0
    %1279 = vmatpush1.msra.mxu0 0.0
    %1280 = vmatprep.subr.mxu0 0.0
    %1281 = vmatpush1.msra.mxu0 0.0
    %1282 = vmatprep.subr.mxu0 0.0
    %1283 = vmatpush1.msra.mxu0 0.0
    %1284 = vmatprep.mubr.f32.mxu0 0.0
    %1285 = vmatmul.mubr.f32.gmra.mrb[0].mxu0 %v1215
    %v1286 = vpop.f32.mrb[0].mxu0
    %v1287 = vadd.f32 0.0, %v1286
    %v1288 = vpop.f32.mrb[0].mxu0
    %1289 = vmatprep.mubr.f32.mxu0 0.0
    %1290 = vmatmul.mubr.f32.gmra.mrb[0].mxu0 %v1218
    %v1291 = vpop.f32.mrb[0].mxu0
    %v1292 = vadd.f32 0.0, %v1291
    %v1293 = vpop.f32.mrb[0].mxu0
    %1294 = vdwg.mxu0
    %s1295 = scalar_lea.vmem %s15, 128
    %v1296 = vld [vmem:[%s1295] sm:$0xff]
    %v1297 = vld [vmem:[%s1295 + $0x8] sm:$0xff]
    %v1298 = vld [vmem:[%s1295 + $0x10] sm:$0xff]
    %v1299 = vld [vmem:[%s1295 + $0x18] sm:$0xff]
    %v1300 = vld [vmem:[%s1295 + $0x20] sm:$0xff]
    %v1301 = vld [vmem:[%s1295 + $0x28] sm:$0xff]
    %v1302 = vld [vmem:[%s1295 + $0x30] sm:$0xff]
    %v1303 = vld [vmem:[%s1295 + $0x38] sm:$0xff]
    %v1304 = vld [vmem:[%s1295 + $0x40] sm:$0xff]
    %v1305 = vld [vmem:[%s1295 + $0x48] sm:$0xff]
    %v1306 = vld [vmem:[%s1295 + $0x50] sm:$0xff]
    %v1307 = vld [vmem:[%s1295 + $0x58] sm:$0xff]
    %v1308 = vld [vmem:[%s1295 + $0x60] sm:$0xff]
    %v1309 = vld [vmem:[%s1295 + $0x68] sm:$0xff]
    %v1310 = vld [vmem:[%s1295 + $0x70] sm:$0xff]
    %v1311 = vld [vmem:[%s1295 + $0x78] sm:$0xff]
    %1312 = vmatprep.subr.mxu0 0.0
    %1313 = vmatpush1.msra.mxu0 %v1296
    %1314 = vmatprep.subr.mxu0 0.0
    %1315 = vmatpush1.msra.mxu0 %v1297
    %1316 = vmatprep.subr.mxu0 0.0
    %1317 = vmatpush1.msra.mxu0 %v1298
    %1318 = vmatprep.subr.mxu0 0.0
    %1319 = vmatpush1.msra.mxu0 %v1299
    %1320 = vmatprep.subr.mxu0 0.0
    %1321 = vmatpush1.msra.mxu0 %v1300
    %1322 = vmatprep.subr.mxu0 0.0
    %1323 = vmatpush1.msra.mxu0 %v1301
    %1324 = vmatprep.subr.mxu0 0.0
    %1325 = vmatpush1.msra.mxu0 %v1302
    %1326 = vmatprep.subr.mxu0 0.0
    %1327 = vmatpush1.msra.mxu0 %v1303
    %1328 = vmatprep.subr.mxu0 0.0
    %1329 = vmatpush1.msra.mxu0 %v1304
    %1330 = vmatprep.subr.mxu0 0.0
    %1331 = vmatpush1.msra.mxu0 %v1305
    %1332 = vmatprep.subr.mxu0 0.0
    %1333 = vmatpush1.msra.mxu0 %v1306
    %1334 = vmatprep.subr.mxu0 0.0
    %1335 = vmatpush1.msra.mxu0 %v1307
    %1336 = vmatprep.subr.mxu0 0.0
    %1337 = vmatpush1.msra.mxu0 %v1308
    %1338 = vmatprep.subr.mxu0 0.0
    %1339 = vmatpush1.msra.mxu0 %v1309
    %1340 = vmatprep.subr.mxu0 0.0
    %1341 = vmatpush1.msra.mxu0 %v1310
    %1342 = vmatprep.subr.mxu0 0.0
    %1343 = vmatpush1.msra.mxu0 %v1311
    %1344 = vmatprep.subr.mxu0 0.0
    %1345 = vmatpush1.msra.mxu0 0.0
    %1346 = vmatprep.subr.mxu0 0.0
    %1347 = vmatpush1.msra.mxu0 0.0
    %1348 = vmatprep.subr.mxu0 0.0
    %1349 = vmatpush1.msra.mxu0 0.0
    %1350 = vmatprep.subr.mxu0 0.0
    %1351 = vmatpush1.msra.mxu0 0.0
    %1352 = vmatprep.subr.mxu0 0.0
    %1353 = vmatpush1.msra.mxu0 0.0
    %1354 = vmatprep.subr.mxu0 0.0
    %1355 = vmatpush1.msra.mxu0 0.0
    %1356 = vmatprep.subr.mxu0 0.0
    %1357 = vmatpush1.msra.mxu0 0.0
    %1358 = vmatprep.subr.mxu0 0.0
    %1359 = vmatpush1.msra.mxu0 0.0
    %1360 = vmatprep.subr.mxu0 0.0
    %1361 = vmatpush1.msra.mxu0 0.0
    %1362 = vmatprep.subr.mxu0 0.0
    %1363 = vmatpush1.msra.mxu0 0.0
    %1364 = vmatprep.subr.mxu0 0.0
    %1365 = vmatpush1.msra.mxu0 0.0
    %1366 = vmatprep.subr.mxu0 0.0
    %1367 = vmatpush1.msra.mxu0 0.0
    %1368 = vmatprep.subr.mxu0 0.0
    %1369 = vmatpush1.msra.mxu0 0.0
    %1370 = vmatprep.subr.mxu0 0.0
    %1371 = vmatpush1.msra.mxu0 0.0
    %1372 = vmatprep.subr.mxu0 0.0
    %1373 = vmatpush1.msra.mxu0 0.0
    %1374 = vmatprep.subr.mxu0 0.0
    %1375 = vmatpush1.msra.mxu0 0.0
    %1376 = vmatprep.mubr.f32.mxu0 0.0
    %1377 = vmatmul.mubr.f32.gmra.mrb[0].mxu0 %v1287
    %v1378 = vpop.f32.mrb[0].mxu0
    %v1379 = vadd.f32 0.0, %v1378
    %v1380 = vpop.f32.mrb[0].mxu0
    %1381 = vmatprep.mubr.f32.mxu0 0.0
    %1382 = vmatmul.mubr.f32.gmra.mrb[0].mxu0 %v1292
    %v1383 = vpop.f32.mrb[0].mxu0
    %v1384 = vadd.f32 0.0, %v1383
    %v1385 = vpop.f32.mrb[0].mxu0
    %1386 = vdwg.mxu0
    %1387 = vmatprep.subr.mxu0 0.0
    %1388 = vmatpush1.msra.mxu0 %v1195
    %1389 = vmatprep.subr.mxu0 0.0
    %1390 = vmatpush1.msra.mxu0 %v1196
    %1391 = vmatprep.subr.mxu0 0.0
    %1392 = vmatpush1.msra.mxu0 %v1197
    %1393 = vmatprep.subr.mxu0 0.0
    %1394 = vmatpush1.msra.mxu0 %v1198
    %1395 = vmatprep.subr.mxu0 0.0
    %1396 = vmatpush1.msra.mxu0 %v1199
    %1397 = vmatprep.subr.mxu0 0.0
    %1398 = vmatpush1.msra.mxu0 %v1200
    %1399 = vmatprep.subr.mxu0 0.0
    %1400 = vmatpush1.msra.mxu0 %v1201
    %1401 = vmatprep.subr.mxu0 0.0
    %1402 = vmatpush1.msra.mxu0 %v1202
    %1403 = vmatprep.subr.mxu0 0.0
    %1404 = vmatpush1.msra.mxu0 %v1203
    %1405 = vmatprep.subr.mxu0 0.0
    %1406 = vmatpush1.msra.mxu0 %v1204
    %1407 = vmatprep.subr.mxu0 0.0
    %1408 = vmatpush1.msra.mxu0 %v1205
    %1409 = vmatprep.subr.mxu0 0.0
    %1410 = vmatpush1.msra.mxu0 %v1206
    %1411 = vmatprep.subr.mxu0 0.0
    %1412 = vmatpush1.msra.mxu0 %v1207
    %1413 = vmatprep.subr.mxu0 0.0
    %1414 = vmatpush1.msra.mxu0 %v1208
    %1415 = vmatprep.subr.mxu0 0.0
    %1416 = vmatpush1.msra.mxu0 %v1209
    %1417 = vmatprep.subr.mxu0 0.0
    %1418 = vmatpush1.msra.mxu0 %v1210
    %1419 = vmatprep.subr.mxu0 0.0
    %1420 = vmatpush1.msra.mxu0 0.0
    %1421 = vmatprep.subr.mxu0 0.0
    %1422 = vmatpush1.msra.mxu0 0.0
    %1423 = vmatprep.subr.mxu0 0.0
    %1424 = vmatpush1.msra.mxu0 0.0
    %1425 = vmatprep.subr.mxu0 0.0
    %1426 = vmatpush1.msra.mxu0 0.0
    %1427 = vmatprep.subr.mxu0 0.0
    %1428 = vmatpush1.msra.mxu0 0.0
    %1429 = vmatprep.subr.mxu0 0.0
    %1430 = vmatpush1.msra.mxu0 0.0
    %1431 = vmatprep.subr.mxu0 0.0
    %1432 = vmatpush1.msra.mxu0 0.0
    %1433 = vmatprep.subr.mxu0 0.0
    %1434 = vmatpush1.msra.mxu0 0.0
    %1435 = vmatprep.subr.mxu0 0.0
    %1436 = vmatpush1.msra.mxu0 0.0
    %1437 = vmatprep.subr.mxu0 0.0
    %1438 = vmatpush1.msra.mxu0 0.0
    %1439 = vmatprep.subr.mxu0 0.0
    %1440 = vmatpush1.msra.mxu0 0.0
    %1441 = vmatprep.subr.mxu0 0.0
    %1442 = vmatpush1.msra.mxu0 0.0
    %1443 = vmatprep.subr.mxu0 0.0
    %1444 = vmatpush1.msra.mxu0 0.0
    %1445 = vmatprep.subr.mxu0 0.0
    %1446 = vmatpush1.msra.mxu0 0.0
    %1447 = vmatprep.subr.mxu0 0.0
    %1448 = vmatpush1.msra.mxu0 0.0
    %1449 = vmatprep.subr.mxu0 0.0
    %1450 = vmatpush1.msra.mxu0 0.0
    %1451 = vmatprep.mubr.f32.mxu0 0.0
    %1452 = vmatmul.mubr.f32.gmra.mrb[0].mxu0 %v1187
    %v1453 = vpop.f32.mrb[0].mxu0
    %v1454 = vadd.f32 %v1379, %v1453
    %v1455 = vpop.f32.mrb[0].mxu0
    %1456 = vmatprep.mubr.f32.mxu0 0.0
    %1457 = vmatmul.mubr.f32.gmra.mrb[0].mxu0 %v1192
    %v1458 = vpop.f32.mrb[0].mxu0
    %v1459 = vadd.f32 %v1384, %v1458
    %v1460 = vpop.f32.mrb[0].mxu0
    %1461 = vdwg.mxu0
    %s1462 = scalar_lea.vmem %s13, 32
    %v1463 = vld [vmem:[%s1462] sm:$0xff]
    %v1464 = vld [vmem:[%s1462 + $0x8] sm:$0xff]
    %v1466 = vsel %vm282, %v1463, 0
    %v1469 = vsel %vm282, %v1464, 0
    %1471 = vmatprep.subr.mxu0 0.0
    %1472 = vmatpush1.msra.mxu0 %v1108
    %1473 = vmatprep.subr.mxu0 0.0
    %1474 = vmatpush1.msra.mxu0 %v1109
    %1475 = vmatprep.subr.mxu0 0.0
    %1476 = vmatpush1.msra.mxu0 %v1110
    %1477 = vmatprep.subr.mxu0 0.0
    %1478 = vmatpush1.msra.mxu0 %v1111
    %1479 = vmatprep.subr.mxu0 0.0
    %1480 = vmatpush1.msra.mxu0 0.0
    %1481 = vmatprep.subr.mxu0 0.0
    %1482 = vmatpush1.msra.mxu0 0.0
    %1483 = vmatprep.subr.mxu0 0.0
    %1484 = vmatpush1.msra.mxu0 0.0
    %1485 = vmatprep.subr.mxu0 0.0
    %1486 = vmatpush1.msra.mxu0 0.0
    %1487 = vmatprep.subr.mxu0 0.0
    %1488 = vmatpush1.msra.mxu0 0.0
    %1489 = vmatprep.subr.mxu0 0.0
    %1490 = vmatpush1.msra.mxu0 0.0
    %1491 = vmatprep.subr.mxu0 0.0
    %1492 = vmatpush1.msra.mxu0 0.0
    %1493 = vmatprep.subr.mxu0 0.0
    %1494 = vmatpush1.msra.mxu0 0.0
    %1495 = vmatprep.subr.mxu0 0.0
    %1496 = vmatpush1.msra.mxu0 0.0
    %1497 = vmatprep.subr.mxu0 0.0
    %1498 = vmatpush1.msra.mxu0 0.0
    %1499 = vmatprep.subr.mxu0 0.0
    %1500 = vmatpush1.msra.mxu0 0.0
    %1501 = vmatprep.subr.mxu0 0.0
    %1502 = vmatpush1.msra.mxu0 0.0
    %1503 = vmatprep.subr.mxu0 0.0
    %1504 = vmatpush1.msra.mxu0 0.0
    %1505 = vmatprep.subr.mxu0 0.0
    %1506 = vmatpush1.msra.mxu0 0.0
    %1507 = vmatprep.subr.mxu0 0.0
    %1508 = vmatpush1.msra.mxu0 0.0
    %1509 = vmatprep.subr.mxu0 0.0
    %1510 = vmatpush1.msra.mxu0 0.0
    %1511 = vmatprep.subr.mxu0 0.0
    %1512 = vmatpush1.msra.mxu0 0.0
    %1513 = vmatprep.subr.mxu0 0.0
    %1514 = vmatpush1.msra.mxu0 0.0
    %1515 = vmatprep.subr.mxu0 0.0
    %1516 = vmatpush1.msra.mxu0 0.0
    %1517 = vmatprep.subr.mxu0 0.0
    %1518 = vmatpush1.msra.mxu0 0.0
    %1519 = vmatprep.subr.mxu0 0.0
    %1520 = vmatpush1.msra.mxu0 0.0
    %1521 = vmatprep.subr.mxu0 0.0
    %1522 = vmatpush1.msra.mxu0 0.0
    %1523 = vmatprep.subr.mxu0 0.0
    %1524 = vmatpush1.msra.mxu0 0.0
    %1525 = vmatprep.subr.mxu0 0.0
    %1526 = vmatpush1.msra.mxu0 0.0
    %1527 = vmatprep.subr.mxu0 0.0
    %1528 = vmatpush1.msra.mxu0 0.0
    %1529 = vmatprep.subr.mxu0 0.0
    %1530 = vmatpush1.msra.mxu0 0.0
    %1531 = vmatprep.subr.mxu0 0.0
    %1532 = vmatpush1.msra.mxu0 0.0
    %1533 = vmatprep.subr.mxu0 0.0
    %1534 = vmatpush1.msra.mxu0 0.0
    %1535 = vmatprep.mubr.f32.mxu0 0.0
    %1536 = vmatmul.mubr.f32.gmra.mrb[0].mxu0 %v1466
    %v1537 = vpop.f32.mrb[0].mxu0
    %v1538 = vadd.f32 0.0, %v1537
    %v1539 = vpop.f32.mrb[0].mxu0
    %1540 = vmatprep.mubr.f32.mxu0 0.0
    %1541 = vmatmul.mubr.f32.gmra.mrb[0].mxu0 %v1469
    %v1542 = vpop.f32.mrb[0].mxu0
    %v1543 = vadd.f32 0.0, %v1542
    %v1544 = vpop.f32.mrb[0].mxu0
    %1545 = vdwg.mxu0
    %s1546 = scalar_lea.vmem %s15, 256
    %v1547 = vld [vmem:[%s1546] sm:$0xff]
    %v1548 = vld [vmem:[%s1546 + $0x8] sm:$0xff]
    %v1549 = vld [vmem:[%s1546 + $0x10] sm:$0xff]
    %v1550 = vld [vmem:[%s1546 + $0x18] sm:$0xff]
    %v1551 = vld [vmem:[%s1546 + $0x20] sm:$0xff]
    %v1552 = vld [vmem:[%s1546 + $0x28] sm:$0xff]
    %v1553 = vld [vmem:[%s1546 + $0x30] sm:$0xff]
    %v1554 = vld [vmem:[%s1546 + $0x38] sm:$0xff]
    %v1555 = vld [vmem:[%s1546 + $0x40] sm:$0xff]
    %v1556 = vld [vmem:[%s1546 + $0x48] sm:$0xff]
    %v1557 = vld [vmem:[%s1546 + $0x50] sm:$0xff]
    %v1558 = vld [vmem:[%s1546 + $0x58] sm:$0xff]
    %v1559 = vld [vmem:[%s1546 + $0x60] sm:$0xff]
    %v1560 = vld [vmem:[%s1546 + $0x68] sm:$0xff]
    %v1561 = vld [vmem:[%s1546 + $0x70] sm:$0xff]
    %v1562 = vld [vmem:[%s1546 + $0x78] sm:$0xff]
    %1563 = vmatprep.subr.mxu0 0.0
    %1564 = vmatpush1.msra.mxu0 %v1547
    %1565 = vmatprep.subr.mxu0 0.0
    %1566 = vmatpush1.msra.mxu0 %v1548
    %1567 = vmatprep.subr.mxu0 0.0
    %1568 = vmatpush1.msra.mxu0 %v1549
    %1569 = vmatprep.subr.mxu0 0.0
    %1570 = vmatpush1.msra.mxu0 %v1550
    %1571 = vmatprep.subr.mxu0 0.0
    %1572 = vmatpush1.msra.mxu0 %v1551
    %1573 = vmatprep.subr.mxu0 0.0
    %1574 = vmatpush1.msra.mxu0 %v1552
    %1575 = vmatprep.subr.mxu0 0.0
    %1576 = vmatpush1.msra.mxu0 %v1553
    %1577 = vmatprep.subr.mxu0 0.0
    %1578 = vmatpush1.msra.mxu0 %v1554
    %1579 = vmatprep.subr.mxu0 0.0
    %1580 = vmatpush1.msra.mxu0 %v1555
    %1581 = vmatprep.subr.mxu0 0.0
    %1582 = vmatpush1.msra.mxu0 %v1556
    %1583 = vmatprep.subr.mxu0 0.0
    %1584 = vmatpush1.msra.mxu0 %v1557
    %1585 = vmatprep.subr.mxu0 0.0
    %1586 = vmatpush1.msra.mxu0 %v1558
    %1587 = vmatprep.subr.mxu0 0.0
    %1588 = vmatpush1.msra.mxu0 %v1559
    %1589 = vmatprep.subr.mxu0 0.0
    %1590 = vmatpush1.msra.mxu0 %v1560
    %1591 = vmatprep.subr.mxu0 0.0
    %1592 = vmatpush1.msra.mxu0 %v1561
    %1593 = vmatprep.subr.mxu0 0.0
    %1594 = vmatpush1.msra.mxu0 %v1562
    %1595 = vmatprep.subr.mxu0 0.0
    %1596 = vmatpush1.msra.mxu0 0.0
    %1597 = vmatprep.subr.mxu0 0.0
    %1598 = vmatpush1.msra.mxu0 0.0
    %1599 = vmatprep.subr.mxu0 0.0
    %1600 = vmatpush1.msra.mxu0 0.0
    %1601 = vmatprep.subr.mxu0 0.0
    %1602 = vmatpush1.msra.mxu0 0.0
    %1603 = vmatprep.subr.mxu0 0.0
    %1604 = vmatpush1.msra.mxu0 0.0
    %1605 = vmatprep.subr.mxu0 0.0
    %1606 = vmatpush1.msra.mxu0 0.0
    %1607 = vmatprep.subr.mxu0 0.0
    %1608 = vmatpush1.msra.mxu0 0.0
    %1609 = vmatprep.subr.mxu0 0.0
    %1610 = vmatpush1.msra.mxu0 0.0
    %1611 = vmatprep.subr.mxu0 0.0
    %1612 = vmatpush1.msra.mxu0 0.0
    %1613 = vmatprep.subr.mxu0 0.0
    %1614 = vmatpush1.msra.mxu0 0.0
    %1615 = vmatprep.subr.mxu0 0.0
    %1616 = vmatpush1.msra.mxu0 0.0
    %1617 = vmatprep.subr.mxu0 0.0
    %1618 = vmatpush1.msra.mxu0 0.0
    %1619 = vmatprep.subr.mxu0 0.0
    %1620 = vmatpush1.msra.mxu0 0.0
    %1621 = vmatprep.subr.mxu0 0.0
    %1622 = vmatpush1.msra.mxu0 0.0
    %1623 = vmatprep.subr.mxu0 0.0
    %1624 = vmatpush1.msra.mxu0 0.0
    %1625 = vmatprep.subr.mxu0 0.0
    %1626 = vmatpush1.msra.mxu0 0.0
    %1627 = vmatprep.mubr.f32.mxu0 0.0
    %1628 = vmatmul.mubr.f32.gmra.mrb[0].mxu0 %v1538
    %v1629 = vpop.f32.mrb[0].mxu0
    %v1630 = vadd.f32 0.0, %v1629
    %v1631 = vpop.f32.mrb[0].mxu0
    %1632 = vmatprep.mubr.f32.mxu0 0.0
    %1633 = vmatmul.mubr.f32.gmra.mrb[0].mxu0 %v1543
    %v1634 = vpop.f32.mrb[0].mxu0
    %v1635 = vadd.f32 0.0, %v1634
    %v1636 = vpop.f32.mrb[0].mxu0
    %1637 = vdwg.mxu0
    %v1638 = vadd.f32 %v1454, %v1630
    %v1639 = vadd.f32 %v1459, %v1635
    %vm1640 = vcmask 523264
    %v1641 = vsel %vm1640, %v1638, 0.0
    %v1642 = vsel %vm1640, %v1639, 0.0
    %v1643 = vadd.f32 %v1641, %v1642
    %v1644 = vrot.slane %v1643, 4
    %v1645 = vadd.f32 %v1643, %v1644
    %v1646 = vrot.slane %v1645, 2
    %v1647 = vadd.f32 %v1645, %v1646
    %v1648 = vrot.slane %v1647, 1
    %v1649 = vadd.f32 %v1647, %v1648
    %v1650 = vld [vmem:[%s17] sm:$0xff]
    %v1651 = vld [vmem:[%s17 + $0x8] sm:$0xff]
    %v1652 = vld [vmem:[%s17 + $0x10] sm:$0xff]
    %v1653 = vld [vmem:[%s17 + $0x18] sm:$0xff]
    %v1654 = vld [vmem:[%s17 + $0x20] sm:$0xff]
    %v1655 = vld [vmem:[%s17 + $0x28] sm:$0xff]
    %v1656 = vld [vmem:[%s17 + $0x30] sm:$0xff]
    %v1657 = vld [vmem:[%s17 + $0x38] sm:$0xff]
    %v1659 = vsel %vm1640, %v1649, 0
    %1661 = vmatprep.subr.mxu0 0.0
    %1662 = vmatpush1.msra.mxu0 %v1650
    %1663 = vmatprep.subr.mxu0 0.0
    %1664 = vmatpush1.msra.mxu0 %v1651
    %1665 = vmatprep.subr.mxu0 0.0
    %1666 = vmatpush1.msra.mxu0 %v1652
    %1667 = vmatprep.subr.mxu0 0.0
    %1668 = vmatpush1.msra.mxu0 %v1653
    %1669 = vmatprep.subr.mxu0 0.0
    %1670 = vmatpush1.msra.mxu0 %v1654
    %1671 = vmatprep.subr.mxu0 0.0
    %1672 = vmatpush1.msra.mxu0 %v1655
    %1673 = vmatprep.subr.mxu0 0.0
    %1674 = vmatpush1.msra.mxu0 %v1656
    %1675 = vmatprep.subr.mxu0 0.0
    %1676 = vmatpush1.msra.mxu0 %v1657
    %1677 = vmatprep.subr.mxu0 0.0
    %1678 = vmatpush1.msra.mxu0 0.0
    %1679 = vmatprep.subr.mxu0 0.0
    %1680 = vmatpush1.msra.mxu0 0.0
    %1681 = vmatprep.subr.mxu0 0.0
    %1682 = vmatpush1.msra.mxu0 0.0
    %1683 = vmatprep.subr.mxu0 0.0
    %1684 = vmatpush1.msra.mxu0 0.0
    %1685 = vmatprep.subr.mxu0 0.0
    %1686 = vmatpush1.msra.mxu0 0.0
    %1687 = vmatprep.subr.mxu0 0.0
    %1688 = vmatpush1.msra.mxu0 0.0
    %1689 = vmatprep.subr.mxu0 0.0
    %1690 = vmatpush1.msra.mxu0 0.0
    %1691 = vmatprep.subr.mxu0 0.0
    %1692 = vmatpush1.msra.mxu0 0.0
    %1693 = vmatprep.subr.mxu0 0.0
    %1694 = vmatpush1.msra.mxu0 0.0
    %1695 = vmatprep.subr.mxu0 0.0
    %1696 = vmatpush1.msra.mxu0 0.0
    %1697 = vmatprep.subr.mxu0 0.0
    %1698 = vmatpush1.msra.mxu0 0.0
    %1699 = vmatprep.subr.mxu0 0.0
    %1700 = vmatpush1.msra.mxu0 0.0
    %1701 = vmatprep.subr.mxu0 0.0
    %1702 = vmatpush1.msra.mxu0 0.0
    %1703 = vmatprep.subr.mxu0 0.0
    %1704 = vmatpush1.msra.mxu0 0.0
    %1705 = vmatprep.subr.mxu0 0.0
    %1706 = vmatpush1.msra.mxu0 0.0
    %1707 = vmatprep.subr.mxu0 0.0
    %1708 = vmatpush1.msra.mxu0 0.0
    %1709 = vmatprep.subr.mxu0 0.0
    %1710 = vmatpush1.msra.mxu0 0.0
    %1711 = vmatprep.subr.mxu0 0.0
    %1712 = vmatpush1.msra.mxu0 0.0
    %1713 = vmatprep.subr.mxu0 0.0
    %1714 = vmatpush1.msra.mxu0 0.0
    %1715 = vmatprep.subr.mxu0 0.0
    %1716 = vmatpush1.msra.mxu0 0.0
    %1717 = vmatprep.subr.mxu0 0.0
    %1718 = vmatpush1.msra.mxu0 0.0
    %1719 = vmatprep.subr.mxu0 0.0
    %1720 = vmatpush1.msra.mxu0 0.0
    %1721 = vmatprep.subr.mxu0 0.0
    %1722 = vmatpush1.msra.mxu0 0.0
    %1723 = vmatprep.subr.mxu0 0.0
    %1724 = vmatpush1.msra.mxu0 0.0
    %1725 = vmatprep.mubr.f32.mxu0 0.0
    %1726 = vmatmul.mubr.f32.gmra.mrb[0].mxu0 %v1659
    %v1727 = vpop.f32.mrb[0].mxu0
    %v1728 = vadd.f32 0.0, %v1727
    %v1729 = vpop.f32.mrb[0].mxu0
    %1730 = vdwg.mxu0
    %v1731 = vmul.f32 %v1638, %v1638
    %v1732 = vmul.f32 %v1639, %v1639
    %v1733 = vsel %vm1640, %v1731, 0.0
    %v1734 = vsel %vm1640, %v1732, 0.0
    %v1735 = vadd.f32 %v1733, %v1734
    %v1736 = vrot.slane %v1735, 4
    %v1737 = vadd.f32 %v1735, %v1736
    %v1738 = vrot.slane %v1737, 2
    %v1739 = vadd.f32 %v1737, %v1738
    %v1740 = vrot.slane %v1739, 1
    %v1741 = vadd.f32 %v1739, %v1740
    %v1743 = vsel %vm1640, %v1741, 0
    %1745 = vmatprep.subr.mxu0 0.0
    %1746 = vmatpush1.msra.mxu0 %v1650
    %1747 = vmatprep.subr.mxu0 0.0
    %1748 = vmatpush1.msra.mxu0 %v1651
    %1749 = vmatprep.subr.mxu0 0.0
    %1750 = vmatpush1.msra.mxu0 %v1652
    %1751 = vmatprep.subr.mxu0 0.0
    %1752 = vmatpush1.msra.mxu0 %v1653
    %1753 = vmatprep.subr.mxu0 0.0
    %1754 = vmatpush1.msra.mxu0 %v1654
    %1755 = vmatprep.subr.mxu0 0.0
    %1756 = vmatpush1.msra.mxu0 %v1655
    %1757 = vmatprep.subr.mxu0 0.0
    %1758 = vmatpush1.msra.mxu0 %v1656
    %1759 = vmatprep.subr.mxu0 0.0
    %1760 = vmatpush1.msra.mxu0 %v1657
    %1761 = vmatprep.subr.mxu0 0.0
    %1762 = vmatpush1.msra.mxu0 0.0
    %1763 = vmatprep.subr.mxu0 0.0
    %1764 = vmatpush1.msra.mxu0 0.0
    %1765 = vmatprep.subr.mxu0 0.0
    %1766 = vmatpush1.msra.mxu0 0.0
    %1767 = vmatprep.subr.mxu0 0.0
    %1768 = vmatpush1.msra.mxu0 0.0
    %1769 = vmatprep.subr.mxu0 0.0
    %1770 = vmatpush1.msra.mxu0 0.0
    %1771 = vmatprep.subr.mxu0 0.0
    %1772 = vmatpush1.msra.mxu0 0.0
    %1773 = vmatprep.subr.mxu0 0.0
    %1774 = vmatpush1.msra.mxu0 0.0
    %1775 = vmatprep.subr.mxu0 0.0
    %1776 = vmatpush1.msra.mxu0 0.0
    %1777 = vmatprep.subr.mxu0 0.0
    %1778 = vmatpush1.msra.mxu0 0.0
    %1779 = vmatprep.subr.mxu0 0.0
    %1780 = vmatpush1.msra.mxu0 0.0
    %1781 = vmatprep.subr.mxu0 0.0
    %1782 = vmatpush1.msra.mxu0 0.0
    %1783 = vmatprep.subr.mxu0 0.0
    %1784 = vmatpush1.msra.mxu0 0.0
    %1785 = vmatprep.subr.mxu0 0.0
    %1786 = vmatpush1.msra.mxu0 0.0
    %1787 = vmatprep.subr.mxu0 0.0
    %1788 = vmatpush1.msra.mxu0 0.0
    %1789 = vmatprep.subr.mxu0 0.0
    %1790 = vmatpush1.msra.mxu0 0.0
    %1791 = vmatprep.subr.mxu0 0.0
    %1792 = vmatpush1.msra.mxu0 0.0
    %1793 = vmatprep.subr.mxu0 0.0
    %1794 = vmatpush1.msra.mxu0 0.0
    %1795 = vmatprep.subr.mxu0 0.0
    %1796 = vmatpush1.msra.mxu0 0.0
    %1797 = vmatprep.subr.mxu0 0.0
    %1798 = vmatpush1.msra.mxu0 0.0
    %1799 = vmatprep.subr.mxu0 0.0
    %1800 = vmatpush1.msra.mxu0 0.0
    %1801 = vmatprep.subr.mxu0 0.0
    %1802 = vmatpush1.msra.mxu0 0.0
    %1803 = vmatprep.subr.mxu0 0.0
    %1804 = vmatpush1.msra.mxu0 0.0
    %1805 = vmatprep.subr.mxu0 0.0
    %1806 = vmatpush1.msra.mxu0 0.0
    %1807 = vmatprep.subr.mxu0 0.0
    %1808 = vmatpush1.msra.mxu0 0.0
    %1809 = vmatprep.mubr.f32.mxu0 0.0
    %1810 = vmatmul.mubr.f32.gmra.mrb[0].mxu0 %v1743
    %v1811 = vpop.f32.mrb[0].mxu0
    %v1812 = vadd.f32 0.0, %v1811
    %v1813 = vpop.f32.mrb[0].mxu0
    %1814 = vdwg.mxu0
    %v1815 = vmul.f32 %v1728, %v1728
    %v1816 = vsub.f32 %v1812, %v1815
    %v1817 = vmax.f32 %v1816, 0.0
    %v1818 = vld [vmem:[#allocation5] sm:$0x1]
    %v1819 = vadd.f32 %v1817, 1e-05
    %v1820 = vrsqrt.pop %v1819
    %v1821 = vmul.f32 %v1818, %v1820
    %v1822 = vld [vmem:[#allocation7] sm:$0x1]
    %v1823 = vmul.f32 %v1728, %v1821
    %v1824 = vsub.f32 %v1822, %v1823
    %v1826 = vlaneseq
    %v1827 = vshrl.u32 %v1826, 7
    %v1828 = vsub.s32 0, %v1827
    %v1829 = vrot.slane %v1821, %v1828
    %v1831 = vmul.f32 %v1638, %v1829
    %v1832 = vmul.f32 %v1639, %v1829
    %v1834 = vlaneseq
    %v1835 = vshrl.u32 %v1834, 7
    %v1836 = vsub.s32 0, %v1835
    %v1837 = vrot.slane %v1824, %v1836
    %v1839 = vadd.f32 %v1831, %v1837
    %v1840 = vadd.f32 %v1832, %v1837
    %v1841 = vmax.f32 %v1839, 0.0
    %v1842 = vmax.f32 %v1840, 0.0
    %v1843 = vld [vmem:[#allocation8] sm:$0xff]
    %v1844 = vld [vmem:[#allocation8 + $0x8] sm:$0xff]
    %vm1845 = vcmask 130048
    %v1847 = vsel %vm1845, %v1843, 0
    %v1850 = vsel %vm1845, %v1844, 0
    %1852 = vmatprep.subr.mxu0 0.0
    %1853 = vmatpush1.msra.mxu0 %v1841
    %1854 = vmatprep.subr.mxu0 0.0
    %1855 = vmatpush1.msra.mxu0 %v1842
    %1856 = vmatprep.subr.mxu0 0.0
    %1857 = vmatpush1.msra.mxu0 0.0
    %1858 = vmatprep.subr.mxu0 0.0
    %1859 = vmatpush1.msra.mxu0 0.0
    %1860 = vmatprep.subr.mxu0 0.0
    %1861 = vmatpush1.msra.mxu0 0.0
    %1862 = vmatprep.subr.mxu0 0.0
    %1863 = vmatpush1.msra.mxu0 0.0
    %1864 = vmatprep.subr.mxu0 0.0
    %1865 = vmatpush1.msra.mxu0 0.0
    %1866 = vmatprep.subr.mxu0 0.0
    %1867 = vmatpush1.msra.mxu0 0.0
    %1868 = vmatprep.subr.mxu0 0.0
    %1869 = vmatpush1.msra.mxu0 0.0
    %1870 = vmatprep.subr.mxu0 0.0
    %1871 = vmatpush1.msra.mxu0 0.0
    %1872 = vmatprep.subr.mxu0 0.0
    %1873 = vmatpush1.msra.mxu0 0.0
    %1874 = vmatprep.subr.mxu0 0.0
    %1875 = vmatpush1.msra.mxu0 0.0
    %1876 = vmatprep.subr.mxu0 0.0
    %1877 = vmatpush1.msra.mxu0 0.0
    %1878 = vmatprep.subr.mxu0 0.0
    %1879 = vmatpush1.msra.mxu0 0.0
    %1880 = vmatprep.subr.mxu0 0.0
    %1881 = vmatpush1.msra.mxu0 0.0
    %1882 = vmatprep.subr.mxu0 0.0
    %1883 = vmatpush1.msra.mxu0 0.0
    %1884 = vmatprep.subr.mxu0 0.0
    %1885 = vmatpush1.msra.mxu0 0.0
    %1886 = vmatprep.subr.mxu0 0.0
    %1887 = vmatpush1.msra.mxu0 0.0
    %1888 = vmatprep.subr.mxu0 0.0
    %1889 = vmatpush1.msra.mxu0 0.0
    %1890 = vmatprep.subr.mxu0 0.0
    %1891 = vmatpush1.msra.mxu0 0.0
    %1892 = vmatprep.subr.mxu0 0.0
    %1893 = vmatpush1.msra.mxu0 0.0
    %1894 = vmatprep.subr.mxu0 0.0
    %1895 = vmatpush1.msra.mxu0 0.0
    %1896 = vmatprep.subr.mxu0 0.0
    %1897 = vmatpush1.msra.mxu0 0.0
    %1898 = vmatprep.subr.mxu0 0.0
    %1899 = vmatpush1.msra.mxu0 0.0
    %1900 = vmatprep.subr.mxu0 0.0
    %1901 = vmatpush1.msra.mxu0 0.0
    %1902 = vmatprep.subr.mxu0 0.0
    %1903 = vmatpush1.msra.mxu0 0.0
    %1904 = vmatprep.subr.mxu0 0.0
    %1905 = vmatpush1.msra.mxu0 0.0
    %1906 = vmatprep.subr.mxu0 0.0
    %1907 = vmatpush1.msra.mxu0 0.0
    %1908 = vmatprep.subr.mxu0 0.0
    %1909 = vmatpush1.msra.mxu0 0.0
    %1910 = vmatprep.subr.mxu0 0.0
    %1911 = vmatpush1.msra.mxu0 0.0
    %1912 = vmatprep.subr.mxu0 0.0
    %1913 = vmatpush1.msra.mxu0 0.0
    %1914 = vmatprep.subr.mxu0 0.0
    %1915 = vmatpush1.msra.mxu0 0.0
    %1916 = vmatprep.mubr.f32.mxu0 0.0
    %1917 = vmatmul.mubr.f32.gmra.mrb[0].mxu0 %v1847
    %v1918 = vpop.f32.mrb[0].mxu0
    %v1919 = vadd.f32 0.0, %v1918
    %v1920 = vpop.f32.mrb[0].mxu0
    %1921 = vmatprep.mubr.f32.mxu0 0.0
    %1922 = vmatmul.mubr.f32.gmra.mrb[0].mxu0 %v1850
    %v1923 = vpop.f32.mrb[0].mxu0
    %v1924 = vadd.f32 0.0, %v1923
    %v1925 = vpop.f32.mrb[0].mxu0
    %1926 = vdwg.mxu0
    %v1927 = vld [vmem:[%s25] sm:$0xff]
    %v1928 = vld [vmem:[%s25 + $0x8] sm:$0xff]
    %v1929 = vld [vmem:[%s25 + $0x10] sm:$0xff]
    %v1930 = vld [vmem:[%s25 + $0x18] sm:$0xff]
    %v1931 = vld [vmem:[%s25 + $0x20] sm:$0xff]
    %v1932 = vld [vmem:[%s25 + $0x28] sm:$0xff]
    %v1933 = vld [vmem:[%s25 + $0x30] sm:$0xff]
    %v1934 = vld [vmem:[%s25 + $0x38] sm:$0xff]
    %s1935 = scalar_lea.vmem [#allocation8], 16
    %v1936 = vld [vmem:[%s1935] sm:$0xff]
    %v1937 = vld [vmem:[%s1935 + $0x8] sm:$0xff]
    %v1939 = vsel %vm1845, %v1936, 0
    %v1942 = vsel %vm1845, %v1937, 0
    %1944 = vmatprep.subr.mxu0 0.0
    %1945 = vmatpush1.msra.mxu0 %v1841
    %1946 = vmatprep.subr.mxu0 0.0
    %1947 = vmatpush1.msra.mxu0 %v1842
    %1948 = vmatprep.subr.mxu0 0.0
    %1949 = vmatpush1.msra.mxu0 0.0
    %1950 = vmatprep.subr.mxu0 0.0
    %1951 = vmatpush1.msra.mxu0 0.0
    %1952 = vmatprep.subr.mxu0 0.0
    %1953 = vmatpush1.msra.mxu0 0.0
    %1954 = vmatprep.subr.mxu0 0.0
    %1955 = vmatpush1.msra.mxu0 0.0
    %1956 = vmatprep.subr.mxu0 0.0
    %1957 = vmatpush1.msra.mxu0 0.0
    %1958 = vmatprep.subr.mxu0 0.0
    %1959 = vmatpush1.msra.mxu0 0.0
    %1960 = vmatprep.subr.mxu0 0.0
    %1961 = vmatpush1.msra.mxu0 0.0
    %1962 = vmatprep.subr.mxu0 0.0
    %1963 = vmatpush1.msra.mxu0 0.0
    %1964 = vmatprep.subr.mxu0 0.0
    %1965 = vmatpush1.msra.mxu0 0.0
    %1966 = vmatprep.subr.mxu0 0.0
    %1967 = vmatpush1.msra.mxu0 0.0
    %1968 = vmatprep.subr.mxu0 0.0
    %1969 = vmatpush1.msra.mxu0 0.0
    %1970 = vmatprep.subr.mxu0 0.0
    %1971 = vmatpush1.msra.mxu0 0.0
    %1972 = vmatprep.subr.mxu0 0.0
    %1973 = vmatpush1.msra.mxu0 0.0
    %1974 = vmatprep.subr.mxu0 0.0
    %1975 = vmatpush1.msra.mxu0 0.0
    %1976 = vmatprep.subr.mxu0 0.0
    %1977 = vmatpush1.msra.mxu0 0.0
    %1978 = vmatprep.subr.mxu0 0.0
    %1979 = vmatpush1.msra.mxu0 0.0
    %1980 = vmatprep.subr.mxu0 0.0
    %1981 = vmatpush1.msra.mxu0 0.0
    %1982 = vmatprep.subr.mxu0 0.0
    %1983 = vmatpush1.msra.mxu0 0.0
    %1984 = vmatprep.subr.mxu0 0.0
    %1985 = vmatpush1.msra.mxu0 0.0
    %1986 = vmatprep.subr.mxu0 0.0
    %1987 = vmatpush1.msra.mxu0 0.0
    %1988 = vmatprep.subr.mxu0 0.0
    %1989 = vmatpush1.msra.mxu0 0.0
    %1990 = vmatprep.subr.mxu0 0.0
    %1991 = vmatpush1.msra.mxu0 0.0
    %1992 = vmatprep.subr.mxu0 0.0
    %1993 = vmatpush1.msra.mxu0 0.0
    %1994 = vmatprep.subr.mxu0 0.0
    %1995 = vmatpush1.msra.mxu0 0.0
    %1996 = vmatprep.subr.mxu0 0.0
    %1997 = vmatpush1.msra.mxu0 0.0
    %1998 = vmatprep.subr.mxu0 0.0
    %1999 = vmatpush1.msra.mxu0 0.0
    %2000 = vmatprep.subr.mxu0 0.0
    %2001 = vmatpush1.msra.mxu0 0.0
    %2002 = vmatprep.subr.mxu0 0.0
    %2003 = vmatpush1.msra.mxu0 0.0
    %2004 = vmatprep.subr.mxu0 0.0
    %2005 = vmatpush1.msra.mxu0 0.0
    %2006 = vmatprep.subr.mxu0 0.0
    %2007 = vmatpush1.msra.mxu0 0.0
    %2008 = vmatprep.mubr.f32.mxu0 0.0
    %2009 = vmatmul.mubr.f32.gmra.mrb[0].mxu0 %v1939
    %v2010 = vpop.f32.mrb[0].mxu0
    %v2011 = vadd.f32 0.0, %v2010
    %v2012 = vpop.f32.mrb[0].mxu0
    %2013 = vmatprep.mubr.f32.mxu0 0.0
    %2014 = vmatmul.mubr.f32.gmra.mrb[0].mxu0 %v1942
    %v2015 = vpop.f32.mrb[0].mxu0
    %v2016 = vadd.f32 0.0, %v2015
    %v2017 = vpop.f32.mrb[0].mxu0
    %2018 = vdwg.mxu0
    %s2019 = scalar_lea.vmem %s25, 64
    %v2020 = vld [vmem:[%s2019] sm:$0xff]
    %v2021 = vld [vmem:[%s2019 + $0x8] sm:$0xff]
    %v2022 = vld [vmem:[%s2019 + $0x10] sm:$0xff]
    %v2023 = vld [vmem:[%s2019 + $0x18] sm:$0xff]
    %v2024 = vld [vmem:[%s2019 + $0x20] sm:$0xff]
    %v2025 = vld [vmem:[%s2019 + $0x28] sm:$0xff]
    %v2026 = vld [vmem:[%s2019 + $0x30] sm:$0xff]
    %v2027 = vld [vmem:[%s2019 + $0x38] sm:$0xff]
    %v2029 = vsel %vm1640, %v2011, 0
    %v2032 = vsel %vm1640, %v2016, 0
    %2034 = vmatprep.subr.mxu0 0.0
    %2035 = vmatpush1.msra.mxu0 %v2020
    %2036 = vmatprep.subr.mxu0 0.0
    %2037 = vmatpush1.msra.mxu0 %v2021
    %2038 = vmatprep.subr.mxu0 0.0
    %2039 = vmatpush1.msra.mxu0 %v2022
    %2040 = vmatprep.subr.mxu0 0.0
    %2041 = vmatpush1.msra.mxu0 %v2023
    %2042 = vmatprep.subr.mxu0 0.0
    %2043 = vmatpush1.msra.mxu0 %v2024
    %2044 = vmatprep.subr.mxu0 0.0
    %2045 = vmatpush1.msra.mxu0 %v2025
    %2046 = vmatprep.subr.mxu0 0.0
    %2047 = vmatpush1.msra.mxu0 %v2026
    %2048 = vmatprep.subr.mxu0 0.0
    %2049 = vmatpush1.msra.mxu0 %v2027
    %2050 = vmatprep.subr.mxu0 0.0
    %2051 = vmatpush1.msra.mxu0 0.0
    %2052 = vmatprep.subr.mxu0 0.0
    %2053 = vmatpush1.msra.mxu0 0.0
    %2054 = vmatprep.subr.mxu0 0.0
    %2055 = vmatpush1.msra.mxu0 0.0
    %2056 = vmatprep.subr.mxu0 0.0
    %2057 = vmatpush1.msra.mxu0 0.0
    %2058 = vmatprep.subr.mxu0 0.0
    %2059 = vmatpush1.msra.mxu0 0.0
    %2060 = vmatprep.subr.mxu0 0.0
    %2061 = vmatpush1.msra.mxu0 0.0
    %2062 = vmatprep.subr.mxu0 0.0
    %2063 = vmatpush1.msra.mxu0 0.0
    %2064 = vmatprep.subr.mxu0 0.0
    %2065 = vmatpush1.msra.mxu0 0.0
    %2066 = vmatprep.subr.mxu0 0.0
    %2067 = vmatpush1.msra.mxu0 0.0
    %2068 = vmatprep.subr.mxu0 0.0
    %2069 = vmatpush1.msra.mxu0 0.0
    %2070 = vmatprep.subr.mxu0 0.0
    %2071 = vmatpush1.msra.mxu0 0.0
    %2072 = vmatprep.subr.mxu0 0.0
    %2073 = vmatpush1.msra.mxu0 0.0
    %2074 = vmatprep.subr.mxu0 0.0
    %2075 = vmatpush1.msra.mxu0 0.0
    %2076 = vmatprep.subr.mxu0 0.0
    %2077 = vmatpush1.msra.mxu0 0.0
    %2078 = vmatprep.subr.mxu0 0.0
    %2079 = vmatpush1.msra.mxu0 0.0
    %2080 = vmatprep.subr.mxu0 0.0
    %2081 = vmatpush1.msra.mxu0 0.0
    %2082 = vmatprep.subr.mxu0 0.0
    %2083 = vmatpush1.msra.mxu0 0.0
    %2084 = vmatprep.subr.mxu0 0.0
    %2085 = vmatpush1.msra.mxu0 0.0
    %2086 = vmatprep.subr.mxu0 0.0
    %2087 = vmatpush1.msra.mxu0 0.0
    %2088 = vmatprep.subr.mxu0 0.0
    %2089 = vmatpush1.msra.mxu0 0.0
    %2090 = vmatprep.subr.mxu0 0.0
    %2091 = vmatpush1.msra.mxu0 0.0
    %2092 = vmatprep.subr.mxu0 0.0
    %2093 = vmatpush1.msra.mxu0 0.0
    %2094 = vmatprep.subr.mxu0 0.0
    %2095 = vmatpush1.msra.mxu0 0.0
    %2096 = vmatprep.subr.mxu0 0.0
    %2097 = vmatpush1.msra.mxu0 0.0
    %2098 = vmatprep.mubr.f32.mxu0 0.0
    %2099 = vmatmul.mubr.f32.gmra.mrb[0].mxu0 %v2029
    %v2100 = vpop.f32.mrb[0].mxu0
    %v2101 = vadd.f32 0.0, %v2100
    %v2102 = vpop.f32.mrb[0].mxu0
    %2103 = vmatprep.mubr.f32.mxu0 0.0
    %2104 = vmatmul.mubr.f32.gmra.mrb[0].mxu0 %v2032
    %v2105 = vpop.f32.mrb[0].mxu0
    %v2106 = vadd.f32 0.0, %v2105
    %v2107 = vpop.f32.mrb[0].mxu0
    %2108 = vdwg.mxu0
    %v2110 = vsel %vm1640, %v1919, 0
    %v2113 = vsel %vm1640, %v1924, 0
    %2115 = vmatprep.subr.mxu0 0.0
    %2116 = vmatpush1.msra.mxu0 %v1927
    %2117 = vmatprep.subr.mxu0 0.0
    %2118 = vmatpush1.msra.mxu0 %v1928
    %2119 = vmatprep.subr.mxu0 0.0
    %2120 = vmatpush1.msra.mxu0 %v1929
    %2121 = vmatprep.subr.mxu0 0.0
    %2122 = vmatpush1.msra.mxu0 %v1930
    %2123 = vmatprep.subr.mxu0 0.0
    %2124 = vmatpush1.msra.mxu0 %v1931
    %2125 = vmatprep.subr.mxu0 0.0
    %2126 = vmatpush1.msra.mxu0 %v1932
    %2127 = vmatprep.subr.mxu0 0.0
    %2128 = vmatpush1.msra.mxu0 %v1933
    %2129 = vmatprep.subr.mxu0 0.0
    %2130 = vmatpush1.msra.mxu0 %v1934
    %2131 = vmatprep.subr.mxu0 0.0
    %2132 = vmatpush1.msra.mxu0 0.0
    %2133 = vmatprep.subr.mxu0 0.0
    %2134 = vmatpush1.msra.mxu0 0.0
    %2135 = vmatprep.subr.mxu0 0.0
    %2136 = vmatpush1.msra.mxu0 0.0
    %2137 = vmatprep.subr.mxu0 0.0
    %2138 = vmatpush1.msra.mxu0 0.0
    %2139 = vmatprep.subr.mxu0 0.0
    %2140 = vmatpush1.msra.mxu0 0.0
    %2141 = vmatprep.subr.mxu0 0.0
    %2142 = vmatpush1.msra.mxu0 0.0
    %2143 = vmatprep.subr.mxu0 0.0
    %2144 = vmatpush1.msra.mxu0 0.0
    %2145 = vmatprep.subr.mxu0 0.0
    %2146 = vmatpush1.msra.mxu0 0.0
    %2147 = vmatprep.subr.mxu0 0.0
    %2148 = vmatpush1.msra.mxu0 0.0
    %2149 = vmatprep.subr.mxu0 0.0
    %2150 = vmatpush1.msra.mxu0 0.0
    %2151 = vmatprep.subr.mxu0 0.0
    %2152 = vmatpush1.msra.mxu0 0.0
    %2153 = vmatprep.subr.mxu0 0.0
    %2154 = vmatpush1.msra.mxu0 0.0
    %2155 = vmatprep.subr.mxu0 0.0
    %2156 = vmatpush1.msra.mxu0 0.0
    %2157 = vmatprep.subr.mxu0 0.0
    %2158 = vmatpush1.msra.mxu0 0.0
    %2159 = vmatprep.subr.mxu0 0.0
    %2160 = vmatpush1.msra.mxu0 0.0
    %2161 = vmatprep.subr.mxu0 0.0
    %2162 = vmatpush1.msra.mxu0 0.0
    %2163 = vmatprep.subr.mxu0 0.0
    %2164 = vmatpush1.msra.mxu0 0.0
    %2165 = vmatprep.subr.mxu0 0.0
    %2166 = vmatpush1.msra.mxu0 0.0
    %2167 = vmatprep.subr.mxu0 0.0
    %2168 = vmatpush1.msra.mxu0 0.0
    %2169 = vmatprep.subr.mxu0 0.0
    %2170 = vmatpush1.msra.mxu0 0.0
    %2171 = vmatprep.subr.mxu0 0.0
    %2172 = vmatpush1.msra.mxu0 0.0
    %2173 = vmatprep.subr.mxu0 0.0
    %2174 = vmatpush1.msra.mxu0 0.0
    %2175 = vmatprep.subr.mxu0 0.0
    %2176 = vmatpush1.msra.mxu0 0.0
    %2177 = vmatprep.subr.mxu0 0.0
    %2178 = vmatpush1.msra.mxu0 0.0
    %2179 = vmatprep.mubr.f32.mxu0 0.0
    %2180 = vmatmul.mubr.f32.gmra.mrb[0].mxu0 %v2110
    %v2181 = vpop.f32.mrb[0].mxu0
    %v2182 = vadd.f32 %v2101, %v2181
    %v2183 = vpop.f32.mrb[0].mxu0
    %2184 = vmatprep.mubr.f32.mxu0 0.0
    %2185 = vmatmul.mubr.f32.gmra.mrb[0].mxu0 %v2113
    %v2186 = vpop.f32.mrb[0].mxu0
    %v2187 = vadd.f32 %v2106, %v2186
    %v2188 = vpop.f32.mrb[0].mxu0
    %2189 = vdwg.mxu0
    %s2190 = scalar_lea.vmem [#allocation8], 32
    %v2191 = vld [vmem:[%s2190] sm:$0xff]
    %v2192 = vld [vmem:[%s2190 + $0x8] sm:$0xff]
    %v2194 = vsel %vm1845, %v2191, 0
    %v2197 = vsel %vm1845, %v2192, 0
    %2199 = vmatprep.subr.mxu0 0.0
    %2200 = vmatpush1.msra.mxu0 %v1841
    %2201 = vmatprep.subr.mxu0 0.0
    %2202 = vmatpush1.msra.mxu0 %v1842
    %2203 = vmatprep.subr.mxu0 0.0
    %2204 = vmatpush1.msra.mxu0 0.0
    %2205 = vmatprep.subr.mxu0 0.0
    %2206 = vmatpush1.msra.mxu0 0.0
    %2207 = vmatprep.subr.mxu0 0.0
    %2208 = vmatpush1.msra.mxu0 0.0
    %2209 = vmatprep.subr.mxu0 0.0
    %2210 = vmatpush1.msra.mxu0 0.0
    %2211 = vmatprep.subr.mxu0 0.0
    %2212 = vmatpush1.msra.mxu0 0.0
    %2213 = vmatprep.subr.mxu0 0.0
    %2214 = vmatpush1.msra.mxu0 0.0
    %2215 = vmatprep.subr.mxu0 0.0
    %2216 = vmatpush1.msra.mxu0 0.0
    %2217 = vmatprep.subr.mxu0 0.0
    %2218 = vmatpush1.msra.mxu0 0.0
    %2219 = vmatprep.subr.mxu0 0.0
    %2220 = vmatpush1.msra.mxu0 0.0
    %2221 = vmatprep.subr.mxu0 0.0
    %2222 = vmatpush1.msra.mxu0 0.0
    %2223 = vmatprep.subr.mxu0 0.0
    %2224 = vmatpush1.msra.mxu0 0.0
    %2225 = vmatprep.subr.mxu0 0.0
    %2226 = vmatpush1.msra.mxu0 0.0
    %2227 = vmatprep.subr.mxu0 0.0
    %2228 = vmatpush1.msra.mxu0 0.0
    %2229 = vmatprep.subr.mxu0 0.0
    %2230 = vmatpush1.msra.mxu0 0.0
    %2231 = vmatprep.subr.mxu0 0.0
    %2232 = vmatpush1.msra.mxu0 0.0
    %2233 = vmatprep.subr.mxu0 0.0
    %2234 = vmatpush1.msra.mxu0 0.0
    %2235 = vmatprep.subr.mxu0 0.0
    %2236 = vmatpush1.msra.mxu0 0.0
    %2237 = vmatprep.subr.mxu0 0.0
    %2238 = vmatpush1.msra.mxu0 0.0
    %2239 = vmatprep.subr.mxu0 0.0
    %2240 = vmatpush1.msra.mxu0 0.0
    %2241 = vmatprep.subr.mxu0 0.0
    %2242 = vmatpush1.msra.mxu0 0.0
    %2243 = vmatprep.subr.mxu0 0.0
    %2244 = vmatpush1.msra.mxu0 0.0
    %2245 = vmatprep.subr.mxu0 0.0
    %2246 = vmatpush1.msra.mxu0 0.0
    %2247 = vmatprep.subr.mxu0 0.0
    %2248 = vmatpush1.msra.mxu0 0.0
    %2249 = vmatprep.subr.mxu0 0.0
    %2250 = vmatpush1.msra.mxu0 0.0
    %2251 = vmatprep.subr.mxu0 0.0
    %2252 = vmatpush1.msra.mxu0 0.0
    %2253 = vmatprep.subr.mxu0 0.0
    %2254 = vmatpush1.msra.mxu0 0.0
    %2255 = vmatprep.subr.mxu0 0.0
    %2256 = vmatpush1.msra.mxu0 0.0
    %2257 = vmatprep.subr.mxu0 0.0
    %2258 = vmatpush1.msra.mxu0 0.0
    %2259 = vmatprep.subr.mxu0 0.0
    %2260 = vmatpush1.msra.mxu0 0.0
    %2261 = vmatprep.subr.mxu0 0.0
    %2262 = vmatpush1.msra.mxu0 0.0
    %2263 = vmatprep.mubr.f32.mxu0 0.0
    %2264 = vmatmul.mubr.f32.gmra.mrb[0].mxu0 %v2194
    %v2265 = vpop.f32.mrb[0].mxu0
    %v2266 = vadd.f32 0.0, %v2265
    %v2267 = vpop.f32.mrb[0].mxu0
    %2268 = vmatprep.mubr.f32.mxu0 0.0
    %2269 = vmatmul.mubr.f32.gmra.mrb[0].mxu0 %v2197
    %v2270 = vpop.f32.mrb[0].mxu0
    %v2271 = vadd.f32 0.0, %v2270
    %v2272 = vpop.f32.mrb[0].mxu0
    %2273 = vdwg.mxu0
    %s2274 = scalar_lea.vmem %s25, 128
    %v2275 = vld [vmem:[%s2274] sm:$0xff]
    %v2276 = vld [vmem:[%s2274 + $0x8] sm:$0xff]
    %v2277 = vld [vmem:[%s2274 + $0x10] sm:$0xff]
    %v2278 = vld [vmem:[%s2274 + $0x18] sm:$0xff]
    %v2279 = vld [vmem:[%s2274 + $0x20] sm:$0xff]
    %v2280 = vld [vmem:[%s2274 + $0x28] sm:$0xff]
    %v2281 = vld [vmem:[%s2274 + $0x30] sm:$0xff]
    %v2282 = vld [vmem:[%s2274 + $0x38] sm:$0xff]
    %v2284 = vsel %vm1640, %v2266, 0
    %v2287 = vsel %vm1640, %v2271, 0
    %2289 = vmatprep.subr.mxu0 0.0
    %2290 = vmatpush1.msra.mxu0 %v2275
    %2291 = vmatprep.subr.mxu0 0.0
    %2292 = vmatpush1.msra.mxu0 %v2276
    %2293 = vmatprep.subr.mxu0 0.0
    %2294 = vmatpush1.msra.mxu0 %v2277
    %2295 = vmatprep.subr.mxu0 0.0
    %2296 = vmatpush1.msra.mxu0 %v2278
    %2297 = vmatprep.subr.mxu0 0.0
    %2298 = vmatpush1.msra.mxu0 %v2279
    %2299 = vmatprep.subr.mxu0 0.0
    %2300 = vmatpush1.msra.mxu0 %v2280
    %2301 = vmatprep.subr.mxu0 0.0
    %2302 = vmatpush1.msra.mxu0 %v2281
    %2303 = vmatprep.subr.mxu0 0.0
    %2304 = vmatpush1.msra.mxu0 %v2282
    %2305 = vmatprep.subr.mxu0 0.0
    %2306 = vmatpush1.msra.mxu0 0.0
    %2307 = vmatprep.subr.mxu0 0.0
    %2308 = vmatpush1.msra.mxu0 0.0
    %2309 = vmatprep.subr.mxu0 0.0
    %2310 = vmatpush1.msra.mxu0 0.0
    %2311 = vmatprep.subr.mxu0 0.0
    %2312 = vmatpush1.msra.mxu0 0.0
    %2313 = vmatprep.subr.mxu0 0.0
    %2314 = vmatpush1.msra.mxu0 0.0
    %2315 = vmatprep.subr.mxu0 0.0
    %2316 = vmatpush1.msra.mxu0 0.0
    %2317 = vmatprep.subr.mxu0 0.0
    %2318 = vmatpush1.msra.mxu0 0.0
    %2319 = vmatprep.subr.mxu0 0.0
    %2320 = vmatpush1.msra.mxu0 0.0
    %2321 = vmatprep.subr.mxu0 0.0
    %2322 = vmatpush1.msra.mxu0 0.0
    %2323 = vmatprep.subr.mxu0 0.0
    %2324 = vmatpush1.msra.mxu0 0.0
    %2325 = vmatprep.subr.mxu0 0.0
    %2326 = vmatpush1.msra.mxu0 0.0
    %2327 = vmatprep.subr.mxu0 0.0
    %2328 = vmatpush1.msra.mxu0 0.0
    %2329 = vmatprep.subr.mxu0 0.0
    %2330 = vmatpush1.msra.mxu0 0.0
    %2331 = vmatprep.subr.mxu0 0.0
    %2332 = vmatpush1.msra.mxu0 0.0
    %2333 = vmatprep.subr.mxu0 0.0
    %2334 = vmatpush1.msra.mxu0 0.0
    %2335 = vmatprep.subr.mxu0 0.0
    %2336 = vmatpush1.msra.mxu0 0.0
    %2337 = vmatprep.subr.mxu0 0.0
    %2338 = vmatpush1.msra.mxu0 0.0
    %2339 = vmatprep.subr.mxu0 0.0
    %2340 = vmatpush1.msra.mxu0 0.0
    %2341 = vmatprep.subr.mxu0 0.0
    %2342 = vmatpush1.msra.mxu0 0.0
    %2343 = vmatprep.subr.mxu0 0.0
    %2344 = vmatpush1.msra.mxu0 0.0
    %2345 = vmatprep.subr.mxu0 0.0
    %2346 = vmatpush1.msra.mxu0 0.0
    %2347 = vmatprep.subr.mxu0 0.0
    %2348 = vmatpush1.msra.mxu0 0.0
    %2349 = vmatprep.subr.mxu0 0.0
    %2350 = vmatpush1.msra.mxu0 0.0
    %2351 = vmatprep.subr.mxu0 0.0
    %2352 = vmatpush1.msra.mxu0 0.0
    %2353 = vmatprep.mubr.f32.mxu0 0.0
    %2354 = vmatmul.mubr.f32.gmra.mrb[0].mxu0 %v2284
    %v2355 = vpop.f32.mrb[0].mxu0
    %v2356 = vadd.f32 0.0, %v2355
    %v2357 = vpop.f32.mrb[0].mxu0
    %2358 = vmatprep.mubr.f32.mxu0 0.0
    %2359 = vmatmul.mubr.f32.gmra.mrb[0].mxu0 %v2287
    %v2360 = vpop.f32.mrb[0].mxu0
    %v2361 = vadd.f32 0.0, %v2360
    %v2362 = vpop.f32.mrb[0].mxu0
    %2363 = vdwg.mxu0
    %v2364 = vadd.f32 %v2182, %v2356
    %v2365 = vadd.f32 %v2187, %v2361
    %v2366 = vadd.f32 %v2364, %v2365
    %v2367 = vrot.slane %v2366, 4
    %v2368 = vadd.f32 %v2366, %v2367
    %v2369 = vrot.slane %v2368, 2
    %v2370 = vadd.f32 %v2368, %v2369
    %v2371 = vrot.slane %v2370, 1
    %v2372 = vadd.f32 %v2370, %v2371
    %v2373 = vld [vmem:[%s27] sm:$0xff]
    %v2374 = vld [vmem:[%s27 + $0x8] sm:$0xff]
    %v2375 = vld [vmem:[%s27 + $0x10] sm:$0xff]
    %v2376 = vld [vmem:[%s27 + $0x18] sm:$0xff]
    %v2377 = vld [vmem:[%s27 + $0x20] sm:$0xff]
    %v2378 = vld [vmem:[%s27 + $0x28] sm:$0xff]
    %v2379 = vld [vmem:[%s27 + $0x30] sm:$0xff]
    %v2380 = vld [vmem:[%s27 + $0x38] sm:$0xff]
    %v2381 = vld [vmem:[%s27 + $0x40] sm:$0xff]
    %v2382 = vld [vmem:[%s27 + $0x48] sm:$0xff]
    %v2383 = vld [vmem:[%s27 + $0x50] sm:$0xff]
    %v2384 = vld [vmem:[%s27 + $0x58] sm:$0xff]
    %v2385 = vld [vmem:[%s27 + $0x60] sm:$0xff]
    %v2386 = vld [vmem:[%s27 + $0x68] sm:$0xff]
    %v2387 = vld [vmem:[%s27 + $0x70] sm:$0xff]
    %v2388 = vld [vmem:[%s27 + $0x78] sm:$0xff]
    %2389 = vmatprep.subr.mxu0 0.0
    %2390 = vmatpush1.msra.mxu0 %v2373
    %2391 = vmatprep.subr.mxu0 0.0
    %2392 = vmatpush1.msra.mxu0 %v2374
    %2393 = vmatprep.subr.mxu0 0.0
    %2394 = vmatpush1.msra.mxu0 %v2375
    %2395 = vmatprep.subr.mxu0 0.0
    %2396 = vmatpush1.msra.mxu0 %v2376
    %2397 = vmatprep.subr.mxu0 0.0
    %2398 = vmatpush1.msra.mxu0 %v2377
    %2399 = vmatprep.subr.mxu0 0.0
    %2400 = vmatpush1.msra.mxu0 %v2378
    %2401 = vmatprep.subr.mxu0 0.0
    %2402 = vmatpush1.msra.mxu0 %v2379
    %2403 = vmatprep.subr.mxu0 0.0
    %2404 = vmatpush1.msra.mxu0 %v2380
    %2405 = vmatprep.subr.mxu0 0.0
    %2406 = vmatpush1.msra.mxu0 %v2381
    %2407 = vmatprep.subr.mxu0 0.0
    %2408 = vmatpush1.msra.mxu0 %v2382
    %2409 = vmatprep.subr.mxu0 0.0
    %2410 = vmatpush1.msra.mxu0 %v2383
    %2411 = vmatprep.subr.mxu0 0.0
    %2412 = vmatpush1.msra.mxu0 %v2384
    %2413 = vmatprep.subr.mxu0 0.0
    %2414 = vmatpush1.msra.mxu0 %v2385
    %2415 = vmatprep.subr.mxu0 0.0
    %2416 = vmatpush1.msra.mxu0 %v2386
    %2417 = vmatprep.subr.mxu0 0.0
    %2418 = vmatpush1.msra.mxu0 %v2387
    %2419 = vmatprep.subr.mxu0 0.0
    %2420 = vmatpush1.msra.mxu0 %v2388
    %2421 = vmatprep.subr.mxu0 0.0
    %2422 = vmatpush1.msra.mxu0 0.0
    %2423 = vmatprep.subr.mxu0 0.0
    %2424 = vmatpush1.msra.mxu0 0.0
    %2425 = vmatprep.subr.mxu0 0.0
    %2426 = vmatpush1.msra.mxu0 0.0
    %2427 = vmatprep.subr.mxu0 0.0
    %2428 = vmatpush1.msra.mxu0 0.0
    %2429 = vmatprep.subr.mxu0 0.0
    %2430 = vmatpush1.msra.mxu0 0.0
    %2431 = vmatprep.subr.mxu0 0.0
    %2432 = vmatpush1.msra.mxu0 0.0
    %2433 = vmatprep.subr.mxu0 0.0
    %2434 = vmatpush1.msra.mxu0 0.0
    %2435 = vmatprep.subr.mxu0 0.0
    %2436 = vmatpush1.msra.mxu0 0.0
    %2437 = vmatprep.subr.mxu0 0.0
    %2438 = vmatpush1.msra.mxu0 0.0
    %2439 = vmatprep.subr.mxu0 0.0
    %2440 = vmatpush1.msra.mxu0 0.0
    %2441 = vmatprep.subr.mxu0 0.0
    %2442 = vmatpush1.msra.mxu0 0.0
    %2443 = vmatprep.subr.mxu0 0.0
    %2444 = vmatpush1.msra.mxu0 0.0
    %2445 = vmatprep.subr.mxu0 0.0
    %2446 = vmatpush1.msra.mxu0 0.0
    %2447 = vmatprep.subr.mxu0 0.0
    %2448 = vmatpush1.msra.mxu0 0.0
    %2449 = vmatprep.subr.mxu0 0.0
    %2450 = vmatpush1.msra.mxu0 0.0
    %2451 = vmatprep.subr.mxu0 0.0
    %2452 = vmatpush1.msra.mxu0 0.0
    %2453 = vmatprep.mubr.f32.mxu0 0.0
    %2454 = vmatmul.mubr.f32.gmra.mrb[0].mxu0 %v2372
    %v2455 = vpop.f32.mrb[0].mxu0
    %v2456 = vadd.f32 0.0, %v2455
    %v2457 = vpop.f32.mrb[0].mxu0
    %2458 = vdwg.mxu0
    %v2459 = vmul.f32 %v2364, %v2364
    %v2460 = vmul.f32 %v2365, %v2365
    %v2461 = vadd.f32 %v2459, %v2460
    %v2462 = vrot.slane %v2461, 4
    %v2463 = vadd.f32 %v2461, %v2462
    %v2464 = vrot.slane %v2463, 2
    %v2465 = vadd.f32 %v2463, %v2464
    %v2466 = vrot.slane %v2465, 1
    %v2467 = vadd.f32 %v2465, %v2466
    %2468 = vmatprep.subr.mxu0 0.0
    %2469 = vmatpush1.msra.mxu0 %v2373
    %2470 = vmatprep.subr.mxu0 0.0
    %2471 = vmatpush1.msra.mxu0 %v2374
    %2472 = vmatprep.subr.mxu0 0.0
    %2473 = vmatpush1.msra.mxu0 %v2375
    %2474 = vmatprep.subr.mxu0 0.0
    %2475 = vmatpush1.msra.mxu0 %v2376
    %2476 = vmatprep.subr.mxu0 0.0
    %2477 = vmatpush1.msra.mxu0 %v2377
    %2478 = vmatprep.subr.mxu0 0.0
    %2479 = vmatpush1.msra.mxu0 %v2378
    %2480 = vmatprep.subr.mxu0 0.0
    %2481 = vmatpush1.msra.mxu0 %v2379
    %2482 = vmatprep.subr.mxu0 0.0
    %2483 = vmatpush1.msra.mxu0 %v2380
    %2484 = vmatprep.subr.mxu0 0.0
    %2485 = vmatpush1.msra.mxu0 %v2381
    %2486 = vmatprep.subr.mxu0 0.0
    %2487 = vmatpush1.msra.mxu0 %v2382
    %2488 = vmatprep.subr.mxu0 0.0
    %2489 = vmatpush1.msra.mxu0 %v2383
    %2490 = vmatprep.subr.mxu0 0.0
    %2491 = vmatpush1.msra.mxu0 %v2384
    %2492 = vmatprep.subr.mxu0 0.0
    %2493 = vmatpush1.msra.mxu0 %v2385
    %2494 = vmatprep.subr.mxu0 0.0
    %2495 = vmatpush1.msra.mxu0 %v2386
    %2496 = vmatprep.subr.mxu0 0.0
    %2497 = vmatpush1.msra.mxu0 %v2387
    %2498 = vmatprep.subr.mxu0 0.0
    %2499 = vmatpush1.msra.mxu0 %v2388
    %2500 = vmatprep.subr.mxu0 0.0
    %2501 = vmatpush1.msra.mxu0 0.0
    %2502 = vmatprep.subr.mxu0 0.0
    %2503 = vmatpush1.msra.mxu0 0.0
    %2504 = vmatprep.subr.mxu0 0.0
    %2505 = vmatpush1.msra.mxu0 0.0
    %2506 = vmatprep.subr.mxu0 0.0
    %2507 = vmatpush1.msra.mxu0 0.0
    %2508 = vmatprep.subr.mxu0 0.0
    %2509 = vmatpush1.msra.mxu0 0.0
    %2510 = vmatprep.subr.mxu0 0.0
    %2511 = vmatpush1.msra.mxu0 0.0
    %2512 = vmatprep.subr.mxu0 0.0
    %2513 = vmatpush1.msra.mxu0 0.0
    %2514 = vmatprep.subr.mxu0 0.0
    %2515 = vmatpush1.msra.mxu0 0.0
    %2516 = vmatprep.subr.mxu0 0.0
    %2517 = vmatpush1.msra.mxu0 0.0
    %2518 = vmatprep.subr.mxu0 0.0
    %2519 = vmatpush1.msra.mxu0 0.0
    %2520 = vmatprep.subr.mxu0 0.0
    %2521 = vmatpush1.msra.mxu0 0.0
    %2522 = vmatprep.subr.mxu0 0.0
    %2523 = vmatpush1.msra.mxu0 0.0
    %2524 = vmatprep.subr.mxu0 0.0
    %2525 = vmatpush1.msra.mxu0 0.0
    %2526 = vmatprep.subr.mxu0 0.0
    %2527 = vmatpush1.msra.mxu0 0.0
    %2528 = vmatprep.subr.mxu0 0.0
    %2529 = vmatpush1.msra.mxu0 0.0
    %2530 = vmatprep.subr.mxu0 0.0
    %2531 = vmatpush1.msra.mxu0 0.0
    %2532 = vmatprep.mubr.f32.mxu0 0.0
    %2533 = vmatmul.mubr.f32.gmra.mrb[0].mxu0 %v2467
    %v2534 = vpop.f32.mrb[0].mxu0
    %v2535 = vadd.f32 0.0, %v2534
    %v2536 = vpop.f32.mrb[0].mxu0
    %2537 = vdwg.mxu0
    %v2538 = vmul.f32 %v2456, %v2456
    %v2539 = vsub.f32 %v2535, %v2538
    %v2540 = vmax.f32 %v2539, 0.0
    %v2541 = vld [vmem:[#allocation10] sm:$0x1]
    %v2542 = vadd.f32 %v2540, 1e-05
    %v2543 = vrsqrt.pop %v2542
    %v2544 = vmul.f32 %v2541, %v2543
    %v2545 = vld [vmem:[#allocation11] sm:$0x1]
    %v2546 = vmul.f32 %v2456, %v2544
    %v2547 = vsub.f32 %v2545, %v2546
    %v2549 = vlaneseq
    %v2550 = vshrl.u32 %v2549, 7
    %v2551 = vsub.s32 0, %v2550
    %v2552 = vrot.slane %v2544, %v2551
    %v2554 = vmul.f32 %v2364, %v2552
    %v2555 = vmul.f32 %v2365, %v2552
    %v2557 = vlaneseq
    %v2558 = vshrl.u32 %v2557, 7
    %v2559 = vsub.s32 0, %v2558
    %v2560 = vrot.slane %v2547, %v2559
    %v2562 = vadd.f32 %v2554, %v2560
    %v2563 = vadd.f32 %v2555, %v2560
    %v2564 = vmax.f32 %v2562, 0.0
    %v2565 = vmax.f32 %v2563, 0.0
    %v2566 = vld [vmem:[%s33] sm:$0xff]
    %v2568 = vsel %vm1845, %v2566, 0
    %2570 = vmatprep.subr.mxu0 0.0
    %2571 = vmatpush1.msra.mxu0 %v2564
    %2572 = vmatprep.subr.mxu0 0.0
    %2573 = vmatpush1.msra.mxu0 %v2565
    %2574 = vmatprep.subr.mxu0 0.0
    %2575 = vmatpush1.msra.mxu0 0.0
    %2576 = vmatprep.subr.mxu0 0.0
    %2577 = vmatpush1.msra.mxu0 0.0
    %2578 = vmatprep.subr.mxu0 0.0
    %2579 = vmatpush1.msra.mxu0 0.0
    %2580 = vmatprep.subr.mxu0 0.0
    %2581 = vmatpush1.msra.mxu0 0.0
    %2582 = vmatprep.subr.mxu0 0.0
    %2583 = vmatpush1.msra.mxu0 0.0
    %2584 = vmatprep.subr.mxu0 0.0
    %2585 = vmatpush1.msra.mxu0 0.0
    %2586 = vmatprep.subr.mxu0 0.0
    %2587 = vmatpush1.msra.mxu0 0.0
    %2588 = vmatprep.subr.mxu0 0.0
    %2589 = vmatpush1.msra.mxu0 0.0
    %2590 = vmatprep.subr.mxu0 0.0
    %2591 = vmatpush1.msra.mxu0 0.0
    %2592 = vmatprep.subr.mxu0 0.0
    %2593 = vmatpush1.msra.mxu0 0.0
    %2594 = vmatprep.subr.mxu0 0.0
    %2595 = vmatpush1.msra.mxu0 0.0
    %2596 = vmatprep.subr.mxu0 0.0
    %2597 = vmatpush1.msra.mxu0 0.0
    %2598 = vmatprep.subr.mxu0 0.0
    %2599 = vmatpush1.msra.mxu0 0.0
    %2600 = vmatprep.subr.mxu0 0.0
    %2601 = vmatpush1.msra.mxu0 0.0
    %2602 = vmatprep.subr.mxu0 0.0
    %2603 = vmatpush1.msra.mxu0 0.0
    %2604 = vmatprep.subr.mxu0 0.0
    %2605 = vmatpush1.msra.mxu0 0.0
    %2606 = vmatprep.subr.mxu0 0.0
    %2607 = vmatpush1.msra.mxu0 0.0
    %2608 = vmatprep.subr.mxu0 0.0
    %2609 = vmatpush1.msra.mxu0 0.0
    %2610 = vmatprep.subr.mxu0 0.0
    %2611 = vmatpush1.msra.mxu0 0.0
    %2612 = vmatprep.subr.mxu0 0.0
    %2613 = vmatpush1.msra.mxu0 0.0
    %2614 = vmatprep.subr.mxu0 0.0
    %2615 = vmatpush1.msra.mxu0 0.0
    %2616 = vmatprep.subr.mxu0 0.0
    %2617 = vmatpush1.msra.mxu0 0.0
    %2618 = vmatprep.subr.mxu0 0.0
    %2619 = vmatpush1.msra.mxu0 0.0
    %2620 = vmatprep.subr.mxu0 0.0
    %2621 = vmatpush1.msra.mxu0 0.0
    %2622 = vmatprep.subr.mxu0 0.0
    %2623 = vmatpush1.msra.mxu0 0.0
    %2624 = vmatprep.subr.mxu0 0.0
    %2625 = vmatpush1.msra.mxu0 0.0
    %2626 = vmatprep.subr.mxu0 0.0
    %2627 = vmatpush1.msra.mxu0 0.0
    %2628 = vmatprep.subr.mxu0 0.0
    %2629 = vmatpush1.msra.mxu0 0.0
    %2630 = vmatprep.subr.mxu0 0.0
    %2631 = vmatpush1.msra.mxu0 0.0
    %2632 = vmatprep.subr.mxu0 0.0
    %2633 = vmatpush1.msra.mxu0 0.0
    %2634 = vmatprep.mubr.f32.mxu0 0.0
    %2635 = vmatmul.mubr.f32.gmra.mrb[0].mxu0 %v2568
    %v2636 = vpop.f32.mrb[0].mxu0
    %v2637 = vadd.f32 0.0, %v2636
    %v2638 = vpop.f32.mrb[0].mxu0
    %2639 = vdwg.mxu0
    %v2640 = vld [vmem:[%s35] sm:$0xff]
    %v2641 = vld [vmem:[%s35 + $0x8] sm:$0xff]
    %v2642 = vld [vmem:[%s35 + $0x10] sm:$0xff]
    %v2643 = vld [vmem:[%s35 + $0x18] sm:$0xff]
    %v2644 = vld [vmem:[%s35 + $0x20] sm:$0xff]
    %v2645 = vld [vmem:[%s35 + $0x28] sm:$0xff]
    %v2646 = vld [vmem:[%s35 + $0x30] sm:$0xff]
    %v2647 = vld [vmem:[%s35 + $0x38] sm:$0xff]
    %v2648 = vld [vmem:[%s35 + $0x40] sm:$0xff]
    %v2649 = vld [vmem:[%s35 + $0x48] sm:$0xff]
    %v2650 = vld [vmem:[%s35 + $0x50] sm:$0xff]
    %v2651 = vld [vmem:[%s35 + $0x58] sm:$0xff]
    %v2652 = vld [vmem:[%s35 + $0x60] sm:$0xff]
    %v2653 = vld [vmem:[%s35 + $0x68] sm:$0xff]
    %v2654 = vld [vmem:[%s35 + $0x70] sm:$0xff]
    %v2655 = vld [vmem:[%s35 + $0x78] sm:$0xff]
    %s2656 = scalar_lea.vmem %s33, 8
    %v2657 = vld [vmem:[%s2656] sm:$0xff]
    %v2659 = vsel %vm1845, %v2657, 0
    %2661 = vmatprep.subr.mxu0 0.0
    %2662 = vmatpush1.msra.mxu0 %v2564
    %2663 = vmatprep.subr.mxu0 0.0
    %2664 = vmatpush1.msra.mxu0 %v2565
    %2665 = vmatprep.subr.mxu0 0.0
    %2666 = vmatpush1.msra.mxu0 0.0
    %2667 = vmatprep.subr.mxu0 0.0
    %2668 = vmatpush1.msra.mxu0 0.0
    %2669 = vmatprep.subr.mxu0 0.0
    %2670 = vmatpush1.msra.mxu0 0.0
    %2671 = vmatprep.subr.mxu0 0.0
    %2672 = vmatpush1.msra.mxu0 0.0
    %2673 = vmatprep.subr.mxu0 0.0
    %2674 = vmatpush1.msra.mxu0 0.0
    %2675 = vmatprep.subr.mxu0 0.0
    %2676 = vmatpush1.msra.mxu0 0.0
    %2677 = vmatprep.subr.mxu0 0.0
    %2678 = vmatpush1.msra.mxu0 0.0
    %2679 = vmatprep.subr.mxu0 0.0
    %2680 = vmatpush1.msra.mxu0 0.0
    %2681 = vmatprep.subr.mxu0 0.0
    %2682 = vmatpush1.msra.mxu0 0.0
    %2683 = vmatprep.subr.mxu0 0.0
    %2684 = vmatpush1.msra.mxu0 0.0
    %2685 = vmatprep.subr.mxu0 0.0
    %2686 = vmatpush1.msra.mxu0 0.0
    %2687 = vmatprep.subr.mxu0 0.0
    %2688 = vmatpush1.msra.mxu0 0.0
    %2689 = vmatprep.subr.mxu0 0.0
    %2690 = vmatpush1.msra.mxu0 0.0
    %2691 = vmatprep.subr.mxu0 0.0
    %2692 = vmatpush1.msra.mxu0 0.0
    %2693 = vmatprep.subr.mxu0 0.0
    %2694 = vmatpush1.msra.mxu0 0.0
    %2695 = vmatprep.subr.mxu0 0.0
    %2696 = vmatpush1.msra.mxu0 0.0
    %2697 = vmatprep.subr.mxu0 0.0
    %2698 = vmatpush1.msra.mxu0 0.0
    %2699 = vmatprep.subr.mxu0 0.0
    %2700 = vmatpush1.msra.mxu0 0.0
    %2701 = vmatprep.subr.mxu0 0.0
    %2702 = vmatpush1.msra.mxu0 0.0
    %2703 = vmatprep.subr.mxu0 0.0
    %2704 = vmatpush1.msra.mxu0 0.0
    %2705 = vmatprep.subr.mxu0 0.0
    %2706 = vmatpush1.msra.mxu0 0.0
    %2707 = vmatprep.subr.mxu0 0.0
    %2708 = vmatpush1.msra.mxu0 0.0
    %2709 = vmatprep.subr.mxu0 0.0
    %2710 = vmatpush1.msra.mxu0 0.0
    %2711 = vmatprep.subr.mxu0 0.0
    %2712 = vmatpush1.msra.mxu0 0.0
    %2713 = vmatprep.subr.mxu0 0.0
    %2714 = vmatpush1.msra.mxu0 0.0
    %2715 = vmatprep.subr.mxu0 0.0
    %2716 = vmatpush1.msra.mxu0 0.0
    %2717 = vmatprep.subr.mxu0 0.0
    %2718 = vmatpush1.msra.mxu0 0.0
    %2719 = vmatprep.subr.mxu0 0.0
    %2720 = vmatpush1.msra.mxu0 0.0
    %2721 = vmatprep.subr.mxu0 0.0
    %2722 = vmatpush1.msra.mxu0 0.0
    %2723 = vmatprep.subr.mxu0 0.0
    %2724 = vmatpush1.msra.mxu0 0.0
    %2725 = vmatprep.mubr.f32.mxu0 0.0
    %2726 = vmatmul.mubr.f32.gmra.mrb[0].mxu0 %v2659
    %v2727 = vpop.f32.mrb[0].mxu0
    %v2728 = vadd.f32 0.0, %v2727
    %v2729 = vpop.f32.mrb[0].mxu0
    %2730 = vdwg.mxu0
    %s2731 = scalar_lea.vmem %s35, 128
    %v2732 = vld [vmem:[%s2731] sm:$0xff]
    %v2733 = vld [vmem:[%s2731 + $0x8] sm:$0xff]
    %v2734 = vld [vmem:[%s2731 + $0x10] sm:$0xff]
    %v2735 = vld [vmem:[%s2731 + $0x18] sm:$0xff]
    %v2736 = vld [vmem:[%s2731 + $0x20] sm:$0xff]
    %v2737 = vld [vmem:[%s2731 + $0x28] sm:$0xff]
    %v2738 = vld [vmem:[%s2731 + $0x30] sm:$0xff]
    %v2739 = vld [vmem:[%s2731 + $0x38] sm:$0xff]
    %v2740 = vld [vmem:[%s2731 + $0x40] sm:$0xff]
    %v2741 = vld [vmem:[%s2731 + $0x48] sm:$0xff]
    %v2742 = vld [vmem:[%s2731 + $0x50] sm:$0xff]
    %v2743 = vld [vmem:[%s2731 + $0x58] sm:$0xff]
    %v2744 = vld [vmem:[%s2731 + $0x60] sm:$0xff]
    %v2745 = vld [vmem:[%s2731 + $0x68] sm:$0xff]
    %v2746 = vld [vmem:[%s2731 + $0x70] sm:$0xff]
    %v2747 = vld [vmem:[%s2731 + $0x78] sm:$0xff]
    %2748 = vmatprep.subr.mxu0 0.0
    %2749 = vmatpush1.msra.mxu0 %v2732
    %2750 = vmatprep.subr.mxu0 0.0
    %2751 = vmatpush1.msra.mxu0 %v2733
    %2752 = vmatprep.subr.mxu0 0.0
    %2753 = vmatpush1.msra.mxu0 %v2734
    %2754 = vmatprep.subr.mxu0 0.0
    %2755 = vmatpush1.msra.mxu0 %v2735
    %2756 = vmatprep.subr.mxu0 0.0
    %2757 = vmatpush1.msra.mxu0 %v2736
    %2758 = vmatprep.subr.mxu0 0.0
    %2759 = vmatpush1.msra.mxu0 %v2737
    %2760 = vmatprep.subr.mxu0 0.0
    %2761 = vmatpush1.msra.mxu0 %v2738
    %2762 = vmatprep.subr.mxu0 0.0
    %2763 = vmatpush1.msra.mxu0 %v2739
    %2764 = vmatprep.subr.mxu0 0.0
    %2765 = vmatpush1.msra.mxu0 %v2740
    %2766 = vmatprep.subr.mxu0 0.0
    %2767 = vmatpush1.msra.mxu0 %v2741
    %2768 = vmatprep.subr.mxu0 0.0
    %2769 = vmatpush1.msra.mxu0 %v2742
    %2770 = vmatprep.subr.mxu0 0.0
    %2771 = vmatpush1.msra.mxu0 %v2743
    %2772 = vmatprep.subr.mxu0 0.0
    %2773 = vmatpush1.msra.mxu0 %v2744
    %2774 = vmatprep.subr.mxu0 0.0
    %2775 = vmatpush1.msra.mxu0 %v2745
    %2776 = vmatprep.subr.mxu0 0.0
    %2777 = vmatpush1.msra.mxu0 %v2746
    %2778 = vmatprep.subr.mxu0 0.0
    %2779 = vmatpush1.msra.mxu0 %v2747
    %2780 = vmatprep.subr.mxu0 0.0
    %2781 = vmatpush1.msra.mxu0 0.0
    %2782 = vmatprep.subr.mxu0 0.0
    %2783 = vmatpush1.msra.mxu0 0.0
    %2784 = vmatprep.subr.mxu0 0.0
    %2785 = vmatpush1.msra.mxu0 0.0
    %2786 = vmatprep.subr.mxu0 0.0
    %2787 = vmatpush1.msra.mxu0 0.0
    %2788 = vmatprep.subr.mxu0 0.0
    %2789 = vmatpush1.msra.mxu0 0.0
    %2790 = vmatprep.subr.mxu0 0.0
    %2791 = vmatpush1.msra.mxu0 0.0
    %2792 = vmatprep.subr.mxu0 0.0
    %2793 = vmatpush1.msra.mxu0 0.0
    %2794 = vmatprep.subr.mxu0 0.0
    %2795 = vmatpush1.msra.mxu0 0.0
    %2796 = vmatprep.subr.mxu0 0.0
    %2797 = vmatpush1.msra.mxu0 0.0
    %2798 = vmatprep.subr.mxu0 0.0
    %2799 = vmatpush1.msra.mxu0 0.0
    %2800 = vmatprep.subr.mxu0 0.0
    %2801 = vmatpush1.msra.mxu0 0.0
    %2802 = vmatprep.subr.mxu0 0.0
    %2803 = vmatpush1.msra.mxu0 0.0
    %2804 = vmatprep.subr.mxu0 0.0
    %2805 = vmatpush1.msra.mxu0 0.0
    %2806 = vmatprep.subr.mxu0 0.0
    %2807 = vmatpush1.msra.mxu0 0.0
    %2808 = vmatprep.subr.mxu0 0.0
    %2809 = vmatpush1.msra.mxu0 0.0
    %2810 = vmatprep.subr.mxu0 0.0
    %2811 = vmatpush1.msra.mxu0 0.0
    %2812 = vmatprep.mubr.f32.mxu0 0.0
    %2813 = vmatmul.mubr.f32.gmra.mrb[0].mxu0 %v2728
    %v2814 = vpop.f32.mrb[0].mxu0
    %v2815 = vadd.f32 0.0, %v2814
    %v2816 = vpop.f32.mrb[0].mxu0
    %2817 = vdwg.mxu0
    %2818 = vmatprep.subr.mxu0 0.0
    %2819 = vmatpush1.msra.mxu0 %v2640
    %2820 = vmatprep.subr.mxu0 0.0
    %2821 = vmatpush1.msra.mxu0 %v2641
    %2822 = vmatprep.subr.mxu0 0.0
    %2823 = vmatpush1.msra.mxu0 %v2642
    %2824 = vmatprep.subr.mxu0 0.0
    %2825 = vmatpush1.msra.mxu0 %v2643
    %2826 = vmatprep.subr.mxu0 0.0
    %2827 = vmatpush1.msra.mxu0 %v2644
    %2828 = vmatprep.subr.mxu0 0.0
    %2829 = vmatpush1.msra.mxu0 %v2645
    %2830 = vmatprep.subr.mxu0 0.0
    %2831 = vmatpush1.msra.mxu0 %v2646
    %2832 = vmatprep.subr.mxu0 0.0
    %2833 = vmatpush1.msra.mxu0 %v2647
    %2834 = vmatprep.subr.mxu0 0.0
    %2835 = vmatpush1.msra.mxu0 %v2648
    %2836 = vmatprep.subr.mxu0 0.0
    %2837 = vmatpush1.msra.mxu0 %v2649
    %2838 = vmatprep.subr.mxu0 0.0
    %2839 = vmatpush1.msra.mxu0 %v2650
    %2840 = vmatprep.subr.mxu0 0.0
    %2841 = vmatpush1.msra.mxu0 %v2651
    %2842 = vmatprep.subr.mxu0 0.0
    %2843 = vmatpush1.msra.mxu0 %v2652
    %2844 = vmatprep.subr.mxu0 0.0
    %2845 = vmatpush1.msra.mxu0 %v2653
    %2846 = vmatprep.subr.mxu0 0.0
    %2847 = vmatpush1.msra.mxu0 %v2654
    %2848 = vmatprep.subr.mxu0 0.0
    %2849 = vmatpush1.msra.mxu0 %v2655
    %2850 = vmatprep.subr.mxu0 0.0
    %2851 = vmatpush1.msra.mxu0 0.0
    %2852 = vmatprep.subr.mxu0 0.0
    %2853 = vmatpush1.msra.mxu0 0.0
    %2854 = vmatprep.subr.mxu0 0.0
    %2855 = vmatpush1.msra.mxu0 0.0
    %2856 = vmatprep.subr.mxu0 0.0
    %2857 = vmatpush1.msra.mxu0 0.0
    %2858 = vmatprep.subr.mxu0 0.0
    %2859 = vmatpush1.msra.mxu0 0.0
    %2860 = vmatprep.subr.mxu0 0.0
    %2861 = vmatpush1.msra.mxu0 0.0
    %2862 = vmatprep.subr.mxu0 0.0
    %2863 = vmatpush1.msra.mxu0 0.0
    %2864 = vmatprep.subr.mxu0 0.0
    %2865 = vmatpush1.msra.mxu0 0.0
    %2866 = vmatprep.subr.mxu0 0.0
    %2867 = vmatpush1.msra.mxu0 0.0
    %2868 = vmatprep.subr.mxu0 0.0
    %2869 = vmatpush1.msra.mxu0 0.0
    %2870 = vmatprep.subr.mxu0 0.0
    %2871 = vmatpush1.msra.mxu0 0.0
    %2872 = vmatprep.subr.mxu0 0.0
    %2873 = vmatpush1.msra.mxu0 0.0
    %2874 = vmatprep.subr.mxu0 0.0
    %2875 = vmatpush1.msra.mxu0 0.0
    %2876 = vmatprep.subr.mxu0 0.0
    %2877 = vmatpush1.msra.mxu0 0.0
    %2878 = vmatprep.subr.mxu0 0.0
    %2879 = vmatpush1.msra.mxu0 0.0
    %2880 = vmatprep.subr.mxu0 0.0
    %2881 = vmatpush1.msra.mxu0 0.0
    %2882 = vmatprep.mubr.f32.mxu0 0.0
    %2883 = vmatmul.mubr.f32.gmra.mrb[0].mxu0 %v2637
    %v2884 = vpop.f32.mrb[0].mxu0
    %v2885 = vadd.f32 %v2815, %v2884
    %v2886 = vpop.f32.mrb[0].mxu0
    %2887 = vdwg.mxu0
    %s2888 = scalar_lea.vmem %s33, 16
    %v2889 = vld [vmem:[%s2888] sm:$0xff]
    %v2891 = vsel %vm1845, %v2889, 0
    %2893 = vmatprep.subr.mxu0 0.0
    %2894 = vmatpush1.msra.mxu0 %v2564
    %2895 = vmatprep.subr.mxu0 0.0
    %2896 = vmatpush1.msra.mxu0 %v2565
    %2897 = vmatprep.subr.mxu0 0.0
    %2898 = vmatpush1.msra.mxu0 0.0
    %2899 = vmatprep.subr.mxu0 0.0
    %2900 = vmatpush1.msra.mxu0 0.0
    %2901 = vmatprep.subr.mxu0 0.0
    %2902 = vmatpush1.msra.mxu0 0.0
    %2903 = vmatprep.subr.mxu0 0.0
    %2904 = vmatpush1.msra.mxu0 0.0
    %2905 = vmatprep.subr.mxu0 0.0
    %2906 = vmatpush1.msra.mxu0 0.0
    %2907 = vmatprep.subr.mxu0 0.0
    %2908 = vmatpush1.msra.mxu0 0.0
    %2909 = vmatprep.subr.mxu0 0.0
    %2910 = vmatpush1.msra.mxu0 0.0
    %2911 = vmatprep.subr.mxu0 0.0
    %2912 = vmatpush1.msra.mxu0 0.0
    %2913 = vmatprep.subr.mxu0 0.0
    %2914 = vmatpush1.msra.mxu0 0.0
    %2915 = vmatprep.subr.mxu0 0.0
    %2916 = vmatpush1.msra.mxu0 0.0
    %2917 = vmatprep.subr.mxu0 0.0
    %2918 = vmatpush1.msra.mxu0 0.0
    %2919 = vmatprep.subr.mxu0 0.0
    %2920 = vmatpush1.msra.mxu0 0.0
    %2921 = vmatprep.subr.mxu0 0.0
    %2922 = vmatpush1.msra.mxu0 0.0
    %2923 = vmatprep.subr.mxu0 0.0
    %2924 = vmatpush1.msra.mxu0 0.0
    %2925 = vmatprep.subr.mxu0 0.0
    %2926 = vmatpush1.msra.mxu0 0.0
    %2927 = vmatprep.subr.mxu0 0.0
    %2928 = vmatpush1.msra.mxu0 0.0
    %2929 = vmatprep.subr.mxu0 0.0
    %2930 = vmatpush1.msra.mxu0 0.0
    %2931 = vmatprep.subr.mxu0 0.0
    %2932 = vmatpush1.msra.mxu0 0.0
    %2933 = vmatprep.subr.mxu0 0.0
    %2934 = vmatpush1.msra.mxu0 0.0
    %2935 = vmatprep.subr.mxu0 0.0
    %2936 = vmatpush1.msra.mxu0 0.0
    %2937 = vmatprep.subr.mxu0 0.0
    %2938 = vmatpush1.msra.mxu0 0.0
    %2939 = vmatprep.subr.mxu0 0.0
    %2940 = vmatpush1.msra.mxu0 0.0
    %2941 = vmatprep.subr.mxu0 0.0
    %2942 = vmatpush1.msra.mxu0 0.0
    %2943 = vmatprep.subr.mxu0 0.0
    %2944 = vmatpush1.msra.mxu0 0.0
    %2945 = vmatprep.subr.mxu0 0.0
    %2946 = vmatpush1.msra.mxu0 0.0
    %2947 = vmatprep.subr.mxu0 0.0
    %2948 = vmatpush1.msra.mxu0 0.0
    %2949 = vmatprep.subr.mxu0 0.0
    %2950 = vmatpush1.msra.mxu0 0.0
    %2951 = vmatprep.subr.mxu0 0.0
    %2952 = vmatpush1.msra.mxu0 0.0
    %2953 = vmatprep.subr.mxu0 0.0
    %2954 = vmatpush1.msra.mxu0 0.0
    %2955 = vmatprep.subr.mxu0 0.0
    %2956 = vmatpush1.msra.mxu0 0.0
    %2957 = vmatprep.mubr.f32.mxu0 0.0
    %2958 = vmatmul.mubr.f32.gmra.mrb[0].mxu0 %v2891
    %v2959 = vpop.f32.mrb[0].mxu0
    %v2960 = vadd.f32 0.0, %v2959
    %v2961 = vpop.f32.mrb[0].mxu0
    %2962 = vdwg.mxu0
    %s2963 = scalar_lea.vmem %s35, 256
    %v2964 = vld [vmem:[%s2963] sm:$0xff]
    %v2965 = vld [vmem:[%s2963 + $0x8] sm:$0xff]
    %v2966 = vld [vmem:[%s2963 + $0x10] sm:$0xff]
    %v2967 = vld [vmem:[%s2963 + $0x18] sm:$0xff]
    %v2968 = vld [vmem:[%s2963 + $0x20] sm:$0xff]
    %v2969 = vld [vmem:[%s2963 + $0x28] sm:$0xff]
    %v2970 = vld [vmem:[%s2963 + $0x30] sm:$0xff]
    %v2971 = vld [vmem:[%s2963 + $0x38] sm:$0xff]
    %v2972 = vld [vmem:[%s2963 + $0x40] sm:$0xff]
    %v2973 = vld [vmem:[%s2963 + $0x48] sm:$0xff]
    %v2974 = vld [vmem:[%s2963 + $0x50] sm:$0xff]
    %v2975 = vld [vmem:[%s2963 + $0x58] sm:$0xff]
    %v2976 = vld [vmem:[%s2963 + $0x60] sm:$0xff]
    %v2977 = vld [vmem:[%s2963 + $0x68] sm:$0xff]
    %v2978 = vld [vmem:[%s2963 + $0x70] sm:$0xff]
    %v2979 = vld [vmem:[%s2963 + $0x78] sm:$0xff]
    %2980 = vmatprep.subr.mxu0 0.0
    %2981 = vmatpush1.msra.mxu0 %v2964
    %2982 = vmatprep.subr.mxu0 0.0
    %2983 = vmatpush1.msra.mxu0 %v2965
    %2984 = vmatprep.subr.mxu0 0.0
    %2985 = vmatpush1.msra.mxu0 %v2966
    %2986 = vmatprep.subr.mxu0 0.0
    %2987 = vmatpush1.msra.mxu0 %v2967
    %2988 = vmatprep.subr.mxu0 0.0
    %2989 = vmatpush1.msra.mxu0 %v2968
    %2990 = vmatprep.subr.mxu0 0.0
    %2991 = vmatpush1.msra.mxu0 %v2969
    %2992 = vmatprep.subr.mxu0 0.0
    %2993 = vmatpush1.msra.mxu0 %v2970
    %2994 = vmatprep.subr.mxu0 0.0
    %2995 = vmatpush1.msra.mxu0 %v2971
    %2996 = vmatprep.subr.mxu0 0.0
    %2997 = vmatpush1.msra.mxu0 %v2972
    %2998 = vmatprep.subr.mxu0 0.0
    %2999 = vmatpush1.msra.mxu0 %v2973
    %3000 = vmatprep.subr.mxu0 0.0
    %3001 = vmatpush1.msra.mxu0 %v2974
    %3002 = vmatprep.subr.mxu0 0.0
    %3003 = vmatpush1.msra.mxu0 %v2975
    %3004 = vmatprep.subr.mxu0 0.0
    %3005 = vmatpush1.msra.mxu0 %v2976
    %3006 = vmatprep.subr.mxu0 0.0
    %3007 = vmatpush1.msra.mxu0 %v2977
    %3008 = vmatprep.subr.mxu0 0.0
    %3009 = vmatpush1.msra.mxu0 %v2978
    %3010 = vmatprep.subr.mxu0 0.0
    %3011 = vmatpush1.msra.mxu0 %v2979
    %3012 = vmatprep.subr.mxu0 0.0
    %3013 = vmatpush1.msra.mxu0 0.0
    %3014 = vmatprep.subr.mxu0 0.0
    %3015 = vmatpush1.msra.mxu0 0.0
    %3016 = vmatprep.subr.mxu0 0.0
    %3017 = vmatpush1.msra.mxu0 0.0
    %3018 = vmatprep.subr.mxu0 0.0
    %3019 = vmatpush1.msra.mxu0 0.0
    %3020 = vmatprep.subr.mxu0 0.0
    %3021 = vmatpush1.msra.mxu0 0.0
    %3022 = vmatprep.subr.mxu0 0.0
    %3023 = vmatpush1.msra.mxu0 0.0
    %3024 = vmatprep.subr.mxu0 0.0
    %3025 = vmatpush1.msra.mxu0 0.0
    %3026 = vmatprep.subr.mxu0 0.0
    %3027 = vmatpush1.msra.mxu0 0.0
    %3028 = vmatprep.subr.mxu0 0.0
    %3029 = vmatpush1.msra.mxu0 0.0
    %3030 = vmatprep.subr.mxu0 0.0
    %3031 = vmatpush1.msra.mxu0 0.0
    %3032 = vmatprep.subr.mxu0 0.0
    %3033 = vmatpush1.msra.mxu0 0.0
    %3034 = vmatprep.subr.mxu0 0.0
    %3035 = vmatpush1.msra.mxu0 0.0
    %3036 = vmatprep.subr.mxu0 0.0
    %3037 = vmatpush1.msra.mxu0 0.0
    %3038 = vmatprep.subr.mxu0 0.0
    %3039 = vmatpush1.msra.mxu0 0.0
    %3040 = vmatprep.subr.mxu0 0.0
    %3041 = vmatpush1.msra.mxu0 0.0
    %3042 = vmatprep.subr.mxu0 0.0
    %3043 = vmatpush1.msra.mxu0 0.0
    %3044 = vmatprep.mubr.f32.mxu0 0.0
    %3045 = vmatmul.mubr.f32.gmra.mrb[0].mxu0 %v2960
    %v3046 = vpop.f32.mrb[0].mxu0
    %v3047 = vadd.f32 0.0, %v3046
    %v3048 = vpop.f32.mrb[0].mxu0
    %3049 = vdwg.mxu0
    %v3050 = vadd.f32 %v2885, %v3047
    %v3051 = vsel %vm1640, %v3050, 0.0
    %v3052 = vrot.slane %v3051, 4
    %v3053 = vadd.f32 %v3051, %v3052
    %v3054 = vrot.slane %v3053, 2
    %v3055 = vadd.f32 %v3053, %v3054
    %v3056 = vrot.slane %v3055, 1
    %v3057 = vadd.f32 %v3055, %v3056
    %v3058 = vld [vmem:[%s37] sm:$0xff]
    %v3059 = vld [vmem:[%s37 + $0x8] sm:$0xff]
    %v3060 = vld [vmem:[%s37 + $0x10] sm:$0xff]
    %v3061 = vld [vmem:[%s37 + $0x18] sm:$0xff]
    %v3062 = vld [vmem:[%s37 + $0x20] sm:$0xff]
    %v3063 = vld [vmem:[%s37 + $0x28] sm:$0xff]
    %v3064 = vld [vmem:[%s37 + $0x30] sm:$0xff]
    %v3065 = vld [vmem:[%s37 + $0x38] sm:$0xff]
    %v3067 = vsel %vm1640, %v3057, 0
    %3069 = vmatprep.subr.mxu0 0.0
    %3070 = vmatpush1.msra.mxu0 %v3058
    %3071 = vmatprep.subr.mxu0 0.0
    %3072 = vmatpush1.msra.mxu0 %v3059
    %3073 = vmatprep.subr.mxu0 0.0
    %3074 = vmatpush1.msra.mxu0 %v3060
    %3075 = vmatprep.subr.mxu0 0.0
    %3076 = vmatpush1.msra.mxu0 %v3061
    %3077 = vmatprep.subr.mxu0 0.0
    %3078 = vmatpush1.msra.mxu0 %v3062
    %3079 = vmatprep.subr.mxu0 0.0
    %3080 = vmatpush1.msra.mxu0 %v3063
    %3081 = vmatprep.subr.mxu0 0.0
    %3082 = vmatpush1.msra.mxu0 %v3064
    %3083 = vmatprep.subr.mxu0 0.0
    %3084 = vmatpush1.msra.mxu0 %v3065
    %3085 = vmatprep.subr.mxu0 0.0
    %3086 = vmatpush1.msra.mxu0 0.0
    %3087 = vmatprep.subr.mxu0 0.0
    %3088 = vmatpush1.msra.mxu0 0.0
    %3089 = vmatprep.subr.mxu0 0.0
    %3090 = vmatpush1.msra.mxu0 0.0
    %3091 = vmatprep.subr.mxu0 0.0
    %3092 = vmatpush1.msra.mxu0 0.0
    %3093 = vmatprep.subr.mxu0 0.0
    %3094 = vmatpush1.msra.mxu0 0.0
    %3095 = vmatprep.subr.mxu0 0.0
    %3096 = vmatpush1.msra.mxu0 0.0
    %3097 = vmatprep.subr.mxu0 0.0
    %3098 = vmatpush1.msra.mxu0 0.0
    %3099 = vmatprep.subr.mxu0 0.0
    %3100 = vmatpush1.msra.mxu0 0.0
    %3101 = vmatprep.subr.mxu0 0.0
    %3102 = vmatpush1.msra.mxu0 0.0
    %3103 = vmatprep.subr.mxu0 0.0
    %3104 = vmatpush1.msra.mxu0 0.0
    %3105 = vmatprep.subr.mxu0 0.0
    %3106 = vmatpush1.msra.mxu0 0.0
    %3107 = vmatprep.subr.mxu0 0.0
    %3108 = vmatpush1.msra.mxu0 0.0
    %3109 = vmatprep.subr.mxu0 0.0
    %3110 = vmatpush1.msra.mxu0 0.0
    %3111 = vmatprep.subr.mxu0 0.0
    %3112 = vmatpush1.msra.mxu0 0.0
    %3113 = vmatprep.subr.mxu0 0.0
    %3114 = vmatpush1.msra.mxu0 0.0
    %3115 = vmatprep.subr.mxu0 0.0
    %3116 = vmatpush1.msra.mxu0 0.0
    %3117 = vmatprep.subr.mxu0 0.0
    %3118 = vmatpush1.msra.mxu0 0.0
    %3119 = vmatprep.subr.mxu0 0.0
    %3120 = vmatpush1.msra.mxu0 0.0
    %3121 = vmatprep.subr.mxu0 0.0
    %3122 = vmatpush1.msra.mxu0 0.0
    %3123 = vmatprep.subr.mxu0 0.0
    %3124 = vmatpush1.msra.mxu0 0.0
    %3125 = vmatprep.subr.mxu0 0.0
    %3126 = vmatpush1.msra.mxu0 0.0
    %3127 = vmatprep.subr.mxu0 0.0
    %3128 = vmatpush1.msra.mxu0 0.0
    %3129 = vmatprep.subr.mxu0 0.0
    %3130 = vmatpush1.msra.mxu0 0.0
    %3131 = vmatprep.subr.mxu0 0.0
    %3132 = vmatpush1.msra.mxu0 0.0
    %3133 = vmatprep.mubr.f32.mxu0 0.0
    %3134 = vmatmul.mubr.f32.gmra.mrb[0].mxu0 %v3067
    %v3135 = vpop.f32.mrb[0].mxu0
    %v3136 = vadd.f32 0.0, %v3135
    %v3137 = vpop.f32.mrb[0].mxu0
    %3138 = vdwg.mxu0
    %v3139 = vmul.f32 %v3050, %v3050
    %v3140 = vsel %vm1640, %v3139, 0.0
    %v3141 = vrot.slane %v3140, 4
    %v3142 = vadd.f32 %v3140, %v3141
    %v3143 = vrot.slane %v3142, 2
    %v3144 = vadd.f32 %v3142, %v3143
    %v3145 = vrot.slane %v3144, 1
    %v3146 = vadd.f32 %v3144, %v3145
    %v3148 = vsel %vm1640, %v3146, 0
    %3150 = vmatprep.subr.mxu0 0.0
    %3151 = vmatpush1.msra.mxu0 %v3058
    %3152 = vmatprep.subr.mxu0 0.0
    %3153 = vmatpush1.msra.mxu0 %v3059
    %3154 = vmatprep.subr.mxu0 0.0
    %3155 = vmatpush1.msra.mxu0 %v3060
    %3156 = vmatprep.subr.mxu0 0.0
    %3157 = vmatpush1.msra.mxu0 %v3061
    %3158 = vmatprep.subr.mxu0 0.0
    %3159 = vmatpush1.msra.mxu0 %v3062
    %3160 = vmatprep.subr.mxu0 0.0
    %3161 = vmatpush1.msra.mxu0 %v3063
    %3162 = vmatprep.subr.mxu0 0.0
    %3163 = vmatpush1.msra.mxu0 %v3064
    %3164 = vmatprep.subr.mxu0 0.0
    %3165 = vmatpush1.msra.mxu0 %v3065
    %3166 = vmatprep.subr.mxu0 0.0
    %3167 = vmatpush1.msra.mxu0 0.0
    %3168 = vmatprep.subr.mxu0 0.0
    %3169 = vmatpush1.msra.mxu0 0.0
    %3170 = vmatprep.subr.mxu0 0.0
    %3171 = vmatpush1.msra.mxu0 0.0
    %3172 = vmatprep.subr.mxu0 0.0
    %3173 = vmatpush1.msra.mxu0 0.0
    %3174 = vmatprep.subr.mxu0 0.0
    %3175 = vmatpush1.msra.mxu0 0.0
    %3176 = vmatprep.subr.mxu0 0.0
    %3177 = vmatpush1.msra.mxu0 0.0
    %3178 = vmatprep.subr.mxu0 0.0
    %3179 = vmatpush1.msra.mxu0 0.0
    %3180 = vmatprep.subr.mxu0 0.0
    %3181 = vmatpush1.msra.mxu0 0.0
    %3182 = vmatprep.subr.mxu0 0.0
    %3183 = vmatpush1.msra.mxu0 0.0
    %3184 = vmatprep.subr.mxu0 0.0
    %3185 = vmatpush1.msra.mxu0 0.0
    %3186 = vmatprep.subr.mxu0 0.0
    %3187 = vmatpush1.msra.mxu0 0.0
    %3188 = vmatprep.subr.mxu0 0.0
    %3189 = vmatpush1.msra.mxu0 0.0
    %3190 = vmatprep.subr.mxu0 0.0
    %3191 = vmatpush1.msra.mxu0 0.0
    %3192 = vmatprep.subr.mxu0 0.0
    %3193 = vmatpush1.msra.mxu0 0.0
    %3194 = vmatprep.subr.mxu0 0.0
    %3195 = vmatpush1.msra.mxu0 0.0
    %3196 = vmatprep.subr.mxu0 0.0
    %3197 = vmatpush1.msra.mxu0 0.0
    %3198 = vmatprep.subr.mxu0 0.0
    %3199 = vmatpush1.msra.mxu0 0.0
    %3200 = vmatprep.subr.mxu0 0.0
    %3201 = vmatpush1.msra.mxu0 0.0
    %3202 = vmatprep.subr.mxu0 0.0
    %3203 = vmatpush1.msra.mxu0 0.0
    %3204 = vmatprep.subr.mxu0 0.0
    %3205 = vmatpush1.msra.mxu0 0.0
    %3206 = vmatprep.subr.mxu0 0.0
    %3207 = vmatpush1.msra.mxu0 0.0
    %3208 = vmatprep.subr.mxu0 0.0
    %3209 = vmatpush1.msra.mxu0 0.0
    %3210 = vmatprep.subr.mxu0 0.0
    %3211 = vmatpush1.msra.mxu0 0.0
    %3212 = vmatprep.subr.mxu0 0.0
    %3213 = vmatpush1.msra.mxu0 0.0
    %3214 = vmatprep.mubr.f32.mxu0 0.0
    %3215 = vmatmul.mubr.f32.gmra.mrb[0].mxu0 %v3148
    %v3216 = vpop.f32.mrb[0].mxu0
    %v3217 = vadd.f32 0.0, %v3216
    %v3218 = vpop.f32.mrb[0].mxu0
    %3219 = vdwg.mxu0
    %v3220 = vmul.f32 %v3136, %v3136
    %v3221 = vsub.f32 %v3217, %v3220
    %v3222 = vmax.f32 %v3221, 0.0
    %v3223 = vld [vmem:[#allocation13] sm:$0x1]
    %v3224 = vadd.f32 %v3222, 1e-05
    %v3225 = vrsqrt.pop %v3224
    %v3226 = vmul.f32 %v3223, %v3225
    %v3227 = vld [vmem:[%s41] sm:$0x1]
    %v3228 = vmul.f32 %v3136, %v3226
    %v3229 = vsub.f32 %v3227, %v3228
    %v3231 = vlaneseq
    %v3232 = vshrl.u32 %v3231, 7
    %v3233 = vsub.s32 0, %v3232
    %v3234 = vrot.slane %v3226, %v3233
    %v3236 = vmul.f32 %v3050, %v3234
    %v3238 = vlaneseq
    %v3239 = vshrl.u32 %v3238, 7
    %v3240 = vsub.s32 0, %v3239
    %v3241 = vrot.slane %v3229, %v3240
    %v3243 = vadd.f32 %v3236, %v3241
    %v3244 = vmax.f32 %v3243, 0.0
    %v3245 = vld [vmem:[%s43] sm:$0xff]
    %vm3246 = vcmask 64512
    %v3248 = vsel %vm3246, %v3245, 0
    %3250 = vmatprep.subr.mxu0 0.0
    %3251 = vmatpush1.msra.mxu0 %v3244
    %3252 = vmatprep.subr.mxu0 0.0
    %3253 = vmatpush1.msra.mxu0 0.0
    %3254 = vmatprep.subr.mxu0 0.0
    %3255 = vmatpush1.msra.mxu0 0.0
    %3256 = vmatprep.subr.mxu0 0.0
    %3257 = vmatpush1.msra.mxu0 0.0
    %3258 = vmatprep.subr.mxu0 0.0
    %3259 = vmatpush1.msra.mxu0 0.0
    %3260 = vmatprep.subr.mxu0 0.0
    %3261 = vmatpush1.msra.mxu0 0.0
    %3262 = vmatprep.subr.mxu0 0.0
    %3263 = vmatpush1.msra.mxu0 0.0
    %3264 = vmatprep.subr.mxu0 0.0
    %3265 = vmatpush1.msra.mxu0 0.0
    %3266 = vmatprep.subr.mxu0 0.0
    %3267 = vmatpush1.msra.mxu0 0.0
    %3268 = vmatprep.subr.mxu0 0.0
    %3269 = vmatpush1.msra.mxu0 0.0
    %3270 = vmatprep.subr.mxu0 0.0
    %3271 = vmatpush1.msra.mxu0 0.0
    %3272 = vmatprep.subr.mxu0 0.0
    %3273 = vmatpush1.msra.mxu0 0.0
    %3274 = vmatprep.subr.mxu0 0.0
    %3275 = vmatpush1.msra.mxu0 0.0
    %3276 = vmatprep.subr.mxu0 0.0
    %3277 = vmatpush1.msra.mxu0 0.0
    %3278 = vmatprep.subr.mxu0 0.0
    %3279 = vmatpush1.msra.mxu0 0.0
    %3280 = vmatprep.subr.mxu0 0.0
    %3281 = vmatpush1.msra.mxu0 0.0
    %3282 = vmatprep.subr.mxu0 0.0
    %3283 = vmatpush1.msra.mxu0 0.0
    %3284 = vmatprep.subr.mxu0 0.0
    %3285 = vmatpush1.msra.mxu0 0.0
    %3286 = vmatprep.subr.mxu0 0.0
    %3287 = vmatpush1.msra.mxu0 0.0
    %3288 = vmatprep.subr.mxu0 0.0
    %3289 = vmatpush1.msra.mxu0 0.0
    %3290 = vmatprep.subr.mxu0 0.0
    %3291 = vmatpush1.msra.mxu0 0.0
    %3292 = vmatprep.subr.mxu0 0.0
    %3293 = vmatpush1.msra.mxu0 0.0
    %3294 = vmatprep.subr.mxu0 0.0
    %3295 = vmatpush1.msra.mxu0 0.0
    %3296 = vmatprep.subr.mxu0 0.0
    %3297 = vmatpush1.msra.mxu0 0.0
    %3298 = vmatprep.subr.mxu0 0.0
    %3299 = vmatpush1.msra.mxu0 0.0
    %3300 = vmatprep.subr.mxu0 0.0
    %3301 = vmatpush1.msra.mxu0 0.0
    %3302 = vmatprep.subr.mxu0 0.0
    %3303 = vmatpush1.msra.mxu0 0.0
    %3304 = vmatprep.subr.mxu0 0.0
    %3305 = vmatpush1.msra.mxu0 0.0
    %3306 = vmatprep.subr.mxu0 0.0
    %3307 = vmatpush1.msra.mxu0 0.0
    %3308 = vmatprep.subr.mxu0 0.0
    %3309 = vmatpush1.msra.mxu0 0.0
    %3310 = vmatprep.subr.mxu0 0.0
    %3311 = vmatpush1.msra.mxu0 0.0
    %3312 = vmatprep.subr.mxu0 0.0
    %3313 = vmatpush1.msra.mxu0 0.0
    %3314 = vmatprep.mubr.f32.mxu0 0.0
    %3315 = vmatmul.mubr.f32.gmra.mrb[0].mxu0 %v3248
    %v3316 = vpop.f32.mrb[0].mxu0
    %v3317 = vadd.f32 0.0, %v3316
    %v3318 = vpop.f32.mrb[0].mxu0
    %3319 = vdwg.mxu0
    %v3320 = vld [vmem:[%s45] sm:$0xff]
    %v3321 = vld [vmem:[%s45 + $0x8] sm:$0xff]
    %v3322 = vld [vmem:[%s45 + $0x10] sm:$0xff]
    %v3323 = vld [vmem:[%s45 + $0x18] sm:$0xff]
    %v3324 = vld [vmem:[%s45 + $0x20] sm:$0xff]
    %v3325 = vld [vmem:[%s45 + $0x28] sm:$0xff]
    %v3326 = vld [vmem:[%s45 + $0x30] sm:$0xff]
    %v3327 = vld [vmem:[%s45 + $0x38] sm:$0xff]
    %s3328 = scalar_lea.vmem %s43, 8
    %v3329 = vld [vmem:[%s3328] sm:$0xff]
    %v3331 = vsel %vm3246, %v3329, 0
    %3333 = vmatprep.subr.mxu0 0.0
    %3334 = vmatpush1.msra.mxu0 %v3244
    %3335 = vmatprep.subr.mxu0 0.0
    %3336 = vmatpush1.msra.mxu0 0.0
    %3337 = vmatprep.subr.mxu0 0.0
    %3338 = vmatpush1.msra.mxu0 0.0
    %3339 = vmatprep.subr.mxu0 0.0
    %3340 = vmatpush1.msra.mxu0 0.0
    %3341 = vmatprep.subr.mxu0 0.0
    %3342 = vmatpush1.msra.mxu0 0.0
    %3343 = vmatprep.subr.mxu0 0.0
    %3344 = vmatpush1.msra.mxu0 0.0
    %3345 = vmatprep.subr.mxu0 0.0
    %3346 = vmatpush1.msra.mxu0 0.0
    %3347 = vmatprep.subr.mxu0 0.0
    %3348 = vmatpush1.msra.mxu0 0.0
    %3349 = vmatprep.subr.mxu0 0.0
    %3350 = vmatpush1.msra.mxu0 0.0
    %3351 = vmatprep.subr.mxu0 0.0
    %3352 = vmatpush1.msra.mxu0 0.0
    %3353 = vmatprep.subr.mxu0 0.0
    %3354 = vmatpush1.msra.mxu0 0.0
    %3355 = vmatprep.subr.mxu0 0.0
    %3356 = vmatpush1.msra.mxu0 0.0
    %3357 = vmatprep.subr.mxu0 0.0
    %3358 = vmatpush1.msra.mxu0 0.0
    %3359 = vmatprep.subr.mxu0 0.0
    %3360 = vmatpush1.msra.mxu0 0.0
    %3361 = vmatprep.subr.mxu0 0.0
    %3362 = vmatpush1.msra.mxu0 0.0
    %3363 = vmatprep.subr.mxu0 0.0
    %3364 = vmatpush1.msra.mxu0 0.0
    %3365 = vmatprep.subr.mxu0 0.0
    %3366 = vmatpush1.msra.mxu0 0.0
    %3367 = vmatprep.subr.mxu0 0.0
    %3368 = vmatpush1.msra.mxu0 0.0
    %3369 = vmatprep.subr.mxu0 0.0
    %3370 = vmatpush1.msra.mxu0 0.0
    %3371 = vmatprep.subr.mxu0 0.0
    %3372 = vmatpush1.msra.mxu0 0.0
    %3373 = vmatprep.subr.mxu0 0.0
    %3374 = vmatpush1.msra.mxu0 0.0
    %3375 = vmatprep.subr.mxu0 0.0
    %3376 = vmatpush1.msra.mxu0 0.0
    %3377 = vmatprep.subr.mxu0 0.0
    %3378 = vmatpush1.msra.mxu0 0.0
    %3379 = vmatprep.subr.mxu0 0.0
    %3380 = vmatpush1.msra.mxu0 0.0
    %3381 = vmatprep.subr.mxu0 0.0
    %3382 = vmatpush1.msra.mxu0 0.0
    %3383 = vmatprep.subr.mxu0 0.0
    %3384 = vmatpush1.msra.mxu0 0.0
    %3385 = vmatprep.subr.mxu0 0.0
    %3386 = vmatpush1.msra.mxu0 0.0
    %3387 = vmatprep.subr.mxu0 0.0
    %3388 = vmatpush1.msra.mxu0 0.0
    %3389 = vmatprep.subr.mxu0 0.0
    %3390 = vmatpush1.msra.mxu0 0.0
    %3391 = vmatprep.subr.mxu0 0.0
    %3392 = vmatpush1.msra.mxu0 0.0
    %3393 = vmatprep.subr.mxu0 0.0
    %3394 = vmatpush1.msra.mxu0 0.0
    %3395 = vmatprep.subr.mxu0 0.0
    %3396 = vmatpush1.msra.mxu0 0.0
    %3397 = vmatprep.mubr.f32.mxu0 0.0
    %3398 = vmatmul.mubr.f32.gmra.mrb[0].mxu0 %v3331
    %v3399 = vpop.f32.mrb[0].mxu0
    %v3400 = vadd.f32 0.0, %v3399
    %v3401 = vpop.f32.mrb[0].mxu0
    %3402 = vdwg.mxu0
    %s3403 = scalar_lea.vmem %s45, 64
    %v3404 = vld [vmem:[%s3403] sm:$0xff]
    %v3405 = vld [vmem:[%s3403 + $0x8] sm:$0xff]
    %v3406 = vld [vmem:[%s3403 + $0x10] sm:$0xff]
    %v3407 = vld [vmem:[%s3403 + $0x18] sm:$0xff]
    %v3408 = vld [vmem:[%s3403 + $0x20] sm:$0xff]
    %v3409 = vld [vmem:[%s3403 + $0x28] sm:$0xff]
    %v3410 = vld [vmem:[%s3403 + $0x30] sm:$0xff]
    %v3411 = vld [vmem:[%s3403 + $0x38] sm:$0xff]
    %v3413 = vsel %vm1640, %v3400, 0
    %3415 = vmatprep.subr.mxu0 0.0
    %3416 = vmatpush1.msra.mxu0 %v3404
    %3417 = vmatprep.subr.mxu0 0.0
    %3418 = vmatpush1.msra.mxu0 %v3405
    %3419 = vmatprep.subr.mxu0 0.0
    %3420 = vmatpush1.msra.mxu0 %v3406
    %3421 = vmatprep.subr.mxu0 0.0
    %3422 = vmatpush1.msra.mxu0 %v3407
    %3423 = vmatprep.subr.mxu0 0.0
    %3424 = vmatpush1.msra.mxu0 %v3408
    %3425 = vmatprep.subr.mxu0 0.0
    %3426 = vmatpush1.msra.mxu0 %v3409
    %3427 = vmatprep.subr.mxu0 0.0
    %3428 = vmatpush1.msra.mxu0 %v3410
    %3429 = vmatprep.subr.mxu0 0.0
    %3430 = vmatpush1.msra.mxu0 %v3411
    %3431 = vmatprep.subr.mxu0 0.0
    %3432 = vmatpush1.msra.mxu0 0.0
    %3433 = vmatprep.subr.mxu0 0.0
    %3434 = vmatpush1.msra.mxu0 0.0
    %3435 = vmatprep.subr.mxu0 0.0
    %3436 = vmatpush1.msra.mxu0 0.0
    %3437 = vmatprep.subr.mxu0 0.0
    %3438 = vmatpush1.msra.mxu0 0.0
    %3439 = vmatprep.subr.mxu0 0.0
    %3440 = vmatpush1.msra.mxu0 0.0
    %3441 = vmatprep.subr.mxu0 0.0
    %3442 = vmatpush1.msra.mxu0 0.0
    %3443 = vmatprep.subr.mxu0 0.0
    %3444 = vmatpush1.msra.mxu0 0.0
    %3445 = vmatprep.subr.mxu0 0.0
    %3446 = vmatpush1.msra.mxu0 0.0
    %3447 = vmatprep.subr.mxu0 0.0
    %3448 = vmatpush1.msra.mxu0 0.0
    %3449 = vmatprep.subr.mxu0 0.0
    %3450 = vmatpush1.msra.mxu0 0.0
    %3451 = vmatprep.subr.mxu0 0.0
    %3452 = vmatpush1.msra.mxu0 0.0
    %3453 = vmatprep.subr.mxu0 0.0
    %3454 = vmatpush1.msra.mxu0 0.0
    %3455 = vmatprep.subr.mxu0 0.0
    %3456 = vmatpush1.msra.mxu0 0.0
    %3457 = vmatprep.subr.mxu0 0.0
    %3458 = vmatpush1.msra.mxu0 0.0
    %3459 = vmatprep.subr.mxu0 0.0
    %3460 = vmatpush1.msra.mxu0 0.0
    %3461 = vmatprep.subr.mxu0 0.0
    %3462 = vmatpush1.msra.mxu0 0.0
    %3463 = vmatprep.subr.mxu0 0.0
    %3464 = vmatpush1.msra.mxu0 0.0
    %3465 = vmatprep.subr.mxu0 0.0
    %3466 = vmatpush1.msra.mxu0 0.0
    %3467 = vmatprep.subr.mxu0 0.0
    %3468 = vmatpush1.msra.mxu0 0.0
    %3469 = vmatprep.subr.mxu0 0.0
    %3470 = vmatpush1.msra.mxu0 0.0
    %3471 = vmatprep.subr.mxu0 0.0
    %3472 = vmatpush1.msra.mxu0 0.0
    %3473 = vmatprep.subr.mxu0 0.0
    %3474 = vmatpush1.msra.mxu0 0.0
    %3475 = vmatprep.subr.mxu0 0.0
    %3476 = vmatpush1.msra.mxu0 0.0
    %3477 = vmatprep.subr.mxu0 0.0
    %3478 = vmatpush1.msra.mxu0 0.0
    %3479 = vmatprep.mubr.f32.mxu0 0.0
    %3480 = vmatmul.mubr.f32.gmra.mrb[0].mxu0 %v3413
    %v3481 = vpop.f32.mrb[0].mxu0
    %v3482 = vadd.f32 0.0, %v3481
    %v3483 = vpop.f32.mrb[0].mxu0
    %3484 = vdwg.mxu0
    %v3486 = vsel %vm1640, %v3317, 0
    %3488 = vmatprep.subr.mxu0 0.0
    %3489 = vmatpush1.msra.mxu0 %v3320
    %3490 = vmatprep.subr.mxu0 0.0
    %3491 = vmatpush1.msra.mxu0 %v3321
    %3492 = vmatprep.subr.mxu0 0.0
    %3493 = vmatpush1.msra.mxu0 %v3322
    %3494 = vmatprep.subr.mxu0 0.0
    %3495 = vmatpush1.msra.mxu0 %v3323
    %3496 = vmatprep.subr.mxu0 0.0
    %3497 = vmatpush1.msra.mxu0 %v3324
    %3498 = vmatprep.subr.mxu0 0.0
    %3499 = vmatpush1.msra.mxu0 %v3325
    %3500 = vmatprep.subr.mxu0 0.0
    %3501 = vmatpush1.msra.mxu0 %v3326
    %3502 = vmatprep.subr.mxu0 0.0
    %3503 = vmatpush1.msra.mxu0 %v3327
    %3504 = vmatprep.subr.mxu0 0.0
    %3505 = vmatpush1.msra.mxu0 0.0
    %3506 = vmatprep.subr.mxu0 0.0
    %3507 = vmatpush1.msra.mxu0 0.0
    %3508 = vmatprep.subr.mxu0 0.0
    %3509 = vmatpush1.msra.mxu0 0.0
    %3510 = vmatprep.subr.mxu0 0.0
    %3511 = vmatpush1.msra.mxu0 0.0
    %3512 = vmatprep.subr.mxu0 0.0
    %3513 = vmatpush1.msra.mxu0 0.0
    %3514 = vmatprep.subr.mxu0 0.0
    %3515 = vmatpush1.msra.mxu0 0.0
    %3516 = vmatprep.subr.mxu0 0.0
    %3517 = vmatpush1.msra.mxu0 0.0
    %3518 = vmatprep.subr.mxu0 0.0
    %3519 = vmatpush1.msra.mxu0 0.0
    %3520 = vmatprep.subr.mxu0 0.0
    %3521 = vmatpush1.msra.mxu0 0.0
    %3522 = vmatprep.subr.mxu0 0.0
    %3523 = vmatpush1.msra.mxu0 0.0
    %3524 = vmatprep.subr.mxu0 0.0
    %3525 = vmatpush1.msra.mxu0 0.0
    %3526 = vmatprep.subr.mxu0 0.0
    %3527 = vmatpush1.msra.mxu0 0.0
    %3528 = vmatprep.subr.mxu0 0.0
    %3529 = vmatpush1.msra.mxu0 0.0
    %3530 = vmatprep.subr.mxu0 0.0
    %3531 = vmatpush1.msra.mxu0 0.0
    %3532 = vmatprep.subr.mxu0 0.0
    %3533 = vmatpush1.msra.mxu0 0.0
    %3534 = vmatprep.subr.mxu0 0.0
    %3535 = vmatpush1.msra.mxu0 0.0
    %3536 = vmatprep.subr.mxu0 0.0
    %3537 = vmatpush1.msra.mxu0 0.0
    %3538 = vmatprep.subr.mxu0 0.0
    %3539 = vmatpush1.msra.mxu0 0.0
    %3540 = vmatprep.subr.mxu0 0.0
    %3541 = vmatpush1.msra.mxu0 0.0
    %3542 = vmatprep.subr.mxu0 0.0
    %3543 = vmatpush1.msra.mxu0 0.0
    %3544 = vmatprep.subr.mxu0 0.0
    %3545 = vmatpush1.msra.mxu0 0.0
    %3546 = vmatprep.subr.mxu0 0.0
    %3547 = vmatpush1.msra.mxu0 0.0
    %3548 = vmatprep.subr.mxu0 0.0
    %3549 = vmatpush1.msra.mxu0 0.0
    %3550 = vmatprep.subr.mxu0 0.0
    %3551 = vmatpush1.msra.mxu0 0.0
    %3552 = vmatprep.mubr.f32.mxu0 0.0
    %3553 = vmatmul.mubr.f32.gmra.mrb[0].mxu0 %v3486
    %v3554 = vpop.f32.mrb[0].mxu0
    %v3555 = vadd.f32 %v3482, %v3554
    %v3556 = vpop.f32.mrb[0].mxu0
    %3557 = vdwg.mxu0
    %s3558 = scalar_lea.vmem %s43, 16
    %v3559 = vld [vmem:[%s3558] sm:$0xff]
    %v3561 = vsel %vm3246, %v3559, 0
    %3563 = vmatprep.subr.mxu0 0.0
    %3564 = vmatpush1.msra.mxu0 %v3244
    %3565 = vmatprep.subr.mxu0 0.0
    %3566 = vmatpush1.msra.mxu0 0.0
    %3567 = vmatprep.subr.mxu0 0.0
    %3568 = vmatpush1.msra.mxu0 0.0
    %3569 = vmatprep.subr.mxu0 0.0
    %3570 = vmatpush1.msra.mxu0 0.0
    %3571 = vmatprep.subr.mxu0 0.0
    %3572 = vmatpush1.msra.mxu0 0.0
    %3573 = vmatprep.subr.mxu0 0.0
    %3574 = vmatpush1.msra.mxu0 0.0
    %3575 = vmatprep.subr.mxu0 0.0
    %3576 = vmatpush1.msra.mxu0 0.0
    %3577 = vmatprep.subr.mxu0 0.0
    %3578 = vmatpush1.msra.mxu0 0.0
    %3579 = vmatprep.subr.mxu0 0.0
    %3580 = vmatpush1.msra.mxu0 0.0
    %3581 = vmatprep.subr.mxu0 0.0
    %3582 = vmatpush1.msra.mxu0 0.0
    %3583 = vmatprep.subr.mxu0 0.0
    %3584 = vmatpush1.msra.mxu0 0.0
    %3585 = vmatprep.subr.mxu0 0.0
    %3586 = vmatpush1.msra.mxu0 0.0
    %3587 = vmatprep.subr.mxu0 0.0
    %3588 = vmatpush1.msra.mxu0 0.0
    %3589 = vmatprep.subr.mxu0 0.0
    %3590 = vmatpush1.msra.mxu0 0.0
    %3591 = vmatprep.subr.mxu0 0.0
    %3592 = vmatpush1.msra.mxu0 0.0
    %3593 = vmatprep.subr.mxu0 0.0
    %3594 = vmatpush1.msra.mxu0 0.0
    %3595 = vmatprep.subr.mxu0 0.0
    %3596 = vmatpush1.msra.mxu0 0.0
    %3597 = vmatprep.subr.mxu0 0.0
    %3598 = vmatpush1.msra.mxu0 0.0
    %3599 = vmatprep.subr.mxu0 0.0
    %3600 = vmatpush1.msra.mxu0 0.0
    %3601 = vmatprep.subr.mxu0 0.0
    %3602 = vmatpush1.msra.mxu0 0.0
    %3603 = vmatprep.subr.mxu0 0.0
    %3604 = vmatpush1.msra.mxu0 0.0
    %3605 = vmatprep.subr.mxu0 0.0
    %3606 = vmatpush1.msra.mxu0 0.0
    %3607 = vmatprep.subr.mxu0 0.0
    %3608 = vmatpush1.msra.mxu0 0.0
    %3609 = vmatprep.subr.mxu0 0.0
    %3610 = vmatpush1.msra.mxu0 0.0
    %3611 = vmatprep.subr.mxu0 0.0
    %3612 = vmatpush1.msra.mxu0 0.0
    %3613 = vmatprep.subr.mxu0 0.0
    %3614 = vmatpush1.msra.mxu0 0.0
    %3615 = vmatprep.subr.mxu0 0.0
    %3616 = vmatpush1.msra.mxu0 0.0
    %3617 = vmatprep.subr.mxu0 0.0
    %3618 = vmatpush1.msra.mxu0 0.0
    %3619 = vmatprep.subr.mxu0 0.0
    %3620 = vmatpush1.msra.mxu0 0.0
    %3621 = vmatprep.subr.mxu0 0.0
    %3622 = vmatpush1.msra.mxu0 0.0
    %3623 = vmatprep.subr.mxu0 0.0
    %3624 = vmatpush1.msra.mxu0 0.0
    %3625 = vmatprep.subr.mxu0 0.0
    %3626 = vmatpush1.msra.mxu0 0.0
    %3627 = vmatprep.mubr.f32.mxu0 0.0
    %3628 = vmatmul.mubr.f32.gmra.mrb[0].mxu0 %v3561
    %v3629 = vpop.f32.mrb[0].mxu0
    %v3630 = vadd.f32 0.0, %v3629
    %v3631 = vpop.f32.mrb[0].mxu0
    %3632 = vdwg.mxu0
    %s3633 = scalar_lea.vmem %s45, 128
    %v3634 = vld [vmem:[%s3633] sm:$0xff]
    %v3635 = vld [vmem:[%s3633 + $0x8] sm:$0xff]
    %v3636 = vld [vmem:[%s3633 + $0x10] sm:$0xff]
    %v3637 = vld [vmem:[%s3633 + $0x18] sm:$0xff]
    %v3638 = vld [vmem:[%s3633 + $0x20] sm:$0xff]
    %v3639 = vld [vmem:[%s3633 + $0x28] sm:$0xff]
    %v3640 = vld [vmem:[%s3633 + $0x30] sm:$0xff]
    %v3641 = vld [vmem:[%s3633 + $0x38] sm:$0xff]
    %v3643 = vsel %vm1640, %v3630, 0
    %3645 = vmatprep.subr.mxu0 0.0
    %3646 = vmatpush1.msra.mxu0 %v3634
    %3647 = vmatprep.subr.mxu0 0.0
    %3648 = vmatpush1.msra.mxu0 %v3635
    %3649 = vmatprep.subr.mxu0 0.0
    %3650 = vmatpush1.msra.mxu0 %v3636
    %3651 = vmatprep.subr.mxu0 0.0
    %3652 = vmatpush1.msra.mxu0 %v3637
    %3653 = vmatprep.subr.mxu0 0.0
    %3654 = vmatpush1.msra.mxu0 %v3638
    %3655 = vmatprep.subr.mxu0 0.0
    %3656 = vmatpush1.msra.mxu0 %v3639
    %3657 = vmatprep.subr.mxu0 0.0
    %3658 = vmatpush1.msra.mxu0 %v3640
    %3659 = vmatprep.subr.mxu0 0.0
    %3660 = vmatpush1.msra.mxu0 %v3641
    %3661 = vmatprep.subr.mxu0 0.0
    %3662 = vmatpush1.msra.mxu0 0.0
    %3663 = vmatprep.subr.mxu0 0.0
    %3664 = vmatpush1.msra.mxu0 0.0
    %3665 = vmatprep.subr.mxu0 0.0
    %3666 = vmatpush1.msra.mxu0 0.0
    %3667 = vmatprep.subr.mxu0 0.0
    %3668 = vmatpush1.msra.mxu0 0.0
    %3669 = vmatprep.subr.mxu0 0.0
    %3670 = vmatpush1.msra.mxu0 0.0
    %3671 = vmatprep.subr.mxu0 0.0
    %3672 = vmatpush1.msra.mxu0 0.0
    %3673 = vmatprep.subr.mxu0 0.0
    %3674 = vmatpush1.msra.mxu0 0.0
    %3675 = vmatprep.subr.mxu0 0.0
    %3676 = vmatpush1.msra.mxu0 0.0
    %3677 = vmatprep.subr.mxu0 0.0
    %3678 = vmatpush1.msra.mxu0 0.0
    %3679 = vmatprep.subr.mxu0 0.0
    %3680 = vmatpush1.msra.mxu0 0.0
    %3681 = vmatprep.subr.mxu0 0.0
    %3682 = vmatpush1.msra.mxu0 0.0
    %3683 = vmatprep.subr.mxu0 0.0
    %3684 = vmatpush1.msra.mxu0 0.0
    %3685 = vmatprep.subr.mxu0 0.0
    %3686 = vmatpush1.msra.mxu0 0.0
    %3687 = vmatprep.subr.mxu0 0.0
    %3688 = vmatpush1.msra.mxu0 0.0
    %3689 = vmatprep.subr.mxu0 0.0
    %3690 = vmatpush1.msra.mxu0 0.0
    %3691 = vmatprep.subr.mxu0 0.0
    %3692 = vmatpush1.msra.mxu0 0.0
    %3693 = vmatprep.subr.mxu0 0.0
    %3694 = vmatpush1.msra.mxu0 0.0
    %3695 = vmatprep.subr.mxu0 0.0
    %3696 = vmatpush1.msra.mxu0 0.0
    %3697 = vmatprep.subr.mxu0 0.0
    %3698 = vmatpush1.msra.mxu0 0.0
    %3699 = vmatprep.subr.mxu0 0.0
    %3700 = vmatpush1.msra.mxu0 0.0
    %3701 = vmatprep.subr.mxu0 0.0
    %3702 = vmatpush1.msra.mxu0 0.0
    %3703 = vmatprep.subr.mxu0 0.0
    %3704 = vmatpush1.msra.mxu0 0.0
    %3705 = vmatprep.subr.mxu0 0.0
    %3706 = vmatpush1.msra.mxu0 0.0
    %3707 = vmatprep.subr.mxu0 0.0
    %3708 = vmatpush1.msra.mxu0 0.0
    %3709 = vmatprep.mubr.f32.mxu0 0.0
    %3710 = vmatmul.mubr.f32.gmra.mrb[0].mxu0 %v3643
    %v3711 = vpop.f32.mrb[0].mxu0
    %v3712 = vadd.f32 0.0, %v3711
    %v3713 = vpop.f32.mrb[0].mxu0
    %3714 = vdwg.mxu0
    %v3715 = vadd.f32 %v3555, %v3712
    %v3716 = vrot.slane %v3715, 4
    %v3717 = vadd.f32 %v3715, %v3716
    %v3718 = vrot.slane %v3717, 2
    %v3719 = vadd.f32 %v3717, %v3718
    %v3720 = vrot.slane %v3719, 1
    %v3721 = vadd.f32 %v3719, %v3720
    %v3722 = vld [vmem:[%s47] sm:$0xff]
    %v3723 = vld [vmem:[%s47 + $0x8] sm:$0xff]
    %v3724 = vld [vmem:[%s47 + $0x10] sm:$0xff]
    %v3725 = vld [vmem:[%s47 + $0x18] sm:$0xff]
    %v3726 = vld [vmem:[%s47 + $0x20] sm:$0xff]
    %v3727 = vld [vmem:[%s47 + $0x28] sm:$0xff]
    %v3728 = vld [vmem:[%s47 + $0x30] sm:$0xff]
    %v3729 = vld [vmem:[%s47 + $0x38] sm:$0xff]
    %v3730 = vld [vmem:[%s47 + $0x40] sm:$0xff]
    %v3731 = vld [vmem:[%s47 + $0x48] sm:$0xff]
    %v3732 = vld [vmem:[%s47 + $0x50] sm:$0xff]
    %v3733 = vld [vmem:[%s47 + $0x58] sm:$0xff]
    %v3734 = vld [vmem:[%s47 + $0x60] sm:$0xff]
    %v3735 = vld [vmem:[%s47 + $0x68] sm:$0xff]
    %v3736 = vld [vmem:[%s47 + $0x70] sm:$0xff]
    %v3737 = vld [vmem:[%s47 + $0x78] sm:$0xff]
    %3738 = vmatprep.subr.mxu0 0.0
    %3739 = vmatpush1.msra.mxu0 %v3722
    %3740 = vmatprep.subr.mxu0 0.0
    %3741 = vmatpush1.msra.mxu0 %v3723
    %3742 = vmatprep.subr.mxu0 0.0
    %3743 = vmatpush1.msra.mxu0 %v3724
    %3744 = vmatprep.subr.mxu0 0.0
    %3745 = vmatpush1.msra.mxu0 %v3725
    %3746 = vmatprep.subr.mxu0 0.0
    %3747 = vmatpush1.msra.mxu0 %v3726
    %3748 = vmatprep.subr.mxu0 0.0
    %3749 = vmatpush1.msra.mxu0 %v3727
    %3750 = vmatprep.subr.mxu0 0.0
    %3751 = vmatpush1.msra.mxu0 %v3728
    %3752 = vmatprep.subr.mxu0 0.0
    %3753 = vmatpush1.msra.mxu0 %v3729
    %3754 = vmatprep.subr.mxu0 0.0
    %3755 = vmatpush1.msra.mxu0 %v3730
    %3756 = vmatprep.subr.mxu0 0.0
    %3757 = vmatpush1.msra.mxu0 %v3731
    %3758 = vmatprep.subr.mxu0 0.0
    %3759 = vmatpush1.msra.mxu0 %v3732
    %3760 = vmatprep.subr.mxu0 0.0
    %3761 = vmatpush1.msra.mxu0 %v3733
    %3762 = vmatprep.subr.mxu0 0.0
    %3763 = vmatpush1.msra.mxu0 %v3734
    %3764 = vmatprep.subr.mxu0 0.0
    %3765 = vmatpush1.msra.mxu0 %v3735
    %3766 = vmatprep.subr.mxu0 0.0
    %3767 = vmatpush1.msra.mxu0 %v3736
    %3768 = vmatprep.subr.mxu0 0.0
    %3769 = vmatpush1.msra.mxu0 %v3737
    %3770 = vmatprep.subr.mxu0 0.0
    %3771 = vmatpush1.msra.mxu0 0.0
    %3772 = vmatprep.subr.mxu0 0.0
    %3773 = vmatpush1.msra.mxu0 0.0
    %3774 = vmatprep.subr.mxu0 0.0
    %3775 = vmatpush1.msra.mxu0 0.0
    %3776 = vmatprep.subr.mxu0 0.0
    %3777 = vmatpush1.msra.mxu0 0.0
    %3778 = vmatprep.subr.mxu0 0.0
    %3779 = vmatpush1.msra.mxu0 0.0
    %3780 = vmatprep.subr.mxu0 0.0
    %3781 = vmatpush1.msra.mxu0 0.0
    %3782 = vmatprep.subr.mxu0 0.0
    %3783 = vmatpush1.msra.mxu0 0.0
    %3784 = vmatprep.subr.mxu0 0.0
    %3785 = vmatpush1.msra.mxu0 0.0
    %3786 = vmatprep.subr.mxu0 0.0
    %3787 = vmatpush1.msra.mxu0 0.0
    %3788 = vmatprep.subr.mxu0 0.0
    %3789 = vmatpush1.msra.mxu0 0.0
    %3790 = vmatprep.subr.mxu0 0.0
    %3791 = vmatpush1.msra.mxu0 0.0
    %3792 = vmatprep.subr.mxu0 0.0
    %3793 = vmatpush1.msra.mxu0 0.0
    %3794 = vmatprep.subr.mxu0 0.0
    %3795 = vmatpush1.msra.mxu0 0.0
    %3796 = vmatprep.subr.mxu0 0.0
    %3797 = vmatpush1.msra.mxu0 0.0
    %3798 = vmatprep.subr.mxu0 0.0
    %3799 = vmatpush1.msra.mxu0 0.0
    %3800 = vmatprep.subr.mxu0 0.0
    %3801 = vmatpush1.msra.mxu0 0.0
    %3802 = vmatprep.mubr.f32.mxu0 0.0
    %3803 = vmatmul.mubr.f32.gmra.mrb[0].mxu0 %v3721
    %v3804 = vpop.f32.mrb[0].mxu0
    %v3805 = vadd.f32 0.0, %v3804
    %v3806 = vpop.f32.mrb[0].mxu0
    %3807 = vdwg.mxu0
    %v3808 = vmul.f32 %v3715, %v3715
    %v3809 = vrot.slane %v3808, 4
    %v3810 = vadd.f32 %v3808, %v3809
    %v3811 = vrot.slane %v3810, 2
    %v3812 = vadd.f32 %v3810, %v3811
    %v3813 = vrot.slane %v3812, 1
    %v3814 = vadd.f32 %v3812, %v3813
    %3815 = vmatprep.subr.mxu0 0.0
    %3816 = vmatpush1.msra.mxu0 %v3722
    %3817 = vmatprep.subr.mxu0 0.0
    %3818 = vmatpush1.msra.mxu0 %v3723
    %3819 = vmatprep.subr.mxu0 0.0
    %3820 = vmatpush1.msra.mxu0 %v3724
    %3821 = vmatprep.subr.mxu0 0.0
    %3822 = vmatpush1.msra.mxu0 %v3725
    %3823 = vmatprep.subr.mxu0 0.0
    %3824 = vmatpush1.msra.mxu0 %v3726
    %3825 = vmatprep.subr.mxu0 0.0
    %3826 = vmatpush1.msra.mxu0 %v3727
    %3827 = vmatprep.subr.mxu0 0.0
    %3828 = vmatpush1.msra.mxu0 %v3728
    %3829 = vmatprep.subr.mxu0 0.0
    %3830 = vmatpush1.msra.mxu0 %v3729
    %3831 = vmatprep.subr.mxu0 0.0
    %3832 = vmatpush1.msra.mxu0 %v3730
    %3833 = vmatprep.subr.mxu0 0.0
    %3834 = vmatpush1.msra.mxu0 %v3731
    %3835 = vmatprep.subr.mxu0 0.0
    %3836 = vmatpush1.msra.mxu0 %v3732
    %3837 = vmatprep.subr.mxu0 0.0
    %3838 = vmatpush1.msra.mxu0 %v3733
    %3839 = vmatprep.subr.mxu0 0.0
    %3840 = vmatpush1.msra.mxu0 %v3734
    %3841 = vmatprep.subr.mxu0 0.0
    %3842 = vmatpush1.msra.mxu0 %v3735
    %3843 = vmatprep.subr.mxu0 0.0
    %3844 = vmatpush1.msra.mxu0 %v3736
    %3845 = vmatprep.subr.mxu0 0.0
    %3846 = vmatpush1.msra.mxu0 %v3737
    %3847 = vmatprep.subr.mxu0 0.0
    %3848 = vmatpush1.msra.mxu0 0.0
    %3849 = vmatprep.subr.mxu0 0.0
    %3850 = vmatpush1.msra.mxu0 0.0
    %3851 = vmatprep.subr.mxu0 0.0
    %3852 = vmatpush1.msra.mxu0 0.0
    %3853 = vmatprep.subr.mxu0 0.0
    %3854 = vmatpush1.msra.mxu0 0.0
    %3855 = vmatprep.subr.mxu0 0.0
    %3856 = vmatpush1.msra.mxu0 0.0
    %3857 = vmatprep.subr.mxu0 0.0
    %3858 = vmatpush1.msra.mxu0 0.0
    %3859 = vmatprep.subr.mxu0 0.0
    %3860 = vmatpush1.msra.mxu0 0.0
    %3861 = vmatprep.subr.mxu0 0.0
    %3862 = vmatpush1.msra.mxu0 0.0
    %3863 = vmatprep.subr.mxu0 0.0
    %3864 = vmatpush1.msra.mxu0 0.0
    %3865 = vmatprep.subr.mxu0 0.0
    %3866 = vmatpush1.msra.mxu0 0.0
    %3867 = vmatprep.subr.mxu0 0.0
    %3868 = vmatpush1.msra.mxu0 0.0
    %3869 = vmatprep.subr.mxu0 0.0
    %3870 = vmatpush1.msra.mxu0 0.0
    %3871 = vmatprep.subr.mxu0 0.0
    %3872 = vmatpush1.msra.mxu0 0.0
    %3873 = vmatprep.subr.mxu0 0.0
    %3874 = vmatpush1.msra.mxu0 0.0
    %3875 = vmatprep.subr.mxu0 0.0
    %3876 = vmatpush1.msra.mxu0 0.0
    %3877 = vmatprep.subr.mxu0 0.0
    %3878 = vmatpush1.msra.mxu0 0.0
    %3879 = vmatprep.mubr.f32.mxu0 0.0
    %3880 = vmatmul.mubr.f32.gmra.mrb[0].mxu0 %v3814
    %v3881 = vpop.f32.mrb[0].mxu0
    %v3882 = vadd.f32 0.0, %v3881
    %v3883 = vpop.f32.mrb[0].mxu0
    %3884 = vdwg.mxu0
    %v3885 = vmul.f32 %v3805, %v3805
    %v3886 = vsub.f32 %v3882, %v3885
    %v3887 = vmax.f32 %v3886, 0.0
    %v3888 = vld [vmem:[%s49] sm:$0x1]
    %v3889 = vadd.f32 %v3887, 1e-05
    %v3890 = vrsqrt.pop %v3889
    %v3891 = vmul.f32 %v3888, %v3890
    %v3892 = vld [vmem:[%s51] sm:$0x1]
    %v3893 = vmul.f32 %v3805, %v3891
    %v3894 = vsub.f32 %v3892, %v3893
    %v3896 = vlaneseq
    %v3897 = vshrl.u32 %v3896, 7
    %v3898 = vsub.s32 0, %v3897
    %v3899 = vrot.slane %v3891, %v3898
    %v3901 = vmul.f32 %v3715, %v3899
    %v3903 = vlaneseq
    %v3904 = vshrl.u32 %v3903, 7
    %v3905 = vsub.s32 0, %v3904
    %v3906 = vrot.slane %v3894, %v3905
    %v3908 = vadd.f32 %v3901, %v3906
    %v3909 = vmax.f32 %v3908, 0.0
    %v3910 = vld [vmem:[%s53] sm:$0xf]
    %v3912 = vsel %vm3246, %v3910, 0
    %3914 = vmatprep.subr.mxu0 0.0
    %3915 = vmatpush1.msra.mxu0 %v3909
    %3916 = vmatprep.subr.mxu0 0.0
    %3917 = vmatpush1.msra.mxu0 0.0
    %3918 = vmatprep.subr.mxu0 0.0
    %3919 = vmatpush1.msra.mxu0 0.0
    %3920 = vmatprep.subr.mxu0 0.0
    %3921 = vmatpush1.msra.mxu0 0.0
    %3922 = vmatprep.subr.mxu0 0.0
    %3923 = vmatpush1.msra.mxu0 0.0
    %3924 = vmatprep.subr.mxu0 0.0
    %3925 = vmatpush1.msra.mxu0 0.0
    %3926 = vmatprep.subr.mxu0 0.0
    %3927 = vmatpush1.msra.mxu0 0.0
    %3928 = vmatprep.subr.mxu0 0.0
    %3929 = vmatpush1.msra.mxu0 0.0
    %3930 = vmatprep.subr.mxu0 0.0
    %3931 = vmatpush1.msra.mxu0 0.0
    %3932 = vmatprep.subr.mxu0 0.0
    %3933 = vmatpush1.msra.mxu0 0.0
    %3934 = vmatprep.subr.mxu0 0.0
    %3935 = vmatpush1.msra.mxu0 0.0
    %3936 = vmatprep.subr.mxu0 0.0
    %3937 = vmatpush1.msra.mxu0 0.0
    %3938 = vmatprep.subr.mxu0 0.0
    %3939 = vmatpush1.msra.mxu0 0.0
    %3940 = vmatprep.subr.mxu0 0.0
    %3941 = vmatpush1.msra.mxu0 0.0
    %3942 = vmatprep.subr.mxu0 0.0
    %3943 = vmatpush1.msra.mxu0 0.0
    %3944 = vmatprep.subr.mxu0 0.0
    %3945 = vmatpush1.msra.mxu0 0.0
    %3946 = vmatprep.subr.mxu0 0.0
    %3947 = vmatpush1.msra.mxu0 0.0
    %3948 = vmatprep.subr.mxu0 0.0
    %3949 = vmatpush1.msra.mxu0 0.0
    %3950 = vmatprep.subr.mxu0 0.0
    %3951 = vmatpush1.msra.mxu0 0.0
    %3952 = vmatprep.subr.mxu0 0.0
    %3953 = vmatpush1.msra.mxu0 0.0
    %3954 = vmatprep.subr.mxu0 0.0
    %3955 = vmatpush1.msra.mxu0 0.0
    %3956 = vmatprep.subr.mxu0 0.0
    %3957 = vmatpush1.msra.mxu0 0.0
    %3958 = vmatprep.subr.mxu0 0.0
    %3959 = vmatpush1.msra.mxu0 0.0
    %3960 = vmatprep.subr.mxu0 0.0
    %3961 = vmatpush1.msra.mxu0 0.0
    %3962 = vmatprep.subr.mxu0 0.0
    %3963 = vmatpush1.msra.mxu0 0.0
    %3964 = vmatprep.subr.mxu0 0.0
    %3965 = vmatpush1.msra.mxu0 0.0
    %3966 = vmatprep.subr.mxu0 0.0
    %3967 = vmatpush1.msra.mxu0 0.0
    %3968 = vmatprep.subr.mxu0 0.0
    %3969 = vmatpush1.msra.mxu0 0.0
    %3970 = vmatprep.subr.mxu0 0.0
    %3971 = vmatpush1.msra.mxu0 0.0
    %3972 = vmatprep.subr.mxu0 0.0
    %3973 = vmatpush1.msra.mxu0 0.0
    %3974 = vmatprep.subr.mxu0 0.0
    %3975 = vmatpush1.msra.mxu0 0.0
    %3976 = vmatprep.subr.mxu0 0.0
    %3977 = vmatpush1.msra.mxu0 0.0
    %3978 = vmatprep.mubr.f32.mxu0 0.0
    %3979 = vmatmul.mubr.f32.gmra.mrb[0].mxu0 %v3912
    %v3980 = vpop.f32.mrb[0].mxu0
    %v3981 = vadd.f32 0.0, %v3980
    %v3982 = vpop.f32.mrb[0].mxu0
    %3983 = vdwg.mxu0
    %v3984 = vld [vmem:[%s55] sm:$0xff]
    %v3985 = vld [vmem:[%s55 + $0x8] sm:$0xff]
    %v3986 = vld [vmem:[%s55 + $0x10] sm:$0xff]
    %v3987 = vld [vmem:[%s55 + $0x18] sm:$0xff]
    %v3988 = vld [vmem:[%s55 + $0x20] sm:$0xff]
    %v3989 = vld [vmem:[%s55 + $0x28] sm:$0xff]
    %v3990 = vld [vmem:[%s55 + $0x30] sm:$0xff]
    %v3991 = vld [vmem:[%s55 + $0x38] sm:$0xff]
    %v3992 = vld [vmem:[%s55 + $0x40] sm:$0xff]
    %v3993 = vld [vmem:[%s55 + $0x48] sm:$0xff]
    %v3994 = vld [vmem:[%s55 + $0x50] sm:$0xff]
    %v3995 = vld [vmem:[%s55 + $0x58] sm:$0xff]
    %v3996 = vld [vmem:[%s55 + $0x60] sm:$0xff]
    %v3997 = vld [vmem:[%s55 + $0x68] sm:$0xff]
    %v3998 = vld [vmem:[%s55 + $0x70] sm:$0xff]
    %v3999 = vld [vmem:[%s55 + $0x78] sm:$0xff]
    %s4000 = scalar_lea.vmem %s53, 4
    %v4001 = vld [vmem:[%s4000] sm:$0xf]
    %v4003 = vsel %vm3246, %v4001, 0
    %4005 = vmatprep.subr.mxu0 0.0
    %4006 = vmatpush1.msra.mxu0 %v3909
    %4007 = vmatprep.subr.mxu0 0.0
    %4008 = vmatpush1.msra.mxu0 0.0
    %4009 = vmatprep.subr.mxu0 0.0
    %4010 = vmatpush1.msra.mxu0 0.0
    %4011 = vmatprep.subr.mxu0 0.0
    %4012 = vmatpush1.msra.mxu0 0.0
    %4013 = vmatprep.subr.mxu0 0.0
    %4014 = vmatpush1.msra.mxu0 0.0
    %4015 = vmatprep.subr.mxu0 0.0
    %4016 = vmatpush1.msra.mxu0 0.0
    %4017 = vmatprep.subr.mxu0 0.0
    %4018 = vmatpush1.msra.mxu0 0.0
    %4019 = vmatprep.subr.mxu0 0.0
    %4020 = vmatpush1.msra.mxu0 0.0
    %4021 = vmatprep.subr.mxu0 0.0
    %4022 = vmatpush1.msra.mxu0 0.0
    %4023 = vmatprep.subr.mxu0 0.0
    %4024 = vmatpush1.msra.mxu0 0.0
    %4025 = vmatprep.subr.mxu0 0.0
    %4026 = vmatpush1.msra.mxu0 0.0
    %4027 = vmatprep.subr.mxu0 0.0
    %4028 = vmatpush1.msra.mxu0 0.0
    %4029 = vmatprep.subr.mxu0 0.0
    %4030 = vmatpush1.msra.mxu0 0.0
    %4031 = vmatprep.subr.mxu0 0.0
    %4032 = vmatpush1.msra.mxu0 0.0
    %4033 = vmatprep.subr.mxu0 0.0
    %4034 = vmatpush1.msra.mxu0 0.0
    %4035 = vmatprep.subr.mxu0 0.0
    %4036 = vmatpush1.msra.mxu0 0.0
    %4037 = vmatprep.subr.mxu0 0.0
    %4038 = vmatpush1.msra.mxu0 0.0
    %4039 = vmatprep.subr.mxu0 0.0
    %4040 = vmatpush1.msra.mxu0 0.0
    %4041 = vmatprep.subr.mxu0 0.0
    %4042 = vmatpush1.msra.mxu0 0.0
    %4043 = vmatprep.subr.mxu0 0.0
    %4044 = vmatpush1.msra.mxu0 0.0
    %4045 = vmatprep.subr.mxu0 0.0
    %4046 = vmatpush1.msra.mxu0 0.0
    %4047 = vmatprep.subr.mxu0 0.0
    %4048 = vmatpush1.msra.mxu0 0.0
    %4049 = vmatprep.subr.mxu0 0.0
    %4050 = vmatpush1.msra.mxu0 0.0
    %4051 = vmatprep.subr.mxu0 0.0
    %4052 = vmatpush1.msra.mxu0 0.0
    %4053 = vmatprep.subr.mxu0 0.0
    %4054 = vmatpush1.msra.mxu0 0.0
    %4055 = vmatprep.subr.mxu0 0.0
    %4056 = vmatpush1.msra.mxu0 0.0
    %4057 = vmatprep.subr.mxu0 0.0
    %4058 = vmatpush1.msra.mxu0 0.0
    %4059 = vmatprep.subr.mxu0 0.0
    %4060 = vmatpush1.msra.mxu0 0.0
    %4061 = vmatprep.subr.mxu0 0.0
    %4062 = vmatpush1.msra.mxu0 0.0
    %4063 = vmatprep.subr.mxu0 0.0
    %4064 = vmatpush1.msra.mxu0 0.0
    %4065 = vmatprep.subr.mxu0 0.0
    %4066 = vmatpush1.msra.mxu0 0.0
    %4067 = vmatprep.subr.mxu0 0.0
    %4068 = vmatpush1.msra.mxu0 0.0
    %4069 = vmatprep.mubr.f32.mxu0 0.0
    %4070 = vmatmul.mubr.f32.gmra.mrb[0].mxu0 %v4003
    %v4071 = vpop.f32.mrb[0].mxu0
    %v4072 = vadd.f32 0.0, %v4071
    %v4073 = vpop.f32.mrb[0].mxu0
    %4074 = vdwg.mxu0
    %s4075 = scalar_lea.vmem %s55, 128
    %v4076 = vld [vmem:[%s4075] sm:$0xff]
    %v4077 = vld [vmem:[%s4075 + $0x8] sm:$0xff]
    %v4078 = vld [vmem:[%s4075 + $0x10] sm:$0xff]
    %v4079 = vld [vmem:[%s4075 + $0x18] sm:$0xff]
    %v4080 = vld [vmem:[%s4075 + $0x20] sm:$0xff]
    %v4081 = vld [vmem:[%s4075 + $0x28] sm:$0xff]
    %v4082 = vld [vmem:[%s4075 + $0x30] sm:$0xff]
    %v4083 = vld [vmem:[%s4075 + $0x38] sm:$0xff]
    %v4084 = vld [vmem:[%s4075 + $0x40] sm:$0xff]
    %v4085 = vld [vmem:[%s4075 + $0x48] sm:$0xff]
    %v4086 = vld [vmem:[%s4075 + $0x50] sm:$0xff]
    %v4087 = vld [vmem:[%s4075 + $0x58] sm:$0xff]
    %v4088 = vld [vmem:[%s4075 + $0x60] sm:$0xff]
    %v4089 = vld [vmem:[%s4075 + $0x68] sm:$0xff]
    %v4090 = vld [vmem:[%s4075 + $0x70] sm:$0xff]
    %v4091 = vld [vmem:[%s4075 + $0x78] sm:$0xff]
    %4092 = vmatprep.subr.mxu0 0.0
    %4093 = vmatpush1.msra.mxu0 %v4076
    %4094 = vmatprep.subr.mxu0 0.0
    %4095 = vmatpush1.msra.mxu0 %v4077
    %4096 = vmatprep.subr.mxu0 0.0
    %4097 = vmatpush1.msra.mxu0 %v4078
    %4098 = vmatprep.subr.mxu0 0.0
    %4099 = vmatpush1.msra.mxu0 %v4079
    %4100 = vmatprep.subr.mxu0 0.0
    %4101 = vmatpush1.msra.mxu0 %v4080
    %4102 = vmatprep.subr.mxu0 0.0
    %4103 = vmatpush1.msra.mxu0 %v4081
    %4104 = vmatprep.subr.mxu0 0.0
    %4105 = vmatpush1.msra.mxu0 %v4082
    %4106 = vmatprep.subr.mxu0 0.0
    %4107 = vmatpush1.msra.mxu0 %v4083
    %4108 = vmatprep.subr.mxu0 0.0
    %4109 = vmatpush1.msra.mxu0 %v4084
    %4110 = vmatprep.subr.mxu0 0.0
    %4111 = vmatpush1.msra.mxu0 %v4085
    %4112 = vmatprep.subr.mxu0 0.0
    %4113 = vmatpush1.msra.mxu0 %v4086
    %4114 = vmatprep.subr.mxu0 0.0
    %4115 = vmatpush1.msra.mxu0 %v4087
    %4116 = vmatprep.subr.mxu0 0.0
    %4117 = vmatpush1.msra.mxu0 %v4088
    %4118 = vmatprep.subr.mxu0 0.0
    %4119 = vmatpush1.msra.mxu0 %v4089
    %4120 = vmatprep.subr.mxu0 0.0
    %4121 = vmatpush1.msra.mxu0 %v4090
    %4122 = vmatprep.subr.mxu0 0.0
    %4123 = vmatpush1.msra.mxu0 %v4091
    %4124 = vmatprep.subr.mxu0 0.0
    %4125 = vmatpush1.msra.mxu0 0.0
    %4126 = vmatprep.subr.mxu0 0.0
    %4127 = vmatpush1.msra.mxu0 0.0
    %4128 = vmatprep.subr.mxu0 0.0
    %4129 = vmatpush1.msra.mxu0 0.0
    %4130 = vmatprep.subr.mxu0 0.0
    %4131 = vmatpush1.msra.mxu0 0.0
    %4132 = vmatprep.subr.mxu0 0.0
    %4133 = vmatpush1.msra.mxu0 0.0
    %4134 = vmatprep.subr.mxu0 0.0
    %4135 = vmatpush1.msra.mxu0 0.0
    %4136 = vmatprep.subr.mxu0 0.0
    %4137 = vmatpush1.msra.mxu0 0.0
    %4138 = vmatprep.subr.mxu0 0.0
    %4139 = vmatpush1.msra.mxu0 0.0
    %4140 = vmatprep.subr.mxu0 0.0
    %4141 = vmatpush1.msra.mxu0 0.0
    %4142 = vmatprep.subr.mxu0 0.0
    %4143 = vmatpush1.msra.mxu0 0.0
    %4144 = vmatprep.subr.mxu0 0.0
    %4145 = vmatpush1.msra.mxu0 0.0
    %4146 = vmatprep.subr.mxu0 0.0
    %4147 = vmatpush1.msra.mxu0 0.0
    %4148 = vmatprep.subr.mxu0 0.0
    %4149 = vmatpush1.msra.mxu0 0.0
    %4150 = vmatprep.subr.mxu0 0.0
    %4151 = vmatpush1.msra.mxu0 0.0
    %4152 = vmatprep.subr.mxu0 0.0
    %4153 = vmatpush1.msra.mxu0 0.0
    %4154 = vmatprep.subr.mxu0 0.0
    %4155 = vmatpush1.msra.mxu0 0.0
    %4156 = vmatprep.mubr.f32.mxu0 0.0
    %4157 = vmatmul.mubr.f32.gmra.mrb[0].mxu0 %v4072
    %v4158 = vpop.f32.mrb[0].mxu0
    %v4159 = vadd.f32 0.0, %v4158
    %v4160 = vpop.f32.mrb[0].mxu0
    %4161 = vdwg.mxu0
    %4162 = vmatprep.subr.mxu0 0.0
    %4163 = vmatpush1.msra.mxu0 %v3984
    %4164 = vmatprep.subr.mxu0 0.0
    %4165 = vmatpush1.msra.mxu0 %v3985
    %4166 = vmatprep.subr.mxu0 0.0
    %4167 = vmatpush1.msra.mxu0 %v3986
    %4168 = vmatprep.subr.mxu0 0.0
    %4169 = vmatpush1.msra.mxu0 %v3987
    %4170 = vmatprep.subr.mxu0 0.0
    %4171 = vmatpush1.msra.mxu0 %v3988
    %4172 = vmatprep.subr.mxu0 0.0
    %4173 = vmatpush1.msra.mxu0 %v3989
    %4174 = vmatprep.subr.mxu0 0.0
    %4175 = vmatpush1.msra.mxu0 %v3990
    %4176 = vmatprep.subr.mxu0 0.0
    %4177 = vmatpush1.msra.mxu0 %v3991
    %4178 = vmatprep.subr.mxu0 0.0
    %4179 = vmatpush1.msra.mxu0 %v3992
    %4180 = vmatprep.subr.mxu0 0.0
    %4181 = vmatpush1.msra.mxu0 %v3993
    %4182 = vmatprep.subr.mxu0 0.0
    %4183 = vmatpush1.msra.mxu0 %v3994
    %4184 = vmatprep.subr.mxu0 0.0
    %4185 = vmatpush1.msra.mxu0 %v3995
    %4186 = vmatprep.subr.mxu0 0.0
    %4187 = vmatpush1.msra.mxu0 %v3996
    %4188 = vmatprep.subr.mxu0 0.0
    %4189 = vmatpush1.msra.mxu0 %v3997
    %4190 = vmatprep.subr.mxu0 0.0
    %4191 = vmatpush1.msra.mxu0 %v3998
    %4192 = vmatprep.subr.mxu0 0.0
    %4193 = vmatpush1.msra.mxu0 %v3999
    %4194 = vmatprep.subr.mxu0 0.0
    %4195 = vmatpush1.msra.mxu0 0.0
    %4196 = vmatprep.subr.mxu0 0.0
    %4197 = vmatpush1.msra.mxu0 0.0
    %4198 = vmatprep.subr.mxu0 0.0
    %4199 = vmatpush1.msra.mxu0 0.0
    %4200 = vmatprep.subr.mxu0 0.0
    %4201 = vmatpush1.msra.mxu0 0.0
    %4202 = vmatprep.subr.mxu0 0.0
    %4203 = vmatpush1.msra.mxu0 0.0
    %4204 = vmatprep.subr.mxu0 0.0
    %4205 = vmatpush1.msra.mxu0 0.0
    %4206 = vmatprep.subr.mxu0 0.0
    %4207 = vmatpush1.msra.mxu0 0.0
    %4208 = vmatprep.subr.mxu0 0.0
    %4209 = vmatpush1.msra.mxu0 0.0
    %4210 = vmatprep.subr.mxu0 0.0
    %4211 = vmatpush1.msra.mxu0 0.0
    %4212 = vmatprep.subr.mxu0 0.0
    %4213 = vmatpush1.msra.mxu0 0.0
    %4214 = vmatprep.subr.mxu0 0.0
    %4215 = vmatpush1.msra.mxu0 0.0
    %4216 = vmatprep.subr.mxu0 0.0
    %4217 = vmatpush1.msra.mxu0 0.0
    %4218 = vmatprep.subr.mxu0 0.0
    %4219 = vmatpush1.msra.mxu0 0.0
    %4220 = vmatprep.subr.mxu0 0.0
    %4221 = vmatpush1.msra.mxu0 0.0
    %4222 = vmatprep.subr.mxu0 0.0
    %4223 = vmatpush1.msra.mxu0 0.0
    %4224 = vmatprep.subr.mxu0 0.0
    %4225 = vmatpush1.msra.mxu0 0.0
    %4226 = vmatprep.mubr.f32.mxu0 0.0
    %4227 = vmatmul.mubr.f32.gmra.mrb[0].mxu0 %v3981
    %v4228 = vpop.f32.mrb[0].mxu0
    %v4229 = vadd.f32 %v4159, %v4228
    %v4230 = vpop.f32.mrb[0].mxu0
    %4231 = vdwg.mxu0
    %s4232 = scalar_lea.vmem %s53, 8
    %v4233 = vld [vmem:[%s4232] sm:$0xf]
    %v4235 = vsel %vm3246, %v4233, 0
    %4237 = vmatprep.subr.mxu0 0.0
    %4238 = vmatpush1.msra.mxu0 %v3909
    %4239 = vmatprep.subr.mxu0 0.0
    %4240 = vmatpush1.msra.mxu0 0.0
    %4241 = vmatprep.subr.mxu0 0.0
    %4242 = vmatpush1.msra.mxu0 0.0
    %4243 = vmatprep.subr.mxu0 0.0
    %4244 = vmatpush1.msra.mxu0 0.0
    %4245 = vmatprep.subr.mxu0 0.0
    %4246 = vmatpush1.msra.mxu0 0.0
    %4247 = vmatprep.subr.mxu0 0.0
    %4248 = vmatpush1.msra.mxu0 0.0
    %4249 = vmatprep.subr.mxu0 0.0
    %4250 = vmatpush1.msra.mxu0 0.0
    %4251 = vmatprep.subr.mxu0 0.0
    %4252 = vmatpush1.msra.mxu0 0.0
    %4253 = vmatprep.subr.mxu0 0.0
    %4254 = vmatpush1.msra.mxu0 0.0
    %4255 = vmatprep.subr.mxu0 0.0
    %4256 = vmatpush1.msra.mxu0 0.0
    %4257 = vmatprep.subr.mxu0 0.0
    %4258 = vmatpush1.msra.mxu0 0.0
    %4259 = vmatprep.subr.mxu0 0.0
    %4260 = vmatpush1.msra.mxu0 0.0
    %4261 = vmatprep.subr.mxu0 0.0
    %4262 = vmatpush1.msra.mxu0 0.0
    %4263 = vmatprep.subr.mxu0 0.0
    %4264 = vmatpush1.msra.mxu0 0.0
    %4265 = vmatprep.subr.mxu0 0.0
    %4266 = vmatpush1.msra.mxu0 0.0
    %4267 = vmatprep.subr.mxu0 0.0
    %4268 = vmatpush1.msra.mxu0 0.0
    %4269 = vmatprep.subr.mxu0 0.0
    %4270 = vmatpush1.msra.mxu0 0.0
    %4271 = vmatprep.subr.mxu0 0.0
    %4272 = vmatpush1.msra.mxu0 0.0
    %4273 = vmatprep.subr.mxu0 0.0
    %4274 = vmatpush1.msra.mxu0 0.0
    %4275 = vmatprep.subr.mxu0 0.0
    %4276 = vmatpush1.msra.mxu0 0.0
    %4277 = vmatprep.subr.mxu0 0.0
    %4278 = vmatpush1.msra.mxu0 0.0
    %4279 = vmatprep.subr.mxu0 0.0
    %4280 = vmatpush1.msra.mxu0 0.0
    %4281 = vmatprep.subr.mxu0 0.0
    %4282 = vmatpush1.msra.mxu0 0.0
    %4283 = vmatprep.subr.mxu0 0.0
    %4284 = vmatpush1.msra.mxu0 0.0
    %4285 = vmatprep.subr.mxu0 0.0
    %4286 = vmatpush1.msra.mxu0 0.0
    %4287 = vmatprep.subr.mxu0 0.0
    %4288 = vmatpush1.msra.mxu0 0.0
    %4289 = vmatprep.subr.mxu0 0.0
    %4290 = vmatpush1.msra.mxu0 0.0
    %4291 = vmatprep.subr.mxu0 0.0
    %4292 = vmatpush1.msra.mxu0 0.0
    %4293 = vmatprep.subr.mxu0 0.0
    %4294 = vmatpush1.msra.mxu0 0.0
    %4295 = vmatprep.subr.mxu0 0.0
    %4296 = vmatpush1.msra.mxu0 0.0
    %4297 = vmatprep.subr.mxu0 0.0
    %4298 = vmatpush1.msra.mxu0 0.0
    %4299 = vmatprep.subr.mxu0 0.0
    %4300 = vmatpush1.msra.mxu0 0.0
    %4301 = vmatprep.mubr.f32.mxu0 0.0
    %4302 = vmatmul.mubr.f32.gmra.mrb[0].mxu0 %v4235
    %v4303 = vpop.f32.mrb[0].mxu0
    %v4304 = vadd.f32 0.0, %v4303
    %v4305 = vpop.f32.mrb[0].mxu0
    %4306 = vdwg.mxu0
    %s4307 = scalar_lea.vmem %s55, 256
    %v4308 = vld [vmem:[%s4307] sm:$0xff]
    %v4309 = vld [vmem:[%s4307 + $0x8] sm:$0xff]
    %v4310 = vld [vmem:[%s4307 + $0x10] sm:$0xff]
    %v4311 = vld [vmem:[%s4307 + $0x18] sm:$0xff]
    %v4312 = vld [vmem:[%s4307 + $0x20] sm:$0xff]
    %v4313 = vld [vmem:[%s4307 + $0x28] sm:$0xff]
    %v4314 = vld [vmem:[%s4307 + $0x30] sm:$0xff]
    %v4315 = vld [vmem:[%s4307 + $0x38] sm:$0xff]
    %v4316 = vld [vmem:[%s4307 + $0x40] sm:$0xff]
    %v4317 = vld [vmem:[%s4307 + $0x48] sm:$0xff]
    %v4318 = vld [vmem:[%s4307 + $0x50] sm:$0xff]
    %v4319 = vld [vmem:[%s4307 + $0x58] sm:$0xff]
    %v4320 = vld [vmem:[%s4307 + $0x60] sm:$0xff]
    %v4321 = vld [vmem:[%s4307 + $0x68] sm:$0xff]
    %v4322 = vld [vmem:[%s4307 + $0x70] sm:$0xff]
    %v4323 = vld [vmem:[%s4307 + $0x78] sm:$0xff]
    %4324 = vmatprep.subr.mxu0 0.0
    %4325 = vmatpush1.msra.mxu0 %v4308
    %4326 = vmatprep.subr.mxu0 0.0
    %4327 = vmatpush1.msra.mxu0 %v4309
    %4328 = vmatprep.subr.mxu0 0.0
    %4329 = vmatpush1.msra.mxu0 %v4310
    %4330 = vmatprep.subr.mxu0 0.0
    %4331 = vmatpush1.msra.mxu0 %v4311
    %4332 = vmatprep.subr.mxu0 0.0
    %4333 = vmatpush1.msra.mxu0 %v4312
    %4334 = vmatprep.subr.mxu0 0.0
    %4335 = vmatpush1.msra.mxu0 %v4313
    %4336 = vmatprep.subr.mxu0 0.0
    %4337 = vmatpush1.msra.mxu0 %v4314
    %4338 = vmatprep.subr.mxu0 0.0
    %4339 = vmatpush1.msra.mxu0 %v4315
    %4340 = vmatprep.subr.mxu0 0.0
    %4341 = vmatpush1.msra.mxu0 %v4316
    %4342 = vmatprep.subr.mxu0 0.0
    %4343 = vmatpush1.msra.mxu0 %v4317
    %4344 = vmatprep.subr.mxu0 0.0
    %4345 = vmatpush1.msra.mxu0 %v4318
    %4346 = vmatprep.subr.mxu0 0.0
    %4347 = vmatpush1.msra.mxu0 %v4319
    %4348 = vmatprep.subr.mxu0 0.0
    %4349 = vmatpush1.msra.mxu0 %v4320
    %4350 = vmatprep.subr.mxu0 0.0
    %4351 = vmatpush1.msra.mxu0 %v4321
    %4352 = vmatprep.subr.mxu0 0.0
    %4353 = vmatpush1.msra.mxu0 %v4322
    %4354 = vmatprep.subr.mxu0 0.0
    %4355 = vmatpush1.msra.mxu0 %v4323
    %4356 = vmatprep.subr.mxu0 0.0
    %4357 = vmatpush1.msra.mxu0 0.0
    %4358 = vmatprep.subr.mxu0 0.0
    %4359 = vmatpush1.msra.mxu0 0.0
    %4360 = vmatprep.subr.mxu0 0.0
    %4361 = vmatpush1.msra.mxu0 0.0
    %4362 = vmatprep.subr.mxu0 0.0
    %4363 = vmatpush1.msra.mxu0 0.0
    %4364 = vmatprep.subr.mxu0 0.0
    %4365 = vmatpush1.msra.mxu0 0.0
    %4366 = vmatprep.subr.mxu0 0.0
    %4367 = vmatpush1.msra.mxu0 0.0
    %4368 = vmatprep.subr.mxu0 0.0
    %4369 = vmatpush1.msra.mxu0 0.0
    %4370 = vmatprep.subr.mxu0 0.0
    %4371 = vmatpush1.msra.mxu0 0.0
    %4372 = vmatprep.subr.mxu0 0.0
    %4373 = vmatpush1.msra.mxu0 0.0
    %4374 = vmatprep.subr.mxu0 0.0
    %4375 = vmatpush1.msra.mxu0 0.0
    %4376 = vmatprep.subr.mxu0 0.0
    %4377 = vmatpush1.msra.mxu0 0.0
    %4378 = vmatprep.subr.mxu0 0.0
    %4379 = vmatpush1.msra.mxu0 0.0
    %4380 = vmatprep.subr.mxu0 0.0
    %4381 = vmatpush1.msra.mxu0 0.0
    %4382 = vmatprep.subr.mxu0 0.0
    %4383 = vmatpush1.msra.mxu0 0.0
    %4384 = vmatprep.subr.mxu0 0.0
    %4385 = vmatpush1.msra.mxu0 0.0
    %4386 = vmatprep.subr.mxu0 0.0
    %4387 = vmatpush1.msra.mxu0 0.0
    %4388 = vmatprep.mubr.f32.mxu0 0.0
    %4389 = vmatmul.mubr.f32.gmra.mrb[0].mxu0 %v4304
    %v4390 = vpop.f32.mrb[0].mxu0
    %v4391 = vadd.f32 0.0, %v4390
    %v4392 = vpop.f32.mrb[0].mxu0
    %4393 = vdwg.mxu0
    %v4394 = vadd.f32 %v4229, %v4391
    %vm4395 = vcmask 519168
    %v4396 = vsel %vm4395, %v4394, 0.0
    %v4397 = vrot.slane %v4396, 4
    %v4398 = vadd.f32 %v4396, %v4397
    %v4399 = vrot.slane %v4398, 2
    %v4400 = vadd.f32 %v4398, %v4399
    %v4401 = vrot.slane %v4400, 1
    %v4402 = vadd.f32 %v4400, %v4401
    %v4403 = vld [vmem:[%s57] sm:$0xff]
    %v4404 = vld [vmem:[%s57 + $0x8] sm:$0xff]
    %v4405 = vld [vmem:[%s57 + $0x10] sm:$0xff]
    %v4406 = vld [vmem:[%s57 + $0x18] sm:$0xff]
    %v4407 = vld [vmem:[%s57 + $0x20] sm:$0xff]
    %v4408 = vld [vmem:[%s57 + $0x28] sm:$0xff]
    %v4409 = vld [vmem:[%s57 + $0x30] sm:$0xff]
    %v4410 = vld [vmem:[%s57 + $0x38] sm:$0xff]
    %v4412 = vsel %vm1640, %v4402, 0
    %4414 = vmatprep.subr.mxu0 0.0
    %4415 = vmatpush1.msra.mxu0 %v4403
    %4416 = vmatprep.subr.mxu0 0.0
    %4417 = vmatpush1.msra.mxu0 %v4404
    %4418 = vmatprep.subr.mxu0 0.0
    %4419 = vmatpush1.msra.mxu0 %v4405
    %4420 = vmatprep.subr.mxu0 0.0
    %4421 = vmatpush1.msra.mxu0 %v4406
    %4422 = vmatprep.subr.mxu0 0.0
    %4423 = vmatpush1.msra.mxu0 %v4407
    %4424 = vmatprep.subr.mxu0 0.0
    %4425 = vmatpush1.msra.mxu0 %v4408
    %4426 = vmatprep.subr.mxu0 0.0
    %4427 = vmatpush1.msra.mxu0 %v4409
    %4428 = vmatprep.subr.mxu0 0.0
    %4429 = vmatpush1.msra.mxu0 %v4410
    %4430 = vmatprep.subr.mxu0 0.0
    %4431 = vmatpush1.msra.mxu0 0.0
    %4432 = vmatprep.subr.mxu0 0.0
    %4433 = vmatpush1.msra.mxu0 0.0
    %4434 = vmatprep.subr.mxu0 0.0
    %4435 = vmatpush1.msra.mxu0 0.0
    %4436 = vmatprep.subr.mxu0 0.0
    %4437 = vmatpush1.msra.mxu0 0.0
    %4438 = vmatprep.subr.mxu0 0.0
    %4439 = vmatpush1.msra.mxu0 0.0
    %4440 = vmatprep.subr.mxu0 0.0
    %4441 = vmatpush1.msra.mxu0 0.0
    %4442 = vmatprep.subr.mxu0 0.0
    %4443 = vmatpush1.msra.mxu0 0.0
    %4444 = vmatprep.subr.mxu0 0.0
    %4445 = vmatpush1.msra.mxu0 0.0
    %4446 = vmatprep.subr.mxu0 0.0
    %4447 = vmatpush1.msra.mxu0 0.0
    %4448 = vmatprep.subr.mxu0 0.0
    %4449 = vmatpush1.msra.mxu0 0.0
    %4450 = vmatprep.subr.mxu0 0.0
    %4451 = vmatpush1.msra.mxu0 0.0
    %4452 = vmatprep.subr.mxu0 0.0
    %4453 = vmatpush1.msra.mxu0 0.0
    %4454 = vmatprep.subr.mxu0 0.0
    %4455 = vmatpush1.msra.mxu0 0.0
    %4456 = vmatprep.subr.mxu0 0.0
    %4457 = vmatpush1.msra.mxu0 0.0
    %4458 = vmatprep.subr.mxu0 0.0
    %4459 = vmatpush1.msra.mxu0 0.0
    %4460 = vmatprep.subr.mxu0 0.0
    %4461 = vmatpush1.msra.mxu0 0.0
    %4462 = vmatprep.subr.mxu0 0.0
    %4463 = vmatpush1.msra.mxu0 0.0
    %4464 = vmatprep.subr.mxu0 0.0
    %4465 = vmatpush1.msra.mxu0 0.0
    %4466 = vmatprep.subr.mxu0 0.0
    %4467 = vmatpush1.msra.mxu0 0.0
    %4468 = vmatprep.subr.mxu0 0.0
    %4469 = vmatpush1.msra.mxu0 0.0
    %4470 = vmatprep.subr.mxu0 0.0
    %4471 = vmatpush1.msra.mxu0 0.0
    %4472 = vmatprep.subr.mxu0 0.0
    %4473 = vmatpush1.msra.mxu0 0.0
    %4474 = vmatprep.subr.mxu0 0.0
    %4475 = vmatpush1.msra.mxu0 0.0
    %4476 = vmatprep.subr.mxu0 0.0
    %4477 = vmatpush1.msra.mxu0 0.0
    %4478 = vmatprep.mubr.f32.mxu0 0.0
    %4479 = vmatmul.mubr.f32.gmra.mrb[0].mxu0 %v4412
    %v4480 = vpop.f32.mrb[0].mxu0
    %v4481 = vadd.f32 0.0, %v4480
    %v4482 = vpop.f32.mrb[0].mxu0
    %4483 = vdwg.mxu0
    %v4484 = vmul.f32 %v4394, %v4394
    %v4485 = vsel %vm4395, %v4484, 0.0
    %v4486 = vrot.slane %v4485, 4
    %v4487 = vadd.f32 %v4485, %v4486
    %v4488 = vrot.slane %v4487, 2
    %v4489 = vadd.f32 %v4487, %v4488
    %v4490 = vrot.slane %v4489, 1
    %v4491 = vadd.f32 %v4489, %v4490
    %v4493 = vsel %vm1640, %v4491, 0
    %4495 = vmatprep.subr.mxu0 0.0
    %4496 = vmatpush1.msra.mxu0 %v4403
    %4497 = vmatprep.subr.mxu0 0.0
    %4498 = vmatpush1.msra.mxu0 %v4404
    %4499 = vmatprep.subr.mxu0 0.0
    %4500 = vmatpush1.msra.mxu0 %v4405
    %4501 = vmatprep.subr.mxu0 0.0
    %4502 = vmatpush1.msra.mxu0 %v4406
    %4503 = vmatprep.subr.mxu0 0.0
    %4504 = vmatpush1.msra.mxu0 %v4407
    %4505 = vmatprep.subr.mxu0 0.0
    %4506 = vmatpush1.msra.mxu0 %v4408
    %4507 = vmatprep.subr.mxu0 0.0
    %4508 = vmatpush1.msra.mxu0 %v4409
    %4509 = vmatprep.subr.mxu0 0.0
    %4510 = vmatpush1.msra.mxu0 %v4410
    %4511 = vmatprep.subr.mxu0 0.0
    %4512 = vmatpush1.msra.mxu0 0.0
    %4513 = vmatprep.subr.mxu0 0.0
    %4514 = vmatpush1.msra.mxu0 0.0
    %4515 = vmatprep.subr.mxu0 0.0
    %4516 = vmatpush1.msra.mxu0 0.0
    %4517 = vmatprep.subr.mxu0 0.0
    %4518 = vmatpush1.msra.mxu0 0.0
    %4519 = vmatprep.subr.mxu0 0.0
    %4520 = vmatpush1.msra.mxu0 0.0
    %4521 = vmatprep.subr.mxu0 0.0
    %4522 = vmatpush1.msra.mxu0 0.0
    %4523 = vmatprep.subr.mxu0 0.0
    %4524 = vmatpush1.msra.mxu0 0.0
    %4525 = vmatprep.subr.mxu0 0.0
    %4526 = vmatpush1.msra.mxu0 0.0
    %4527 = vmatprep.subr.mxu0 0.0
    %4528 = vmatpush1.msra.mxu0 0.0
    %4529 = vmatprep.subr.mxu0 0.0
    %4530 = vmatpush1.msra.mxu0 0.0
    %4531 = vmatprep.subr.mxu0 0.0
    %4532 = vmatpush1.msra.mxu0 0.0
    %4533 = vmatprep.subr.mxu0 0.0
    %4534 = vmatpush1.msra.mxu0 0.0
    %4535 = vmatprep.subr.mxu0 0.0
    %4536 = vmatpush1.msra.mxu0 0.0
    %4537 = vmatprep.subr.mxu0 0.0
    %4538 = vmatpush1.msra.mxu0 0.0
    %4539 = vmatprep.subr.mxu0 0.0
    %4540 = vmatpush1.msra.mxu0 0.0
    %4541 = vmatprep.subr.mxu0 0.0
    %4542 = vmatpush1.msra.mxu0 0.0
    %4543 = vmatprep.subr.mxu0 0.0
    %4544 = vmatpush1.msra.mxu0 0.0
    %4545 = vmatprep.subr.mxu0 0.0
    %4546 = vmatpush1.msra.mxu0 0.0
    %4547 = vmatprep.subr.mxu0 0.0
    %4548 = vmatpush1.msra.mxu0 0.0
    %4549 = vmatprep.subr.mxu0 0.0
    %4550 = vmatpush1.msra.mxu0 0.0
    %4551 = vmatprep.subr.mxu0 0.0
    %4552 = vmatpush1.msra.mxu0 0.0
    %4553 = vmatprep.subr.mxu0 0.0
    %4554 = vmatpush1.msra.mxu0 0.0
    %4555 = vmatprep.subr.mxu0 0.0
    %4556 = vmatpush1.msra.mxu0 0.0
    %4557 = vmatprep.subr.mxu0 0.0
    %4558 = vmatpush1.msra.mxu0 0.0
    %4559 = vmatprep.mubr.f32.mxu0 0.0
    %4560 = vmatmul.mubr.f32.gmra.mrb[0].mxu0 %v4493
    %v4561 = vpop.f32.mrb[0].mxu0
    %v4562 = vadd.f32 0.0, %v4561
    %v4563 = vpop.f32.mrb[0].mxu0
    %4564 = vdwg.mxu0
    %v4565 = vmul.f32 %v4481, %v4481
    %v4566 = vsub.f32 %v4562, %v4565
    %v4567 = vmax.f32 %v4566, 0.0
    %v4568 = vld [vmem:[%s59] sm:$0x1]
    %v4569 = vadd.f32 %v4567, 1e-05
    %v4570 = vrsqrt.pop %v4569
    %v4571 = vmul.f32 %v4568, %v4570
    %v4572 = vld [vmem:[%s61] sm:$0x1]
    %v4573 = vmul.f32 %v4481, %v4571
    %v4574 = vsub.f32 %v4572, %v4573
    %v4576 = vlaneseq
    %v4577 = vshrl.u32 %v4576, 7
    %v4578 = vsub.s32 0, %v4577
    %v4579 = vrot.slane %v4571, %v4578
    %v4581 = vmul.f32 %v4394, %v4579
    %v4583 = vlaneseq
    %v4584 = vshrl.u32 %v4583, 7
    %v4585 = vsub.s32 0, %v4584
    %v4586 = vrot.slane %v4574, %v4585
    %v4588 = vadd.f32 %v4581, %v4586
    %v4589 = vmax.f32 %v4588, 0.0
    %v4590 = vld [vmem:[%s63] sm:$0xf]
    %vm4591 = vcmask 31744
    %v4593 = vsel %vm4591, %v4590, 0
    %vm4595 = vcmask 1043456
    %v4597 = vsel %vm4595, %v4589, 0
    %4599 = vmatprep.subr.mxu0 0.0
    %4600 = vmatpush1.msra.mxu0 %v4597
    %4601 = vmatprep.subr.mxu0 0.0
    %4602 = vmatpush1.msra.mxu0 0.0
    %4603 = vmatprep.subr.mxu0 0.0
    %4604 = vmatpush1.msra.mxu0 0.0
    %4605 = vmatprep.subr.mxu0 0.0
    %4606 = vmatpush1.msra.mxu0 0.0
    %4607 = vmatprep.subr.mxu0 0.0
    %4608 = vmatpush1.msra.mxu0 0.0
    %4609 = vmatprep.subr.mxu0 0.0
    %4610 = vmatpush1.msra.mxu0 0.0
    %4611 = vmatprep.subr.mxu0 0.0
    %4612 = vmatpush1.msra.mxu0 0.0
    %4613 = vmatprep.subr.mxu0 0.0
    %4614 = vmatpush1.msra.mxu0 0.0
    %4615 = vmatprep.subr.mxu0 0.0
    %4616 = vmatpush1.msra.mxu0 0.0
    %4617 = vmatprep.subr.mxu0 0.0
    %4618 = vmatpush1.msra.mxu0 0.0
    %4619 = vmatprep.subr.mxu0 0.0
    %4620 = vmatpush1.msra.mxu0 0.0
    %4621 = vmatprep.subr.mxu0 0.0
    %4622 = vmatpush1.msra.mxu0 0.0
    %4623 = vmatprep.subr.mxu0 0.0
    %4624 = vmatpush1.msra.mxu0 0.0
    %4625 = vmatprep.subr.mxu0 0.0
    %4626 = vmatpush1.msra.mxu0 0.0
    %4627 = vmatprep.subr.mxu0 0.0
    %4628 = vmatpush1.msra.mxu0 0.0
    %4629 = vmatprep.subr.mxu0 0.0
    %4630 = vmatpush1.msra.mxu0 0.0
    %4631 = vmatprep.subr.mxu0 0.0
    %4632 = vmatpush1.msra.mxu0 0.0
    %4633 = vmatprep.subr.mxu0 0.0
    %4634 = vmatpush1.msra.mxu0 0.0
    %4635 = vmatprep.subr.mxu0 0.0
    %4636 = vmatpush1.msra.mxu0 0.0
    %4637 = vmatprep.subr.mxu0 0.0
    %4638 = vmatpush1.msra.mxu0 0.0
    %4639 = vmatprep.subr.mxu0 0.0
    %4640 = vmatpush1.msra.mxu0 0.0
    %4641 = vmatprep.subr.mxu0 0.0
    %4642 = vmatpush1.msra.mxu0 0.0
    %4643 = vmatprep.subr.mxu0 0.0
    %4644 = vmatpush1.msra.mxu0 0.0
    %4645 = vmatprep.subr.mxu0 0.0
    %4646 = vmatpush1.msra.mxu0 0.0
    %4647 = vmatprep.subr.mxu0 0.0
    %4648 = vmatpush1.msra.mxu0 0.0
    %4649 = vmatprep.subr.mxu0 0.0
    %4650 = vmatpush1.msra.mxu0 0.0
    %4651 = vmatprep.subr.mxu0 0.0
    %4652 = vmatpush1.msra.mxu0 0.0
    %4653 = vmatprep.subr.mxu0 0.0
    %4654 = vmatpush1.msra.mxu0 0.0
    %4655 = vmatprep.subr.mxu0 0.0
    %4656 = vmatpush1.msra.mxu0 0.0
    %4657 = vmatprep.subr.mxu0 0.0
    %4658 = vmatpush1.msra.mxu0 0.0
    %4659 = vmatprep.subr.mxu0 0.0
    %4660 = vmatpush1.msra.mxu0 0.0
    %4661 = vmatprep.subr.mxu0 0.0
    %4662 = vmatpush1.msra.mxu0 0.0
    %4663 = vmatprep.mubr.f32.mxu0 0.0
    %4664 = vmatmul.mubr.f32.gmra.mrb[0].mxu0 %v4593
    %v4665 = vpop.f32.mrb[0].mxu0
    %v4666 = vadd.f32 0.0, %v4665
    %v4667 = vpop.f32.mrb[0].mxu0
    %4668 = vdwg.mxu0
    %v4669 = vld [vmem:[%s65] sm:$0xff]
    %v4670 = vld [vmem:[%s65 + $0x8] sm:$0xff]
    %v4671 = vld [vmem:[%s65 + $0x10] sm:$0xff]
    %v4672 = vld [vmem:[%s65 + $0x18] sm:$0xff]
    %v4673 = vld [vmem:[%s65 + $0x20] sm:$0xff]
    %v4674 = vld [vmem:[%s65 + $0x28] sm:$0xff]
    %v4675 = vld [vmem:[%s65 + $0x30] sm:$0xff]
    %v4676 = vld [vmem:[%s65 + $0x38] sm:$0xff]
    %s4677 = scalar_lea.vmem %s63, 4
    %v4678 = vld [vmem:[%s4677] sm:$0xf]
    %v4680 = vsel %vm4591, %v4678, 0
    %4682 = vmatprep.subr.mxu0 0.0
    %4683 = vmatpush1.msra.mxu0 %v4597
    %4684 = vmatprep.subr.mxu0 0.0
    %4685 = vmatpush1.msra.mxu0 0.0
    %4686 = vmatprep.subr.mxu0 0.0
    %4687 = vmatpush1.msra.mxu0 0.0
    %4688 = vmatprep.subr.mxu0 0.0
    %4689 = vmatpush1.msra.mxu0 0.0
    %4690 = vmatprep.subr.mxu0 0.0
    %4691 = vmatpush1.msra.mxu0 0.0
    %4692 = vmatprep.subr.mxu0 0.0
    %4693 = vmatpush1.msra.mxu0 0.0
    %4694 = vmatprep.subr.mxu0 0.0
    %4695 = vmatpush1.msra.mxu0 0.0
    %4696 = vmatprep.subr.mxu0 0.0
    %4697 = vmatpush1.msra.mxu0 0.0
    %4698 = vmatprep.subr.mxu0 0.0
    %4699 = vmatpush1.msra.mxu0 0.0
    %4700 = vmatprep.subr.mxu0 0.0
    %4701 = vmatpush1.msra.mxu0 0.0
    %4702 = vmatprep.subr.mxu0 0.0
    %4703 = vmatpush1.msra.mxu0 0.0
    %4704 = vmatprep.subr.mxu0 0.0
    %4705 = vmatpush1.msra.mxu0 0.0
    %4706 = vmatprep.subr.mxu0 0.0
    %4707 = vmatpush1.msra.mxu0 0.0
    %4708 = vmatprep.subr.mxu0 0.0
    %4709 = vmatpush1.msra.mxu0 0.0
    %4710 = vmatprep.subr.mxu0 0.0
    %4711 = vmatpush1.msra.mxu0 0.0
    %4712 = vmatprep.subr.mxu0 0.0
    %4713 = vmatpush1.msra.mxu0 0.0
    %4714 = vmatprep.subr.mxu0 0.0
    %4715 = vmatpush1.msra.mxu0 0.0
    %4716 = vmatprep.subr.mxu0 0.0
    %4717 = vmatpush1.msra.mxu0 0.0
    %4718 = vmatprep.subr.mxu0 0.0
    %4719 = vmatpush1.msra.mxu0 0.0
    %4720 = vmatprep.subr.mxu0 0.0
    %4721 = vmatpush1.msra.mxu0 0.0
    %4722 = vmatprep.subr.mxu0 0.0
    %4723 = vmatpush1.msra.mxu0 0.0
    %4724 = vmatprep.subr.mxu0 0.0
    %4725 = vmatpush1.msra.mxu0 0.0
    %4726 = vmatprep.subr.mxu0 0.0
    %4727 = vmatpush1.msra.mxu0 0.0
    %4728 = vmatprep.subr.mxu0 0.0
    %4729 = vmatpush1.msra.mxu0 0.0
    %4730 = vmatprep.subr.mxu0 0.0
    %4731 = vmatpush1.msra.mxu0 0.0
    %4732 = vmatprep.subr.mxu0 0.0
    %4733 = vmatpush1.msra.mxu0 0.0
    %4734 = vmatprep.subr.mxu0 0.0
    %4735 = vmatpush1.msra.mxu0 0.0
    %4736 = vmatprep.subr.mxu0 0.0
    %4737 = vmatpush1.msra.mxu0 0.0
    %4738 = vmatprep.subr.mxu0 0.0
    %4739 = vmatpush1.msra.mxu0 0.0
    %4740 = vmatprep.subr.mxu0 0.0
    %4741 = vmatpush1.msra.mxu0 0.0
    %4742 = vmatprep.subr.mxu0 0.0
    %4743 = vmatpush1.msra.mxu0 0.0
    %4744 = vmatprep.subr.mxu0 0.0
    %4745 = vmatpush1.msra.mxu0 0.0
    %4746 = vmatprep.mubr.f32.mxu0 0.0
    %4747 = vmatmul.mubr.f32.gmra.mrb[0].mxu0 %v4680
    %v4748 = vpop.f32.mrb[0].mxu0
    %v4749 = vadd.f32 0.0, %v4748
    %v4750 = vpop.f32.mrb[0].mxu0
    %4751 = vdwg.mxu0
    %s4752 = scalar_lea.vmem %s65, 64
    %v4753 = vld [vmem:[%s4752] sm:$0xff]
    %v4754 = vld [vmem:[%s4752 + $0x8] sm:$0xff]
    %v4755 = vld [vmem:[%s4752 + $0x10] sm:$0xff]
    %v4756 = vld [vmem:[%s4752 + $0x18] sm:$0xff]
    %v4757 = vld [vmem:[%s4752 + $0x20] sm:$0xff]
    %v4758 = vld [vmem:[%s4752 + $0x28] sm:$0xff]
    %v4759 = vld [vmem:[%s4752 + $0x30] sm:$0xff]
    %v4760 = vld [vmem:[%s4752 + $0x38] sm:$0xff]
    %v4762 = vsel %vm1640, %v4749, 0
    %4764 = vmatprep.subr.mxu0 0.0
    %4765 = vmatpush1.msra.mxu0 %v4753
    %4766 = vmatprep.subr.mxu0 0.0
    %4767 = vmatpush1.msra.mxu0 %v4754
    %4768 = vmatprep.subr.mxu0 0.0
    %4769 = vmatpush1.msra.mxu0 %v4755
    %4770 = vmatprep.subr.mxu0 0.0
    %4771 = vmatpush1.msra.mxu0 %v4756
    %4772 = vmatprep.subr.mxu0 0.0
    %4773 = vmatpush1.msra.mxu0 %v4757
    %4774 = vmatprep.subr.mxu0 0.0
    %4775 = vmatpush1.msra.mxu0 %v4758
    %4776 = vmatprep.subr.mxu0 0.0
    %4777 = vmatpush1.msra.mxu0 %v4759
    %4778 = vmatprep.subr.mxu0 0.0
    %4779 = vmatpush1.msra.mxu0 %v4760
    %4780 = vmatprep.subr.mxu0 0.0
    %4781 = vmatpush1.msra.mxu0 0.0
    %4782 = vmatprep.subr.mxu0 0.0
    %4783 = vmatpush1.msra.mxu0 0.0
    %4784 = vmatprep.subr.mxu0 0.0
    %4785 = vmatpush1.msra.mxu0 0.0
    %4786 = vmatprep.subr.mxu0 0.0
    %4787 = vmatpush1.msra.mxu0 0.0
    %4788 = vmatprep.subr.mxu0 0.0
    %4789 = vmatpush1.msra.mxu0 0.0
    %4790 = vmatprep.subr.mxu0 0.0
    %4791 = vmatpush1.msra.mxu0 0.0
    %4792 = vmatprep.subr.mxu0 0.0
    %4793 = vmatpush1.msra.mxu0 0.0
    %4794 = vmatprep.subr.mxu0 0.0
    %4795 = vmatpush1.msra.mxu0 0.0
    %4796 = vmatprep.subr.mxu0 0.0
    %4797 = vmatpush1.msra.mxu0 0.0
    %4798 = vmatprep.subr.mxu0 0.0
    %4799 = vmatpush1.msra.mxu0 0.0
    %4800 = vmatprep.subr.mxu0 0.0
    %4801 = vmatpush1.msra.mxu0 0.0
    %4802 = vmatprep.subr.mxu0 0.0
    %4803 = vmatpush1.msra.mxu0 0.0
    %4804 = vmatprep.subr.mxu0 0.0
    %4805 = vmatpush1.msra.mxu0 0.0
    %4806 = vmatprep.subr.mxu0 0.0
    %4807 = vmatpush1.msra.mxu0 0.0
    %4808 = vmatprep.subr.mxu0 0.0
    %4809 = vmatpush1.msra.mxu0 0.0
    %4810 = vmatprep.subr.mxu0 0.0
    %4811 = vmatpush1.msra.mxu0 0.0
    %4812 = vmatprep.subr.mxu0 0.0
    %4813 = vmatpush1.msra.mxu0 0.0
    %4814 = vmatprep.subr.mxu0 0.0
    %4815 = vmatpush1.msra.mxu0 0.0
    %4816 = vmatprep.subr.mxu0 0.0
    %4817 = vmatpush1.msra.mxu0 0.0
    %4818 = vmatprep.subr.mxu0 0.0
    %4819 = vmatpush1.msra.mxu0 0.0
    %4820 = vmatprep.subr.mxu0 0.0
    %4821 = vmatpush1.msra.mxu0 0.0
    %4822 = vmatprep.subr.mxu0 0.0
    %4823 = vmatpush1.msra.mxu0 0.0
    %4824 = vmatprep.subr.mxu0 0.0
    %4825 = vmatpush1.msra.mxu0 0.0
    %4826 = vmatprep.subr.mxu0 0.0
    %4827 = vmatpush1.msra.mxu0 0.0
    %4828 = vmatprep.mubr.f32.mxu0 0.0
    %4829 = vmatmul.mubr.f32.gmra.mrb[0].mxu0 %v4762
    %v4830 = vpop.f32.mrb[0].mxu0
    %v4831 = vadd.f32 0.0, %v4830
    %v4832 = vpop.f32.mrb[0].mxu0
    %4833 = vdwg.mxu0
    %v4835 = vsel %vm1640, %v4666, 0
    %4837 = vmatprep.subr.mxu0 0.0
    %4838 = vmatpush1.msra.mxu0 %v4669
    %4839 = vmatprep.subr.mxu0 0.0
    %4840 = vmatpush1.msra.mxu0 %v4670
    %4841 = vmatprep.subr.mxu0 0.0
    %4842 = vmatpush1.msra.mxu0 %v4671
    %4843 = vmatprep.subr.mxu0 0.0
    %4844 = vmatpush1.msra.mxu0 %v4672
    %4845 = vmatprep.subr.mxu0 0.0
    %4846 = vmatpush1.msra.mxu0 %v4673
    %4847 = vmatprep.subr.mxu0 0.0
    %4848 = vmatpush1.msra.mxu0 %v4674
    %4849 = vmatprep.subr.mxu0 0.0
    %4850 = vmatpush1.msra.mxu0 %v4675
    %4851 = vmatprep.subr.mxu0 0.0
    %4852 = vmatpush1.msra.mxu0 %v4676
    %4853 = vmatprep.subr.mxu0 0.0
    %4854 = vmatpush1.msra.mxu0 0.0
    %4855 = vmatprep.subr.mxu0 0.0
    %4856 = vmatpush1.msra.mxu0 0.0
    %4857 = vmatprep.subr.mxu0 0.0
    %4858 = vmatpush1.msra.mxu0 0.0
    %4859 = vmatprep.subr.mxu0 0.0
    %4860 = vmatpush1.msra.mxu0 0.0
    %4861 = vmatprep.subr.mxu0 0.0
    %4862 = vmatpush1.msra.mxu0 0.0
    %4863 = vmatprep.subr.mxu0 0.0
    %4864 = vmatpush1.msra.mxu0 0.0
    %4865 = vmatprep.subr.mxu0 0.0
    %4866 = vmatpush1.msra.mxu0 0.0
    %4867 = vmatprep.subr.mxu0 0.0
    %4868 = vmatpush1.msra.mxu0 0.0
    %4869 = vmatprep.subr.mxu0 0.0
    %4870 = vmatpush1.msra.mxu0 0.0
    %4871 = vmatprep.subr.mxu0 0.0
    %4872 = vmatpush1.msra.mxu0 0.0
    %4873 = vmatprep.subr.mxu0 0.0
    %4874 = vmatpush1.msra.mxu0 0.0
    %4875 = vmatprep.subr.mxu0 0.0
    %4876 = vmatpush1.msra.mxu0 0.0
    %4877 = vmatprep.subr.mxu0 0.0
    %4878 = vmatpush1.msra.mxu0 0.0
    %4879 = vmatprep.subr.mxu0 0.0
    %4880 = vmatpush1.msra.mxu0 0.0
    %4881 = vmatprep.subr.mxu0 0.0
    %4882 = vmatpush1.msra.mxu0 0.0
    %4883 = vmatprep.subr.mxu0 0.0
    %4884 = vmatpush1.msra.mxu0 0.0
    %4885 = vmatprep.subr.mxu0 0.0
    %4886 = vmatpush1.msra.mxu0 0.0
    %4887 = vmatprep.subr.mxu0 0.0
    %4888 = vmatpush1.msra.mxu0 0.0
    %4889 = vmatprep.subr.mxu0 0.0
    %4890 = vmatpush1.msra.mxu0 0.0
    %4891 = vmatprep.subr.mxu0 0.0
    %4892 = vmatpush1.msra.mxu0 0.0
    %4893 = vmatprep.subr.mxu0 0.0
    %4894 = vmatpush1.msra.mxu0 0.0
    %4895 = vmatprep.subr.mxu0 0.0
    %4896 = vmatpush1.msra.mxu0 0.0
    %4897 = vmatprep.subr.mxu0 0.0
    %4898 = vmatpush1.msra.mxu0 0.0
    %4899 = vmatprep.subr.mxu0 0.0
    %4900 = vmatpush1.msra.mxu0 0.0
    %4901 = vmatprep.mubr.f32.mxu0 0.0
    %4902 = vmatmul.mubr.f32.gmra.mrb[0].mxu0 %v4835
    %v4903 = vpop.f32.mrb[0].mxu0
    %v4904 = vadd.f32 %v4831, %v4903
    %v4905 = vpop.f32.mrb[0].mxu0
    %4906 = vdwg.mxu0
    %s4907 = scalar_lea.vmem %s63, 8
    %v4908 = vld [vmem:[%s4907] sm:$0xf]
    %v4910 = vsel %vm4591, %v4908, 0
    %4912 = vmatprep.subr.mxu0 0.0
    %4913 = vmatpush1.msra.mxu0 %v4597
    %4914 = vmatprep.subr.mxu0 0.0
    %4915 = vmatpush1.msra.mxu0 0.0
    %4916 = vmatprep.subr.mxu0 0.0
    %4917 = vmatpush1.msra.mxu0 0.0
    %4918 = vmatprep.subr.mxu0 0.0
    %4919 = vmatpush1.msra.mxu0 0.0
    %4920 = vmatprep.subr.mxu0 0.0
    %4921 = vmatpush1.msra.mxu0 0.0
    %4922 = vmatprep.subr.mxu0 0.0
    %4923 = vmatpush1.msra.mxu0 0.0
    %4924 = vmatprep.subr.mxu0 0.0
    %4925 = vmatpush1.msra.mxu0 0.0
    %4926 = vmatprep.subr.mxu0 0.0
    %4927 = vmatpush1.msra.mxu0 0.0
    %4928 = vmatprep.subr.mxu0 0.0
    %4929 = vmatpush1.msra.mxu0 0.0
    %4930 = vmatprep.subr.mxu0 0.0
    %4931 = vmatpush1.msra.mxu0 0.0
    %4932 = vmatprep.subr.mxu0 0.0
    %4933 = vmatpush1.msra.mxu0 0.0
    %4934 = vmatprep.subr.mxu0 0.0
    %4935 = vmatpush1.msra.mxu0 0.0
    %4936 = vmatprep.subr.mxu0 0.0
    %4937 = vmatpush1.msra.mxu0 0.0
    %4938 = vmatprep.subr.mxu0 0.0
    %4939 = vmatpush1.msra.mxu0 0.0
    %4940 = vmatprep.subr.mxu0 0.0
    %4941 = vmatpush1.msra.mxu0 0.0
    %4942 = vmatprep.subr.mxu0 0.0
    %4943 = vmatpush1.msra.mxu0 0.0
    %4944 = vmatprep.subr.mxu0 0.0
    %4945 = vmatpush1.msra.mxu0 0.0
    %4946 = vmatprep.subr.mxu0 0.0
    %4947 = vmatpush1.msra.mxu0 0.0
    %4948 = vmatprep.subr.mxu0 0.0
    %4949 = vmatpush1.msra.mxu0 0.0
    %4950 = vmatprep.subr.mxu0 0.0
    %4951 = vmatpush1.msra.mxu0 0.0
    %4952 = vmatprep.subr.mxu0 0.0
    %4953 = vmatpush1.msra.mxu0 0.0
    %4954 = vmatprep.subr.mxu0 0.0
    %4955 = vmatpush1.msra.mxu0 0.0
    %4956 = vmatprep.subr.mxu0 0.0
    %4957 = vmatpush1.msra.mxu0 0.0
    %4958 = vmatprep.subr.mxu0 0.0
    %4959 = vmatpush1.msra.mxu0 0.0
    %4960 = vmatprep.subr.mxu0 0.0
    %4961 = vmatpush1.msra.mxu0 0.0
    %4962 = vmatprep.subr.mxu0 0.0
    %4963 = vmatpush1.msra.mxu0 0.0
    %4964 = vmatprep.subr.mxu0 0.0
    %4965 = vmatpush1.msra.mxu0 0.0
    %4966 = vmatprep.subr.mxu0 0.0
    %4967 = vmatpush1.msra.mxu0 0.0
    %4968 = vmatprep.subr.mxu0 0.0
    %4969 = vmatpush1.msra.mxu0 0.0
    %4970 = vmatprep.subr.mxu0 0.0
    %4971 = vmatpush1.msra.mxu0 0.0
    %4972 = vmatprep.subr.mxu0 0.0
    %4973 = vmatpush1.msra.mxu0 0.0
    %4974 = vmatprep.subr.mxu0 0.0
    %4975 = vmatpush1.msra.mxu0 0.0
    %4976 = vmatprep.mubr.f32.mxu0 0.0
    %4977 = vmatmul.mubr.f32.gmra.mrb[0].mxu0 %v4910
    %v4978 = vpop.f32.mrb[0].mxu0
    %v4979 = vadd.f32 0.0, %v4978
    %v4980 = vpop.f32.mrb[0].mxu0
    %4981 = vdwg.mxu0
    %s4982 = scalar_lea.vmem %s65, 128
    %v4983 = vld [vmem:[%s4982] sm:$0xff]
    %v4984 = vld [vmem:[%s4982 + $0x8] sm:$0xff]
    %v4985 = vld [vmem:[%s4982 + $0x10] sm:$0xff]
    %v4986 = vld [vmem:[%s4982 + $0x18] sm:$0xff]
    %v4987 = vld [vmem:[%s4982 + $0x20] sm:$0xff]
    %v4988 = vld [vmem:[%s4982 + $0x28] sm:$0xff]
    %v4989 = vld [vmem:[%s4982 + $0x30] sm:$0xff]
    %v4990 = vld [vmem:[%s4982 + $0x38] sm:$0xff]
    %v4992 = vsel %vm1640, %v4979, 0
    %4994 = vmatprep.subr.mxu0 0.0
    %4995 = vmatpush1.msra.mxu0 %v4983
    %4996 = vmatprep.subr.mxu0 0.0
    %4997 = vmatpush1.msra.mxu0 %v4984
    %4998 = vmatprep.subr.mxu0 0.0
    %4999 = vmatpush1.msra.mxu0 %v4985
    %5000 = vmatprep.subr.mxu0 0.0
    %5001 = vmatpush1.msra.mxu0 %v4986
    %5002 = vmatprep.subr.mxu0 0.0
    %5003 = vmatpush1.msra.mxu0 %v4987
    %5004 = vmatprep.subr.mxu0 0.0
    %5005 = vmatpush1.msra.mxu0 %v4988
    %5006 = vmatprep.subr.mxu0 0.0
    %5007 = vmatpush1.msra.mxu0 %v4989
    %5008 = vmatprep.subr.mxu0 0.0
    %5009 = vmatpush1.msra.mxu0 %v4990
    %5010 = vmatprep.subr.mxu0 0.0
    %5011 = vmatpush1.msra.mxu0 0.0
    %5012 = vmatprep.subr.mxu0 0.0
    %5013 = vmatpush1.msra.mxu0 0.0
    %5014 = vmatprep.subr.mxu0 0.0
    %5015 = vmatpush1.msra.mxu0 0.0
    %5016 = vmatprep.subr.mxu0 0.0
    %5017 = vmatpush1.msra.mxu0 0.0
    %5018 = vmatprep.subr.mxu0 0.0
    %5019 = vmatpush1.msra.mxu0 0.0
    %5020 = vmatprep.subr.mxu0 0.0
    %5021 = vmatpush1.msra.mxu0 0.0
    %5022 = vmatprep.subr.mxu0 0.0
    %5023 = vmatpush1.msra.mxu0 0.0
    %5024 = vmatprep.subr.mxu0 0.0
    %5025 = vmatpush1.msra.mxu0 0.0
    %5026 = vmatprep.subr.mxu0 0.0
    %5027 = vmatpush1.msra.mxu0 0.0
    %5028 = vmatprep.subr.mxu0 0.0
    %5029 = vmatpush1.msra.mxu0 0.0
    %5030 = vmatprep.subr.mxu0 0.0
    %5031 = vmatpush1.msra.mxu0 0.0
    %5032 = vmatprep.subr.mxu0 0.0
    %5033 = vmatpush1.msra.mxu0 0.0
    %5034 = vmatprep.subr.mxu0 0.0
    %5035 = vmatpush1.msra.mxu0 0.0
    %5036 = vmatprep.subr.mxu0 0.0
    %5037 = vmatpush1.msra.mxu0 0.0
    %5038 = vmatprep.subr.mxu0 0.0
    %5039 = vmatpush1.msra.mxu0 0.0
    %5040 = vmatprep.subr.mxu0 0.0
    %5041 = vmatpush1.msra.mxu0 0.0
    %5042 = vmatprep.subr.mxu0 0.0
    %5043 = vmatpush1.msra.mxu0 0.0
    %5044 = vmatprep.subr.mxu0 0.0
    %5045 = vmatpush1.msra.mxu0 0.0
    %5046 = vmatprep.subr.mxu0 0.0
    %5047 = vmatpush1.msra.mxu0 0.0
    %5048 = vmatprep.subr.mxu0 0.0
    %5049 = vmatpush1.msra.mxu0 0.0
    %5050 = vmatprep.subr.mxu0 0.0
    %5051 = vmatpush1.msra.mxu0 0.0
    %5052 = vmatprep.subr.mxu0 0.0
    %5053 = vmatpush1.msra.mxu0 0.0
    %5054 = vmatprep.subr.mxu0 0.0
    %5055 = vmatpush1.msra.mxu0 0.0
    %5056 = vmatprep.subr.mxu0 0.0
    %5057 = vmatpush1.msra.mxu0 0.0
    %5058 = vmatprep.mubr.f32.mxu0 0.0
    %5059 = vmatmul.mubr.f32.gmra.mrb[0].mxu0 %v4992
    %v5060 = vpop.f32.mrb[0].mxu0
    %v5061 = vadd.f32 0.0, %v5060
    %v5062 = vpop.f32.mrb[0].mxu0
    %5063 = vdwg.mxu0
    %v5064 = vadd.f32 %v4904, %v5061
    %v5065 = vsel %vm4595, %v5064, 0.0
    %v5066 = vrot.slane %v5065, 4
    %v5067 = vadd.f32 %v5065, %v5066
    %v5068 = vrot.slane %v5067, 2
    %v5069 = vadd.f32 %v5067, %v5068
    %v5070 = vrot.slane %v5069, 1
    %v5071 = vadd.f32 %v5069, %v5070
    %v5072 = vld [vmem:[%s67] sm:$0xff]
    %v5073 = vld [vmem:[%s67 + $0x8] sm:$0xff]
    %v5074 = vld [vmem:[%s67 + $0x10] sm:$0xff]
    %v5075 = vld [vmem:[%s67 + $0x18] sm:$0xff]
    %v5076 = vld [vmem:[%s67 + $0x20] sm:$0xff]
    %v5077 = vld [vmem:[%s67 + $0x28] sm:$0xff]
    %v5078 = vld [vmem:[%s67 + $0x30] sm:$0xff]
    %v5079 = vld [vmem:[%s67 + $0x38] sm:$0xff]
    %v5080 = vld [vmem:[%s67 + $0x40] sm:$0xff]
    %v5081 = vld [vmem:[%s67 + $0x48] sm:$0xff]
    %v5082 = vld [vmem:[%s67 + $0x50] sm:$0xff]
    %v5083 = vld [vmem:[%s67 + $0x58] sm:$0xff]
    %v5084 = vld [vmem:[%s67 + $0x60] sm:$0xff]
    %v5085 = vld [vmem:[%s67 + $0x68] sm:$0xff]
    %v5086 = vld [vmem:[%s67 + $0x70] sm:$0xff]
    %v5087 = vld [vmem:[%s67 + $0x78] sm:$0xff]
    %5088 = vmatprep.subr.mxu0 0.0
    %5089 = vmatpush1.msra.mxu0 %v5072
    %5090 = vmatprep.subr.mxu0 0.0
    %5091 = vmatpush1.msra.mxu0 %v5073
    %5092 = vmatprep.subr.mxu0 0.0
    %5093 = vmatpush1.msra.mxu0 %v5074
    %5094 = vmatprep.subr.mxu0 0.0
    %5095 = vmatpush1.msra.mxu0 %v5075
    %5096 = vmatprep.subr.mxu0 0.0
    %5097 = vmatpush1.msra.mxu0 %v5076
    %5098 = vmatprep.subr.mxu0 0.0
    %5099 = vmatpush1.msra.mxu0 %v5077
    %5100 = vmatprep.subr.mxu0 0.0
    %5101 = vmatpush1.msra.mxu0 %v5078
    %5102 = vmatprep.subr.mxu0 0.0
    %5103 = vmatpush1.msra.mxu0 %v5079
    %5104 = vmatprep.subr.mxu0 0.0
    %5105 = vmatpush1.msra.mxu0 %v5080
    %5106 = vmatprep.subr.mxu0 0.0
    %5107 = vmatpush1.msra.mxu0 %v5081
    %5108 = vmatprep.subr.mxu0 0.0
    %5109 = vmatpush1.msra.mxu0 %v5082
    %5110 = vmatprep.subr.mxu0 0.0
    %5111 = vmatpush1.msra.mxu0 %v5083
    %5112 = vmatprep.subr.mxu0 0.0
    %5113 = vmatpush1.msra.mxu0 %v5084
    %5114 = vmatprep.subr.mxu0 0.0
    %5115 = vmatpush1.msra.mxu0 %v5085
    %5116 = vmatprep.subr.mxu0 0.0
    %5117 = vmatpush1.msra.mxu0 %v5086
    %5118 = vmatprep.subr.mxu0 0.0
    %5119 = vmatpush1.msra.mxu0 %v5087
    %5120 = vmatprep.subr.mxu0 0.0
    %5121 = vmatpush1.msra.mxu0 0.0
    %5122 = vmatprep.subr.mxu0 0.0
    %5123 = vmatpush1.msra.mxu0 0.0
    %5124 = vmatprep.subr.mxu0 0.0
    %5125 = vmatpush1.msra.mxu0 0.0
    %5126 = vmatprep.subr.mxu0 0.0
    %5127 = vmatpush1.msra.mxu0 0.0
    %5128 = vmatprep.subr.mxu0 0.0
    %5129 = vmatpush1.msra.mxu0 0.0
    %5130 = vmatprep.subr.mxu0 0.0
    %5131 = vmatpush1.msra.mxu0 0.0
    %5132 = vmatprep.subr.mxu0 0.0
    %5133 = vmatpush1.msra.mxu0 0.0
    %5134 = vmatprep.subr.mxu0 0.0
    %5135 = vmatpush1.msra.mxu0 0.0
    %5136 = vmatprep.subr.mxu0 0.0
    %5137 = vmatpush1.msra.mxu0 0.0
    %5138 = vmatprep.subr.mxu0 0.0
    %5139 = vmatpush1.msra.mxu0 0.0
    %5140 = vmatprep.subr.mxu0 0.0
    %5141 = vmatpush1.msra.mxu0 0.0
    %5142 = vmatprep.subr.mxu0 0.0
    %5143 = vmatpush1.msra.mxu0 0.0
    %5144 = vmatprep.subr.mxu0 0.0
    %5145 = vmatpush1.msra.mxu0 0.0
    %5146 = vmatprep.subr.mxu0 0.0
    %5147 = vmatpush1.msra.mxu0 0.0
    %5148 = vmatprep.subr.mxu0 0.0
    %5149 = vmatpush1.msra.mxu0 0.0
    %5150 = vmatprep.subr.mxu0 0.0
    %5151 = vmatpush1.msra.mxu0 0.0
    %5152 = vmatprep.mubr.f32.mxu0 0.0
    %5153 = vmatmul.mubr.f32.gmra.mrb[0].mxu0 %v5071
    %v5154 = vpop.f32.mrb[0].mxu0
    %v5155 = vadd.f32 0.0, %v5154
    %v5156 = vpop.f32.mrb[0].mxu0
    %5157 = vdwg.mxu0
    %v5158 = vmul.f32 %v5064, %v5064
    %v5159 = vsel %vm4595, %v5158, 0.0
    %v5160 = vrot.slane %v5159, 4
    %v5161 = vadd.f32 %v5159, %v5160
    %v5162 = vrot.slane %v5161, 2
    %v5163 = vadd.f32 %v5161, %v5162
    %v5164 = vrot.slane %v5163, 1
    %v5165 = vadd.f32 %v5163, %v5164
    %5166 = vmatprep.subr.mxu0 0.0
    %5167 = vmatpush1.msra.mxu0 %v5072
    %5168 = vmatprep.subr.mxu0 0.0
    %5169 = vmatpush1.msra.mxu0 %v5073
    %5170 = vmatprep.subr.mxu0 0.0
    %5171 = vmatpush1.msra.mxu0 %v5074
    %5172 = vmatprep.subr.mxu0 0.0
    %5173 = vmatpush1.msra.mxu0 %v5075
    %5174 = vmatprep.subr.mxu0 0.0
    %5175 = vmatpush1.msra.mxu0 %v5076
    %5176 = vmatprep.subr.mxu0 0.0
    %5177 = vmatpush1.msra.mxu0 %v5077
    %5178 = vmatprep.subr.mxu0 0.0
    %5179 = vmatpush1.msra.mxu0 %v5078
    %5180 = vmatprep.subr.mxu0 0.0
    %5181 = vmatpush1.msra.mxu0 %v5079
    %5182 = vmatprep.subr.mxu0 0.0
    %5183 = vmatpush1.msra.mxu0 %v5080
    %5184 = vmatprep.subr.mxu0 0.0
    %5185 = vmatpush1.msra.mxu0 %v5081
    %5186 = vmatprep.subr.mxu0 0.0
    %5187 = vmatpush1.msra.mxu0 %v5082
    %5188 = vmatprep.subr.mxu0 0.0
    %5189 = vmatpush1.msra.mxu0 %v5083
    %5190 = vmatprep.subr.mxu0 0.0
    %5191 = vmatpush1.msra.mxu0 %v5084
    %5192 = vmatprep.subr.mxu0 0.0
    %5193 = vmatpush1.msra.mxu0 %v5085
    %5194 = vmatprep.subr.mxu0 0.0
    %5195 = vmatpush1.msra.mxu0 %v5086
    %5196 = vmatprep.subr.mxu0 0.0
    %5197 = vmatpush1.msra.mxu0 %v5087
    %5198 = vmatprep.subr.mxu0 0.0
    %5199 = vmatpush1.msra.mxu0 0.0
    %5200 = vmatprep.subr.mxu0 0.0
    %5201 = vmatpush1.msra.mxu0 0.0
    %5202 = vmatprep.subr.mxu0 0.0
    %5203 = vmatpush1.msra.mxu0 0.0
    %5204 = vmatprep.subr.mxu0 0.0
    %5205 = vmatpush1.msra.mxu0 0.0
    %5206 = vmatprep.subr.mxu0 0.0
    %5207 = vmatpush1.msra.mxu0 0.0
    %5208 = vmatprep.subr.mxu0 0.0
    %5209 = vmatpush1.msra.mxu0 0.0
    %5210 = vmatprep.subr.mxu0 0.0
    %5211 = vmatpush1.msra.mxu0 0.0
    %5212 = vmatprep.subr.mxu0 0.0
    %5213 = vmatpush1.msra.mxu0 0.0
    %5214 = vmatprep.subr.mxu0 0.0
    %5215 = vmatpush1.msra.mxu0 0.0
    %5216 = vmatprep.subr.mxu0 0.0
    %5217 = vmatpush1.msra.mxu0 0.0
    %5218 = vmatprep.subr.mxu0 0.0
    %5219 = vmatpush1.msra.mxu0 0.0
    %5220 = vmatprep.subr.mxu0 0.0
    %5221 = vmatpush1.msra.mxu0 0.0
    %5222 = vmatprep.subr.mxu0 0.0
    %5223 = vmatpush1.msra.mxu0 0.0
    %5224 = vmatprep.subr.mxu0 0.0
    %5225 = vmatpush1.msra.mxu0 0.0
    %5226 = vmatprep.subr.mxu0 0.0
    %5227 = vmatpush1.msra.mxu0 0.0
    %5228 = vmatprep.subr.mxu0 0.0
    %5229 = vmatpush1.msra.mxu0 0.0
    %5230 = vmatprep.mubr.f32.mxu0 0.0
    %5231 = vmatmul.mubr.f32.gmra.mrb[0].mxu0 %v5165
    %v5232 = vpop.f32.mrb[0].mxu0
    %v5233 = vadd.f32 0.0, %v5232
    %v5234 = vpop.f32.mrb[0].mxu0
    %5235 = vdwg.mxu0
    %v5236 = vmul.f32 %v5155, %v5155
    %v5237 = vsub.f32 %v5233, %v5236
    %v5238 = vmax.f32 %v5237, 0.0
    %v5239 = vld [vmem:[%s69] sm:$0x1]
    %v5240 = vadd.f32 %v5238, 1e-05
    %v5241 = vrsqrt.pop %v5240
    %v5242 = vmul.f32 %v5239, %v5241
    %v5243 = vld [vmem:[%s71] sm:$0x1]
    %v5244 = vmul.f32 %v5155, %v5242
    %v5245 = vsub.f32 %v5243, %v5244
    %v5247 = vlaneseq
    %v5248 = vshrl.u32 %v5247, 7
    %v5249 = vsub.s32 0, %v5248
    %v5250 = vrot.slane %v5242, %v5249
    %v5252 = vmul.f32 %v5064, %v5250
    %v5254 = vlaneseq
    %v5255 = vshrl.u32 %v5254, 7
    %v5256 = vsub.s32 0, %v5255
    %v5257 = vrot.slane %v5245, %v5256
    %v5259 = vadd.f32 %v5252, %v5257
    %v5260 = vmax.f32 %v5259, 0.0
    %v5261 = vld [vmem:[%s73] sm:$0x3]
    %v5263 = vsel %vm4591, %v5261, 0
    %v5266 = vsel %vm4595, %v5260, 0
    %5268 = vmatprep.subr.mxu0 0.0
    %5269 = vmatpush1.msra.mxu0 %v5266
    %5270 = vmatprep.subr.mxu0 0.0
    %5271 = vmatpush1.msra.mxu0 0.0
    %5272 = vmatprep.subr.mxu0 0.0
    %5273 = vmatpush1.msra.mxu0 0.0
    %5274 = vmatprep.subr.mxu0 0.0
    %5275 = vmatpush1.msra.mxu0 0.0
    %5276 = vmatprep.subr.mxu0 0.0
    %5277 = vmatpush1.msra.mxu0 0.0
    %5278 = vmatprep.subr.mxu0 0.0
    %5279 = vmatpush1.msra.mxu0 0.0
    %5280 = vmatprep.subr.mxu0 0.0
    %5281 = vmatpush1.msra.mxu0 0.0
    %5282 = vmatprep.subr.mxu0 0.0
    %5283 = vmatpush1.msra.mxu0 0.0
    %5284 = vmatprep.subr.mxu0 0.0
    %5285 = vmatpush1.msra.mxu0 0.0
    %5286 = vmatprep.subr.mxu0 0.0
    %5287 = vmatpush1.msra.mxu0 0.0
    %5288 = vmatprep.subr.mxu0 0.0
    %5289 = vmatpush1.msra.mxu0 0.0
    %5290 = vmatprep.subr.mxu0 0.0
    %5291 = vmatpush1.msra.mxu0 0.0
    %5292 = vmatprep.subr.mxu0 0.0
    %5293 = vmatpush1.msra.mxu0 0.0
    %5294 = vmatprep.subr.mxu0 0.0
    %5295 = vmatpush1.msra.mxu0 0.0
    %5296 = vmatprep.subr.mxu0 0.0
    %5297 = vmatpush1.msra.mxu0 0.0
    %5298 = vmatprep.subr.mxu0 0.0
    %5299 = vmatpush1.msra.mxu0 0.0
    %5300 = vmatprep.subr.mxu0 0.0
    %5301 = vmatpush1.msra.mxu0 0.0
    %5302 = vmatprep.subr.mxu0 0.0
    %5303 = vmatpush1.msra.mxu0 0.0
    %5304 = vmatprep.subr.mxu0 0.0
    %5305 = vmatpush1.msra.mxu0 0.0
    %5306 = vmatprep.subr.mxu0 0.0
    %5307 = vmatpush1.msra.mxu0 0.0
    %5308 = vmatprep.subr.mxu0 0.0
    %5309 = vmatpush1.msra.mxu0 0.0
    %5310 = vmatprep.subr.mxu0 0.0
    %5311 = vmatpush1.msra.mxu0 0.0
    %5312 = vmatprep.subr.mxu0 0.0
    %5313 = vmatpush1.msra.mxu0 0.0
    %5314 = vmatprep.subr.mxu0 0.0
    %5315 = vmatpush1.msra.mxu0 0.0
    %5316 = vmatprep.subr.mxu0 0.0
    %5317 = vmatpush1.msra.mxu0 0.0
    %5318 = vmatprep.subr.mxu0 0.0
    %5319 = vmatpush1.msra.mxu0 0.0
    %5320 = vmatprep.subr.mxu0 0.0
    %5321 = vmatpush1.msra.mxu0 0.0
    %5322 = vmatprep.subr.mxu0 0.0
    %5323 = vmatpush1.msra.mxu0 0.0
    %5324 = vmatprep.subr.mxu0 0.0
    %5325 = vmatpush1.msra.mxu0 0.0
    %5326 = vmatprep.subr.mxu0 0.0
    %5327 = vmatpush1.msra.mxu0 0.0
    %5328 = vmatprep.subr.mxu0 0.0
    %5329 = vmatpush1.msra.mxu0 0.0
    %5330 = vmatprep.subr.mxu0 0.0
    %5331 = vmatpush1.msra.mxu0 0.0
    %5332 = vmatprep.mubr.f32.mxu0 0.0
    %5333 = vmatmul.mubr.f32.gmra.mrb[0].mxu0 %v5263
    %v5334 = vpop.f32.mrb[0].mxu0
    %v5335 = vadd.f32 0.0, %v5334
    %v5336 = vpop.f32.mrb[0].mxu0
    %5337 = vdwg.mxu0
    %v5338 = vld [vmem:[%s75] sm:$0xff]
    %v5339 = vld [vmem:[%s75 + $0x8] sm:$0xff]
    %v5340 = vld [vmem:[%s75 + $0x10] sm:$0xff]
    %v5341 = vld [vmem:[%s75 + $0x18] sm:$0xff]
    %v5342 = vld [vmem:[%s75 + $0x20] sm:$0xff]
    %v5343 = vld [vmem:[%s75 + $0x28] sm:$0xff]
    %v5344 = vld [vmem:[%s75 + $0x30] sm:$0xff]
    %v5345 = vld [vmem:[%s75 + $0x38] sm:$0xff]
    %v5346 = vld [vmem:[%s75 + $0x40] sm:$0xff]
    %v5347 = vld [vmem:[%s75 + $0x48] sm:$0xff]
    %v5348 = vld [vmem:[%s75 + $0x50] sm:$0xff]
    %v5349 = vld [vmem:[%s75 + $0x58] sm:$0xff]
    %v5350 = vld [vmem:[%s75 + $0x60] sm:$0xff]
    %v5351 = vld [vmem:[%s75 + $0x68] sm:$0xff]
    %v5352 = vld [vmem:[%s75 + $0x70] sm:$0xff]
    %v5353 = vld [vmem:[%s75 + $0x78] sm:$0xff]
    %s5354 = scalar_lea.vmem %s73, 2
    %v5355 = vld [vmem:[%s5354] sm:$0x3]
    %v5357 = vsel %vm4591, %v5355, 0
    %5359 = vmatprep.subr.mxu0 0.0
    %5360 = vmatpush1.msra.mxu0 %v5266
    %5361 = vmatprep.subr.mxu0 0.0
    %5362 = vmatpush1.msra.mxu0 0.0
    %5363 = vmatprep.subr.mxu0 0.0
    %5364 = vmatpush1.msra.mxu0 0.0
    %5365 = vmatprep.subr.mxu0 0.0
    %5366 = vmatpush1.msra.mxu0 0.0
    %5367 = vmatprep.subr.mxu0 0.0
    %5368 = vmatpush1.msra.mxu0 0.0
    %5369 = vmatprep.subr.mxu0 0.0
    %5370 = vmatpush1.msra.mxu0 0.0
    %5371 = vmatprep.subr.mxu0 0.0
    %5372 = vmatpush1.msra.mxu0 0.0
    %5373 = vmatprep.subr.mxu0 0.0
    %5374 = vmatpush1.msra.mxu0 0.0
    %5375 = vmatprep.subr.mxu0 0.0
    %5376 = vmatpush1.msra.mxu0 0.0
    %5377 = vmatprep.subr.mxu0 0.0
    %5378 = vmatpush1.msra.mxu0 0.0
    %5379 = vmatprep.subr.mxu0 0.0
    %5380 = vmatpush1.msra.mxu0 0.0
    %5381 = vmatprep.subr.mxu0 0.0
    %5382 = vmatpush1.msra.mxu0 0.0
    %5383 = vmatprep.subr.mxu0 0.0
    %5384 = vmatpush1.msra.mxu0 0.0
    %5385 = vmatprep.subr.mxu0 0.0
    %5386 = vmatpush1.msra.mxu0 0.0
    %5387 = vmatprep.subr.mxu0 0.0
    %5388 = vmatpush1.msra.mxu0 0.0
    %5389 = vmatprep.subr.mxu0 0.0
    %5390 = vmatpush1.msra.mxu0 0.0
    %5391 = vmatprep.subr.mxu0 0.0
    %5392 = vmatpush1.msra.mxu0 0.0
    %5393 = vmatprep.subr.mxu0 0.0
    %5394 = vmatpush1.msra.mxu0 0.0
    %5395 = vmatprep.subr.mxu0 0.0
    %5396 = vmatpush1.msra.mxu0 0.0
    %5397 = vmatprep.subr.mxu0 0.0
    %5398 = vmatpush1.msra.mxu0 0.0
    %5399 = vmatprep.subr.mxu0 0.0
    %5400 = vmatpush1.msra.mxu0 0.0
    %5401 = vmatprep.subr.mxu0 0.0
    %5402 = vmatpush1.msra.mxu0 0.0
    %5403 = vmatprep.subr.mxu0 0.0
    %5404 = vmatpush1.msra.mxu0 0.0
    %5405 = vmatprep.subr.mxu0 0.0
    %5406 = vmatpush1.msra.mxu0 0.0
    %5407 = vmatprep.subr.mxu0 0.0
    %5408 = vmatpush1.msra.mxu0 0.0
    %5409 = vmatprep.subr.mxu0 0.0
    %5410 = vmatpush1.msra.mxu0 0.0
    %5411 = vmatprep.subr.mxu0 0.0
    %5412 = vmatpush1.msra.mxu0 0.0
    %5413 = vmatprep.subr.mxu0 0.0
    %5414 = vmatpush1.msra.mxu0 0.0
    %5415 = vmatprep.subr.mxu0 0.0
    %5416 = vmatpush1.msra.mxu0 0.0
    %5417 = vmatprep.subr.mxu0 0.0
    %5418 = vmatpush1.msra.mxu0 0.0
    %5419 = vmatprep.subr.mxu0 0.0
    %5420 = vmatpush1.msra.mxu0 0.0
    %5421 = vmatprep.subr.mxu0 0.0
    %5422 = vmatpush1.msra.mxu0 0.0
    %5423 = vmatprep.mubr.f32.mxu0 0.0
    %5424 = vmatmul.mubr.f32.gmra.mrb[0].mxu0 %v5357
    %v5425 = vpop.f32.mrb[0].mxu0
    %v5426 = vadd.f32 0.0, %v5425
    %v5427 = vpop.f32.mrb[0].mxu0
    %5428 = vdwg.mxu0
    %s5429 = scalar_lea.vmem %s75, 128
    %v5430 = vld [vmem:[%s5429] sm:$0xff]
    %v5431 = vld [vmem:[%s5429 + $0x8] sm:$0xff]
    %v5432 = vld [vmem:[%s5429 + $0x10] sm:$0xff]
    %v5433 = vld [vmem:[%s5429 + $0x18] sm:$0xff]
    %v5434 = vld [vmem:[%s5429 + $0x20] sm:$0xff]
    %v5435 = vld [vmem:[%s5429 + $0x28] sm:$0xff]
    %v5436 = vld [vmem:[%s5429 + $0x30] sm:$0xff]
    %v5437 = vld [vmem:[%s5429 + $0x38] sm:$0xff]
    %v5438 = vld [vmem:[%s5429 + $0x40] sm:$0xff]
    %v5439 = vld [vmem:[%s5429 + $0x48] sm:$0xff]
    %v5440 = vld [vmem:[%s5429 + $0x50] sm:$0xff]
    %v5441 = vld [vmem:[%s5429 + $0x58] sm:$0xff]
    %v5442 = vld [vmem:[%s5429 + $0x60] sm:$0xff]
    %v5443 = vld [vmem:[%s5429 + $0x68] sm:$0xff]
    %v5444 = vld [vmem:[%s5429 + $0x70] sm:$0xff]
    %v5445 = vld [vmem:[%s5429 + $0x78] sm:$0xff]
    %5446 = vmatprep.subr.mxu0 0.0
    %5447 = vmatpush1.msra.mxu0 %v5430
    %5448 = vmatprep.subr.mxu0 0.0
    %5449 = vmatpush1.msra.mxu0 %v5431
    %5450 = vmatprep.subr.mxu0 0.0
    %5451 = vmatpush1.msra.mxu0 %v5432
    %5452 = vmatprep.subr.mxu0 0.0
    %5453 = vmatpush1.msra.mxu0 %v5433
    %5454 = vmatprep.subr.mxu0 0.0
    %5455 = vmatpush1.msra.mxu0 %v5434
    %5456 = vmatprep.subr.mxu0 0.0
    %5457 = vmatpush1.msra.mxu0 %v5435
    %5458 = vmatprep.subr.mxu0 0.0
    %5459 = vmatpush1.msra.mxu0 %v5436
    %5460 = vmatprep.subr.mxu0 0.0
    %5461 = vmatpush1.msra.mxu0 %v5437
    %5462 = vmatprep.subr.mxu0 0.0
    %5463 = vmatpush1.msra.mxu0 %v5438
    %5464 = vmatprep.subr.mxu0 0.0
    %5465 = vmatpush1.msra.mxu0 %v5439
    %5466 = vmatprep.subr.mxu0 0.0
    %5467 = vmatpush1.msra.mxu0 %v5440
    %5468 = vmatprep.subr.mxu0 0.0
    %5469 = vmatpush1.msra.mxu0 %v5441
    %5470 = vmatprep.subr.mxu0 0.0
    %5471 = vmatpush1.msra.mxu0 %v5442
    %5472 = vmatprep.subr.mxu0 0.0
    %5473 = vmatpush1.msra.mxu0 %v5443
    %5474 = vmatprep.subr.mxu0 0.0
    %5475 = vmatpush1.msra.mxu0 %v5444
    %5476 = vmatprep.subr.mxu0 0.0
    %5477 = vmatpush1.msra.mxu0 %v5445
    %5478 = vmatprep.subr.mxu0 0.0
    %5479 = vmatpush1.msra.mxu0 0.0
    %5480 = vmatprep.subr.mxu0 0.0
    %5481 = vmatpush1.msra.mxu0 0.0
    %5482 = vmatprep.subr.mxu0 0.0
    %5483 = vmatpush1.msra.mxu0 0.0
    %5484 = vmatprep.subr.mxu0 0.0
    %5485 = vmatpush1.msra.mxu0 0.0
    %5486 = vmatprep.subr.mxu0 0.0
    %5487 = vmatpush1.msra.mxu0 0.0
    %5488 = vmatprep.subr.mxu0 0.0
    %5489 = vmatpush1.msra.mxu0 0.0
    %5490 = vmatprep.subr.mxu0 0.0
    %5491 = vmatpush1.msra.mxu0 0.0
    %5492 = vmatprep.subr.mxu0 0.0
    %5493 = vmatpush1.msra.mxu0 0.0
    %5494 = vmatprep.subr.mxu0 0.0
    %5495 = vmatpush1.msra.mxu0 0.0
    %5496 = vmatprep.subr.mxu0 0.0
    %5497 = vmatpush1.msra.mxu0 0.0
    %5498 = vmatprep.subr.mxu0 0.0
    %5499 = vmatpush1.msra.mxu0 0.0
    %5500 = vmatprep.subr.mxu0 0.0
    %5501 = vmatpush1.msra.mxu0 0.0
    %5502 = vmatprep.subr.mxu0 0.0
    %5503 = vmatpush1.msra.mxu0 0.0
    %5504 = vmatprep.subr.mxu0 0.0
    %5505 = vmatpush1.msra.mxu0 0.0
    %5506 = vmatprep.subr.mxu0 0.0
    %5507 = vmatpush1.msra.mxu0 0.0
    %5508 = vmatprep.subr.mxu0 0.0
    %5509 = vmatpush1.msra.mxu0 0.0
    %5510 = vmatprep.mubr.f32.mxu0 0.0
    %5511 = vmatmul.mubr.f32.gmra.mrb[0].mxu0 %v5426
    %v5512 = vpop.f32.mrb[0].mxu0
    %v5513 = vadd.f32 0.0, %v5512
    %v5514 = vpop.f32.mrb[0].mxu0
    %5515 = vdwg.mxu0
    %5516 = vmatprep.subr.mxu0 0.0
    %5517 = vmatpush1.msra.mxu0 %v5338
    %5518 = vmatprep.subr.mxu0 0.0
    %5519 = vmatpush1.msra.mxu0 %v5339
    %5520 = vmatprep.subr.mxu0 0.0
    %5521 = vmatpush1.msra.mxu0 %v5340
    %5522 = vmatprep.subr.mxu0 0.0
    %5523 = vmatpush1.msra.mxu0 %v5341
    %5524 = vmatprep.subr.mxu0 0.0
    %5525 = vmatpush1.msra.mxu0 %v5342
    %5526 = vmatprep.subr.mxu0 0.0
    %5527 = vmatpush1.msra.mxu0 %v5343
    %5528 = vmatprep.subr.mxu0 0.0
    %5529 = vmatpush1.msra.mxu0 %v5344
    %5530 = vmatprep.subr.mxu0 0.0
    %5531 = vmatpush1.msra.mxu0 %v5345
    %5532 = vmatprep.subr.mxu0 0.0
    %5533 = vmatpush1.msra.mxu0 %v5346
    %5534 = vmatprep.subr.mxu0 0.0
    %5535 = vmatpush1.msra.mxu0 %v5347
    %5536 = vmatprep.subr.mxu0 0.0
    %5537 = vmatpush1.msra.mxu0 %v5348
    %5538 = vmatprep.subr.mxu0 0.0
    %5539 = vmatpush1.msra.mxu0 %v5349
    %5540 = vmatprep.subr.mxu0 0.0
    %5541 = vmatpush1.msra.mxu0 %v5350
    %5542 = vmatprep.subr.mxu0 0.0
    %5543 = vmatpush1.msra.mxu0 %v5351
    %5544 = vmatprep.subr.mxu0 0.0
    %5545 = vmatpush1.msra.mxu0 %v5352
    %5546 = vmatprep.subr.mxu0 0.0
    %5547 = vmatpush1.msra.mxu0 %v5353
    %5548 = vmatprep.subr.mxu0 0.0
    %5549 = vmatpush1.msra.mxu0 0.0
    %5550 = vmatprep.subr.mxu0 0.0
    %5551 = vmatpush1.msra.mxu0 0.0
    %5552 = vmatprep.subr.mxu0 0.0
    %5553 = vmatpush1.msra.mxu0 0.0
    %5554 = vmatprep.subr.mxu0 0.0
    %5555 = vmatpush1.msra.mxu0 0.0
    %5556 = vmatprep.subr.mxu0 0.0
    %5557 = vmatpush1.msra.mxu0 0.0
    %5558 = vmatprep.subr.mxu0 0.0
    %5559 = vmatpush1.msra.mxu0 0.0
    %5560 = vmatprep.subr.mxu0 0.0
    %5561 = vmatpush1.msra.mxu0 0.0
    %5562 = vmatprep.subr.mxu0 0.0
    %5563 = vmatpush1.msra.mxu0 0.0
    %5564 = vmatprep.subr.mxu0 0.0
    %5565 = vmatpush1.msra.mxu0 0.0
    %5566 = vmatprep.subr.mxu0 0.0
    %5567 = vmatpush1.msra.mxu0 0.0
    %5568 = vmatprep.subr.mxu0 0.0
    %5569 = vmatpush1.msra.mxu0 0.0
    %5570 = vmatprep.subr.mxu0 0.0
    %5571 = vmatpush1.msra.mxu0 0.0
    %5572 = vmatprep.subr.mxu0 0.0
    %5573 = vmatpush1.msra.mxu0 0.0
    %5574 = vmatprep.subr.mxu0 0.0
    %5575 = vmatpush1.msra.mxu0 0.0
    %5576 = vmatprep.subr.mxu0 0.0
    %5577 = vmatpush1.msra.mxu0 0.0
    %5578 = vmatprep.subr.mxu0 0.0
    %5579 = vmatpush1.msra.mxu0 0.0
    %5580 = vmatprep.mubr.f32.mxu0 0.0
    %5581 = vmatmul.mubr.f32.gmra.mrb[0].mxu0 %v5335
    %v5582 = vpop.f32.mrb[0].mxu0
    %v5583 = vadd.f32 %v5513, %v5582
    %v5584 = vpop.f32.mrb[0].mxu0
    %5585 = vdwg.mxu0
    %s5586 = scalar_lea.vmem %s73, 4
    %v5587 = vld [vmem:[%s5586] sm:$0x3]
    %v5589 = vsel %vm4591, %v5587, 0
    %5591 = vmatprep.subr.mxu0 0.0
    %5592 = vmatpush1.msra.mxu0 %v5266
    %5593 = vmatprep.subr.mxu0 0.0
    %5594 = vmatpush1.msra.mxu0 0.0
    %5595 = vmatprep.subr.mxu0 0.0
    %5596 = vmatpush1.msra.mxu0 0.0
    %5597 = vmatprep.subr.mxu0 0.0
    %5598 = vmatpush1.msra.mxu0 0.0
    %5599 = vmatprep.subr.mxu0 0.0
    %5600 = vmatpush1.msra.mxu0 0.0
    %5601 = vmatprep.subr.mxu0 0.0
    %5602 = vmatpush1.msra.mxu0 0.0
    %5603 = vmatprep.subr.mxu0 0.0
    %5604 = vmatpush1.msra.mxu0 0.0
    %5605 = vmatprep.subr.mxu0 0.0
    %5606 = vmatpush1.msra.mxu0 0.0
    %5607 = vmatprep.subr.mxu0 0.0
    %5608 = vmatpush1.msra.mxu0 0.0
    %5609 = vmatprep.subr.mxu0 0.0
    %5610 = vmatpush1.msra.mxu0 0.0
    %5611 = vmatprep.subr.mxu0 0.0
    %5612 = vmatpush1.msra.mxu0 0.0
    %5613 = vmatprep.subr.mxu0 0.0
    %5614 = vmatpush1.msra.mxu0 0.0
    %5615 = vmatprep.subr.mxu0 0.0
    %5616 = vmatpush1.msra.mxu0 0.0
    %5617 = vmatprep.subr.mxu0 0.0
    %5618 = vmatpush1.msra.mxu0 0.0
    %5619 = vmatprep.subr.mxu0 0.0
    %5620 = vmatpush1.msra.mxu0 0.0
    %5621 = vmatprep.subr.mxu0 0.0
    %5622 = vmatpush1.msra.mxu0 0.0
    %5623 = vmatprep.subr.mxu0 0.0
    %5624 = vmatpush1.msra.mxu0 0.0
    %5625 = vmatprep.subr.mxu0 0.0
    %5626 = vmatpush1.msra.mxu0 0.0
    %5627 = vmatprep.subr.mxu0 0.0
    %5628 = vmatpush1.msra.mxu0 0.0
    %5629 = vmatprep.subr.mxu0 0.0
    %5630 = vmatpush1.msra.mxu0 0.0
    %5631 = vmatprep.subr.mxu0 0.0
    %5632 = vmatpush1.msra.mxu0 0.0
    %5633 = vmatprep.subr.mxu0 0.0
    %5634 = vmatpush1.msra.mxu0 0.0
    %5635 = vmatprep.subr.mxu0 0.0
    %5636 = vmatpush1.msra.mxu0 0.0
    %5637 = vmatprep.subr.mxu0 0.0
    %5638 = vmatpush1.msra.mxu0 0.0
    %5639 = vmatprep.subr.mxu0 0.0
    %5640 = vmatpush1.msra.mxu0 0.0
    %5641 = vmatprep.subr.mxu0 0.0
    %5642 = vmatpush1.msra.mxu0 0.0
    %5643 = vmatprep.subr.mxu0 0.0
    %5644 = vmatpush1.msra.mxu0 0.0
    %5645 = vmatprep.subr.mxu0 0.0
    %5646 = vmatpush1.msra.mxu0 0.0
    %5647 = vmatprep.subr.mxu0 0.0
    %5648 = vmatpush1.msra.mxu0 0.0
    %5649 = vmatprep.subr.mxu0 0.0
    %5650 = vmatpush1.msra.mxu0 0.0
    %5651 = vmatprep.subr.mxu0 0.0
    %5652 = vmatpush1.msra.mxu0 0.0
    %5653 = vmatprep.subr.mxu0 0.0
    %5654 = vmatpush1.msra.mxu0 0.0
    %5655 = vmatprep.mubr.f32.mxu0 0.0
    %5656 = vmatmul.mubr.f32.gmra.mrb[0].mxu0 %v5589
    %v5657 = vpop.f32.mrb[0].mxu0
    %v5658 = vadd.f32 0.0, %v5657
    %v5659 = vpop.f32.mrb[0].mxu0
    %5660 = vdwg.mxu0
    %s5661 = scalar_lea.vmem %s75, 256
    %v5662 = vld [vmem:[%s5661] sm:$0xff]
    %v5663 = vld [vmem:[%s5661 + $0x8] sm:$0xff]
    %v5664 = vld [vmem:[%s5661 + $0x10] sm:$0xff]
    %v5665 = vld [vmem:[%s5661 + $0x18] sm:$0xff]
    %v5666 = vld [vmem:[%s5661 + $0x20] sm:$0xff]
    %v5667 = vld [vmem:[%s5661 + $0x28] sm:$0xff]
    %v5668 = vld [vmem:[%s5661 + $0x30] sm:$0xff]
    %v5669 = vld [vmem:[%s5661 + $0x38] sm:$0xff]
    %v5670 = vld [vmem:[%s5661 + $0x40] sm:$0xff]
    %v5671 = vld [vmem:[%s5661 + $0x48] sm:$0xff]
    %v5672 = vld [vmem:[%s5661 + $0x50] sm:$0xff]
    %v5673 = vld [vmem:[%s5661 + $0x58] sm:$0xff]
    %v5674 = vld [vmem:[%s5661 + $0x60] sm:$0xff]
    %v5675 = vld [vmem:[%s5661 + $0x68] sm:$0xff]
    %v5676 = vld [vmem:[%s5661 + $0x70] sm:$0xff]
    %v5677 = vld [vmem:[%s5661 + $0x78] sm:$0xff]
    %5678 = vmatprep.subr.mxu0 0.0
    %5679 = vmatpush1.msra.mxu0 %v5662
    %5680 = vmatprep.subr.mxu0 0.0
    %5681 = vmatpush1.msra.mxu0 %v5663
    %5682 = vmatprep.subr.mxu0 0.0
    %5683 = vmatpush1.msra.mxu0 %v5664
    %5684 = vmatprep.subr.mxu0 0.0
    %5685 = vmatpush1.msra.mxu0 %v5665
    %5686 = vmatprep.subr.mxu0 0.0
    %5687 = vmatpush1.msra.mxu0 %v5666
    %5688 = vmatprep.subr.mxu0 0.0
    %5689 = vmatpush1.msra.mxu0 %v5667
    %5690 = vmatprep.subr.mxu0 0.0
    %5691 = vmatpush1.msra.mxu0 %v5668
    %5692 = vmatprep.subr.mxu0 0.0
    %5693 = vmatpush1.msra.mxu0 %v5669
    %5694 = vmatprep.subr.mxu0 0.0
    %5695 = vmatpush1.msra.mxu0 %v5670
    %5696 = vmatprep.subr.mxu0 0.0
    %5697 = vmatpush1.msra.mxu0 %v5671
    %5698 = vmatprep.subr.mxu0 0.0
    %5699 = vmatpush1.msra.mxu0 %v5672
    %5700 = vmatprep.subr.mxu0 0.0
    %5701 = vmatpush1.msra.mxu0 %v5673
    %5702 = vmatprep.subr.mxu0 0.0
    %5703 = vmatpush1.msra.mxu0 %v5674
    %5704 = vmatprep.subr.mxu0 0.0
    %5705 = vmatpush1.msra.mxu0 %v5675
    %5706 = vmatprep.subr.mxu0 0.0
    %5707 = vmatpush1.msra.mxu0 %v5676
    %5708 = vmatprep.subr.mxu0 0.0
    %5709 = vmatpush1.msra.mxu0 %v5677
    %5710 = vmatprep.subr.mxu0 0.0
    %5711 = vmatpush1.msra.mxu0 0.0
    %5712 = vmatprep.subr.mxu0 0.0
    %5713 = vmatpush1.msra.mxu0 0.0
    %5714 = vmatprep.subr.mxu0 0.0
    %5715 = vmatpush1.msra.mxu0 0.0
    %5716 = vmatprep.subr.mxu0 0.0
    %5717 = vmatpush1.msra.mxu0 0.0
    %5718 = vmatprep.subr.mxu0 0.0
    %5719 = vmatpush1.msra.mxu0 0.0
    %5720 = vmatprep.subr.mxu0 0.0
    %5721 = vmatpush1.msra.mxu0 0.0
    %5722 = vmatprep.subr.mxu0 0.0
    %5723 = vmatpush1.msra.mxu0 0.0
    %5724 = vmatprep.subr.mxu0 0.0
    %5725 = vmatpush1.msra.mxu0 0.0
    %5726 = vmatprep.subr.mxu0 0.0
    %5727 = vmatpush1.msra.mxu0 0.0
    %5728 = vmatprep.subr.mxu0 0.0
    %5729 = vmatpush1.msra.mxu0 0.0
    %5730 = vmatprep.subr.mxu0 0.0
    %5731 = vmatpush1.msra.mxu0 0.0
    %5732 = vmatprep.subr.mxu0 0.0
    %5733 = vmatpush1.msra.mxu0 0.0
    %5734 = vmatprep.subr.mxu0 0.0
    %5735 = vmatpush1.msra.mxu0 0.0
    %5736 = vmatprep.subr.mxu0 0.0
    %5737 = vmatpush1.msra.mxu0 0.0
    %5738 = vmatprep.subr.mxu0 0.0
    %5739 = vmatpush1.msra.mxu0 0.0
    %5740 = vmatprep.subr.mxu0 0.0
    %5741 = vmatpush1.msra.mxu0 0.0
    %5742 = vmatprep.mubr.f32.mxu0 0.0
    %5743 = vmatmul.mubr.f32.gmra.mrb[0].mxu0 %v5658
    %v5744 = vpop.f32.mrb[0].mxu0
    %v5745 = vadd.f32 0.0, %v5744
    %v5746 = vpop.f32.mrb[0].mxu0
    %5747 = vdwg.mxu0
    %v5748 = vadd.f32 %v5583, %v5745
    %vm5749 = vcmask 517120
    %v5750 = vsel %vm5749, %v5748, 0.0
    %v5751 = vrot.slane %v5750, 4
    %v5752 = vadd.f32 %v5750, %v5751
    %v5753 = vrot.slane %v5752, 2
    %v5754 = vadd.f32 %v5752, %v5753
    %v5755 = vrot.slane %v5754, 1
    %v5756 = vadd.f32 %v5754, %v5755
    %v5757 = vld [vmem:[%s77] sm:$0xff]
    %v5758 = vld [vmem:[%s77 + $0x8] sm:$0xff]
    %v5759 = vld [vmem:[%s77 + $0x10] sm:$0xff]
    %v5760 = vld [vmem:[%s77 + $0x18] sm:$0xff]
    %v5761 = vld [vmem:[%s77 + $0x20] sm:$0xff]
    %v5762 = vld [vmem:[%s77 + $0x28] sm:$0xff]
    %v5763 = vld [vmem:[%s77 + $0x30] sm:$0xff]
    %v5764 = vld [vmem:[%s77 + $0x38] sm:$0xff]
    %v5766 = vsel %vm1640, %v5756, 0
    %5768 = vmatprep.subr.mxu0 0.0
    %5769 = vmatpush1.msra.mxu0 %v5757
    %5770 = vmatprep.subr.mxu0 0.0
    %5771 = vmatpush1.msra.mxu0 %v5758
    %5772 = vmatprep.subr.mxu0 0.0
    %5773 = vmatpush1.msra.mxu0 %v5759
    %5774 = vmatprep.subr.mxu0 0.0
    %5775 = vmatpush1.msra.mxu0 %v5760
    %5776 = vmatprep.subr.mxu0 0.0
    %5777 = vmatpush1.msra.mxu0 %v5761
    %5778 = vmatprep.subr.mxu0 0.0
    %5779 = vmatpush1.msra.mxu0 %v5762
    %5780 = vmatprep.subr.mxu0 0.0
    %5781 = vmatpush1.msra.mxu0 %v5763
    %5782 = vmatprep.subr.mxu0 0.0
    %5783 = vmatpush1.msra.mxu0 %v5764
    %5784 = vmatprep.subr.mxu0 0.0
    %5785 = vmatpush1.msra.mxu0 0.0
    %5786 = vmatprep.subr.mxu0 0.0
    %5787 = vmatpush1.msra.mxu0 0.0
    %5788 = vmatprep.subr.mxu0 0.0
    %5789 = vmatpush1.msra.mxu0 0.0
    %5790 = vmatprep.subr.mxu0 0.0
    %5791 = vmatpush1.msra.mxu0 0.0
    %5792 = vmatprep.subr.mxu0 0.0
    %5793 = vmatpush1.msra.mxu0 0.0
    %5794 = vmatprep.subr.mxu0 0.0
    %5795 = vmatpush1.msra.mxu0 0.0
    %5796 = vmatprep.subr.mxu0 0.0
    %5797 = vmatpush1.msra.mxu0 0.0
    %5798 = vmatprep.subr.mxu0 0.0
    %5799 = vmatpush1.msra.mxu0 0.0
    %5800 = vmatprep.subr.mxu0 0.0
    %5801 = vmatpush1.msra.mxu0 0.0
    %5802 = vmatprep.subr.mxu0 0.0
    %5803 = vmatpush1.msra.mxu0 0.0
    %5804 = vmatprep.subr.mxu0 0.0
    %5805 = vmatpush1.msra.mxu0 0.0
    %5806 = vmatprep.subr.mxu0 0.0
    %5807 = vmatpush1.msra.mxu0 0.0
    %5808 = vmatprep.subr.mxu0 0.0
    %5809 = vmatpush1.msra.mxu0 0.0
    %5810 = vmatprep.subr.mxu0 0.0
    %5811 = vmatpush1.msra.mxu0 0.0
    %5812 = vmatprep.subr.mxu0 0.0
    %5813 = vmatpush1.msra.mxu0 0.0
    %5814 = vmatprep.subr.mxu0 0.0
    %5815 = vmatpush1.msra.mxu0 0.0
    %5816 = vmatprep.subr.mxu0 0.0
    %5817 = vmatpush1.msra.mxu0 0.0
    %5818 = vmatprep.subr.mxu0 0.0
    %5819 = vmatpush1.msra.mxu0 0.0
    %5820 = vmatprep.subr.mxu0 0.0
    %5821 = vmatpush1.msra.mxu0 0.0
    %5822 = vmatprep.subr.mxu0 0.0
    %5823 = vmatpush1.msra.mxu0 0.0
    %5824 = vmatprep.subr.mxu0 0.0
    %5825 = vmatpush1.msra.mxu0 0.0
    %5826 = vmatprep.subr.mxu0 0.0
    %5827 = vmatpush1.msra.mxu0 0.0
    %5828 = vmatprep.subr.mxu0 0.0
    %5829 = vmatpush1.msra.mxu0 0.0
    %5830 = vmatprep.subr.mxu0 0.0
    %5831 = vmatpush1.msra.mxu0 0.0
    %5832 = vmatprep.mubr.f32.mxu0 0.0
    %5833 = vmatmul.mubr.f32.gmra.mrb[0].mxu0 %v5766
    %v5834 = vpop.f32.mrb[0].mxu0
    %v5835 = vadd.f32 0.0, %v5834
    %v5836 = vpop.f32.mrb[0].mxu0
    %5837 = vdwg.mxu0
    %v5838 = vmul.f32 %v5748, %v5748
    %v5839 = vsel %vm5749, %v5838, 0.0
    %v5840 = vrot.slane %v5839, 4
    %v5841 = vadd.f32 %v5839, %v5840
    %v5842 = vrot.slane %v5841, 2
    %v5843 = vadd.f32 %v5841, %v5842
    %v5844 = vrot.slane %v5843, 1
    %v5845 = vadd.f32 %v5843, %v5844
    %v5847 = vsel %vm1640, %v5845, 0
    %5849 = vmatprep.subr.mxu0 0.0
    %5850 = vmatpush1.msra.mxu0 %v5757
    %5851 = vmatprep.subr.mxu0 0.0
    %5852 = vmatpush1.msra.mxu0 %v5758
    %5853 = vmatprep.subr.mxu0 0.0
    %5854 = vmatpush1.msra.mxu0 %v5759
    %5855 = vmatprep.subr.mxu0 0.0
    %5856 = vmatpush1.msra.mxu0 %v5760
    %5857 = vmatprep.subr.mxu0 0.0
    %5858 = vmatpush1.msra.mxu0 %v5761
    %5859 = vmatprep.subr.mxu0 0.0
    %5860 = vmatpush1.msra.mxu0 %v5762
    %5861 = vmatprep.subr.mxu0 0.0
    %5862 = vmatpush1.msra.mxu0 %v5763
    %5863 = vmatprep.subr.mxu0 0.0
    %5864 = vmatpush1.msra.mxu0 %v5764
    %5865 = vmatprep.subr.mxu0 0.0
    %5866 = vmatpush1.msra.mxu0 0.0
    %5867 = vmatprep.subr.mxu0 0.0
    %5868 = vmatpush1.msra.mxu0 0.0
    %5869 = vmatprep.subr.mxu0 0.0
    %5870 = vmatpush1.msra.mxu0 0.0
    %5871 = vmatprep.subr.mxu0 0.0
    %5872 = vmatpush1.msra.mxu0 0.0
    %5873 = vmatprep.subr.mxu0 0.0
    %5874 = vmatpush1.msra.mxu0 0.0
    %5875 = vmatprep.subr.mxu0 0.0
    %5876 = vmatpush1.msra.mxu0 0.0
    %5877 = vmatprep.subr.mxu0 0.0
    %5878 = vmatpush1.msra.mxu0 0.0
    %5879 = vmatprep.subr.mxu0 0.0
    %5880 = vmatpush1.msra.mxu0 0.0
    %5881 = vmatprep.subr.mxu0 0.0
    %5882 = vmatpush1.msra.mxu0 0.0
    %5883 = vmatprep.subr.mxu0 0.0
    %5884 = vmatpush1.msra.mxu0 0.0
    %5885 = vmatprep.subr.mxu0 0.0
    %5886 = vmatpush1.msra.mxu0 0.0
    %5887 = vmatprep.subr.mxu0 0.0
    %5888 = vmatpush1.msra.mxu0 0.0
    %5889 = vmatprep.subr.mxu0 0.0
    %5890 = vmatpush1.msra.mxu0 0.0
    %5891 = vmatprep.subr.mxu0 0.0
    %5892 = vmatpush1.msra.mxu0 0.0
    %5893 = vmatprep.subr.mxu0 0.0
    %5894 = vmatpush1.msra.mxu0 0.0
    %5895 = vmatprep.subr.mxu0 0.0
    %5896 = vmatpush1.msra.mxu0 0.0
    %5897 = vmatprep.subr.mxu0 0.0
    %5898 = vmatpush1.msra.mxu0 0.0
    %5899 = vmatprep.subr.mxu0 0.0
    %5900 = vmatpush1.msra.mxu0 0.0
    %5901 = vmatprep.subr.mxu0 0.0
    %5902 = vmatpush1.msra.mxu0 0.0
    %5903 = vmatprep.subr.mxu0 0.0
    %5904 = vmatpush1.msra.mxu0 0.0
    %5905 = vmatprep.subr.mxu0 0.0
    %5906 = vmatpush1.msra.mxu0 0.0
    %5907 = vmatprep.subr.mxu0 0.0
    %5908 = vmatpush1.msra.mxu0 0.0
    %5909 = vmatprep.subr.mxu0 0.0
    %5910 = vmatpush1.msra.mxu0 0.0
    %5911 = vmatprep.subr.mxu0 0.0
    %5912 = vmatpush1.msra.mxu0 0.0
    %5913 = vmatprep.mubr.f32.mxu0 0.0
    %5914 = vmatmul.mubr.f32.gmra.mrb[0].mxu0 %v5847
    %v5915 = vpop.f32.mrb[0].mxu0
    %v5916 = vadd.f32 0.0, %v5915
    %v5917 = vpop.f32.mrb[0].mxu0
    %5918 = vdwg.mxu0
    %v5919 = vmul.f32 %v5835, %v5835
    %v5920 = vsub.f32 %v5916, %v5919
    %v5921 = vmax.f32 %v5920, 0.0
    %v5922 = vld [vmem:[%s79] sm:$0x1]
    %v5923 = vadd.f32 %v5921, 1e-05
    %v5924 = vrsqrt.pop %v5923
    %v5925 = vmul.f32 %v5922, %v5924
    %v5926 = vld [vmem:[%s81] sm:$0x1]
    %v5927 = vmul.f32 %v5835, %v5925
    %v5928 = vsub.f32 %v5926, %v5927
    %v5930 = vlaneseq
    %v5931 = vshrl.u32 %v5930, 7
    %v5932 = vsub.s32 0, %v5931
    %v5933 = vrot.slane %v5925, %v5932
    %v5935 = vmul.f32 %v5748, %v5933
    %v5937 = vlaneseq
    %v5938 = vshrl.u32 %v5937, 7
    %v5939 = vsub.s32 0, %v5938
    %v5940 = vrot.slane %v5928, %v5939
    %v5942 = vadd.f32 %v5935, %v5940
    %v5943 = vmax.f32 %v5942, 0.0
    %v5944 = vld [vmem:[%s83] sm:$0x3]
    %vm5945 = vcmask 15360
    %v5947 = vsel %vm5945, %v5944, 0
    %vm5949 = vcmask 1041408
    %v5951 = vsel %vm5949, %v5943, 0
    %5953 = vmatprep.subr.mxu0 0.0
    %5954 = vmatpush1.msra.mxu0 %v5951
    %5955 = vmatprep.subr.mxu0 0.0
    %5956 = vmatpush1.msra.mxu0 0.0
    %5957 = vmatprep.subr.mxu0 0.0
    %5958 = vmatpush1.msra.mxu0 0.0
    %5959 = vmatprep.subr.mxu0 0.0
    %5960 = vmatpush1.msra.mxu0 0.0
    %5961 = vmatprep.subr.mxu0 0.0
    %5962 = vmatpush1.msra.mxu0 0.0
    %5963 = vmatprep.subr.mxu0 0.0
    %5964 = vmatpush1.msra.mxu0 0.0
    %5965 = vmatprep.subr.mxu0 0.0
    %5966 = vmatpush1.msra.mxu0 0.0
    %5967 = vmatprep.subr.mxu0 0.0
    %5968 = vmatpush1.msra.mxu0 0.0
    %5969 = vmatprep.subr.mxu0 0.0
    %5970 = vmatpush1.msra.mxu0 0.0
    %5971 = vmatprep.subr.mxu0 0.0
    %5972 = vmatpush1.msra.mxu0 0.0
    %5973 = vmatprep.subr.mxu0 0.0
    %5974 = vmatpush1.msra.mxu0 0.0
    %5975 = vmatprep.subr.mxu0 0.0
    %5976 = vmatpush1.msra.mxu0 0.0
    %5977 = vmatprep.subr.mxu0 0.0
    %5978 = vmatpush1.msra.mxu0 0.0
    %5979 = vmatprep.subr.mxu0 0.0
    %5980 = vmatpush1.msra.mxu0 0.0
    %5981 = vmatprep.subr.mxu0 0.0
    %5982 = vmatpush1.msra.mxu0 0.0
    %5983 = vmatprep.subr.mxu0 0.0
    %5984 = vmatpush1.msra.mxu0 0.0
    %5985 = vmatprep.subr.mxu0 0.0
    %5986 = vmatpush1.msra.mxu0 0.0
    %5987 = vmatprep.subr.mxu0 0.0
    %5988 = vmatpush1.msra.mxu0 0.0
    %5989 = vmatprep.subr.mxu0 0.0
    %5990 = vmatpush1.msra.mxu0 0.0
    %5991 = vmatprep.subr.mxu0 0.0
    %5992 = vmatpush1.msra.mxu0 0.0
    %5993 = vmatprep.subr.mxu0 0.0
    %5994 = vmatpush1.msra.mxu0 0.0
    %5995 = vmatprep.subr.mxu0 0.0
    %5996 = vmatpush1.msra.mxu0 0.0
    %5997 = vmatprep.subr.mxu0 0.0
    %5998 = vmatpush1.msra.mxu0 0.0
    %5999 = vmatprep.subr.mxu0 0.0
    %6000 = vmatpush1.msra.mxu0 0.0
    %6001 = vmatprep.subr.mxu0 0.0
    %6002 = vmatpush1.msra.mxu0 0.0
    %6003 = vmatprep.subr.mxu0 0.0
    %6004 = vmatpush1.msra.mxu0 0.0
    %6005 = vmatprep.subr.mxu0 0.0
    %6006 = vmatpush1.msra.mxu0 0.0
    %6007 = vmatprep.subr.mxu0 0.0
    %6008 = vmatpush1.msra.mxu0 0.0
    %6009 = vmatprep.subr.mxu0 0.0
    %6010 = vmatpush1.msra.mxu0 0.0
    %6011 = vmatprep.subr.mxu0 0.0
    %6012 = vmatpush1.msra.mxu0 0.0
    %6013 = vmatprep.subr.mxu0 0.0
    %6014 = vmatpush1.msra.mxu0 0.0
    %6015 = vmatprep.subr.mxu0 0.0
    %6016 = vmatpush1.msra.mxu0 0.0
    %6017 = vmatprep.mubr.f32.mxu0 0.0
    %6018 = vmatmul.mubr.f32.gmra.mrb[0].mxu0 %v5947
    %v6019 = vpop.f32.mrb[0].mxu0
    %v6020 = vadd.f32 0.0, %v6019
    %v6021 = vpop.f32.mrb[0].mxu0
    %6022 = vdwg.mxu0
    %v6023 = vld [vmem:[%s85] sm:$0xff]
    %v6024 = vld [vmem:[%s85 + $0x8] sm:$0xff]
    %v6025 = vld [vmem:[%s85 + $0x10] sm:$0xff]
    %v6026 = vld [vmem:[%s85 + $0x18] sm:$0xff]
    %v6027 = vld [vmem:[%s85 + $0x20] sm:$0xff]
    %v6028 = vld [vmem:[%s85 + $0x28] sm:$0xff]
    %v6029 = vld [vmem:[%s85 + $0x30] sm:$0xff]
    %v6030 = vld [vmem:[%s85 + $0x38] sm:$0xff]
    %s6031 = scalar_lea.vmem %s83, 2
    %v6032 = vld [vmem:[%s6031] sm:$0x3]
    %v6034 = vsel %vm5945, %v6032, 0
    %6036 = vmatprep.subr.mxu0 0.0
    %6037 = vmatpush1.msra.mxu0 %v5951
    %6038 = vmatprep.subr.mxu0 0.0
    %6039 = vmatpush1.msra.mxu0 0.0
    %6040 = vmatprep.subr.mxu0 0.0
    %6041 = vmatpush1.msra.mxu0 0.0
    %6042 = vmatprep.subr.mxu0 0.0
    %6043 = vmatpush1.msra.mxu0 0.0
    %6044 = vmatprep.subr.mxu0 0.0
    %6045 = vmatpush1.msra.mxu0 0.0
    %6046 = vmatprep.subr.mxu0 0.0
    %6047 = vmatpush1.msra.mxu0 0.0
    %6048 = vmatprep.subr.mxu0 0.0
    %6049 = vmatpush1.msra.mxu0 0.0
    %6050 = vmatprep.subr.mxu0 0.0
    %6051 = vmatpush1.msra.mxu0 0.0
    %6052 = vmatprep.subr.mxu0 0.0
    %6053 = vmatpush1.msra.mxu0 0.0
    %6054 = vmatprep.subr.mxu0 0.0
    %6055 = vmatpush1.msra.mxu0 0.0
    %6056 = vmatprep.subr.mxu0 0.0
    %6057 = vmatpush1.msra.mxu0 0.0
    %6058 = vmatprep.subr.mxu0 0.0
    %6059 = vmatpush1.msra.mxu0 0.0
    %6060 = vmatprep.subr.mxu0 0.0
    %6061 = vmatpush1.msra.mxu0 0.0
    %6062 = vmatprep.subr.mxu0 0.0
    %6063 = vmatpush1.msra.mxu0 0.0
    %6064 = vmatprep.subr.mxu0 0.0
    %6065 = vmatpush1.msra.mxu0 0.0
    %6066 = vmatprep.subr.mxu0 0.0
    %6067 = vmatpush1.msra.mxu0 0.0
    %6068 = vmatprep.subr.mxu0 0.0
    %6069 = vmatpush1.msra.mxu0 0.0
    %6070 = vmatprep.subr.mxu0 0.0
    %6071 = vmatpush1.msra.mxu0 0.0
    %6072 = vmatprep.subr.mxu0 0.0
    %6073 = vmatpush1.msra.mxu0 0.0
    %6074 = vmatprep.subr.mxu0 0.0
    %6075 = vmatpush1.msra.mxu0 0.0
    %6076 = vmatprep.subr.mxu0 0.0
    %6077 = vmatpush1.msra.mxu0 0.0
    %6078 = vmatprep.subr.mxu0 0.0
    %6079 = vmatpush1.msra.mxu0 0.0
    %6080 = vmatprep.subr.mxu0 0.0
    %6081 = vmatpush1.msra.mxu0 0.0
    %6082 = vmatprep.subr.mxu0 0.0
    %6083 = vmatpush1.msra.mxu0 0.0
    %6084 = vmatprep.subr.mxu0 0.0
    %6085 = vmatpush1.msra.mxu0 0.0
    %6086 = vmatprep.subr.mxu0 0.0
    %6087 = vmatpush1.msra.mxu0 0.0
    %6088 = vmatprep.subr.mxu0 0.0
    %6089 = vmatpush1.msra.mxu0 0.0
    %6090 = vmatprep.subr.mxu0 0.0
    %6091 = vmatpush1.msra.mxu0 0.0
    %6092 = vmatprep.subr.mxu0 0.0
    %6093 = vmatpush1.msra.mxu0 0.0
    %6094 = vmatprep.subr.mxu0 0.0
    %6095 = vmatpush1.msra.mxu0 0.0
    %6096 = vmatprep.subr.mxu0 0.0
    %6097 = vmatpush1.msra.mxu0 0.0
    %6098 = vmatprep.subr.mxu0 0.0
    %6099 = vmatpush1.msra.mxu0 0.0
    %6100 = vmatprep.mubr.f32.mxu0 0.0
    %6101 = vmatmul.mubr.f32.gmra.mrb[0].mxu0 %v6034
    %v6102 = vpop.f32.mrb[0].mxu0
    %v6103 = vadd.f32 0.0, %v6102
    %v6104 = vpop.f32.mrb[0].mxu0
    %6105 = vdwg.mxu0
    %s6106 = scalar_lea.vmem %s85, 64
    %v6107 = vld [vmem:[%s6106] sm:$0xff]
    %v6108 = vld [vmem:[%s6106 + $0x8] sm:$0xff]
    %v6109 = vld [vmem:[%s6106 + $0x10] sm:$0xff]
    %v6110 = vld [vmem:[%s6106 + $0x18] sm:$0xff]
    %v6111 = vld [vmem:[%s6106 + $0x20] sm:$0xff]
    %v6112 = vld [vmem:[%s6106 + $0x28] sm:$0xff]
    %v6113 = vld [vmem:[%s6106 + $0x30] sm:$0xff]
    %v6114 = vld [vmem:[%s6106 + $0x38] sm:$0xff]
    %v6116 = vsel %vm1640, %v6103, 0
    %6118 = vmatprep.subr.mxu0 0.0
    %6119 = vmatpush1.msra.mxu0 %v6107
    %6120 = vmatprep.subr.mxu0 0.0
    %6121 = vmatpush1.msra.mxu0 %v6108
    %6122 = vmatprep.subr.mxu0 0.0
    %6123 = vmatpush1.msra.mxu0 %v6109
    %6124 = vmatprep.subr.mxu0 0.0
    %6125 = vmatpush1.msra.mxu0 %v6110
    %6126 = vmatprep.subr.mxu0 0.0
    %6127 = vmatpush1.msra.mxu0 %v6111
    %6128 = vmatprep.subr.mxu0 0.0
    %6129 = vmatpush1.msra.mxu0 %v6112
    %6130 = vmatprep.subr.mxu0 0.0
    %6131 = vmatpush1.msra.mxu0 %v6113
    %6132 = vmatprep.subr.mxu0 0.0
    %6133 = vmatpush1.msra.mxu0 %v6114
    %6134 = vmatprep.subr.mxu0 0.0
    %6135 = vmatpush1.msra.mxu0 0.0
    %6136 = vmatprep.subr.mxu0 0.0
    %6137 = vmatpush1.msra.mxu0 0.0
    %6138 = vmatprep.subr.mxu0 0.0
    %6139 = vmatpush1.msra.mxu0 0.0
    %6140 = vmatprep.subr.mxu0 0.0
    %6141 = vmatpush1.msra.mxu0 0.0
    %6142 = vmatprep.subr.mxu0 0.0
    %6143 = vmatpush1.msra.mxu0 0.0
    %6144 = vmatprep.subr.mxu0 0.0
    %6145 = vmatpush1.msra.mxu0 0.0
    %6146 = vmatprep.subr.mxu0 0.0
    %6147 = vmatpush1.msra.mxu0 0.0
    %6148 = vmatprep.subr.mxu0 0.0
    %6149 = vmatpush1.msra.mxu0 0.0
    %6150 = vmatprep.subr.mxu0 0.0
    %6151 = vmatpush1.msra.mxu0 0.0
    %6152 = vmatprep.subr.mxu0 0.0
    %6153 = vmatpush1.msra.mxu0 0.0
    %6154 = vmatprep.subr.mxu0 0.0
    %6155 = vmatpush1.msra.mxu0 0.0
    %6156 = vmatprep.subr.mxu0 0.0
    %6157 = vmatpush1.msra.mxu0 0.0
    %6158 = vmatprep.subr.mxu0 0.0
    %6159 = vmatpush1.msra.mxu0 0.0
    %6160 = vmatprep.subr.mxu0 0.0
    %6161 = vmatpush1.msra.mxu0 0.0
    %6162 = vmatprep.subr.mxu0 0.0
    %6163 = vmatpush1.msra.mxu0 0.0
    %6164 = vmatprep.subr.mxu0 0.0
    %6165 = vmatpush1.msra.mxu0 0.0
    %6166 = vmatprep.subr.mxu0 0.0
    %6167 = vmatpush1.msra.mxu0 0.0
    %6168 = vmatprep.subr.mxu0 0.0
    %6169 = vmatpush1.msra.mxu0 0.0
    %6170 = vmatprep.subr.mxu0 0.0
    %6171 = vmatpush1.msra.mxu0 0.0
    %6172 = vmatprep.subr.mxu0 0.0
    %6173 = vmatpush1.msra.mxu0 0.0
    %6174 = vmatprep.subr.mxu0 0.0
    %6175 = vmatpush1.msra.mxu0 0.0
    %6176 = vmatprep.subr.mxu0 0.0
    %6177 = vmatpush1.msra.mxu0 0.0
    %6178 = vmatprep.subr.mxu0 0.0
    %6179 = vmatpush1.msra.mxu0 0.0
    %6180 = vmatprep.subr.mxu0 0.0
    %6181 = vmatpush1.msra.mxu0 0.0
    %6182 = vmatprep.mubr.f32.mxu0 0.0
    %6183 = vmatmul.mubr.f32.gmra.mrb[0].mxu0 %v6116
    %v6184 = vpop.f32.mrb[0].mxu0
    %v6185 = vadd.f32 0.0, %v6184
    %v6186 = vpop.f32.mrb[0].mxu0
    %6187 = vdwg.mxu0
    %v6189 = vsel %vm1640, %v6020, 0
    %6191 = vmatprep.subr.mxu0 0.0
    %6192 = vmatpush1.msra.mxu0 %v6023
    %6193 = vmatprep.subr.mxu0 0.0
    %6194 = vmatpush1.msra.mxu0 %v6024
    %6195 = vmatprep.subr.mxu0 0.0
    %6196 = vmatpush1.msra.mxu0 %v6025
    %6197 = vmatprep.subr.mxu0 0.0
    %6198 = vmatpush1.msra.mxu0 %v6026
    %6199 = vmatprep.subr.mxu0 0.0
    %6200 = vmatpush1.msra.mxu0 %v6027
    %6201 = vmatprep.subr.mxu0 0.0
    %6202 = vmatpush1.msra.mxu0 %v6028
    %6203 = vmatprep.subr.mxu0 0.0
    %6204 = vmatpush1.msra.mxu0 %v6029
    %6205 = vmatprep.subr.mxu0 0.0
    %6206 = vmatpush1.msra.mxu0 %v6030
    %6207 = vmatprep.subr.mxu0 0.0
    %6208 = vmatpush1.msra.mxu0 0.0
    %6209 = vmatprep.subr.mxu0 0.0
    %6210 = vmatpush1.msra.mxu0 0.0
    %6211 = vmatprep.subr.mxu0 0.0
    %6212 = vmatpush1.msra.mxu0 0.0
    %6213 = vmatprep.subr.mxu0 0.0
    %6214 = vmatpush1.msra.mxu0 0.0
    %6215 = vmatprep.subr.mxu0 0.0
    %6216 = vmatpush1.msra.mxu0 0.0
    %6217 = vmatprep.subr.mxu0 0.0
    %6218 = vmatpush1.msra.mxu0 0.0
    %6219 = vmatprep.subr.mxu0 0.0
    %6220 = vmatpush1.msra.mxu0 0.0
    %6221 = vmatprep.subr.mxu0 0.0
    %6222 = vmatpush1.msra.mxu0 0.0
    %6223 = vmatprep.subr.mxu0 0.0
    %6224 = vmatpush1.msra.mxu0 0.0
    %6225 = vmatprep.subr.mxu0 0.0
    %6226 = vmatpush1.msra.mxu0 0.0
    %6227 = vmatprep.subr.mxu0 0.0
    %6228 = vmatpush1.msra.mxu0 0.0
    %6229 = vmatprep.subr.mxu0 0.0
    %6230 = vmatpush1.msra.mxu0 0.0
    %6231 = vmatprep.subr.mxu0 0.0
    %6232 = vmatpush1.msra.mxu0 0.0
    %6233 = vmatprep.subr.mxu0 0.0
    %6234 = vmatpush1.msra.mxu0 0.0
    %6235 = vmatprep.subr.mxu0 0.0
    %6236 = vmatpush1.msra.mxu0 0.0
    %6237 = vmatprep.subr.mxu0 0.0
    %6238 = vmatpush1.msra.mxu0 0.0
    %6239 = vmatprep.subr.mxu0 0.0
    %6240 = vmatpush1.msra.mxu0 0.0
    %6241 = vmatprep.subr.mxu0 0.0
    %6242 = vmatpush1.msra.mxu0 0.0
    %6243 = vmatprep.subr.mxu0 0.0
    %6244 = vmatpush1.msra.mxu0 0.0
    %6245 = vmatprep.subr.mxu0 0.0
    %6246 = vmatpush1.msra.mxu0 0.0
    %6247 = vmatprep.subr.mxu0 0.0
    %6248 = vmatpush1.msra.mxu0 0.0
    %6249 = vmatprep.subr.mxu0 0.0
    %6250 = vmatpush1.msra.mxu0 0.0
    %6251 = vmatprep.subr.mxu0 0.0
    %6252 = vmatpush1.msra.mxu0 0.0
    %6253 = vmatprep.subr.mxu0 0.0
    %6254 = vmatpush1.msra.mxu0 0.0
    %6255 = vmatprep.mubr.f32.mxu0 0.0
    %6256 = vmatmul.mubr.f32.gmra.mrb[0].mxu0 %v6189
    %v6257 = vpop.f32.mrb[0].mxu0
    %v6258 = vadd.f32 %v6185, %v6257
    %v6259 = vpop.f32.mrb[0].mxu0
    %6260 = vdwg.mxu0
    %s6261 = scalar_lea.vmem %s83, 4
    %v6262 = vld [vmem:[%s6261] sm:$0x3]
    %v6264 = vsel %vm5945, %v6262, 0
    %6266 = vmatprep.subr.mxu0 0.0
    %6267 = vmatpush1.msra.mxu0 %v5951
    %6268 = vmatprep.subr.mxu0 0.0
    %6269 = vmatpush1.msra.mxu0 0.0
    %6270 = vmatprep.subr.mxu0 0.0
    %6271 = vmatpush1.msra.mxu0 0.0
    %6272 = vmatprep.subr.mxu0 0.0
    %6273 = vmatpush1.msra.mxu0 0.0
    %6274 = vmatprep.subr.mxu0 0.0
    %6275 = vmatpush1.msra.mxu0 0.0
    %6276 = vmatprep.subr.mxu0 0.0
    %6277 = vmatpush1.msra.mxu0 0.0
    %6278 = vmatprep.subr.mxu0 0.0
    %6279 = vmatpush1.msra.mxu0 0.0
    %6280 = vmatprep.subr.mxu0 0.0
    %6281 = vmatpush1.msra.mxu0 0.0
    %6282 = vmatprep.subr.mxu0 0.0
    %6283 = vmatpush1.msra.mxu0 0.0
    %6284 = vmatprep.subr.mxu0 0.0
    %6285 = vmatpush1.msra.mxu0 0.0
    %6286 = vmatprep.subr.mxu0 0.0
    %6287 = vmatpush1.msra.mxu0 0.0
    %6288 = vmatprep.subr.mxu0 0.0
    %6289 = vmatpush1.msra.mxu0 0.0
    %6290 = vmatprep.subr.mxu0 0.0
    %6291 = vmatpush1.msra.mxu0 0.0
    %6292 = vmatprep.subr.mxu0 0.0
    %6293 = vmatpush1.msra.mxu0 0.0
    %6294 = vmatprep.subr.mxu0 0.0
    %6295 = vmatpush1.msra.mxu0 0.0
    %6296 = vmatprep.subr.mxu0 0.0
    %6297 = vmatpush1.msra.mxu0 0.0
    %6298 = vmatprep.subr.mxu0 0.0
    %6299 = vmatpush1.msra.mxu0 0.0
    %6300 = vmatprep.subr.mxu0 0.0
    %6301 = vmatpush1.msra.mxu0 0.0
    %6302 = vmatprep.subr.mxu0 0.0
    %6303 = vmatpush1.msra.mxu0 0.0
    %6304 = vmatprep.subr.mxu0 0.0
    %6305 = vmatpush1.msra.mxu0 0.0
    %6306 = vmatprep.subr.mxu0 0.0
    %6307 = vmatpush1.msra.mxu0 0.0
    %6308 = vmatprep.subr.mxu0 0.0
    %6309 = vmatpush1.msra.mxu0 0.0
    %6310 = vmatprep.subr.mxu0 0.0
    %6311 = vmatpush1.msra.mxu0 0.0
    %6312 = vmatprep.subr.mxu0 0.0
    %6313 = vmatpush1.msra.mxu0 0.0
    %6314 = vmatprep.subr.mxu0 0.0
    %6315 = vmatpush1.msra.mxu0 0.0
    %6316 = vmatprep.subr.mxu0 0.0
    %6317 = vmatpush1.msra.mxu0 0.0
    %6318 = vmatprep.subr.mxu0 0.0
    %6319 = vmatpush1.msra.mxu0 0.0
    %6320 = vmatprep.subr.mxu0 0.0
    %6321 = vmatpush1.msra.mxu0 0.0
    %6322 = vmatprep.subr.mxu0 0.0
    %6323 = vmatpush1.msra.mxu0 0.0
    %6324 = vmatprep.subr.mxu0 0.0
    %6325 = vmatpush1.msra.mxu0 0.0
    %6326 = vmatprep.subr.mxu0 0.0
    %6327 = vmatpush1.msra.mxu0 0.0
    %6328 = vmatprep.subr.mxu0 0.0
    %6329 = vmatpush1.msra.mxu0 0.0
    %6330 = vmatprep.mubr.f32.mxu0 0.0
    %6331 = vmatmul.mubr.f32.gmra.mrb[0].mxu0 %v6264
    %v6332 = vpop.f32.mrb[0].mxu0
    %v6333 = vadd.f32 0.0, %v6332
    %v6334 = vpop.f32.mrb[0].mxu0
    %6335 = vdwg.mxu0
    %s6336 = scalar_lea.vmem %s85, 128
    %v6337 = vld [vmem:[%s6336] sm:$0xff]
    %v6338 = vld [vmem:[%s6336 + $0x8] sm:$0xff]
    %v6339 = vld [vmem:[%s6336 + $0x10] sm:$0xff]
    %v6340 = vld [vmem:[%s6336 + $0x18] sm:$0xff]
    %v6341 = vld [vmem:[%s6336 + $0x20] sm:$0xff]
    %v6342 = vld [vmem:[%s6336 + $0x28] sm:$0xff]
    %v6343 = vld [vmem:[%s6336 + $0x30] sm:$0xff]
    %v6344 = vld [vmem:[%s6336 + $0x38] sm:$0xff]
    %v6346 = vsel %vm1640, %v6333, 0
    %6348 = vmatprep.subr.mxu0 0.0
    %6349 = vmatpush1.msra.mxu0 %v6337
    %6350 = vmatprep.subr.mxu0 0.0
    %6351 = vmatpush1.msra.mxu0 %v6338
    %6352 = vmatprep.subr.mxu0 0.0
    %6353 = vmatpush1.msra.mxu0 %v6339
    %6354 = vmatprep.subr.mxu0 0.0
    %6355 = vmatpush1.msra.mxu0 %v6340
    %6356 = vmatprep.subr.mxu0 0.0
    %6357 = vmatpush1.msra.mxu0 %v6341
    %6358 = vmatprep.subr.mxu0 0.0
    %6359 = vmatpush1.msra.mxu0 %v6342
    %6360 = vmatprep.subr.mxu0 0.0
    %6361 = vmatpush1.msra.mxu0 %v6343
    %6362 = vmatprep.subr.mxu0 0.0
    %6363 = vmatpush1.msra.mxu0 %v6344
    %6364 = vmatprep.subr.mxu0 0.0
    %6365 = vmatpush1.msra.mxu0 0.0
    %6366 = vmatprep.subr.mxu0 0.0
    %6367 = vmatpush1.msra.mxu0 0.0
    %6368 = vmatprep.subr.mxu0 0.0
    %6369 = vmatpush1.msra.mxu0 0.0
    %6370 = vmatprep.subr.mxu0 0.0
    %6371 = vmatpush1.msra.mxu0 0.0
    %6372 = vmatprep.subr.mxu0 0.0
    %6373 = vmatpush1.msra.mxu0 0.0
    %6374 = vmatprep.subr.mxu0 0.0
    %6375 = vmatpush1.msra.mxu0 0.0
    %6376 = vmatprep.subr.mxu0 0.0
    %6377 = vmatpush1.msra.mxu0 0.0
    %6378 = vmatprep.subr.mxu0 0.0
    %6379 = vmatpush1.msra.mxu0 0.0
    %6380 = vmatprep.subr.mxu0 0.0
    %6381 = vmatpush1.msra.mxu0 0.0
    %6382 = vmatprep.subr.mxu0 0.0
    %6383 = vmatpush1.msra.mxu0 0.0
    %6384 = vmatprep.subr.mxu0 0.0
    %6385 = vmatpush1.msra.mxu0 0.0
    %6386 = vmatprep.subr.mxu0 0.0
    %6387 = vmatpush1.msra.mxu0 0.0
    %6388 = vmatprep.subr.mxu0 0.0
    %6389 = vmatpush1.msra.mxu0 0.0
    %6390 = vmatprep.subr.mxu0 0.0
    %6391 = vmatpush1.msra.mxu0 0.0
    %6392 = vmatprep.subr.mxu0 0.0
    %6393 = vmatpush1.msra.mxu0 0.0
    %6394 = vmatprep.subr.mxu0 0.0
    %6395 = vmatpush1.msra.mxu0 0.0
    %6396 = vmatprep.subr.mxu0 0.0
    %6397 = vmatpush1.msra.mxu0 0.0
    %6398 = vmatprep.subr.mxu0 0.0
    %6399 = vmatpush1.msra.mxu0 0.0
    %6400 = vmatprep.subr.mxu0 0.0
    %6401 = vmatpush1.msra.mxu0 0.0
    %6402 = vmatprep.subr.mxu0 0.0
    %6403 = vmatpush1.msra.mxu0 0.0
    %6404 = vmatprep.subr.mxu0 0.0
    %6405 = vmatpush1.msra.mxu0 0.0
    %6406 = vmatprep.subr.mxu0 0.0
    %6407 = vmatpush1.msra.mxu0 0.0
    %6408 = vmatprep.subr.mxu0 0.0
    %6409 = vmatpush1.msra.mxu0 0.0
    %6410 = vmatprep.subr.mxu0 0.0
    %6411 = vmatpush1.msra.mxu0 0.0
    %6412 = vmatprep.mubr.f32.mxu0 0.0
    %6413 = vmatmul.mubr.f32.gmra.mrb[0].mxu0 %v6346
    %v6414 = vpop.f32.mrb[0].mxu0
    %v6415 = vadd.f32 0.0, %v6414
    %v6416 = vpop.f32.mrb[0].mxu0
    %6417 = vdwg.mxu0
    %v6418 = vadd.f32 %v6258, %v6415
    %v6419 = vsel %vm5949, %v6418, 0.0
    %v6420 = vrot.slane %v6419, 4
    %v6421 = vadd.f32 %v6419, %v6420
    %v6422 = vrot.slane %v6421, 2
    %v6423 = vadd.f32 %v6421, %v6422
    %v6424 = vrot.slane %v6423, 1
    %v6425 = vadd.f32 %v6423, %v6424
    %v6426 = vld [vmem:[%s87] sm:$0xff]
    %v6427 = vld [vmem:[%s87 + $0x8] sm:$0xff]
    %v6428 = vld [vmem:[%s87 + $0x10] sm:$0xff]
    %v6429 = vld [vmem:[%s87 + $0x18] sm:$0xff]
    %v6430 = vld [vmem:[%s87 + $0x20] sm:$0xff]
    %v6431 = vld [vmem:[%s87 + $0x28] sm:$0xff]
    %v6432 = vld [vmem:[%s87 + $0x30] sm:$0xff]
    %v6433 = vld [vmem:[%s87 + $0x38] sm:$0xff]
    %v6434 = vld [vmem:[%s87 + $0x40] sm:$0xff]
    %v6435 = vld [vmem:[%s87 + $0x48] sm:$0xff]
    %v6436 = vld [vmem:[%s87 + $0x50] sm:$0xff]
    %v6437 = vld [vmem:[%s87 + $0x58] sm:$0xff]
    %v6438 = vld [vmem:[%s87 + $0x60] sm:$0xff]
    %v6439 = vld [vmem:[%s87 + $0x68] sm:$0xff]
    %v6440 = vld [vmem:[%s87 + $0x70] sm:$0xff]
    %v6441 = vld [vmem:[%s87 + $0x78] sm:$0xff]
    %6442 = vmatprep.subr.mxu0 0.0
    %6443 = vmatpush1.msra.mxu0 %v6426
    %6444 = vmatprep.subr.mxu0 0.0
    %6445 = vmatpush1.msra.mxu0 %v6427
    %6446 = vmatprep.subr.mxu0 0.0
    %6447 = vmatpush1.msra.mxu0 %v6428
    %6448 = vmatprep.subr.mxu0 0.0
    %6449 = vmatpush1.msra.mxu0 %v6429
    %6450 = vmatprep.subr.mxu0 0.0
    %6451 = vmatpush1.msra.mxu0 %v6430
    %6452 = vmatprep.subr.mxu0 0.0
    %6453 = vmatpush1.msra.mxu0 %v6431
    %6454 = vmatprep.subr.mxu0 0.0
    %6455 = vmatpush1.msra.mxu0 %v6432
    %6456 = vmatprep.subr.mxu0 0.0
    %6457 = vmatpush1.msra.mxu0 %v6433
    %6458 = vmatprep.subr.mxu0 0.0
    %6459 = vmatpush1.msra.mxu0 %v6434
    %6460 = vmatprep.subr.mxu0 0.0
    %6461 = vmatpush1.msra.mxu0 %v6435
    %6462 = vmatprep.subr.mxu0 0.0
    %6463 = vmatpush1.msra.mxu0 %v6436
    %6464 = vmatprep.subr.mxu0 0.0
    %6465 = vmatpush1.msra.mxu0 %v6437
    %6466 = vmatprep.subr.mxu0 0.0
    %6467 = vmatpush1.msra.mxu0 %v6438
    %6468 = vmatprep.subr.mxu0 0.0
    %6469 = vmatpush1.msra.mxu0 %v6439
    %6470 = vmatprep.subr.mxu0 0.0
    %6471 = vmatpush1.msra.mxu0 %v6440
    %6472 = vmatprep.subr.mxu0 0.0
    %6473 = vmatpush1.msra.mxu0 %v6441
    %6474 = vmatprep.subr.mxu0 0.0
    %6475 = vmatpush1.msra.mxu0 0.0
    %6476 = vmatprep.subr.mxu0 0.0
    %6477 = vmatpush1.msra.mxu0 0.0
    %6478 = vmatprep.subr.mxu0 0.0
    %6479 = vmatpush1.msra.mxu0 0.0
    %6480 = vmatprep.subr.mxu0 0.0
    %6481 = vmatpush1.msra.mxu0 0.0
    %6482 = vmatprep.subr.mxu0 0.0
    %6483 = vmatpush1.msra.mxu0 0.0
    %6484 = vmatprep.subr.mxu0 0.0
    %6485 = vmatpush1.msra.mxu0 0.0
    %6486 = vmatprep.subr.mxu0 0.0
    %6487 = vmatpush1.msra.mxu0 0.0
    %6488 = vmatprep.subr.mxu0 0.0
    %6489 = vmatpush1.msra.mxu0 0.0
    %6490 = vmatprep.subr.mxu0 0.0
    %6491 = vmatpush1.msra.mxu0 0.0
    %6492 = vmatprep.subr.mxu0 0.0
    %6493 = vmatpush1.msra.mxu0 0.0
    %6494 = vmatprep.subr.mxu0 0.0
    %6495 = vmatpush1.msra.mxu0 0.0
    %6496 = vmatprep.subr.mxu0 0.0
    %6497 = vmatpush1.msra.mxu0 0.0
    %6498 = vmatprep.subr.mxu0 0.0
    %6499 = vmatpush1.msra.mxu0 0.0
    %6500 = vmatprep.subr.mxu0 0.0
    %6501 = vmatpush1.msra.mxu0 0.0
    %6502 = vmatprep.subr.mxu0 0.0
    %6503 = vmatpush1.msra.mxu0 0.0
    %6504 = vmatprep.subr.mxu0 0.0
    %6505 = vmatpush1.msra.mxu0 0.0
    %6506 = vmatprep.mubr.f32.mxu0 0.0
    %6507 = vmatmul.mubr.f32.gmra.mrb[0].mxu0 %v6425
    %v6508 = vpop.f32.mrb[0].mxu0
    %v6509 = vadd.f32 0.0, %v6508
    %v6510 = vpop.f32.mrb[0].mxu0
    %6511 = vdwg.mxu0
    %v6512 = vmul.f32 %v6418, %v6418
    %v6513 = vsel %vm5949, %v6512, 0.0
    %v6514 = vrot.slane %v6513, 4
    %v6515 = vadd.f32 %v6513, %v6514
    %v6516 = vrot.slane %v6515, 2
    %v6517 = vadd.f32 %v6515, %v6516
    %v6518 = vrot.slane %v6517, 1
    %v6519 = vadd.f32 %v6517, %v6518
    %6520 = vmatprep.subr.mxu0 0.0
    %6521 = vmatpush1.msra.mxu0 %v6426
    %6522 = vmatprep.subr.mxu0 0.0
    %6523 = vmatpush1.msra.mxu0 %v6427
    %6524 = vmatprep.subr.mxu0 0.0
    %6525 = vmatpush1.msra.mxu0 %v6428
    %6526 = vmatprep.subr.mxu0 0.0
    %6527 = vmatpush1.msra.mxu0 %v6429
    %6528 = vmatprep.subr.mxu0 0.0
    %6529 = vmatpush1.msra.mxu0 %v6430
    %6530 = vmatprep.subr.mxu0 0.0
    %6531 = vmatpush1.msra.mxu0 %v6431
    %6532 = vmatprep.subr.mxu0 0.0
    %6533 = vmatpush1.msra.mxu0 %v6432
    %6534 = vmatprep.subr.mxu0 0.0
    %6535 = vmatpush1.msra.mxu0 %v6433
    %6536 = vmatprep.subr.mxu0 0.0
    %6537 = vmatpush1.msra.mxu0 %v6434
    %6538 = vmatprep.subr.mxu0 0.0
    %6539 = vmatpush1.msra.mxu0 %v6435
    %6540 = vmatprep.subr.mxu0 0.0
    %6541 = vmatpush1.msra.mxu0 %v6436
    %6542 = vmatprep.subr.mxu0 0.0
    %6543 = vmatpush1.msra.mxu0 %v6437
    %6544 = vmatprep.subr.mxu0 0.0
    %6545 = vmatpush1.msra.mxu0 %v6438
    %6546 = vmatprep.subr.mxu0 0.0
    %6547 = vmatpush1.msra.mxu0 %v6439
    %6548 = vmatprep.subr.mxu0 0.0
    %6549 = vmatpush1.msra.mxu0 %v6440
    %6550 = vmatprep.subr.mxu0 0.0
    %6551 = vmatpush1.msra.mxu0 %v6441
    %6552 = vmatprep.subr.mxu0 0.0
    %6553 = vmatpush1.msra.mxu0 0.0
    %6554 = vmatprep.subr.mxu0 0.0
    %6555 = vmatpush1.msra.mxu0 0.0
    %6556 = vmatprep.subr.mxu0 0.0
    %6557 = vmatpush1.msra.mxu0 0.0
    %6558 = vmatprep.subr.mxu0 0.0
    %6559 = vmatpush1.msra.mxu0 0.0
    %6560 = vmatprep.subr.mxu0 0.0
    %6561 = vmatpush1.msra.mxu0 0.0
    %6562 = vmatprep.subr.mxu0 0.0
    %6563 = vmatpush1.msra.mxu0 0.0
    %6564 = vmatprep.subr.mxu0 0.0
    %6565 = vmatpush1.msra.mxu0 0.0
    %6566 = vmatprep.subr.mxu0 0.0
    %6567 = vmatpush1.msra.mxu0 0.0
    %6568 = vmatprep.subr.mxu0 0.0
    %6569 = vmatpush1.msra.mxu0 0.0
    %6570 = vmatprep.subr.mxu0 0.0
    %6571 = vmatpush1.msra.mxu0 0.0
    %6572 = vmatprep.subr.mxu0 0.0
    %6573 = vmatpush1.msra.mxu0 0.0
    %6574 = vmatprep.subr.mxu0 0.0
    %6575 = vmatpush1.msra.mxu0 0.0
    %6576 = vmatprep.subr.mxu0 0.0
    %6577 = vmatpush1.msra.mxu0 0.0
    %6578 = vmatprep.subr.mxu0 0.0
    %6579 = vmatpush1.msra.mxu0 0.0
    %6580 = vmatprep.subr.mxu0 0.0
    %6581 = vmatpush1.msra.mxu0 0.0
    %6582 = vmatprep.subr.mxu0 0.0
    %6583 = vmatpush1.msra.mxu0 0.0
    %6584 = vmatprep.mubr.f32.mxu0 0.0
    %6585 = vmatmul.mubr.f32.gmra.mrb[0].mxu0 %v6519
    %v6586 = vpop.f32.mrb[0].mxu0
    %v6587 = vadd.f32 0.0, %v6586
    %v6588 = vpop.f32.mrb[0].mxu0
    %6589 = vdwg.mxu0
    %v6590 = vmul.f32 %v6509, %v6509
    %v6591 = vsub.f32 %v6587, %v6590
    %v6592 = vmax.f32 %v6591, 0.0
    %v6593 = vld [vmem:[%s89] sm:$0x1]
    %v6594 = vadd.f32 %v6592, 1e-05
    %v6595 = vrsqrt.pop %v6594
    %v6596 = vmul.f32 %v6593, %v6595
    %v6597 = vld [vmem:[%s91] sm:$0x1]
    %v6598 = vmul.f32 %v6509, %v6596
    %v6599 = vsub.f32 %v6597, %v6598
    %v6601 = vlaneseq
    %v6602 = vshrl.u32 %v6601, 7
    %v6603 = vsub.s32 0, %v6602
    %v6604 = vrot.slane %v6596, %v6603
    %v6606 = vmul.f32 %v6418, %v6604
    %v6608 = vlaneseq
    %v6609 = vshrl.u32 %v6608, 7
    %v6610 = vsub.s32 0, %v6609
    %v6611 = vrot.slane %v6599, %v6610
    %v6613 = vadd.f32 %v6606, %v6611
    %v6614 = vmax.f32 %v6613, 0.0
    %6615 = vst [vmem:[#allocation14] sm:$0x3] %v6614
    // Predicated region
    $region214: #{_lambda_.1} parent=1 // pred_check
      _
    $region215: #{_lambda_.1} parent=1 // pred_check_branch
      %6617 = sbr.rel (0) target = $region217
    $region216: #{_lambda_.1} parent=1 // pred_region
      %s6619 = ssub.s32 32, 32
      %6620 = vsyncadd [#allocation4], %s6619
      %s6622 = sshll.u32 [#allocation14], 4
      %s6623 = int_to_ptr.vmem [resolvable:$true] %s6622
      %6625 = dma.vmem_to_hbm [thread:$0]  %s6623, 32, %s93, [#allocation4]
    $region217: #{_lambda_.1} parent=1 // pred_fallthru
      _
    // Predicated region
    $region218: #{_lambda_.1} parent=1 // pred_check
      _
    $region219: #{_lambda_.1} parent=1 // pred_check_branch
      %6627 = sbr.rel (0) target = $region221
    $region220: #{_lambda_.1} parent=1 // pred_region
      %6628 = dma.done [#allocation4], 32
    $region221: #{_lambda_.1} parent=1 // pred_fallthru
      _
    %6629 = vsyncpa [#allocation3], 1
    %6630 = vsyncpa [#allocation6], 1
    %6631 = vsyncpa [#allocation9], 1
    %6632 = vsyncpa [#allocation12], 1
    %6633 = vsyncpa [#allocation4], 1

</llo_original>
